<compile_context>
chip_gen: v6e
topology: v6e:2x2x1
jax: 0.10.0
libtpu: 0.0.40
codegen_flags: <defaults>
</compile_context>

<pallas_src>
import jax
import jax.numpy as jnp
from jax.experimental import pallas as pl
from jax.experimental.pallas import tpu as pltpu

LEAKY_SLOPE = 0.01  # nn.LeakyReLU default negative_slope


# ------------------------------ fused kernel -------------------------------

def _fused_kernel(x_ref, w1_ref, b1_ref, ph1_ref, s1_ref,
                  w2_ref, b2_ref, ph2_ref, s2_ref, wfc_ref, bfc_ref,
                  out_ref, pad1_ref, pad2_ref):
    f32 = jnp.float32
    bf16 = jnp.bfloat16

    # ---- per-sample normalization: (x - mean) / std (unbiased), single pass ----
    xi = x_ref[0]                                   # (32, 96) = 32 rows x (32 W * 3 C)
    n = float(xi.shape[0] * xi.shape[1])            # 3072
    s = jnp.sum(xi, keepdims=True)                  # (1, 1)
    ss = jnp.sum(xi * xi, keepdims=True)
    mean = s * (1.0 / n)
    var = jnp.maximum((ss - n * mean * mean) * (1.0 / (n - 1.0)), 0.0)
    xn = (xi - mean) * jax.lax.rsqrt(var)           # (32, 96) f32
    # TODO(synk): no epsilon, matching torch (x-mean)/std exactly (constant sample -> inf/nan).

    # ---- Conv2d(3,12,k=4,p=1): 16 shifted block-diagonal matmuls, bf16 x bf16 -> f32 ----
    pad1_ref[...] = jnp.zeros(pad1_ref.shape, f32)  # zero padded border (W*C minor layout)
    pad1_ref[1:33, 3:99] = xn
    acc1 = jnp.zeros((31, 384), f32)                # 31 rows x (32 x-groups of 12 channels)
    q = 0
    for ky in range(4):
        for kx in range(4):
            lhs = pad1_ref[ky:ky + 31, 3 * kx:3 * kx + 93].astype(bf16)   # (31, 93)
            acc1 = acc1 + jnp.dot(lhs, w1_ref[q], preferred_element_type=f32)
            q += 1
    c1 = acc1 + b1_ref[...]                         # (31, 384)

    # ---- MaxPool2d(3) then LeakyReLU ----
    m9 = None
    for kh in range(3):
        for kw in range(3):
            t = c1[kh:kh + 28, 12 * kw:12 * kw + 360]
            m9 = t if m9 is None else jnp.maximum(m9, t)                  # (28, 360)
    hp = jnp.dot(ph1_ref[...], m9, preferred_element_type=f32)            # rows 0,3,..27 -> (10, 360)
    h1 = jnp.dot(hp, s1_ref[...], preferred_element_type=f32)             # cols 0,3,..27 -> (10, 120)
    h1 = jnp.where(h1 >= 0.0, h1, LEAKY_SLOPE * h1)
    # TODO(synk): Dropout(p=0.02) treated as identity (inference mode).

    # ---- Conv2d(12,36,k=3,p=1): 9 shifted block-diagonal matmuls ----
    pad2_ref[...] = jnp.zeros(pad2_ref.shape, f32)
    pad2_ref[1:11, 12:132] = h1
    acc2 = jnp.zeros((10, 396), f32)                # 10 rows x (11 x-groups of 36 channels)
    q = 0
    for ky in range(3):
        for kx in range(3):
            lhs = pad2_ref[ky:ky + 10, 12 * kx:12 * kx + 120].astype(bf16)  # (10, 120)
            acc2 = acc2 + jnp.dot(lhs, w2_ref[q], preferred_element_type=f32)
            q += 1
    c2 = acc2 + b2_ref[...]                         # (10, 396)
    c2 = jnp.where(c2 >= 0.0, c2, LEAKY_SLOPE * c2)  # LeakyReLU (before pool at this stage)

    # ---- MaxPool2d(3) ----
    m9b = None
    for kh in range(3):
        for kw in range(3):
            t = c2[kh:kh + 7, 36 * kw:36 * kw + 252]
            m9b = t if m9b is None else jnp.maximum(m9b, t)               # (7, 252)
    hq = jnp.dot(ph2_ref[...], m9b, preferred_element_type=f32)           # (3, 252)
    h2 = jnp.dot(hq, s2_ref[...], preferred_element_type=f32)             # (3, 108): [i, 36*j + co]

    # ---- Flatten (NCHW order folded into packed FC weights) + Linear ----
    accf = bfc_ref[...]                             # (1, out_pad) f32
    for i in range(3):
        accf = accf + jnp.dot(h2[i:i + 1, :], wfc_ref[i], preferred_element_type=f32)
    out_ref[...] = accf[None]                       # lane-dense (1, 1, out_pad) store


# ------------------------------ weight packing ------------------------------

def _pack_params(params, out_pad):
    """Pack PyTorch-layout params into the block-diagonal / selection matrices the kernel uses."""
    f32 = jnp.float32
    w1 = params["w1"].astype(f32)                   # (12, 3, 4, 4)  [co, c, ky, kx]
    w2 = params["w2"].astype(f32)                   # (36, 12, 3, 3)
    wfc = params["wfc"].astype(f32)                 # (out_size, 324)
    out_size = wfc.shape[0]

    # conv1: w1blk[q, 3x + c, 12x' + co] = w1[co, c, ky, kx] * (x == x'),  q = 4*ky + kx
    w1m = jnp.transpose(w1, (2, 3, 1, 0)).reshape(16, 3, 12)
    w1blk = jnp.einsum("xy,qco->qxcyo", jnp.eye(31, 32, dtype=f32), w1m)
    w1blk = w1blk.reshape(16, 93, 384).astype(jnp.bfloat16)
    b1blk = jnp.tile(params["b1"].astype(f32), 32).reshape(1, 384)

    # conv2: w2blk[q, 12x + c, 36x' + co] = w2[co, c, ky, kx] * (x == x'),  q = 3*ky + kx
    w2m = jnp.transpose(w2, (2, 3, 1, 0)).reshape(9, 12, 36)
    w2blk = jnp.einsum("xy,qco->qxcyo", jnp.eye(10, 11, dtype=f32), w2m)
    w2blk = w2blk.reshape(9, 120, 396).astype(jnp.bfloat16)
    b2blk = jnp.concatenate([jnp.tile(params["b2"].astype(f32), 10),
                             jnp.zeros((36,), f32)]).reshape(1, 396)

    # one-hot pooling selection matrices (keep rows / lane-groups 0, 3, 6, ...)
    ph1 = (jnp.arange(28)[None, :] == 3 * jnp.arange(10)[:, None]).astype(f32)    # (10, 28)
    c120 = jnp.arange(120)
    s1 = (jnp.arange(360)[:, None] ==
          (36 * (c120 // 12) + c120 % 12)[None, :]).astype(f32)                   # (360, 120)
    ph2 = (jnp.arange(7)[None, :] == 3 * jnp.arange(3)[:, None]).astype(f32)      # (3, 7)
    c108 = jnp.arange(108)
    s2 = (jnp.arange(252)[:, None] ==
          (108 * (c108 // 36) + c108 % 36)[None, :]).astype(f32)                  # (252, 108)

    # FC: rows reordered to the kernel's [i, 36*j + co] flatten order, columns padded to out_pad
    wfc3 = jnp.transpose(wfc.reshape(out_size, 36, 3, 3), (2, 3, 1, 0)).reshape(3, 108, out_size)
    wfc3 = jnp.pad(wfc3, ((0, 0), (0, 0), (0, out_pad - out_size)))
    bfcp = jnp.pad(params["bfc"].astype(f32), (0, out_pad - out_size)).reshape(1, out_pad)
    return w1blk, b1blk, ph1, s1, w2blk, b2blk, ph2, s2, wfc3, bfcp


# --------------------------------- wrapper ----------------------------------

@jax.jit
def neuralnet_forward(x, params):
    N = x.shape[0]
    out_size = params["wfc"].shape[0]
    out_pad = max(128, ((out_size + 127) // 128) * 128)

    # compact channel-minor tile for the kernel (layout plumbing only; no im2col in HBM)
    x_img = x.reshape(N, 3, 32, 32).transpose(0, 2, 3, 1).reshape(N, 32, 96).astype(jnp.float32)
    (w1blk, b1blk, ph1, s1, w2blk, b2blk, ph2, s2, wfc3, bfcp) = _pack_params(params, out_pad)

    out = pl.pallas_call(
        _fused_kernel,
        grid=(N,),
        in_specs=[
            pl.BlockSpec((1, 32, 96), lambda i: (i, 0, 0)),      # one sample per grid step
            pl.BlockSpec((16, 93, 384), lambda i: (0, 0, 0)),    # constant blocks: DMA'd once
            pl.BlockSpec((1, 384), lambda i: (0, 0)),
            pl.BlockSpec((10, 28), lambda i: (0, 0)),
            pl.BlockSpec((360, 120), lambda i: (0, 0)),
            pl.BlockSpec((9, 120, 396), lambda i: (0, 0, 0)),
            pl.BlockSpec((1, 396), lambda i: (0, 0)),
            pl.BlockSpec((3, 7), lambda i: (0, 0)),
            pl.BlockSpec((252, 108), lambda i: (0, 0)),
            pl.BlockSpec((3, 108, out_pad), lambda i: (0, 0, 0)),
            pl.BlockSpec((1, out_pad), lambda i: (0, 0)),
        ],
        out_specs=pl.BlockSpec((1, 1, out_pad), lambda i: (i, 0, 0)),
        out_shape=jax.ShapeDtypeStruct((N, 1, out_pad), jnp.float32),
        scratch_shapes=[
            pltpu.VMEM((34, 102), jnp.float32),   # padded normalized image: 34 x (34 W * 3 C)
            pltpu.VMEM((12, 144), jnp.float32),   # padded pooled conv1 map: 12 x (12 W * 12 C)
        ],
        compiler_params=pltpu.CompilerParams(
            dimension_semantics=("parallel",),    # batch split across v7x's two TensorCores
        ),
    )(x_img, w1blk, b1blk, ph1, s1, w2blk, b2blk, ph2, s2, wfc3, bfcp)
    return out.reshape(N, out_pad)[:, :out_size]


# ------------------------- plain-JAX reference (check) ----------------------

def neuralnet_reference(x, params):
    N = x.shape[0]
    img = x.reshape(N, 3, 32, 32).astype(jnp.float32)
    m = jnp.mean(img, axis=(1, 2, 3), keepdims=True)
    v = jnp.sum((img - m) ** 2, axis=(1, 2, 3), keepdims=True) / (3 * 32 * 32 - 1)
    img = (img - m) / jnp.sqrt(v)
    c1 = jax.lax.conv_general_dilated(img, params["w1"], (1, 1), [(1, 1), (1, 1)],
                                      dimension_numbers=("NCHW", "OIHW", "NCHW"))
    c1 = c1 + params["b1"].reshape(1, 12, 1, 1)
    p1 = jax.lax.reduce_window(c1, -jnp.inf, jax.lax.max, (1, 1, 3, 3), (1, 1, 3, 3), "VALID")
    a1 = jnp.where(p1 >= 0, p1, LEAKY_SLOPE * p1)
    c2 = jax.lax.conv_general_dilated(a1, params["w2"], (1, 1), [(1, 1), (1, 1)],
                                      dimension_numbers=("NCHW", "OIHW", "NCHW"))
    c2 = c2 + params["b2"].reshape(1, 36, 1, 1)
    a2 = jnp.where(c2 >= 0, c2, LEAKY_SLOPE * c2)
    p2 = jax.lax.reduce_window(a2, -jnp.inf, jax.lax.max, (1, 1, 3, 3), (1, 1, 3, 3), "VALID")
    flat = p2.reshape(N, 324)
    return flat @ params["wfc"].T + params["bfc"]


def init_params(key, out_size):
    k1, k2, k3, k4, k5, k6 = jax.random.split(key, 6)

    def u(k, shape, fan_in):
        bound = 1.0 / float(jnp.sqrt(fan_in))
        return jax.random.uniform(k, shape, jnp.float32, -bound, bound)

    return {
        "w1": u(k1, (12, 3, 4, 4), 3 * 4 * 4),
        "b1": u(k2, (12,), 3 * 4 * 4),
        "w2": u(k3, (36, 12, 3, 3), 12 * 3 * 3),
        "b2": u(k4, (36,), 12 * 3 * 3),
        "wfc": u(k5, (out_size, 324), 324),
        "bfc": u(k6, (out_size,), 324),
    }


if __name__ == "__main__":
    key = jax.random.PRNGKey(0)
    kx, kp = jax.random.split(key)

    N = 2
    in_size = 3 * 32 * 32          # module hardcodes the (3, 32, 32) view
    out_size = 10

    x = jax.random.normal(kx, (N, in_size), jnp.float32)
    params = init_params(kp, out_size)

    y = neuralnet_forward(x, params)
    jax.block_until_ready(y)
    assert y.shape == (N, out_size)
    assert bool(jnp.all(jnp.isfinite(y)))

    # cross-check against a plain-JAX reference (bf16 conv operands -> loose tolerance)
    y_ref = neuralnet_reference(x, params)
    max_err = float(jnp.max(jnp.abs(y - y_ref)))
    assert max_err < 0.15, f"kernel/reference mismatch: max abs err = {max_err}"

    print("KERNEL_OK")
</pallas_src>

<mosaic_0001>
module attributes {stable_mosaic.version = 11 : i64} {
  func.func @_fused_kernel(%arg0: i32, %arg1: memref<1x32x96xf32, #tpu.memory_space<vmem>>, %arg2: memref<16x93x384xbf16, #tpu.memory_space<vmem>>, %arg3: memref<1x384xf32, #tpu.memory_space<vmem>>, %arg4: memref<10x28xf32, #tpu.memory_space<vmem>>, %arg5: memref<360x120xf32, #tpu.memory_space<vmem>>, %arg6: memref<9x120x396xbf16, #tpu.memory_space<vmem>>, %arg7: memref<1x396xf32, #tpu.memory_space<vmem>>, %arg8: memref<3x7xf32, #tpu.memory_space<vmem>>, %arg9: memref<252x108xf32, #tpu.memory_space<vmem>>, %arg10: memref<3x108x128xf32, #tpu.memory_space<vmem>>, %arg11: memref<1x128xf32, #tpu.memory_space<vmem>>, %arg12: memref<1x1x128xf32, #tpu.memory_space<vmem>>, %arg13: memref<34x102xf32, #tpu.memory_space<vmem>>, %arg14: memref<12x144xf32, #tpu.memory_space<vmem>>) attributes {dimension_semantics = [#tpu.dimension_semantics<parallel>], iteration_bounds = array<i64: 2>, scalar_prefetch = 0 : i64, scratch_operands = 2 : i64, tpu.core_type = #tpu.core_type<tc>, window_params = [{transform_indices = @transform_0, window_bounds = array<i64: 1, 32, 96>}, {pipeline_mode = #tpu.pipeline_mode<synchronous>, transform_indices = @transform_1, window_bounds = array<i64: 16, 93, 384>}, {pipeline_mode = #tpu.pipeline_mode<synchronous>, transform_indices = @transform_2, window_bounds = array<i64: 1, 384>}, {pipeline_mode = #tpu.pipeline_mode<synchronous>, transform_indices = @transform_3, window_bounds = array<i64: 10, 28>}, {pipeline_mode = #tpu.pipeline_mode<synchronous>, transform_indices = @transform_4, window_bounds = array<i64: 360, 120>}, {pipeline_mode = #tpu.pipeline_mode<synchronous>, transform_indices = @transform_5, window_bounds = array<i64: 9, 120, 396>}, {pipeline_mode = #tpu.pipeline_mode<synchronous>, transform_indices = @transform_6, window_bounds = array<i64: 1, 396>}, {pipeline_mode = #tpu.pipeline_mode<synchronous>, transform_indices = @transform_7, window_bounds = array<i64: 3, 7>}, {pipeline_mode = #tpu.pipeline_mode<synchronous>, transform_indices = @transform_8, window_bounds = array<i64: 252, 108>}, {pipeline_mode = #tpu.pipeline_mode<synchronous>, transform_indices = @transform_9, window_bounds = array<i64: 3, 108, 128>}, {pipeline_mode = #tpu.pipeline_mode<synchronous>, transform_indices = @transform_10, window_bounds = array<i64: 1, 128>}, {transform_indices = @transform_11, window_bounds = array<i64: 1, 1, 128>}]} {
    %c0 = arith.constant 0 : index
    %c0_0 = arith.constant 0 : index
    %c0_1 = arith.constant 0 : index
    %0 = vector.load %arg1[%c0, %c0_0, %c0_1] : memref<1x32x96xf32, #tpu.memory_space<vmem>>, vector<1x32x96xf32>
    %1 = vector.shape_cast %0 : vector<1x32x96xf32> to vector<32x96xf32>
    %2 = vector.shape_cast %1 : vector<32x96xf32> to vector<1x32x96xf32>
    %cst = arith.constant dense<0.000000e+00> : vector<1xf32>
    %3 = vector.multi_reduction <add>, %2, %cst [1, 2] : vector<1x32x96xf32> to vector<1xf32>
    %4 = vector.shape_cast %3 : vector<1xf32> to vector<1x1x1xf32>
    %5 = vector.extract %4[0, 0, 0] : f32 from vector<1x1x1xf32>
    %6 = vector.broadcast %5 : f32 to vector<1x1xf32>
    %7 = arith.mulf %1, %1 : vector<32x96xf32>
    %8 = vector.shape_cast %7 : vector<32x96xf32> to vector<1x32x96xf32>
    %cst_2 = arith.constant dense<0.000000e+00> : vector<1xf32>
    %9 = vector.multi_reduction <add>, %8, %cst_2 [1, 2] : vector<1x32x96xf32> to vector<1xf32>
    %10 = vector.shape_cast %9 : vector<1xf32> to vector<1x1x1xf32>
    %11 = vector.extract %10[0, 0, 0] : f32 from vector<1x1x1xf32>
    %12 = vector.broadcast %11 : f32 to vector<1x1xf32>
    %cst_3 = arith.constant 3.25520843E-4 : f32
    %13 = vector.broadcast %cst_3 : f32 to vector<1x1xf32>
    %14 = arith.mulf %6, %13 : vector<1x1xf32>
    %cst_4 = arith.constant 3.072000e+03 : f32
    %15 = vector.broadcast %cst_4 : f32 to vector<1x1xf32>
    %16 = arith.mulf %15, %14 : vector<1x1xf32>
    %17 = arith.mulf %16, %14 : vector<1x1xf32>
    %18 = arith.subf %12, %17 : vector<1x1xf32>
    %cst_5 = arith.constant 3.25626839E-4 : f32
    %19 = vector.broadcast %cst_5 : f32 to vector<1x1xf32>
    %20 = arith.mulf %18, %19 : vector<1x1xf32>
    %cst_6 = arith.constant 0.000000e+00 : f32
    %21 = vector.broadcast %cst_6 : f32 to vector<1x1xf32>
    %22 = arith.maximumf %20, %21 : vector<1x1xf32>
    %23 = vector.broadcast %14 : vector<1x1xf32> to vector<32x96xf32>
    %24 = arith.subf %1, %23 : vector<32x96xf32>
    %25 = math.rsqrt %22 : vector<1x1xf32>
    %26 = vector.broadcast %25 : vector<1x1xf32> to vector<32x96xf32>
    %27 = arith.mulf %24, %26 : vector<32x96xf32>
    %cst_7 = arith.constant 0.000000e+00 : f32
    %28 = vector.broadcast %cst_7 : f32 to vector<34x102xf32>
    %c0_8 = arith.constant 0 : index
    %c0_9 = arith.constant 0 : index
    %29 = vector.load %arg13[%c0_8, %c0_9] : memref<34x102xf32, #tpu.memory_space<vmem>>, vector<34x102xf32>
    tpu.vector_store %arg13[%c0_8, %c0_9], %28 {strides = array<i32>} : memref<34x102xf32, #tpu.memory_space<vmem>>, vector<34x102xf32>,
    %c1 = arith.constant 1 : index
    %c3 = arith.constant 3 : index
    %30 = vector.load %arg13[%c1, %c3] : memref<34x102xf32, #tpu.memory_space<vmem>>, vector<32x96xf32>
    tpu.vector_store %arg13[%c1, %c3], %27 {strides = array<i32>} : memref<34x102xf32, #tpu.memory_space<vmem>>, vector<32x96xf32>,
    %cst_10 = arith.constant 0.000000e+00 : f32
    %31 = vector.broadcast %cst_10 : f32 to vector<31x384xf32>
    %c0_11 = arith.constant 0 : index
    %c0_12 = arith.constant 0 : index
    %32 = vector.load %arg13[%c0_11, %c0_12] : memref<34x102xf32, #tpu.memory_space<vmem>>, vector<31x93xf32>
    %33 = arith.truncf %32 : vector<31x93xf32> to vector<31x93xbf16>
    %c0_13 = arith.constant 0 : index
    %c0_14 = arith.constant 0 : index
    %c0_15 = arith.constant 0 : index
    %34 = vector.load %arg2[%c0_13, %c0_14, %c0_15] : memref<16x93x384xbf16, #tpu.memory_space<vmem>>, vector<1x93x384xbf16>
    %35 = vector.shape_cast %34 : vector<1x93x384xbf16> to vector<93x384xbf16>
    %cst_16 = arith.constant dense<0.000000e+00> : vector<31x384xf32>
    %36 = tpu.matmul %33, %35, %cst_16 {dimension_numbers = #tpu.dot_dimension_numbers<[1], [0], [0], [1], [0, 0, 1, 1], [], []>} : vector<31x93xbf16>, vector<93x384xbf16>, vector<31x384xf32> -> vector<31x384xf32>
    %37 = arith.addf %31, %36 : vector<31x384xf32>
    %c0_17 = arith.constant 0 : index
    %c3_18 = arith.constant 3 : index
    %38 = vector.load %arg13[%c0_17, %c3_18] : memref<34x102xf32, #tpu.memory_space<vmem>>, vector<31x93xf32>
    %39 = arith.truncf %38 : vector<31x93xf32> to vector<31x93xbf16>
    %c1_19 = arith.constant 1 : index
    %c0_20 = arith.constant 0 : index
    %c0_21 = arith.constant 0 : index
    %40 = vector.load %arg2[%c1_19, %c0_20, %c0_21] : memref<16x93x384xbf16, #tpu.memory_space<vmem>>, vector<1x93x384xbf16>
    %41 = vector.shape_cast %40 : vector<1x93x384xbf16> to vector<93x384xbf16>
    %cst_22 = arith.constant dense<0.000000e+00> : vector<31x384xf32>
    %42 = tpu.matmul %39, %41, %cst_22 {dimension_numbers = #tpu.dot_dimension_numbers<[1], [0], [0], [1], [0, 0, 1, 1], [], []>} : vector<31x93xbf16>, vector<93x384xbf16>, vector<31x384xf32> -> vector<31x384xf32>
    %43 = arith.addf %37, %42 : vector<31x384xf32>
    %c0_23 = arith.constant 0 : index
    %c6 = arith.constant 6 : index
    %44 = vector.load %arg13[%c0_23, %c6] : memref<34x102xf32, #tpu.memory_space<vmem>>, vector<31x93xf32>
    %45 = arith.truncf %44 : vector<31x93xf32> to vector<31x93xbf16>
    %c2 = arith.constant 2 : index
    %c0_24 = arith.constant 0 : index
    %c0_25 = arith.constant 0 : index
    %46 = vector.load %arg2[%c2, %c0_24, %c0_25] : memref<16x93x384xbf16, #tpu.memory_space<vmem>>, vector<1x93x384xbf16>
    %47 = vector.shape_cast %46 : vector<1x93x384xbf16> to vector<93x384xbf16>
    %cst_26 = arith.constant dense<0.000000e+00> : vector<31x384xf32>
    %48 = tpu.matmul %45, %47, %cst_26 {dimension_numbers = #tpu.dot_dimension_numbers<[1], [0], [0], [1], [0, 0, 1, 1], [], []>} : vector<31x93xbf16>, vector<93x384xbf16>, vector<31x384xf32> -> vector<31x384xf32>
    %49 = arith.addf %43, %48 : vector<31x384xf32>
    %c0_27 = arith.constant 0 : index
    %c9 = arith.constant 9 : index
    %50 = vector.load %arg13[%c0_27, %c9] : memref<34x102xf32, #tpu.memory_space<vmem>>, vector<31x93xf32>
    %51 = arith.truncf %50 : vector<31x93xf32> to vector<31x93xbf16>
    %c3_28 = arith.constant 3 : index
    %c0_29 = arith.constant 0 : index
    %c0_30 = arith.constant 0 : index
    %52 = vector.load %arg2[%c3_28, %c0_29, %c0_30] : memref<16x93x384xbf16, #tpu.memory_space<vmem>>, vector<1x93x384xbf16>
    %53 = vector.shape_cast %52 : vector<1x93x384xbf16> to vector<93x384xbf16>
    %cst_31 = arith.constant dense<0.000000e+00> : vector<31x384xf32>
    %54 = tpu.matmul %51, %53, %cst_31 {dimension_numbers = #tpu.dot_dimension_numbers<[1], [0], [0], [1], [0, 0, 1, 1], [], []>} : vector<31x93xbf16>, vector<93x384xbf16>, vector<31x384xf32> -> vector<31x384xf32>
    %55 = arith.addf %49, %54 : vector<31x384xf32>
    %c1_32 = arith.constant 1 : index
    %c0_33 = arith.constant 0 : index
    %56 = vector.load %arg13[%c1_32, %c0_33] : memref<34x102xf32, #tpu.memory_space<vmem>>, vector<31x93xf32>
    %57 = arith.truncf %56 : vector<31x93xf32> to vector<31x93xbf16>
    %c4 = arith.constant 4 : index
    %c0_34 = arith.constant 0 : index
    %c0_35 = arith.constant 0 : index
    %58 = vector.load %arg2[%c4, %c0_34, %c0_35] : memref<16x93x384xbf16, #tpu.memory_space<vmem>>, vector<1x93x384xbf16>
    %59 = vector.shape_cast %58 : vector<1x93x384xbf16> to vector<93x384xbf16>
    %cst_36 = arith.constant dense<0.000000e+00> : vector<31x384xf32>
    %60 = tpu.matmul %57, %59, %cst_36 {dimension_numbers = #tpu.dot_dimension_numbers<[1], [0], [0], [1], [0, 0, 1, 1], [], []>} : vector<31x93xbf16>, vector<93x384xbf16>, vector<31x384xf32> -> vector<31x384xf32>
    %61 = arith.addf %55, %60 : vector<31x384xf32>
    %c1_37 = arith.constant 1 : index
    %c3_38 = arith.constant 3 : index
    %62 = vector.load %arg13[%c1_37, %c3_38] : memref<34x102xf32, #tpu.memory_space<vmem>>, vector<31x93xf32>
    %63 = arith.truncf %62 : vector<31x93xf32> to vector<31x93xbf16>
    %c5 = arith.constant 5 : index
    %c0_39 = arith.constant 0 : index
    %c0_40 = arith.constant 0 : index
    %64 = vector.load %arg2[%c5, %c0_39, %c0_40] : memref<16x93x384xbf16, #tpu.memory_space<vmem>>, vector<1x93x384xbf16>
    %65 = vector.shape_cast %64 : vector<1x93x384xbf16> to vector<93x384xbf16>
    %cst_41 = arith.constant dense<0.000000e+00> : vector<31x384xf32>
    %66 = tpu.matmul %63, %65, %cst_41 {dimension_numbers = #tpu.dot_dimension_numbers<[1], [0], [0], [1], [0, 0, 1, 1], [], []>} : vector<31x93xbf16>, vector<93x384xbf16>, vector<31x384xf32> -> vector<31x384xf32>
    %67 = arith.addf %61, %66 : vector<31x384xf32>
    %c1_42 = arith.constant 1 : index
    %c6_43 = arith.constant 6 : index
    %68 = vector.load %arg13[%c1_42, %c6_43] : memref<34x102xf32, #tpu.memory_space<vmem>>, vector<31x93xf32>
    %69 = arith.truncf %68 : vector<31x93xf32> to vector<31x93xbf16>
    %c6_44 = arith.constant 6 : index
    %c0_45 = arith.constant 0 : index
    %c0_46 = arith.constant 0 : index
    %70 = vector.load %arg2[%c6_44, %c0_45, %c0_46] : memref<16x93x384xbf16, #tpu.memory_space<vmem>>, vector<1x93x384xbf16>
    %71 = vector.shape_cast %70 : vector<1x93x384xbf16> to vector<93x384xbf16>
    %cst_47 = arith.constant dense<0.000000e+00> : vector<31x384xf32>
    %72 = tpu.matmul %69, %71, %cst_47 {dimension_numbers = #tpu.dot_dimension_numbers<[1], [0], [0], [1], [0, 0, 1, 1], [], []>} : vector<31x93xbf16>, vector<93x384xbf16>, vector<31x384xf32> -> vector<31x384xf32>
    %73 = arith.addf %67, %72 : vector<31x384xf32>
    %c1_48 = arith.constant 1 : index
    %c9_49 = arith.constant 9 : index
    %74 = vector.load %arg13[%c1_48, %c9_49] : memref<34x102xf32, #tpu.memory_space<vmem>>, vector<31x93xf32>
    %75 = arith.truncf %74 : vector<31x93xf32> to vector<31x93xbf16>
    %c7 = arith.constant 7 : index
    %c0_50 = arith.constant 0 : index
    %c0_51 = arith.constant 0 : index
    %76 = vector.load %arg2[%c7, %c0_50, %c0_51] : memref<16x93x384xbf16, #tpu.memory_space<vmem>>, vector<1x93x384xbf16>
    %77 = vector.shape_cast %76 : vector<1x93x384xbf16> to vector<93x384xbf16>
    %cst_52 = arith.constant dense<0.000000e+00> : vector<31x384xf32>
    %78 = tpu.matmul %75, %77, %cst_52 {dimension_numbers = #tpu.dot_dimension_numbers<[1], [0], [0], [1], [0, 0, 1, 1], [], []>} : vector<31x93xbf16>, vector<93x384xbf16>, vector<31x384xf32> -> vector<31x384xf32>
    %79 = arith.addf %73, %78 : vector<31x384xf32>
    %c2_53 = arith.constant 2 : index
    %c0_54 = arith.constant 0 : index
    %80 = vector.load %arg13[%c2_53, %c0_54] : memref<34x102xf32, #tpu.memory_space<vmem>>, vector<31x93xf32>
    %81 = arith.truncf %80 : vector<31x93xf32> to vector<31x93xbf16>
    %c8 = arith.constant 8 : index
    %c0_55 = arith.constant 0 : index
    %c0_56 = arith.constant 0 : index
    %82 = vector.load %arg2[%c8, %c0_55, %c0_56] : memref<16x93x384xbf16, #tpu.memory_space<vmem>>, vector<1x93x384xbf16>
    %83 = vector.shape_cast %82 : vector<1x93x384xbf16> to vector<93x384xbf16>
    %cst_57 = arith.constant dense<0.000000e+00> : vector<31x384xf32>
    %84 = tpu.matmul %81, %83, %cst_57 {dimension_numbers = #tpu.dot_dimension_numbers<[1], [0], [0], [1], [0, 0, 1, 1], [], []>} : vector<31x93xbf16>, vector<93x384xbf16>, vector<31x384xf32> -> vector<31x384xf32>
    %85 = arith.addf %79, %84 : vector<31x384xf32>
    %c2_58 = arith.constant 2 : index
    %c3_59 = arith.constant 3 : index
    %86 = vector.load %arg13[%c2_58, %c3_59] : memref<34x102xf32, #tpu.memory_space<vmem>>, vector<31x93xf32>
    %87 = arith.truncf %86 : vector<31x93xf32> to vector<31x93xbf16>
    %c9_60 = arith.constant 9 : index
    %c0_61 = arith.constant 0 : index
    %c0_62 = arith.constant 0 : index
    %88 = vector.load %arg2[%c9_60, %c0_61, %c0_62] : memref<16x93x384xbf16, #tpu.memory_space<vmem>>, vector<1x93x384xbf16>
    %89 = vector.shape_cast %88 : vector<1x93x384xbf16> to vector<93x384xbf16>
    %cst_63 = arith.constant dense<0.000000e+00> : vector<31x384xf32>
    %90 = tpu.matmul %87, %89, %cst_63 {dimension_numbers = #tpu.dot_dimension_numbers<[1], [0], [0], [1], [0, 0, 1, 1], [], []>} : vector<31x93xbf16>, vector<93x384xbf16>, vector<31x384xf32> -> vector<31x384xf32>
    %91 = arith.addf %85, %90 : vector<31x384xf32>
    %c2_64 = arith.constant 2 : index
    %c6_65 = arith.constant 6 : index
    %92 = vector.load %arg13[%c2_64, %c6_65] : memref<34x102xf32, #tpu.memory_space<vmem>>, vector<31x93xf32>
    %93 = arith.truncf %92 : vector<31x93xf32> to vector<31x93xbf16>
    %c10 = arith.constant 10 : index
    %c0_66 = arith.constant 0 : index
    %c0_67 = arith.constant 0 : index
    %94 = vector.load %arg2[%c10, %c0_66, %c0_67] : memref<16x93x384xbf16, #tpu.memory_space<vmem>>, vector<1x93x384xbf16>
    %95 = vector.shape_cast %94 : vector<1x93x384xbf16> to vector<93x384xbf16>
    %cst_68 = arith.constant dense<0.000000e+00> : vector<31x384xf32>
    %96 = tpu.matmul %93, %95, %cst_68 {dimension_numbers = #tpu.dot_dimension_numbers<[1], [0], [0], [1], [0, 0, 1, 1], [], []>} : vector<31x93xbf16>, vector<93x384xbf16>, vector<31x384xf32> -> vector<31x384xf32>
    %97 = arith.addf %91, %96 : vector<31x384xf32>
    %c2_69 = arith.constant 2 : index
    %c9_70 = arith.constant 9 : index
    %98 = vector.load %arg13[%c2_69, %c9_70] : memref<34x102xf32, #tpu.memory_space<vmem>>, vector<31x93xf32>
    %99 = arith.truncf %98 : vector<31x93xf32> to vector<31x93xbf16>
    %c11 = arith.constant 11 : index
    %c0_71 = arith.constant 0 : index
    %c0_72 = arith.constant 0 : index
    %100 = vector.load %arg2[%c11, %c0_71, %c0_72] : memref<16x93x384xbf16, #tpu.memory_space<vmem>>, vector<1x93x384xbf16>
    %101 = vector.shape_cast %100 : vector<1x93x384xbf16> to vector<93x384xbf16>
    %cst_73 = arith.constant dense<0.000000e+00> : vector<31x384xf32>
    %102 = tpu.matmul %99, %101, %cst_73 {dimension_numbers = #tpu.dot_dimension_numbers<[1], [0], [0], [1], [0, 0, 1, 1], [], []>} : vector<31x93xbf16>, vector<93x384xbf16>, vector<31x384xf32> -> vector<31x384xf32>
    %103 = arith.addf %97, %102 : vector<31x384xf32>
    %c3_74 = arith.constant 3 : index
    %c0_75 = arith.constant 0 : index
    %104 = vector.load %arg13[%c3_74, %c0_75] : memref<34x102xf32, #tpu.memory_space<vmem>>, vector<31x93xf32>
    %105 = arith.truncf %104 : vector<31x93xf32> to vector<31x93xbf16>
    %c12 = arith.constant 12 : index
    %c0_76 = arith.constant 0 : index
    %c0_77 = arith.constant 0 : index
    %106 = vector.load %arg2[%c12, %c0_76, %c0_77] : memref<16x93x384xbf16, #tpu.memory_space<vmem>>, vector<1x93x384xbf16>
    %107 = vector.shape_cast %106 : vector<1x93x384xbf16> to vector<93x384xbf16>
    %cst_78 = arith.constant dense<0.000000e+00> : vector<31x384xf32>
    %108 = tpu.matmul %105, %107, %cst_78 {dimension_numbers = #tpu.dot_dimension_numbers<[1], [0], [0], [1], [0, 0, 1, 1], [], []>} : vector<31x93xbf16>, vector<93x384xbf16>, vector<31x384xf32> -> vector<31x384xf32>
    %109 = arith.addf %103, %108 : vector<31x384xf32>
    %c3_79 = arith.constant 3 : index
    %c3_80 = arith.constant 3 : index
    %110 = vector.load %arg13[%c3_79, %c3_80] : memref<34x102xf32, #tpu.memory_space<vmem>>, vector<31x93xf32>
    %111 = arith.truncf %110 : vector<31x93xf32> to vector<31x93xbf16>
    %c13 = arith.constant 13 : index
    %c0_81 = arith.constant 0 : index
    %c0_82 = arith.constant 0 : index
    %112 = vector.load %arg2[%c13, %c0_81, %c0_82] : memref<16x93x384xbf16, #tpu.memory_space<vmem>>, vector<1x93x384xbf16>
    %113 = vector.shape_cast %112 : vector<1x93x384xbf16> to vector<93x384xbf16>
    %cst_83 = arith.constant dense<0.000000e+00> : vector<31x384xf32>
    %114 = tpu.matmul %111, %113, %cst_83 {dimension_numbers = #tpu.dot_dimension_numbers<[1], [0], [0], [1], [0, 0, 1, 1], [], []>} : vector<31x93xbf16>, vector<93x384xbf16>, vector<31x384xf32> -> vector<31x384xf32>
    %115 = arith.addf %109, %114 : vector<31x384xf32>
    %c3_84 = arith.constant 3 : index
    %c6_85 = arith.constant 6 : index
    %116 = vector.load %arg13[%c3_84, %c6_85] : memref<34x102xf32, #tpu.memory_space<vmem>>, vector<31x93xf32>
    %117 = arith.truncf %116 : vector<31x93xf32> to vector<31x93xbf16>
    %c14 = arith.constant 14 : index
    %c0_86 = arith.constant 0 : index
    %c0_87 = arith.constant 0 : index
    %118 = vector.load %arg2[%c14, %c0_86, %c0_87] : memref<16x93x384xbf16, #tpu.memory_space<vmem>>, vector<1x93x384xbf16>
    %119 = vector.shape_cast %118 : vector<1x93x384xbf16> to vector<93x384xbf16>
    %cst_88 = arith.constant dense<0.000000e+00> : vector<31x384xf32>
    %120 = tpu.matmul %117, %119, %cst_88 {dimension_numbers = #tpu.dot_dimension_numbers<[1], [0], [0], [1], [0, 0, 1, 1], [], []>} : vector<31x93xbf16>, vector<93x384xbf16>, vector<31x384xf32> -> vector<31x384xf32>
    %121 = arith.addf %115, %120 : vector<31x384xf32>
    %c3_89 = arith.constant 3 : index
    %c9_90 = arith.constant 9 : index
    %122 = vector.load %arg13[%c3_89, %c9_90] : memref<34x102xf32, #tpu.memory_space<vmem>>, vector<31x93xf32>
    %123 = arith.truncf %122 : vector<31x93xf32> to vector<31x93xbf16>
    %c15 = arith.constant 15 : index
    %c0_91 = arith.constant 0 : index
    %c0_92 = arith.constant 0 : index
    %124 = vector.load %arg2[%c15, %c0_91, %c0_92] : memref<16x93x384xbf16, #tpu.memory_space<vmem>>, vector<1x93x384xbf16>
    %125 = vector.shape_cast %124 : vector<1x93x384xbf16> to vector<93x384xbf16>
    %cst_93 = arith.constant dense<0.000000e+00> : vector<31x384xf32>
    %126 = tpu.matmul %123, %125, %cst_93 {dimension_numbers = #tpu.dot_dimension_numbers<[1], [0], [0], [1], [0, 0, 1, 1], [], []>} : vector<31x93xbf16>, vector<93x384xbf16>, vector<31x384xf32> -> vector<31x384xf32>
    %127 = arith.addf %121, %126 : vector<31x384xf32>
    %c0_94 = arith.constant 0 : index
    %c0_95 = arith.constant 0 : index
    %128 = vector.load %arg3[%c0_94, %c0_95] : memref<1x384xf32, #tpu.memory_space<vmem>>, vector<1x384xf32>
    %129 = vector.broadcast %128 : vector<1x384xf32> to vector<31x384xf32>
    %130 = arith.addf %127, %129 : vector<31x384xf32>
    %131 = vector.extract_strided_slice %130 {offsets = [0, 0], sizes = [28, 360], strides = [1, 1]} : vector<31x384xf32> to vector<28x360xf32>
    %132 = vector.extract_strided_slice %130 {offsets = [0, 12], sizes = [28, 360], strides = [1, 1]} : vector<31x384xf32> to vector<28x360xf32>
    %133 = arith.maximumf %131, %132 : vector<28x360xf32>
    %134 = vector.extract_strided_slice %130 {offsets = [0, 24], sizes = [28, 360], strides = [1, 1]} : vector<31x384xf32> to vector<28x360xf32>
    %135 = arith.maximumf %133, %134 : vector<28x360xf32>
    %136 = vector.extract_strided_slice %130 {offsets = [1, 0], sizes = [28, 360], strides = [1, 1]} : vector<31x384xf32> to vector<28x360xf32>
    %137 = arith.maximumf %135, %136 : vector<28x360xf32>
    %138 = vector.extract_strided_slice %130 {offsets = [1, 12], sizes = [28, 360], strides = [1, 1]} : vector<31x384xf32> to vector<28x360xf32>
    %139 = arith.maximumf %137, %138 : vector<28x360xf32>
    %140 = vector.extract_strided_slice %130 {offsets = [1, 24], sizes = [28, 360], strides = [1, 1]} : vector<31x384xf32> to vector<28x360xf32>
    %141 = arith.maximumf %139, %140 : vector<28x360xf32>
    %142 = vector.extract_strided_slice %130 {offsets = [2, 0], sizes = [28, 360], strides = [1, 1]} : vector<31x384xf32> to vector<28x360xf32>
    %143 = arith.maximumf %141, %142 : vector<28x360xf32>
    %144 = vector.extract_strided_slice %130 {offsets = [2, 12], sizes = [28, 360], strides = [1, 1]} : vector<31x384xf32> to vector<28x360xf32>
    %145 = arith.maximumf %143, %144 : vector<28x360xf32>
    %146 = vector.extract_strided_slice %130 {offsets = [2, 24], sizes = [28, 360], strides = [1, 1]} : vector<31x384xf32> to vector<28x360xf32>
    %147 = arith.maximumf %145, %146 : vector<28x360xf32>
    %c0_96 = arith.constant 0 : index
    %c0_97 = arith.constant 0 : index
    %148 = vector.load %arg4[%c0_96, %c0_97] : memref<10x28xf32, #tpu.memory_space<vmem>>, vector<10x28xf32>
    %cst_98 = arith.constant dense<0.000000e+00> : vector<10x360xf32>
    %149 = tpu.matmul %148, %147, %cst_98 {dimension_numbers = #tpu.dot_dimension_numbers<[1], [0], [0], [1], [0, 0, 1, 1], [], []>} : vector<10x28xf32>, vector<28x360xf32>, vector<10x360xf32> -> vector<10x360xf32>
    %c0_99 = arith.constant 0 : index
    %c0_100 = arith.constant 0 : index
    %150 = vector.load %arg5[%c0_99, %c0_100] : memref<360x120xf32, #tpu.memory_space<vmem>>, vector<360x120xf32>
    %cst_101 = arith.constant dense<0.000000e+00> : vector<10x120xf32>
    %151 = tpu.matmul %149, %150, %cst_101 {dimension_numbers = #tpu.dot_dimension_numbers<[1], [0], [0], [1], [0, 0, 1, 1], [], []>} : vector<10x360xf32>, vector<360x120xf32>, vector<10x120xf32> -> vector<10x120xf32>
    %cst_102 = arith.constant 0.000000e+00 : f32
    %152 = vector.broadcast %cst_102 : f32 to vector<10x120xf32>
    %153 = arith.cmpf oge, %151, %152 : vector<10x120xf32>
    %cst_103 = arith.constant 0.00999999977 : f32
    %154 = vector.broadcast %cst_103 : f32 to vector<10x120xf32>
    %155 = arith.mulf %154, %151 : vector<10x120xf32>
    %156 = arith.select %153, %151, %155 : vector<10x120xi1>, vector<10x120xf32>
    %cst_104 = arith.constant 0.000000e+00 : f32
    %157 = vector.broadcast %cst_104 : f32 to vector<12x144xf32>
    %c0_105 = arith.constant 0 : index
    %c0_106 = arith.constant 0 : index
    %158 = vector.load %arg14[%c0_105, %c0_106] : memref<12x144xf32, #tpu.memory_space<vmem>>, vector<12x144xf32>
    tpu.vector_store %arg14[%c0_105, %c0_106], %157 {strides = array<i32>} : memref<12x144xf32, #tpu.memory_space<vmem>>, vector<12x144xf32>,
    %c1_107 = arith.constant 1 : index
    %c12_108 = arith.constant 12 : index
    %159 = vector.load %arg14[%c1_107, %c12_108] : memref<12x144xf32, #tpu.memory_space<vmem>>, vector<10x120xf32>
    tpu.vector_store %arg14[%c1_107, %c12_108], %156 {strides = array<i32>} : memref<12x144xf32, #tpu.memory_space<vmem>>, vector<10x120xf32>,
    %cst_109 = arith.constant 0.000000e+00 : f32
    %160 = vector.broadcast %cst_109 : f32 to vector<10x396xf32>
    %c0_110 = arith.constant 0 : index
    %c0_111 = arith.constant 0 : index
    %161 = vector.load %arg14[%c0_110, %c0_111] : memref<12x144xf32, #tpu.memory_space<vmem>>, vector<10x120xf32>
    %162 = arith.truncf %161 : vector<10x120xf32> to vector<10x120xbf16>
    %c0_112 = arith.constant 0 : index
    %c0_113 = arith.constant 0 : index
    %c0_114 = arith.constant 0 : index
    %163 = vector.load %arg6[%c0_112, %c0_113, %c0_114] : memref<9x120x396xbf16, #tpu.memory_space<vmem>>, vector<1x120x396xbf16>
    %164 = vector.shape_cast %163 : vector<1x120x396xbf16> to vector<120x396xbf16>
    %cst_115 = arith.constant dense<0.000000e+00> : vector<10x396xf32>
    %165 = tpu.matmul %162, %164, %cst_115 {dimension_numbers = #tpu.dot_dimension_numbers<[1], [0], [0], [1], [0, 0, 1, 1], [], []>} : vector<10x120xbf16>, vector<120x396xbf16>, vector<10x396xf32> -> vector<10x396xf32>
    %166 = arith.addf %160, %165 : vector<10x396xf32>
    %c0_116 = arith.constant 0 : index
    %c12_117 = arith.constant 12 : index
    %167 = vector.load %arg14[%c0_116, %c12_117] : memref<12x144xf32, #tpu.memory_space<vmem>>, vector<10x120xf32>
    %168 = arith.truncf %167 : vector<10x120xf32> to vector<10x120xbf16>
    %c1_118 = arith.constant 1 : index
    %c0_119 = arith.constant 0 : index
    %c0_120 = arith.constant 0 : index
    %169 = vector.load %arg6[%c1_118, %c0_119, %c0_120] : memref<9x120x396xbf16, #tpu.memory_space<vmem>>, vector<1x120x396xbf16>
    %170 = vector.shape_cast %169 : vector<1x120x396xbf16> to vector<120x396xbf16>
    %cst_121 = arith.constant dense<0.000000e+00> : vector<10x396xf32>
    %171 = tpu.matmul %168, %170, %cst_121 {dimension_numbers = #tpu.dot_dimension_numbers<[1], [0], [0], [1], [0, 0, 1, 1], [], []>} : vector<10x120xbf16>, vector<120x396xbf16>, vector<10x396xf32> -> vector<10x396xf32>
    %172 = arith.addf %166, %171 : vector<10x396xf32>
    %c0_122 = arith.constant 0 : index
    %c24 = arith.constant 24 : index
    %173 = vector.load %arg14[%c0_122, %c24] : memref<12x144xf32, #tpu.memory_space<vmem>>, vector<10x120xf32>
    %174 = arith.truncf %173 : vector<10x120xf32> to vector<10x120xbf16>
    %c2_123 = arith.constant 2 : index
    %c0_124 = arith.constant 0 : index
    %c0_125 = arith.constant 0 : index
    %175 = vector.load %arg6[%c2_123, %c0_124, %c0_125] : memref<9x120x396xbf16, #tpu.memory_space<vmem>>, vector<1x120x396xbf16>
    %176 = vector.shape_cast %175 : vector<1x120x396xbf16> to vector<120x396xbf16>
    %cst_126 = arith.constant dense<0.000000e+00> : vector<10x396xf32>
    %177 = tpu.matmul %174, %176, %cst_126 {dimension_numbers = #tpu.dot_dimension_numbers<[1], [0], [0], [1], [0, 0, 1, 1], [], []>} : vector<10x120xbf16>, vector<120x396xbf16>, vector<10x396xf32> -> vector<10x396xf32>
    %178 = arith.addf %172, %177 : vector<10x396xf32>
    %c1_127 = arith.constant 1 : index
    %c0_128 = arith.constant 0 : index
    %179 = vector.load %arg14[%c1_127, %c0_128] : memref<12x144xf32, #tpu.memory_space<vmem>>, vector<10x120xf32>
    %180 = arith.truncf %179 : vector<10x120xf32> to vector<10x120xbf16>
    %c3_129 = arith.constant 3 : index
    %c0_130 = arith.constant 0 : index
    %c0_131 = arith.constant 0 : index
    %181 = vector.load %arg6[%c3_129, %c0_130, %c0_131] : memref<9x120x396xbf16, #tpu.memory_space<vmem>>, vector<1x120x396xbf16>
    %182 = vector.shape_cast %181 : vector<1x120x396xbf16> to vector<120x396xbf16>
    %cst_132 = arith.constant dense<0.000000e+00> : vector<10x396xf32>
    %183 = tpu.matmul %180, %182, %cst_132 {dimension_numbers = #tpu.dot_dimension_numbers<[1], [0], [0], [1], [0, 0, 1, 1], [], []>} : vector<10x120xbf16>, vector<120x396xbf16>, vector<10x396xf32> -> vector<10x396xf32>
    %184 = arith.addf %178, %183 : vector<10x396xf32>
    %c1_133 = arith.constant 1 : index
    %c12_134 = arith.constant 12 : index
    %185 = vector.load %arg14[%c1_133, %c12_134] : memref<12x144xf32, #tpu.memory_space<vmem>>, vector<10x120xf32>
    %186 = arith.truncf %185 : vector<10x120xf32> to vector<10x120xbf16>
    %c4_135 = arith.constant 4 : index
    %c0_136 = arith.constant 0 : index
    %c0_137 = arith.constant 0 : index
    %187 = vector.load %arg6[%c4_135, %c0_136, %c0_137] : memref<9x120x396xbf16, #tpu.memory_space<vmem>>, vector<1x120x396xbf16>
    %188 = vector.shape_cast %187 : vector<1x120x396xbf16> to vector<120x396xbf16>
    %cst_138 = arith.constant dense<0.000000e+00> : vector<10x396xf32>
    %189 = tpu.matmul %186, %188, %cst_138 {dimension_numbers = #tpu.dot_dimension_numbers<[1], [0], [0], [1], [0, 0, 1, 1], [], []>} : vector<10x120xbf16>, vector<120x396xbf16>, vector<10x396xf32> -> vector<10x396xf32>
    %190 = arith.addf %184, %189 : vector<10x396xf32>
    %c1_139 = arith.constant 1 : index
    %c24_140 = arith.constant 24 : index
    %191 = vector.load %arg14[%c1_139, %c24_140] : memref<12x144xf32, #tpu.memory_space<vmem>>, vector<10x120xf32>
    %192 = arith.truncf %191 : vector<10x120xf32> to vector<10x120xbf16>
    %c5_141 = arith.constant 5 : index
    %c0_142 = arith.constant 0 : index
    %c0_143 = arith.constant 0 : index
    %193 = vector.load %arg6[%c5_141, %c0_142, %c0_143] : memref<9x120x396xbf16, #tpu.memory_space<vmem>>, vector<1x120x396xbf16>
    %194 = vector.shape_cast %193 : vector<1x120x396xbf16> to vector<120x396xbf16>
    %cst_144 = arith.constant dense<0.000000e+00> : vector<10x396xf32>
    %195 = tpu.matmul %192, %194, %cst_144 {dimension_numbers = #tpu.dot_dimension_numbers<[1], [0], [0], [1], [0, 0, 1, 1], [], []>} : vector<10x120xbf16>, vector<120x396xbf16>, vector<10x396xf32> -> vector<10x396xf32>
    %196 = arith.addf %190, %195 : vector<10x396xf32>
    %c2_145 = arith.constant 2 : index
    %c0_146 = arith.constant 0 : index
    %197 = vector.load %arg14[%c2_145, %c0_146] : memref<12x144xf32, #tpu.memory_space<vmem>>, vector<10x120xf32>
    %198 = arith.truncf %197 : vector<10x120xf32> to vector<10x120xbf16>
    %c6_147 = arith.constant 6 : index
    %c0_148 = arith.constant 0 : index
    %c0_149 = arith.constant 0 : index
    %199 = vector.load %arg6[%c6_147, %c0_148, %c0_149] : memref<9x120x396xbf16, #tpu.memory_space<vmem>>, vector<1x120x396xbf16>
    %200 = vector.shape_cast %199 : vector<1x120x396xbf16> to vector<120x396xbf16>
    %cst_150 = arith.constant dense<0.000000e+00> : vector<10x396xf32>
    %201 = tpu.matmul %198, %200, %cst_150 {dimension_numbers = #tpu.dot_dimension_numbers<[1], [0], [0], [1], [0, 0, 1, 1], [], []>} : vector<10x120xbf16>, vector<120x396xbf16>, vector<10x396xf32> -> vector<10x396xf32>
    %202 = arith.addf %196, %201 : vector<10x396xf32>
    %c2_151 = arith.constant 2 : index
    %c12_152 = arith.constant 12 : index
    %203 = vector.load %arg14[%c2_151, %c12_152] : memref<12x144xf32, #tpu.memory_space<vmem>>, vector<10x120xf32>
    %204 = arith.truncf %203 : vector<10x120xf32> to vector<10x120xbf16>
    %c7_153 = arith.constant 7 : index
    %c0_154 = arith.constant 0 : index
    %c0_155 = arith.constant 0 : index
    %205 = vector.load %arg6[%c7_153, %c0_154, %c0_155] : memref<9x120x396xbf16, #tpu.memory_space<vmem>>, vector<1x120x396xbf16>
    %206 = vector.shape_cast %205 : vector<1x120x396xbf16> to vector<120x396xbf16>
    %cst_156 = arith.constant dense<0.000000e+00> : vector<10x396xf32>
    %207 = tpu.matmul %204, %206, %cst_156 {dimension_numbers = #tpu.dot_dimension_numbers<[1], [0], [0], [1], [0, 0, 1, 1], [], []>} : vector<10x120xbf16>, vector<120x396xbf16>, vector<10x396xf32> -> vector<10x396xf32>
    %208 = arith.addf %202, %207 : vector<10x396xf32>
    %c2_157 = arith.constant 2 : index
    %c24_158 = arith.constant 24 : index
    %209 = vector.load %arg14[%c2_157, %c24_158] : memref<12x144xf32, #tpu.memory_space<vmem>>, vector<10x120xf32>
    %210 = arith.truncf %209 : vector<10x120xf32> to vector<10x120xbf16>
    %c8_159 = arith.constant 8 : index
    %c0_160 = arith.constant 0 : index
    %c0_161 = arith.constant 0 : index
    %211 = vector.load %arg6[%c8_159, %c0_160, %c0_161] : memref<9x120x396xbf16, #tpu.memory_space<vmem>>, vector<1x120x396xbf16>
    %212 = vector.shape_cast %211 : vector<1x120x396xbf16> to vector<120x396xbf16>
    %cst_162 = arith.constant dense<0.000000e+00> : vector<10x396xf32>
    %213 = tpu.matmul %210, %212, %cst_162 {dimension_numbers = #tpu.dot_dimension_numbers<[1], [0], [0], [1], [0, 0, 1, 1], [], []>} : vector<10x120xbf16>, vector<120x396xbf16>, vector<10x396xf32> -> vector<10x396xf32>
    %214 = arith.addf %208, %213 : vector<10x396xf32>
    %c0_163 = arith.constant 0 : index
    %c0_164 = arith.constant 0 : index
    %215 = vector.load %arg7[%c0_163, %c0_164] : memref<1x396xf32, #tpu.memory_space<vmem>>, vector<1x396xf32>
    %216 = vector.broadcast %215 : vector<1x396xf32> to vector<10x396xf32>
    %217 = arith.addf %214, %216 : vector<10x396xf32>
    %cst_165 = arith.constant 0.000000e+00 : f32
    %218 = vector.broadcast %cst_165 : f32 to vector<10x396xf32>
    %219 = arith.cmpf oge, %217, %218 : vector<10x396xf32>
    %cst_166 = arith.constant 0.00999999977 : f32
    %220 = vector.broadcast %cst_166 : f32 to vector<10x396xf32>
    %221 = arith.mulf %220, %217 : vector<10x396xf32>
    %222 = arith.select %219, %217, %221 : vector<10x396xi1>, vector<10x396xf32>
    %223 = vector.extract_strided_slice %222 {offsets = [0, 0], sizes = [7, 252], strides = [1, 1]} : vector<10x396xf32> to vector<7x252xf32>
    %224 = vector.extract_strided_slice %222 {offsets = [0, 36], sizes = [7, 252], strides = [1, 1]} : vector<10x396xf32> to vector<7x252xf32>
    %225 = arith.maximumf %223, %224 : vector<7x252xf32>
    %226 = vector.extract_strided_slice %222 {offsets = [0, 72], sizes = [7, 252], strides = [1, 1]} : vector<10x396xf32> to vector<7x252xf32>
    %227 = arith.maximumf %225, %226 : vector<7x252xf32>
    %228 = vector.extract_strided_slice %222 {offsets = [1, 0], sizes = [7, 252], strides = [1, 1]} : vector<10x396xf32> to vector<7x252xf32>
    %229 = arith.maximumf %227, %228 : vector<7x252xf32>
    %230 = vector.extract_strided_slice %222 {offsets = [1, 36], sizes = [7, 252], strides = [1, 1]} : vector<10x396xf32> to vector<7x252xf32>
    %231 = arith.maximumf %229, %230 : vector<7x252xf32>
    %232 = vector.extract_strided_slice %222 {offsets = [1, 72], sizes = [7, 252], strides = [1, 1]} : vector<10x396xf32> to vector<7x252xf32>
    %233 = arith.maximumf %231, %232 : vector<7x252xf32>
    %234 = vector.extract_strided_slice %222 {offsets = [2, 0], sizes = [7, 252], strides = [1, 1]} : vector<10x396xf32> to vector<7x252xf32>
    %235 = arith.maximumf %233, %234 : vector<7x252xf32>
    %236 = vector.extract_strided_slice %222 {offsets = [2, 36], sizes = [7, 252], strides = [1, 1]} : vector<10x396xf32> to vector<7x252xf32>
    %237 = arith.maximumf %235, %236 : vector<7x252xf32>
    %238 = vector.extract_strided_slice %222 {offsets = [2, 72], sizes = [7, 252], strides = [1, 1]} : vector<10x396xf32> to vector<7x252xf32>
    %239 = arith.maximumf %237, %238 : vector<7x252xf32>
    %c0_167 = arith.constant 0 : index
    %c0_168 = arith.constant 0 : index
    %240 = vector.load %arg8[%c0_167, %c0_168] : memref<3x7xf32, #tpu.memory_space<vmem>>, vector<3x7xf32>
    %cst_169 = arith.constant dense<0.000000e+00> : vector<3x252xf32>
    %241 = tpu.matmul %240, %239, %cst_169 {dimension_numbers = #tpu.dot_dimension_numbers<[1], [0], [0], [1], [0, 0, 1, 1], [], []>} : vector<3x7xf32>, vector<7x252xf32>, vector<3x252xf32> -> vector<3x252xf32>
    %c0_170 = arith.constant 0 : index
    %c0_171 = arith.constant 0 : index
    %242 = vector.load %arg9[%c0_170, %c0_171] : memref<252x108xf32, #tpu.memory_space<vmem>>, vector<252x108xf32>
    %cst_172 = arith.constant dense<0.000000e+00> : vector<3x108xf32>
    %243 = tpu.matmul %241, %242, %cst_172 {dimension_numbers = #tpu.dot_dimension_numbers<[1], [0], [0], [1], [0, 0, 1, 1], [], []>} : vector<3x252xf32>, vector<252x108xf32>, vector<3x108xf32> -> vector<3x108xf32>
    %c0_173 = arith.constant 0 : index
    %c0_174 = arith.constant 0 : index
    %244 = vector.load %arg11[%c0_173, %c0_174] : memref<1x128xf32, #tpu.memory_space<vmem>>, vector<1x128xf32>
    %245 = vector.extract_strided_slice %243 {offsets = [0, 0], sizes = [1, 108], strides = [1, 1]} : vector<3x108xf32> to vector<1x108xf32>
    %c0_175 = arith.constant 0 : index
    %c0_176 = arith.constant 0 : index
    %c0_177 = arith.constant 0 : index
    %246 = vector.load %arg10[%c0_175, %c0_176, %c0_177] : memref<3x108x128xf32, #tpu.memory_space<vmem>>, vector<1x108x128xf32>
    %247 = vector.shape_cast %246 : vector<1x108x128xf32> to vector<108x128xf32>
    %cst_178 = arith.constant dense<0.000000e+00> : vector<1x128xf32>
    %248 = tpu.matmul %245, %247, %cst_178 {dimension_numbers = #tpu.dot_dimension_numbers<[1], [0], [0], [1], [0, 0, 1, 1], [], []>} : vector<1x108xf32>, vector<108x128xf32>, vector<1x128xf32> -> vector<1x128xf32>
    %249 = arith.addf %244, %248 : vector<1x128xf32>
    %250 = vector.extract_strided_slice %243 {offsets = [1, 0], sizes = [1, 108], strides = [1, 1]} : vector<3x108xf32> to vector<1x108xf32>
    %c1_179 = arith.constant 1 : index
    %c0_180 = arith.constant 0 : index
    %c0_181 = arith.constant 0 : index
    %251 = vector.load %arg10[%c1_179, %c0_180, %c0_181] : memref<3x108x128xf32, #tpu.memory_space<vmem>>, vector<1x108x128xf32>
    %252 = vector.shape_cast %251 : vector<1x108x128xf32> to vector<108x128xf32>
    %cst_182 = arith.constant dense<0.000000e+00> : vector<1x128xf32>
    %253 = tpu.matmul %250, %252, %cst_182 {dimension_numbers = #tpu.dot_dimension_numbers<[1], [0], [0], [1], [0, 0, 1, 1], [], []>} : vector<1x108xf32>, vector<108x128xf32>, vector<1x128xf32> -> vector<1x128xf32>
    %254 = arith.addf %249, %253 : vector<1x128xf32>
    %255 = vector.extract_strided_slice %243 {offsets = [2, 0], sizes = [1, 108], strides = [1, 1]} : vector<3x108xf32> to vector<1x108xf32>
    %c2_183 = arith.constant 2 : index
    %c0_184 = arith.constant 0 : index
    %c0_185 = arith.constant 0 : index
    %256 = vector.load %arg10[%c2_183, %c0_184, %c0_185] : memref<3x108x128xf32, #tpu.memory_space<vmem>>, vector<1x108x128xf32>
    %257 = vector.shape_cast %256 : vector<1x108x128xf32> to vector<108x128xf32>
    %cst_186 = arith.constant dense<0.000000e+00> : vector<1x128xf32>
    %258 = tpu.matmul %255, %257, %cst_186 {dimension_numbers = #tpu.dot_dimension_numbers<[1], [0], [0], [1], [0, 0, 1, 1], [], []>} : vector<1x108xf32>, vector<108x128xf32>, vector<1x128xf32> -> vector<1x128xf32>
    %259 = arith.addf %254, %258 : vector<1x128xf32>
    %260 = vector.shape_cast %259 : vector<1x128xf32> to vector<1x1x128xf32>
    %c0_187 = arith.constant 0 : index
    %c0_188 = arith.constant 0 : index
    %c0_189 = arith.constant 0 : index
    %261 = vector.load %arg12[%c0_187, %c0_188, %c0_189] : memref<1x1x128xf32, #tpu.memory_space<vmem>>, vector<1x1x128xf32>
    tpu.vector_store %arg12[%c0_187, %c0_188, %c0_189], %260 {strides = array<i32>} : memref<1x1x128xf32, #tpu.memory_space<vmem>>, vector<1x1x128xf32>,
    return
  }
  func.func @transform_0(%arg0: i32) -> (i32, i32, i32) {
    %c0_i32 = arith.constant 0 : i32
    %c0_i32_0 = arith.constant 0 : i32
    %c0_i32_1 = arith.constant 0 : i32
    return %arg0, %c0_i32, %c0_i32_0 : i32, i32, i32
  }
  func.func @transform_1(%arg0: i32) -> (i32, i32, i32) {
    %c0_i32 = arith.constant 0 : i32
    %c0_i32_0 = arith.constant 0 : i32
    %c0_i32_1 = arith.constant 0 : i32
    %c0_i32_2 = arith.constant 0 : i32
    return %c0_i32, %c0_i32_0, %c0_i32_1 : i32, i32, i32
  }
  func.func @transform_2(%arg0: i32) -> (i32, i32) {
    %c0_i32 = arith.constant 0 : i32
    %c0_i32_0 = arith.constant 0 : i32
    %c0_i32_1 = arith.constant 0 : i32
    return %c0_i32, %c0_i32_0 : i32, i32
  }
  func.func @transform_3(%arg0: i32) -> (i32, i32) {
    %c0_i32 = arith.constant 0 : i32
    %c0_i32_0 = arith.constant 0 : i32
    %c0_i32_1 = arith.constant 0 : i32
    return %c0_i32, %c0_i32_0 : i32, i32
  }
  func.func @transform_4(%arg0: i32) -> (i32, i32) {
    %c0_i32 = arith.constant 0 : i32
    %c0_i32_0 = arith.constant 0 : i32
    %c0_i32_1 = arith.constant 0 : i32
    return %c0_i32, %c0_i32_0 : i32, i32
  }
  func.func @transform_5(%arg0: i32) -> (i32, i32, i32) {
    %c0_i32 = arith.constant 0 : i32
    %c0_i32_0 = arith.constant 0 : i32
    %c0_i32_1 = arith.constant 0 : i32
    %c0_i32_2 = arith.constant 0 : i32
    return %c0_i32, %c0_i32_0, %c0_i32_1 : i32, i32, i32
  }
  func.func @transform_6(%arg0: i32) -> (i32, i32) {
    %c0_i32 = arith.constant 0 : i32
    %c0_i32_0 = arith.constant 0 : i32
    %c0_i32_1 = arith.constant 0 : i32
    return %c0_i32, %c0_i32_0 : i32, i32
  }
  func.func @transform_7(%arg0: i32) -> (i32, i32) {
    %c0_i32 = arith.constant 0 : i32
    %c0_i32_0 = arith.constant 0 : i32
    %c0_i32_1 = arith.constant 0 : i32
    return %c0_i32, %c0_i32_0 : i32, i32
  }
  func.func @transform_8(%arg0: i32) -> (i32, i32) {
    %c0_i32 = arith.constant 0 : i32
    %c0_i32_0 = arith.constant 0 : i32
    %c0_i32_1 = arith.constant 0 : i32
    return %c0_i32, %c0_i32_0 : i32, i32
  }
  func.func @transform_9(%arg0: i32) -> (i32, i32, i32) {
    %c0_i32 = arith.constant 0 : i32
    %c0_i32_0 = arith.constant 0 : i32
    %c0_i32_1 = arith.constant 0 : i32
    %c0_i32_2 = arith.constant 0 : i32
    return %c0_i32, %c0_i32_0, %c0_i32_1 : i32, i32, i32
  }
  func.func @transform_10(%arg0: i32) -> (i32, i32) {
    %c0_i32 = arith.constant 0 : i32
    %c0_i32_0 = arith.constant 0 : i32
    %c0_i32_1 = arith.constant 0 : i32
    return %c0_i32, %c0_i32_0 : i32, i32
  }
  func.func @transform_11(%arg0: i32) -> (i32, i32, i32) {
    %c0_i32 = arith.constant 0 : i32
    %c0_i32_0 = arith.constant 0 : i32
    %c0_i32_1 = arith.constant 0 : i32
    return %arg0, %c0_i32, %c0_i32_0 : i32, i32, i32
  }
}

</mosaic_0001>

<llo_original>
// kernel: tile.13
$region0: #{tile.13}
  #allocation0 [shape = 's32[1]{0}', space=sflag, size = 0x4, scoped, tag = 'scoped memory for tile.13']
  %s0 = inlined_call_operand.vmem [shape: f32[12], index: 0, kind: input, shape index: {}]
  %s1 = inlined_call_operand.vmem [shape: f32[32,12], index: 1, kind: output, shape index: {}]
  // Predicated region
  $region2: #{tile.13} parent=0 // pred_check
    _
  $region3: #{tile.13} parent=0 // pred_check_branch
    %3 = sbr.rel (0) target = $region5
  $region4: #{tile.13} parent=0 // pred_region
    _
  $region5: #{tile.13} parent=0 // pred_fallthru
    _
  %v4 = vld [vmem:[%s0] ss:$0 sm:$0xff]
  %5 = vst [vmem:[%s1] sm:$0xff] %v4
  %s6 = scalar_lea.vmem %s1, 8
  %7 = vst [vmem:[%s6] sm:$0xff] %v4
  %s8 = scalar_lea.vmem %s1, 16
  %9 = vst [vmem:[%s8] sm:$0xff] %v4
  %s10 = scalar_lea.vmem %s1, 24
  %11 = vst [vmem:[%s10] sm:$0xff] %v4

// kernel: tile.14
$region0: #{tile.14}
  %s0 = inlined_call_operand.vmem [shape: f32[32,12], index: 0, kind: input, shape index: {}]
  %s1 = inlined_call_operand.vmem [shape: f32[1,384], index: 1, kind: output, shape index: {}]
  $region1: #{tile.14} parent=0
    #allocation0 [shape = 'u8[12288]{0}', space=vmem, size = 0x3000, scoped, tag = 'scoped mem for output reshape']
    %v2 = vld [vmem:[%s0] sm:$0x1]
    %vm3 = vcmask 97280
    %4 = vst.msk [vmem:[#allocation0] sm:$0x1] %vm3, %v2
    %s5 = scalar_lea.vmem %s0, 21
    %v6 = vld [vmem:[%s5] sm:$0x1]
    %s7 = scalar_lea.vmem %s0, 21
    %v8 = vld [vmem:[%s7] sm:$0x1]
    %vm9 = vcmask 31744
    %v10 = vsel %vm9, %v8, %v6
    %11 = vrot.lane.b32.xlu0 %v10, 124
    %v12 = vpop.permute.xlu0 %11
    %vm13 = vcmask 64512
    %s14 = scalar_lea.vmem [#allocation0], 16
    %15 = vst.msk [vmem:[%s14] sm:$0x1] %vm13, %v12
    %vm16 = vcmask 1048544
    %s17 = scalar_lea.vmem [#allocation0], 8
    %18 = vst.msk [vmem:[%s17] sm:$0x1] %vm16, %v12
    %s19 = scalar_lea.vmem %s0, 10
    %v20 = vld [vmem:[%s19] sm:$0x1]
    %s21 = scalar_lea.vmem %s0, 10
    %v22 = vld [vmem:[%s21] sm:$0x1]
    %vm23 = vcmask 64512
    %v24 = vsel %vm23, %v22, %v20
    %25 = vrot.lane.b32.xlu0 %v24, 120
    %v26 = vpop.permute.xlu0 %25
    %vm27 = vcmask 31744
    %s28 = scalar_lea.vmem [#allocation0], 8
    %29 = vst.msk [vmem:[%s28] sm:$0x1] %vm27, %v26
    %vm30 = vcmask 1048512
    %31 = vst.msk [vmem:[#allocation0] sm:$0x1] %vm30, %v26
    %s32 = scalar_lea.vmem %s0, 31
    %v33 = vld [vmem:[%s32] sm:$0x1]
    %34 = vrot.lane.b32.xlu0 %v33, 116
    %v35 = vpop.permute.xlu0 %34
    %vm36 = vcmask 1048480
    %s37 = scalar_lea.vmem [#allocation0], 16
    %38 = vst.msk [vmem:[%s37] sm:$0x1] %vm36, %v35
    %s39 = scalar_lea.vmem %s0, 20
    %v40 = vld [vmem:[%s39] sm:$0x1]
    %41 = vrot.lane.b32.xlu0 %v40, 112
    %v42 = vpop.permute.xlu0 %41
    %vm43 = vcmask 1015680
    %s44 = scalar_lea.vmem [#allocation0], 8
    %45 = vst.msk [vmem:[%s44] sm:$0x1] %vm43, %v42
    %s46 = scalar_lea.vmem %s0, 9
    %v47 = vld [vmem:[%s46] sm:$0x1]
    %48 = vrot.lane.b32.xlu0 %v47, 108
    %v49 = vpop.permute.xlu0 %48
    %vm50 = vcmask 982880
    %51 = vst.msk [vmem:[#allocation0] sm:$0x1] %vm50, %v49
    %s52 = scalar_lea.vmem %s0, 30
    %v53 = vld [vmem:[%s52] sm:$0x1]
    %54 = vrot.lane.b32.xlu0 %v53, 104
    %v55 = vpop.permute.xlu0 %54
    %vm56 = vcmask 950080
    %s57 = scalar_lea.vmem [#allocation0], 16
    %58 = vst.msk [vmem:[%s57] sm:$0x1] %vm56, %v55
    %s59 = scalar_lea.vmem %s0, 19
    %v60 = vld [vmem:[%s59] sm:$0x1]
    %61 = vrot.lane.b32.xlu0 %v60, 100
    %v62 = vpop.permute.xlu0 %61
    %vm63 = vcmask 917280
    %s64 = scalar_lea.vmem [#allocation0], 8
    %65 = vst.msk [vmem:[%s64] sm:$0x1] %vm63, %v62
    %s66 = scalar_lea.vmem %s0, 8
    %v67 = vld [vmem:[%s66] sm:$0x1]
    %68 = vrot.lane.b32.xlu0 %v67, 96
    %v69 = vpop.permute.xlu0 %68
    %vm70 = vcmask 884480
    %71 = vst.msk [vmem:[#allocation0] sm:$0x1] %vm70, %v69
    %s72 = scalar_lea.vmem %s0, 29
    %v73 = vld [vmem:[%s72] sm:$0x1]
    %74 = vrot.lane.b32.xlu0 %v73, 92
    %v75 = vpop.permute.xlu0 %74
    %vm76 = vcmask 851680
    %s77 = scalar_lea.vmem [#allocation0], 16
    %78 = vst.msk [vmem:[%s77] sm:$0x1] %vm76, %v75
    %s79 = scalar_lea.vmem %s0, 18
    %v80 = vld [vmem:[%s79] sm:$0x1]
    %81 = vrot.lane.b32.xlu0 %v80, 88
    %v82 = vpop.permute.xlu0 %81
    %vm83 = vcmask 818880
    %s84 = scalar_lea.vmem [#allocation0], 8
    %85 = vst.msk [vmem:[%s84] sm:$0x1] %vm83, %v82
    %s86 = scalar_lea.vmem %s0, 7
    %v87 = vld [vmem:[%s86] sm:$0x1]
    %88 = vrot.lane.b32.xlu0 %v87, 84
    %v89 = vpop.permute.xlu0 %88
    %vm90 = vcmask 786080
    %91 = vst.msk [vmem:[#allocation0] sm:$0x1] %vm90, %v89
    %s92 = scalar_lea.vmem %s0, 28
    %v93 = vld [vmem:[%s92] sm:$0x1]
    %94 = vrot.lane.b32.xlu0 %v93, 80
    %v95 = vpop.permute.xlu0 %94
    %vm96 = vcmask 753280
    %s97 = scalar_lea.vmem [#allocation0], 16
    %98 = vst.msk [vmem:[%s97] sm:$0x1] %vm96, %v95
    %s99 = scalar_lea.vmem %s0, 17
    %v100 = vld [vmem:[%s99] sm:$0x1]
    %101 = vrot.lane.b32.xlu0 %v100, 76
    %v102 = vpop.permute.xlu0 %101
    %vm103 = vcmask 720480
    %s104 = scalar_lea.vmem [#allocation0], 8
    %105 = vst.msk [vmem:[%s104] sm:$0x1] %vm103, %v102
    %s106 = scalar_lea.vmem %s0, 6
    %v107 = vld [vmem:[%s106] sm:$0x1]
    %108 = vrot.lane.b32.xlu0 %v107, 72
    %v109 = vpop.permute.xlu0 %108
    %vm110 = vcmask 687680
    %111 = vst.msk [vmem:[#allocation0] sm:$0x1] %vm110, %v109
    %s112 = scalar_lea.vmem %s0, 27
    %v113 = vld [vmem:[%s112] sm:$0x1]
    %114 = vrot.lane.b32.xlu0 %v113, 68
    %v115 = vpop.permute.xlu0 %114
    %vm116 = vcmask 654880
    %s117 = scalar_lea.vmem [#allocation0], 16
    %118 = vst.msk [vmem:[%s117] sm:$0x1] %vm116, %v115
    %s119 = scalar_lea.vmem %s0, 16
    %v120 = vld [vmem:[%s119] sm:$0x1]
    %121 = vrot.lane.b32.xlu0 %v120, 64
    %v122 = vpop.permute.xlu0 %121
    %vm123 = vcmask 622080
    %s124 = scalar_lea.vmem [#allocation0], 8
    %125 = vst.msk [vmem:[%s124] sm:$0x1] %vm123, %v122
    %s126 = scalar_lea.vmem %s0, 5
    %v127 = vld [vmem:[%s126] sm:$0x1]
    %128 = vrot.lane.b32.xlu0 %v127, 60
    %v129 = vpop.permute.xlu0 %128
    %vm130 = vcmask 589280
    %131 = vst.msk [vmem:[#allocation0] sm:$0x1] %vm130, %v129
    %s132 = scalar_lea.vmem %s0, 26
    %v133 = vld [vmem:[%s132] sm:$0x1]
    %134 = vrot.lane.b32.xlu0 %v133, 56
    %v135 = vpop.permute.xlu0 %134
    %vm136 = vcmask 556480
    %s137 = scalar_lea.vmem [#allocation0], 16
    %138 = vst.msk [vmem:[%s137] sm:$0x1] %vm136, %v135
    %s139 = scalar_lea.vmem %s0, 15
    %v140 = vld [vmem:[%s139] sm:$0x1]
    %141 = vrot.lane.b32.xlu0 %v140, 52
    %v142 = vpop.permute.xlu0 %141
    %vm143 = vcmask 523680
    %s144 = scalar_lea.vmem [#allocation0], 8
    %145 = vst.msk [vmem:[%s144] sm:$0x1] %vm143, %v142
    %s146 = scalar_lea.vmem %s0, 4
    %v147 = vld [vmem:[%s146] sm:$0x1]
    %148 = vrot.lane.b32.xlu0 %v147, 48
    %v149 = vpop.permute.xlu0 %148
    %vm150 = vcmask 490880
    %151 = vst.msk [vmem:[#allocation0] sm:$0x1] %vm150, %v149
    %s152 = scalar_lea.vmem %s0, 25
    %v153 = vld [vmem:[%s152] sm:$0x1]
    %154 = vrot.lane.b32.xlu0 %v153, 44
    %v155 = vpop.permute.xlu0 %154
    %vm156 = vcmask 458080
    %s157 = scalar_lea.vmem [#allocation0], 16
    %158 = vst.msk [vmem:[%s157] sm:$0x1] %vm156, %v155
    %s159 = scalar_lea.vmem %s0, 14
    %v160 = vld [vmem:[%s159] sm:$0x1]
    %161 = vrot.lane.b32.xlu0 %v160, 40
    %v162 = vpop.permute.xlu0 %161
    %vm163 = vcmask 425280
    %s164 = scalar_lea.vmem [#allocation0], 8
    %165 = vst.msk [vmem:[%s164] sm:$0x1] %vm163, %v162
    %s166 = scalar_lea.vmem %s0, 3
    %v167 = vld [vmem:[%s166] sm:$0x1]
    %168 = vrot.lane.b32.xlu0 %v167, 36
    %v169 = vpop.permute.xlu0 %168
    %vm170 = vcmask 392480
    %171 = vst.msk [vmem:[#allocation0] sm:$0x1] %vm170, %v169
    %s172 = scalar_lea.vmem %s0, 24
    %v173 = vld [vmem:[%s172] sm:$0x1]
    %174 = vrot.lane.b32.xlu0 %v173, 32
    %v175 = vpop.permute.xlu0 %174
    %vm176 = vcmask 359680
    %s177 = scalar_lea.vmem [#allocation0], 16
    %178 = vst.msk [vmem:[%s177] sm:$0x1] %vm176, %v175
    %s179 = scalar_lea.vmem %s0, 13
    %v180 = vld [vmem:[%s179] sm:$0x1]
    %181 = vrot.lane.b32.xlu0 %v180, 28
    %v182 = vpop.permute.xlu0 %181
    %vm183 = vcmask 326880
    %s184 = scalar_lea.vmem [#allocation0], 8
    %185 = vst.msk [vmem:[%s184] sm:$0x1] %vm183, %v182
    %s186 = scalar_lea.vmem %s0, 2
    %v187 = vld [vmem:[%s186] sm:$0x1]
    %188 = vrot.lane.b32.xlu0 %v187, 24
    %v189 = vpop.permute.xlu0 %188
    %vm190 = vcmask 294080
    %191 = vst.msk [vmem:[#allocation0] sm:$0x1] %vm190, %v189
    %s192 = scalar_lea.vmem %s0, 23
    %v193 = vld [vmem:[%s192] sm:$0x1]
    %194 = vrot.lane.b32.xlu0 %v193, 20
    %v195 = vpop.permute.xlu0 %194
    %vm196 = vcmask 261280
    %s197 = scalar_lea.vmem [#allocation0], 16
    %198 = vst.msk [vmem:[%s197] sm:$0x1] %vm196, %v195
    %s199 = scalar_lea.vmem %s0, 12
    %v200 = vld [vmem:[%s199] sm:$0x1]
    %201 = vrot.lane.b32.xlu0 %v200, 16
    %v202 = vpop.permute.xlu0 %201
    %vm203 = vcmask 228480
    %s204 = scalar_lea.vmem [#allocation0], 8
    %205 = vst.msk [vmem:[%s204] sm:$0x1] %vm203, %v202
    %s206 = scalar_lea.vmem %s0, 1
    %v207 = vld [vmem:[%s206] sm:$0x1]
    %208 = vrot.lane.b32.xlu0 %v207, 12
    %v209 = vpop.permute.xlu0 %208
    %vm210 = vcmask 195680
    %211 = vst.msk [vmem:[#allocation0] sm:$0x1] %vm210, %v209
    %s212 = scalar_lea.vmem %s0, 22
    %v213 = vld [vmem:[%s212] sm:$0x1]
    %214 = vrot.lane.b32.xlu0 %v213, 8
    %v215 = vpop.permute.xlu0 %214
    %vm216 = vcmask 162880
    %s217 = scalar_lea.vmem [#allocation0], 16
    %218 = vst.msk [vmem:[%s217] sm:$0x1] %vm216, %v215
    %s219 = scalar_lea.vmem %s0, 11
    %v220 = vld [vmem:[%s219] sm:$0x1]
    %221 = vrot.lane.b32.xlu0 %v220, 4
    %v222 = vpop.permute.xlu0 %221
    %vm223 = vcmask 130080
    %s224 = scalar_lea.vmem [#allocation0], 8
    %225 = vst.msk [vmem:[%s224] sm:$0x1] %vm223, %v222
    %s227 = sshll.u32 1, 1
    %s228 = ssub.s32 %s227, 1
    %v230 = vld [vmem:[#allocation0] sm:%s228]
    %s231 = sshll.u32 1, 1
    %s232 = ssub.s32 %s231, 1
    %233 = vst [vmem:[%s1] sm:%s232] %v230
    %s234 = scalar_lea.vmem [#allocation0], 8
    %v235 = vld [vmem:[%s234] sm:%s228]
    %s236 = sshll.u32 1, 1
    %s237 = ssub.s32 %s236, 1
    %s238 = scalar_lea.vmem %s1, 1
    %239 = vst [vmem:[%s238] sm:%s237] %v235
    %s240 = scalar_lea.vmem [#allocation0], 16
    %v241 = vld [vmem:[%s240] sm:%s228]
    %s242 = sshll.u32 1, 1
    %s243 = ssub.s32 %s242, 1
    %s244 = smul.addr 1, 2
    %s245 = scalar_lea.vmem %s1, %s244
    %246 = vst [vmem:[%s245] sm:%s243] %v241

// kernel: tile.18
$region0: #{tile.18}
  #allocation0 [shape = 's32[1]{0}', space=sflag, size = 0x4, scoped, tag = 'scoped memory for tile.18']
  %s0 = inlined_call_operand.vmem [shape: f32[36], index: 0, kind: input, shape index: {}]
  %s1 = inlined_call_operand.vmem [shape: f32[10,36], index: 1, kind: output, shape index: {}]
  // Predicated region
  $region2: #{tile.18} parent=0 // pred_check
    _
  $region3: #{tile.18} parent=0 // pred_check_branch
    %3 = sbr.rel (0) target = $region5
  $region4: #{tile.18} parent=0 // pred_region
    _
  $region5: #{tile.18} parent=0 // pred_fallthru
    _
  %v4 = vld [vmem:[%s0] ss:$0 sm:$0xff]
  %5 = vst [vmem:[%s1] sm:$0xff] %v4
  %s6 = scalar_lea.vmem %s1, 8
  %7 = vst [vmem:[%s6] sm:$0xff] %v4

// kernel: tile.19
$region0: #{tile.19}
  %s0 = inlined_call_operand.vmem [shape: f32[10,36], index: 0, kind: input, shape index: {}]
  %s1 = inlined_call_operand.vmem [shape: f32[360], index: 1, kind: output, shape index: {}]
  $region1: #{tile.19} parent=0
    #allocation0 [shape = 'u8[4096]{0}', space=vmem, size = 0x1000, scoped, tag = 'scoped mem for output reshape']
    %v2 = vld [vmem:[%s0] sm:$0x1]
    %vm3 = vcmask 293888
    %4 = vst.msk [vmem:[#allocation0] sm:$0x1] %vm3, %v2
    %s5 = scalar_lea.vmem %s0, 7
    %v6 = vld [vmem:[%s5] sm:$0x1]
    %s7 = scalar_lea.vmem %s0, 7
    %v8 = vld [vmem:[%s7] sm:$0x1]
    %vm9 = vcmask 31744
    %v10 = vsel %vm9, %v8, %v6
    %11 = vrot.lane.b32.xlu0 %v10, 124
    %v12 = vpop.permute.xlu0 %11
    %vm13 = vcmask 261120
    %s14 = scalar_lea.vmem [#allocation0], 2
    %15 = vst.msk [vmem:[%s14] sm:$0x1] %vm13, %v12
    %vm16 = vcmask 1048544
    %s17 = scalar_lea.vmem [#allocation0], 1
    %18 = vst.msk [vmem:[%s17] sm:$0x1] %vm16, %v12
    %s19 = scalar_lea.vmem %s0, 3
    %v20 = vld [vmem:[%s19] sm:$0x1]
    %s21 = scalar_lea.vmem %s0, 3
    %v22 = vld [vmem:[%s21] sm:$0x1]
    %vm23 = vcmask 162816
    %v24 = vsel %vm23, %v22, %v20
    %25 = vrot.lane.b32.xlu0 %v24, 108
    %v26 = vpop.permute.xlu0 %25
    %vm27 = vcmask 130048
    %s28 = scalar_lea.vmem [#allocation0], 1
    %29 = vst.msk [vmem:[%s28] sm:$0x1] %vm27, %v26
    %vm30 = vcmask 1048416
    %31 = vst.msk [vmem:[#allocation0] sm:$0x1] %vm30, %v26
    %s32 = scalar_lea.vmem %s0, 6
    %v33 = vld [vmem:[%s32] sm:$0x1]
    %34 = vrot.lane.b32.xlu0 %v33, 88
    %v35 = vpop.permute.xlu0 %34
    %vm36 = vcmask 1015488
    %s37 = scalar_lea.vmem [#allocation0], 1
    %38 = vst.msk [vmem:[%s37] sm:$0x1] %vm36, %v35
    %s39 = scalar_lea.vmem %s0, 2
    %v40 = vld [vmem:[%s39] sm:$0x1]
    %41 = vrot.lane.b32.xlu0 %v40, 72
    %v42 = vpop.permute.xlu0 %41
    %vm43 = vcmask 884288
    %44 = vst.msk [vmem:[#allocation0] sm:$0x1] %vm43, %v42
    %s45 = scalar_lea.vmem %s0, 9
    %v46 = vld [vmem:[%s45] sm:$0x1]
    %47 = vrot.lane.b32.xlu0 %v46, 68
    %v48 = vpop.permute.xlu0 %47
    %vm49 = vcmask 851488
    %s50 = scalar_lea.vmem [#allocation0], 2
    %51 = vst.msk [vmem:[%s50] sm:$0x1] %vm49, %v48
    %s52 = scalar_lea.vmem %s0, 5
    %v53 = vld [vmem:[%s52] sm:$0x1]
    %54 = vrot.lane.b32.xlu0 %v53, 52
    %v55 = vpop.permute.xlu0 %54
    %vm56 = vcmask 720288
    %s57 = scalar_lea.vmem [#allocation0], 1
    %58 = vst.msk [vmem:[%s57] sm:$0x1] %vm56, %v55
    %s59 = scalar_lea.vmem %s0, 1
    %v60 = vld [vmem:[%s59] sm:$0x1]
    %61 = vrot.lane.b32.xlu0 %v60, 36
    %v62 = vpop.permute.xlu0 %61
    %vm63 = vcmask 589088
    %64 = vst.msk [vmem:[#allocation0] sm:$0x1] %vm63, %v62
    %s65 = scalar_lea.vmem %s0, 8
    %v66 = vld [vmem:[%s65] sm:$0x1]
    %67 = vrot.lane.b32.xlu0 %v66, 32
    %v68 = vpop.permute.xlu0 %67
    %vm69 = vcmask 556288
    %s70 = scalar_lea.vmem [#allocation0], 2
    %71 = vst.msk [vmem:[%s70] sm:$0x1] %vm69, %v68
    %s72 = scalar_lea.vmem %s0, 4
    %v73 = vld [vmem:[%s72] sm:$0x1]
    %74 = vrot.lane.b32.xlu0 %v73, 16
    %v75 = vpop.permute.xlu0 %74
    %vm76 = vcmask 425088
    %s77 = scalar_lea.vmem [#allocation0], 1
    %78 = vst.msk [vmem:[%s77] sm:$0x1] %vm76, %v75
    %s80 = sshll.u32 1, 4
    %s81 = ssub.s32 %s80, 1
    %v83 = vld [vmem:[#allocation0] sm:%s81]
    %s84 = sshll.u32 1, 4
    %s85 = ssub.s32 %s84, 1
    %86 = vst [vmem:[%s1] sm:%s85] %v83

// kernel: neuralnet_forward.1
$region0: #{neuralnet_forward.1}
  #allocation0 [shape = 'u32[]', space=smem, size = 0x4, offset = 0x4, fixed_abs, tag = 'smem constant byte address 0x4 - core index']
  #allocation1 [shape = 'u32[144,128]{1,0:T(1,128)}', space=vmem, size = 0x12000, scoped, tag = 'internal scratch']
  #allocation2 [shape = 'f32[34,102]{1,0:T(8,128)}', space=vmem, size = 0x5000, scoped, tag = 'scratch operand']
  #allocation3 [shape = 'f32[12,144]{1,0:T(8,128)}', space=vmem, size = 0x4000, scoped, tag = 'scratch operand']
  %s0 = inlined_call_operand.vmem [shape: f32[2,32,96], index: 0, kind: input, shape index: {}]
  %s1 = inlined_call_operand.vmem [shape: bf16[16,93,384], index: 1, kind: input, shape index: {}]
  %s2 = inlined_call_operand.vmem [shape: f32[1,384], index: 2, kind: input, shape index: {}]
  %s3 = inlined_call_operand.vmem [shape: f32[10,28], index: 3, kind: input, shape index: {}]
  %s4 = inlined_call_operand.vmem [shape: f32[360,120], index: 4, kind: input, shape index: {}]
  %s5 = inlined_call_operand.vmem [shape: bf16[9,120,396], index: 5, kind: input, shape index: {}]
  %s6 = inlined_call_operand.vmem [shape: f32[1,396], index: 6, kind: input, shape index: {}]
  %s7 = inlined_call_operand.vmem [shape: f32[3,7], index: 7, kind: input, shape index: {}]
  %s8 = inlined_call_operand.vmem [shape: f32[252,108], index: 8, kind: input, shape index: {}]
  %s9 = inlined_call_operand.vmem [shape: f32[3,108,128], index: 9, kind: input, shape index: {}]
  %s10 = inlined_call_operand.vmem [shape: f32[1,128], index: 10, kind: input, shape index: {}]
  %s11 = inlined_call_operand.hbm [shape: f32[2,1,128], index: 11, kind: output, shape index: {}]
  %s12 = sld [smem:[#allocation0]]
  $region77: #{neuralnet_forward.1} parent=0
    _
  %s14 = ssub.s32 1, %s12
  %s15 = scalar_select 0, %s14, %s12
  $region1: #{neuralnet_forward.1} parent=0
    #allocation4 [shape = 'u8[1024]{0}', space=vmem, size = 0x400, scoped, tag = 'output window, operand 0']
    #allocation5 [shape = 's32[2]{0}', space=sflag, size = 0x8, scoped, tag = 'scoped memory for neuralnet_forward.1']
    %16 = vsyncpa [#allocation5], 0
    %s17 = scalar_lea.sflag [#allocation5], 1
    %18 = vsyncpa %s17, 0
    loop: start=0, step=1, limit=4
    $region2: #{neuralnet_forward.1} parent=1 // loop_pre_header
      _
    $region3: #{neuralnet_forward.1} parent=1 // loop_header
      %s20 = sphi 0, %s24
      %p21 = scmp.ge.s32.totalorder %s20, 4
      %s30 = sphi 0, %s32
      %s33 = sphi 0, %s30
      %s34 = sphi 0, %s33
      %s50 = sphi 0, %s34
      %s54 = sphi 0, %s54
      %s56 = sphi 0, %s54
      %s57 = sphi 0, %s56
      %s71 = sphi 0, %s57
      %s75 = sphi 0, %s75
      %s77 = sphi 0, %s75
      %s78 = sphi 0, %s77
      %s92 = sphi 0, %s78
      %s96 = sphi 0, %s96
      %s98 = sphi 0, %s96
      %s99 = sphi 0, %s98
      %s113 = sphi 0, %s99
      %s117 = sphi 0, %s117
      %s119 = sphi 0, %s117
      %s120 = sphi 0, %s119
      %s134 = sphi 0, %s120
      %s138 = sphi 0, %s138
      %s140 = sphi 0, %s138
      %s141 = sphi 0, %s140
      %s155 = sphi 0, %s141
      %s159 = sphi 0, %s159
      %s161 = sphi 0, %s159
      %s162 = sphi 0, %s161
      %s176 = sphi 0, %s162
      %s180 = sphi 0, %s180
      %s182 = sphi 0, %s180
      %s183 = sphi 0, %s182
      %s197 = sphi 0, %s183
      %s201 = sphi 0, %s201
      %s203 = sphi 0, %s201
      %s204 = sphi 0, %s203
      %s218 = sphi 0, %s204
      %s222 = sphi 0, %s222
      %s224 = sphi 0, %s222
      %s225 = sphi 0, %s224
      %s239 = sphi 0, %s225
      %s243 = sphi 0, %s243
      %s245 = sphi 0, %s243
      %s246 = sphi 0, %s245
      %s260 = sphi 0, %s246
      %s266 = sphi 0, %s268
      %s269 = sphi 0, %s266
      %s270 = sphi 0, %s269
      %s286 = sphi 0, %s270
    $region4: #{neuralnet_forward.1} parent=1 // loop_header_branch
      %23 = sbr.rel (%p21) target = $region8
    $region5: #{neuralnet_forward.1} parent=1 // loop_body
      %s25 = ssub.s32 %s20, 1
      %s26 = ssub.s32 %s20, 2
      %s27 = sadd.s32 %s20, 1
      %s28 = ssub.s32 %s20, %s27
      %p29 = scmp.eq.s32.totalorder %s28, 0
      %s31 = sadd.s32 %s30, 1
      %s32 = scalar_select %p29, %s30, %s31
      %p35 = pneg %p29
      %p36 = scmp.eq.s32.totalorder %s20, 1
      %p37 = por %p35, %p36
      %p38 = scmp.ne.s32.totalorder %s30, %s33
      %p39 = scmp.eq.s32.totalorder %s20, 0
      %p40 = por %p38, %p39
      %p41 = scmp.ne.s32.totalorder %s30, %s33
      %p42 = scmp.eq.s32.totalorder %s25, 1
      %p43 = por %p41, %p42
      %p44 = scmp.ne.s32.totalorder %s33, %s34
      %p45 = scmp.eq.s32.totalorder %s25, 0
      %p46 = por %p44, %p45
      %p47 = scmp.ne.s32.totalorder %s33, %s34
      %p48 = scmp.eq.s32.totalorder %s26, 1
      %p49 = por %p47, %p48
      %p51 = scmp.ne.s32.totalorder %s34, %s50
      %p52 = scmp.eq.s32.totalorder %s26, 0
      %p53 = por %p51, %p52
      %s55 = sadd.s32 %s54, 1
      %p58 = scmp.eq.s32.totalorder %s20, 1
      %p59 = scmp.ne.s32.totalorder %s54, %s56
      %p60 = scmp.eq.s32.totalorder %s20, 0
      %p61 = por %p59, %p60
      %p62 = scmp.ne.s32.totalorder %s54, %s56
      %p63 = scmp.eq.s32.totalorder %s25, 1
      %p64 = por %p62, %p63
      %p65 = scmp.ne.s32.totalorder %s56, %s57
      %p66 = scmp.eq.s32.totalorder %s25, 0
      %p67 = por %p65, %p66
      %p68 = scmp.ne.s32.totalorder %s56, %s57
      %p69 = scmp.eq.s32.totalorder %s26, 1
      %p70 = por %p68, %p69
      %p72 = scmp.ne.s32.totalorder %s57, %s71
      %p73 = scmp.eq.s32.totalorder %s26, 0
      %p74 = por %p72, %p73
      %s76 = sadd.s32 %s75, 1
      %p79 = scmp.eq.s32.totalorder %s20, 1
      %p80 = scmp.ne.s32.totalorder %s75, %s77
      %p81 = scmp.eq.s32.totalorder %s20, 0
      %p82 = por %p80, %p81
      %p83 = scmp.ne.s32.totalorder %s75, %s77
      %p84 = scmp.eq.s32.totalorder %s25, 1
      %p85 = por %p83, %p84
      %p86 = scmp.ne.s32.totalorder %s77, %s78
      %p87 = scmp.eq.s32.totalorder %s25, 0
      %p88 = por %p86, %p87
      %p89 = scmp.ne.s32.totalorder %s77, %s78
      %p90 = scmp.eq.s32.totalorder %s26, 1
      %p91 = por %p89, %p90
      %p93 = scmp.ne.s32.totalorder %s78, %s92
      %p94 = scmp.eq.s32.totalorder %s26, 0
      %p95 = por %p93, %p94
      %s97 = sadd.s32 %s96, 1
      %p100 = scmp.eq.s32.totalorder %s20, 1
      %p101 = scmp.ne.s32.totalorder %s96, %s98
      %p102 = scmp.eq.s32.totalorder %s20, 0
      %p103 = por %p101, %p102
      %p104 = scmp.ne.s32.totalorder %s96, %s98
      %p105 = scmp.eq.s32.totalorder %s25, 1
      %p106 = por %p104, %p105
      %p107 = scmp.ne.s32.totalorder %s98, %s99
      %p108 = scmp.eq.s32.totalorder %s25, 0
      %p109 = por %p107, %p108
      %p110 = scmp.ne.s32.totalorder %s98, %s99
      %p111 = scmp.eq.s32.totalorder %s26, 1
      %p112 = por %p110, %p111
      %p114 = scmp.ne.s32.totalorder %s99, %s113
      %p115 = scmp.eq.s32.totalorder %s26, 0
      %p116 = por %p114, %p115
      %s118 = sadd.s32 %s117, 1
      %p121 = scmp.eq.s32.totalorder %s20, 1
      %p122 = scmp.ne.s32.totalorder %s117, %s119
      %p123 = scmp.eq.s32.totalorder %s20, 0
      %p124 = por %p122, %p123
      %p125 = scmp.ne.s32.totalorder %s117, %s119
      %p126 = scmp.eq.s32.totalorder %s25, 1
      %p127 = por %p125, %p126
      %p128 = scmp.ne.s32.totalorder %s119, %s120
      %p129 = scmp.eq.s32.totalorder %s25, 0
      %p130 = por %p128, %p129
      %p131 = scmp.ne.s32.totalorder %s119, %s120
      %p132 = scmp.eq.s32.totalorder %s26, 1
      %p133 = por %p131, %p132
      %p135 = scmp.ne.s32.totalorder %s120, %s134
      %p136 = scmp.eq.s32.totalorder %s26, 0
      %p137 = por %p135, %p136
      %s139 = sadd.s32 %s138, 1
      %p142 = scmp.eq.s32.totalorder %s20, 1
      %p143 = scmp.ne.s32.totalorder %s138, %s140
      %p144 = scmp.eq.s32.totalorder %s20, 0
      %p145 = por %p143, %p144
      %p146 = scmp.ne.s32.totalorder %s138, %s140
      %p147 = scmp.eq.s32.totalorder %s25, 1
      %p148 = por %p146, %p147
      %p149 = scmp.ne.s32.totalorder %s140, %s141
      %p150 = scmp.eq.s32.totalorder %s25, 0
      %p151 = por %p149, %p150
      %p152 = scmp.ne.s32.totalorder %s140, %s141
      %p153 = scmp.eq.s32.totalorder %s26, 1
      %p154 = por %p152, %p153
      %p156 = scmp.ne.s32.totalorder %s141, %s155
      %p157 = scmp.eq.s32.totalorder %s26, 0
      %p158 = por %p156, %p157
      %s160 = sadd.s32 %s159, 1
      %p163 = scmp.eq.s32.totalorder %s20, 1
      %p164 = scmp.ne.s32.totalorder %s159, %s161
      %p165 = scmp.eq.s32.totalorder %s20, 0
      %p166 = por %p164, %p165
      %p167 = scmp.ne.s32.totalorder %s159, %s161
      %p168 = scmp.eq.s32.totalorder %s25, 1
      %p169 = por %p167, %p168
      %p170 = scmp.ne.s32.totalorder %s161, %s162
      %p171 = scmp.eq.s32.totalorder %s25, 0
      %p172 = por %p170, %p171
      %p173 = scmp.ne.s32.totalorder %s161, %s162
      %p174 = scmp.eq.s32.totalorder %s26, 1
      %p175 = por %p173, %p174
      %p177 = scmp.ne.s32.totalorder %s162, %s176
      %p178 = scmp.eq.s32.totalorder %s26, 0
      %p179 = por %p177, %p178
      %s181 = sadd.s32 %s180, 1
      %p184 = scmp.eq.s32.totalorder %s20, 1
      %p185 = scmp.ne.s32.totalorder %s180, %s182
      %p186 = scmp.eq.s32.totalorder %s20, 0
      %p187 = por %p185, %p186
      %p188 = scmp.ne.s32.totalorder %s180, %s182
      %p189 = scmp.eq.s32.totalorder %s25, 1
      %p190 = por %p188, %p189
      %p191 = scmp.ne.s32.totalorder %s182, %s183
      %p192 = scmp.eq.s32.totalorder %s25, 0
      %p193 = por %p191, %p192
      %p194 = scmp.ne.s32.totalorder %s182, %s183
      %p195 = scmp.eq.s32.totalorder %s26, 1
      %p196 = por %p194, %p195
      %p198 = scmp.ne.s32.totalorder %s183, %s197
      %p199 = scmp.eq.s32.totalorder %s26, 0
      %p200 = por %p198, %p199
      %s202 = sadd.s32 %s201, 1
      %p205 = scmp.eq.s32.totalorder %s20, 1
      %p206 = scmp.ne.s32.totalorder %s201, %s203
      %p207 = scmp.eq.s32.totalorder %s20, 0
      %p208 = por %p206, %p207
      %p209 = scmp.ne.s32.totalorder %s201, %s203
      %p210 = scmp.eq.s32.totalorder %s25, 1
      %p211 = por %p209, %p210
      %p212 = scmp.ne.s32.totalorder %s203, %s204
      %p213 = scmp.eq.s32.totalorder %s25, 0
      %p214 = por %p212, %p213
      %p215 = scmp.ne.s32.totalorder %s203, %s204
      %p216 = scmp.eq.s32.totalorder %s26, 1
      %p217 = por %p215, %p216
      %p219 = scmp.ne.s32.totalorder %s204, %s218
      %p220 = scmp.eq.s32.totalorder %s26, 0
      %p221 = por %p219, %p220
      %s223 = sadd.s32 %s222, 1
      %p226 = scmp.eq.s32.totalorder %s20, 1
      %p227 = scmp.ne.s32.totalorder %s222, %s224
      %p228 = scmp.eq.s32.totalorder %s20, 0
      %p229 = por %p227, %p228
      %p230 = scmp.ne.s32.totalorder %s222, %s224
      %p231 = scmp.eq.s32.totalorder %s25, 1
      %p232 = por %p230, %p231
      %p233 = scmp.ne.s32.totalorder %s224, %s225
      %p234 = scmp.eq.s32.totalorder %s25, 0
      %p235 = por %p233, %p234
      %p236 = scmp.ne.s32.totalorder %s224, %s225
      %p237 = scmp.eq.s32.totalorder %s26, 1
      %p238 = por %p236, %p237
      %p240 = scmp.ne.s32.totalorder %s225, %s239
      %p241 = scmp.eq.s32.totalorder %s26, 0
      %p242 = por %p240, %p241
      %s244 = sadd.s32 %s243, 1
      %p247 = scmp.eq.s32.totalorder %s20, 1
      %p248 = scmp.ne.s32.totalorder %s243, %s245
      %p249 = scmp.eq.s32.totalorder %s20, 0
      %p250 = por %p248, %p249
      %p251 = scmp.ne.s32.totalorder %s243, %s245
      %p252 = scmp.eq.s32.totalorder %s25, 1
      %p253 = por %p251, %p252
      %p254 = scmp.ne.s32.totalorder %s245, %s246
      %p255 = scmp.eq.s32.totalorder %s25, 0
      %p256 = por %p254, %p255
      %p257 = scmp.ne.s32.totalorder %s245, %s246
      %p258 = scmp.eq.s32.totalorder %s26, 1
      %p259 = por %p257, %p258
      %p261 = scmp.ne.s32.totalorder %s246, %s260
      %p262 = scmp.eq.s32.totalorder %s26, 0
      %p263 = por %p261, %p262
      %s264 = ssub.s32 %s20, %s27
      %p265 = scmp.eq.s32.totalorder %s264, 0
      %s267 = sadd.s32 %s266, 1
      %s268 = scalar_select %p265, %s266, %s267
      %p271 = pneg %p265
      %p272 = scmp.eq.s32.totalorder %s20, 1
      %p273 = por %p271, %p272
      %p274 = scmp.ne.s32.totalorder %s266, %s269
      %p275 = scmp.eq.s32.totalorder %s20, 0
      %p276 = por %p274, %p275
      %p277 = scmp.ne.s32.totalorder %s266, %s269
      %p278 = scmp.eq.s32.totalorder %s25, 1
      %p279 = por %p277, %p278
      %p280 = scmp.ne.s32.totalorder %s269, %s270
      %p281 = scmp.eq.s32.totalorder %s25, 0
      %p282 = por %p280, %p281
      %p283 = scmp.ne.s32.totalorder %s269, %s270
      %p284 = scmp.eq.s32.totalorder %s26, 1
      %p285 = por %p283, %p284
      %p287 = scmp.ne.s32.totalorder %s270, %s286
      %p288 = scmp.eq.s32.totalorder %s26, 0
      %p289 = por %p287, %p288
      %p290 = scmp.le.s32.totalorder 1, %s20
      %p291 = scmp.lt.s32.totalorder %s20, 3
      %p292 = pnand %p290, %p291
      %p293 = pneg %p292
      // Predicated region
      $region9: #{neuralnet_forward.1} parent=5 // pred_check
        _
      $region10: #{neuralnet_forward.1} parent=5 // pred_check_branch
        %295 = sbr.rel (%p292) target = $region12
      $region11: #{neuralnet_forward.1} parent=5 // pred_region
        %s296 = ssub.s32 %s20, 1
        // Predicated region
        $region13: #{neuralnet_forward.1} parent=11 // pred_check
          %p297 = pneg %p67
        $region14: #{neuralnet_forward.1} parent=11 // pred_check_branch
          %299 = sbr.rel (%p297) target = $region16
        $region15: #{neuralnet_forward.1} parent=11 // pred_region
          _
        $region16: #{neuralnet_forward.1} parent=11 // pred_fallthru
          _
        // Predicated region
        $region17: #{neuralnet_forward.1} parent=11 // pred_check
          %p300 = pneg %p88
        $region18: #{neuralnet_forward.1} parent=11 // pred_check_branch
          %302 = sbr.rel (%p300) target = $region20
        $region19: #{neuralnet_forward.1} parent=11 // pred_region
          _
        $region20: #{neuralnet_forward.1} parent=11 // pred_fallthru
          _
        // Predicated region
        $region21: #{neuralnet_forward.1} parent=11 // pred_check
          %p303 = pneg %p109
        $region22: #{neuralnet_forward.1} parent=11 // pred_check_branch
          %305 = sbr.rel (%p303) target = $region24
        $region23: #{neuralnet_forward.1} parent=11 // pred_region
          _
        $region24: #{neuralnet_forward.1} parent=11 // pred_fallthru
          _
        // Predicated region
        $region25: #{neuralnet_forward.1} parent=11 // pred_check
          %p306 = pneg %p130
        $region26: #{neuralnet_forward.1} parent=11 // pred_check_branch
          %308 = sbr.rel (%p306) target = $region28
        $region27: #{neuralnet_forward.1} parent=11 // pred_region
          _
        $region28: #{neuralnet_forward.1} parent=11 // pred_fallthru
          _
        // Predicated region
        $region29: #{neuralnet_forward.1} parent=11 // pred_check
          %p309 = pneg %p151
        $region30: #{neuralnet_forward.1} parent=11 // pred_check_branch
          %311 = sbr.rel (%p309) target = $region32
        $region31: #{neuralnet_forward.1} parent=11 // pred_region
          _
        $region32: #{neuralnet_forward.1} parent=11 // pred_fallthru
          _
        // Predicated region
        $region33: #{neuralnet_forward.1} parent=11 // pred_check
          %p312 = pneg %p172
        $region34: #{neuralnet_forward.1} parent=11 // pred_check_branch
          %314 = sbr.rel (%p312) target = $region36
        $region35: #{neuralnet_forward.1} parent=11 // pred_region
          _
        $region36: #{neuralnet_forward.1} parent=11 // pred_fallthru
          _
        // Predicated region
        $region37: #{neuralnet_forward.1} parent=11 // pred_check
          %p315 = pneg %p193
        $region38: #{neuralnet_forward.1} parent=11 // pred_check_branch
          %317 = sbr.rel (%p315) target = $region40
        $region39: #{neuralnet_forward.1} parent=11 // pred_region
          _
        $region40: #{neuralnet_forward.1} parent=11 // pred_fallthru
          _
        // Predicated region
        $region41: #{neuralnet_forward.1} parent=11 // pred_check
          %p318 = pneg %p214
        $region42: #{neuralnet_forward.1} parent=11 // pred_check_branch
          %320 = sbr.rel (%p318) target = $region44
        $region43: #{neuralnet_forward.1} parent=11 // pred_region
          _
        $region44: #{neuralnet_forward.1} parent=11 // pred_fallthru
          _
        // Predicated region
        $region45: #{neuralnet_forward.1} parent=11 // pred_check
          %p321 = pneg %p235
        $region46: #{neuralnet_forward.1} parent=11 // pred_check_branch
          %323 = sbr.rel (%p321) target = $region48
        $region47: #{neuralnet_forward.1} parent=11 // pred_region
          _
        $region48: #{neuralnet_forward.1} parent=11 // pred_fallthru
          _
        // Predicated region
        $region49: #{neuralnet_forward.1} parent=11 // pred_check
          %p324 = pneg %p256
        $region50: #{neuralnet_forward.1} parent=11 // pred_check_branch
          %326 = sbr.rel (%p324) target = $region52
        $region51: #{neuralnet_forward.1} parent=11 // pred_region
          _
        $region52: #{neuralnet_forward.1} parent=11 // pred_fallthru
          _
      $region12: #{neuralnet_forward.1} parent=5 // pred_fallthru
        _
      %p327 = scmp.lt.s32.totalorder %s20, 2
      // Predicated region
      $region53: #{neuralnet_forward.1} parent=5 // pred_check
        %p328 = pneg %p327
      $region54: #{neuralnet_forward.1} parent=5 // pred_check_branch
        %330 = sbr.rel (%p328) target = $region56
      $region55: #{neuralnet_forward.1} parent=5 // pred_region
        // Predicated region
        $region57: #{neuralnet_forward.1} parent=55 // pred_check
          %p331 = pneg %p40
        $region58: #{neuralnet_forward.1} parent=55 // pred_check_branch
          %333 = sbr.rel (%p331) target = $region60
        $region59: #{neuralnet_forward.1} parent=55 // pred_region
          %p334 = scmp.lt.s32.totalorder %s20, 1
          %s335 = scalar_select %p334, %s20, 1
          %s336 = smul.addr %s335, 4
          %s337 = smul.addr %s336, 8
          %s338 = scalar_lea.vmem %s0, %s337
        $region60: #{neuralnet_forward.1} parent=55 // pred_fallthru
          _
      $region56: #{neuralnet_forward.1} parent=5 // pred_fallthru
        _
      %p339 = scmp.le.s32.totalorder 1, %s20
      %p340 = scmp.lt.s32.totalorder %s20, 3
      %p341 = pnand %p339, %p340
      %p342 = pneg %p341
      // Predicated region
      $region61: #{neuralnet_forward.1} parent=5 // pred_check
        _
      $region62: #{neuralnet_forward.1} parent=5 // pred_check_branch
        %344 = sbr.rel (%p341) target = $region64
      $region63: #{neuralnet_forward.1} parent=5 // pred_region
        %s345 = ssub.s32 %s20, 1
        %p346 = scmp.lt.s32.totalorder %s25, 1
        %s347 = scalar_select %p346, %s25, 1
        %s348 = smul.addr %s347, 4
        %s349 = smul.addr %s348, 8
        %s350 = scalar_lea.vmem %s0, %s349
        %p351 = pneg %p46
        %p352 = pneg %p43
        %p353 = pneg %p67
        %p354 = pneg %p64
        %p355 = pneg %p88
        %p356 = pneg %p85
        %p357 = pneg %p109
        %p358 = pneg %p106
        %p359 = pneg %p130
        %p360 = pneg %p127
        %p361 = pneg %p151
        %p362 = pneg %p148
        %p363 = pneg %p172
        %p364 = pneg %p169
        %p365 = pneg %p193
        %p366 = pneg %p190
        %p367 = pneg %p214
        %p368 = pneg %p211
        %p369 = pneg %p235
        %p370 = pneg %p232
        %p371 = pneg %p256
        %p372 = pneg %p253
        %p373 = pneg %p282
        %p374 = pneg %p279
        %s375 = sand.u32 %s269, 1
        %s376 = scalar_lea.sflag [#allocation5], %s375
        %s377 = sand.u32 %s269, 1
        %s378 = scalar_lea.vmem [#allocation4], %s377
        %p379 = scmp.lt.s32.totalorder %s25, 1
        %s380 = scalar_select %p379, %s25, 1
        %s381 = smul.addr %s380, 4
        %s382 = smul.addr %s381, 8
        %s383 = scalar_lea.vmem %s0, %s382
        %v385 = vld [vmem:[%s383] sm:$0xff]
        %v386 = vld [vmem:[%s383 + $0x8] sm:$0xff]
        %v387 = vld [vmem:[%s383 + $0x10] sm:$0xff]
        %v388 = vld [vmem:[%s383 + $0x18] sm:$0xff]
        %vm389 = vcmask 785408
        %v390 = vsel %vm389, %v385, 0.0
        %v391 = vsel %vm389, %v386, 0.0
        %v392 = vadd.f32 %v390, %v391
        %v393 = vsel %vm389, %v387, 0.0
        %v394 = vadd.f32 %v392, %v393
        %v395 = vsel %vm389, %v388, 0.0
        %v396 = vadd.f32 %v394, %v395
        %397 = vadd.xlane.f32.xlu0 %v396
        %v398 = vpop.xlane.xlu0 %397
        %v399 = vrot.slane %v398, 4
        %v400 = vadd.f32 %v398, %v399
        %v401 = vrot.slane %v400, 2
        %v402 = vadd.f32 %v400, %v401
        %v403 = vrot.slane %v402, 1
        %v404 = vadd.f32 %v402, %v403
        %s405 = vtos %v404
        %v406 = vstv %s405
        %v407 = vmul.f32 %v385, %v385
        %v408 = vmul.f32 %v386, %v386
        %v409 = vmul.f32 %v387, %v387
        %v410 = vmul.f32 %v388, %v388
        %v411 = vsel %vm389, %v407, 0.0
        %v412 = vsel %vm389, %v408, 0.0
        %v413 = vadd.f32 %v411, %v412
        %v414 = vsel %vm389, %v409, 0.0
        %v415 = vadd.f32 %v413, %v414
        %v416 = vsel %vm389, %v410, 0.0
        %v417 = vadd.f32 %v415, %v416
        %418 = vadd.xlane.f32.xlu0 %v417
        %v419 = vpop.xlane.xlu0 %418
        %v420 = vrot.slane %v419, 4
        %v421 = vadd.f32 %v419, %v420
        %v422 = vrot.slane %v421, 2
        %v423 = vadd.f32 %v421, %v422
        %v424 = vrot.slane %v423, 1
        %v425 = vadd.f32 %v423, %v424
        %s426 = vtos %v425
        %v427 = vstv %s426
        %v428 = vmul.f32 %v406, 0.00032552084
        %v429 = vmul.f32 %v428, 3072.0
        %v430 = vmul.f32 %v429, %v428
        %v431 = vsub.f32 %v427, %v430
        %v432 = vmul.f32 %v431, 0.00032562684
        %v433 = vmax.f32 %v432, 0.0
        %v434 = vsub.f32 %v385, %v428
        %v435 = vsub.f32 %v386, %v428
        %v436 = vsub.f32 %v387, %v428
        %v437 = vsub.f32 %v388, %v428
        %v438 = vrsqrt.pop %v433
        %v439 = vmul.f32 %v434, %v438
        %v440 = vmul.f32 %v435, %v438
        %v441 = vmul.f32 %v436, %v438
        %v442 = vmul.f32 %v437, %v438
        %vm443 = vcmask 834560
        %444 = vst.msk [vmem:[#allocation2] sm:$0xff] %vm443, 0.0
        %445 = vst.msk [vmem:[#allocation2 + $0x8] sm:$0xff] %vm443, 0.0
        %446 = vst.msk [vmem:[#allocation2 + $0x10] sm:$0xff] %vm443, 0.0
        %447 = vst.msk [vmem:[#allocation2 + $0x18] sm:$0xff] %vm443, 0.0
        %vm448 = vcmask 828416
        %449 = vst.msk [vmem:[#allocation2 + $0x20] sm:$0x3] %vm448, 0.0
        %454 = vrot.lane.b32.xlu0 %v439, 3
        %v455 = vpop.permute.xlu0 %454
        %456 = vrot.lane.b32.xlu0 %v440, 3
        %v457 = vpop.permute.xlu0 %456
        %458 = vrot.lane.b32.xlu0 %v441, 3
        %v459 = vpop.permute.xlu0 %458
        %460 = vrot.lane.b32.xlu0 %v442, 3
        %v461 = vpop.permute.xlu0 %460
        %vm466 = vcmask 810008
        %467 = vst.msk [vmem:[#allocation2 + $0x1] sm:$0xff] %vm466, %v455
        %468 = vst.msk [vmem:[#allocation2 + $0x9] sm:$0xff] %vm466, %v457
        %469 = vst.msk [vmem:[#allocation2 + $0x11] sm:$0xff] %vm466, %v459
        %470 = vst.msk [vmem:[#allocation2 + $0x19] sm:$0xff] %vm466, %v461
        %v471 = vld [vmem:[#allocation2] sm:$0xff]
        %v472 = vld [vmem:[#allocation2 + $0x8] sm:$0xff]
        %v473 = vld [vmem:[#allocation2 + $0x10] sm:$0xff]
        %v474 = vld [vmem:[#allocation2 + $0x18] sm:$0x7f]
        %v475 = vpack.c.bf16 %v472, %v471
        %v476 = vpack.c.bf16 %v474, %v473
        %v477 = vld [vmem:[%s1] sm:$0xff]
        %v478 = vld [vmem:[%s1 + $0x8] sm:$0xf]
        %v479 = vld [vmem:[%s1 + $0xc] sm:$0xff]
        %v480 = vld [vmem:[%s1 + $0x14] sm:$0xf]
        %v481 = vld [vmem:[%s1 + $0x18] sm:$0xff]
        %v482 = vld [vmem:[%s1 + $0x20] sm:$0xf]
        %v483 = vld [vmem:[%s1 + $0x24] sm:$0xff]
        %v484 = vld [vmem:[%s1 + $0x2c] sm:$0xf]
        %v485 = vld [vmem:[%s1 + $0x30] sm:$0xff]
        %v486 = vld [vmem:[%s1 + $0x38] sm:$0xf]
        %v487 = vld [vmem:[%s1 + $0x3c] sm:$0xff]
        %v488 = vld [vmem:[%s1 + $0x44] sm:$0xf]
        %v489 = vld [vmem:[%s1 + $0x48] sm:$0xff]
        %v490 = vld [vmem:[%s1 + $0x50] sm:$0xf]
        %v491 = vld [vmem:[%s1 + $0x54] sm:$0xff]
        %v492 = vld [vmem:[%s1 + $0x5c] sm:$0xf]
        %v493 = vld [vmem:[%s1 + $0x60] sm:$0xff]
        %v494 = vld [vmem:[%s1 + $0x68] sm:$0xf]
        %v495 = vld [vmem:[%s1 + $0x6c] sm:$0xff]
        %v496 = vld [vmem:[%s1 + $0x74] sm:$0xf]
        %v497 = vld [vmem:[%s1 + $0x78] sm:$0xff]
        %v498 = vld [vmem:[%s1 + $0x80] sm:$0xf]
        %v499 = vld [vmem:[%s1 + $0x84] sm:$0x77]
        %v500 = vld [vmem:[%s1 + $0x8c] sm:$0x7]
        %s501 = scalar_lea.vmem %s1, 144
        %v502 = vld [vmem:[%s501] sm:$0xff]
        %v503 = vld [vmem:[%s501 + $0x8] sm:$0xf]
        %v504 = vld [vmem:[%s501 + $0xc] sm:$0xff]
        %v505 = vld [vmem:[%s501 + $0x14] sm:$0xf]
        %v506 = vld [vmem:[%s501 + $0x18] sm:$0xff]
        %v507 = vld [vmem:[%s501 + $0x20] sm:$0xf]
        %v508 = vld [vmem:[%s501 + $0x24] sm:$0xff]
        %v509 = vld [vmem:[%s501 + $0x2c] sm:$0xf]
        %v510 = vld [vmem:[%s501 + $0x30] sm:$0xff]
        %v511 = vld [vmem:[%s501 + $0x38] sm:$0xf]
        %v512 = vld [vmem:[%s501 + $0x3c] sm:$0xff]
        %v513 = vld [vmem:[%s501 + $0x44] sm:$0xf]
        %v514 = vld [vmem:[%s501 + $0x48] sm:$0xff]
        %v515 = vld [vmem:[%s501 + $0x50] sm:$0xf]
        %v516 = vld [vmem:[%s501 + $0x54] sm:$0xff]
        %v517 = vld [vmem:[%s501 + $0x5c] sm:$0xf]
        %v518 = vld [vmem:[%s501 + $0x60] sm:$0xff]
        %v519 = vld [vmem:[%s501 + $0x68] sm:$0xf]
        %v520 = vld [vmem:[%s501 + $0x6c] sm:$0xff]
        %v521 = vld [vmem:[%s501 + $0x74] sm:$0xf]
        %v522 = vld [vmem:[%s501 + $0x78] sm:$0xff]
        %v523 = vld [vmem:[%s501 + $0x80] sm:$0xf]
        %v524 = vld [vmem:[%s501 + $0x84] sm:$0x77]
        %v525 = vld [vmem:[%s501 + $0x8c] sm:$0x7]
        %528 = vrot.lane.b32.xlu0 %v475, 125
        %v529 = vpop.permute.xlu0 %528
        %530 = vrot.lane.b32.xlu0 %v476, 125
        %v531 = vpop.permute.xlu0 %530
        %v556 = vunpack.c.l.b16 %v502
        %v557 = vunpack.c.h.b16 %v502
        %v558 = vunpack.c.l.b16 %v503
        %v559 = vunpack.c.l.b16 %v504
        %v560 = vunpack.c.h.b16 %v504
        %v561 = vunpack.c.l.b16 %v505
        %v562 = vunpack.c.l.b16 %v506
        %v563 = vunpack.c.h.b16 %v506
        %v564 = vunpack.c.l.b16 %v507
        %v565 = vunpack.c.l.b16 %v508
        %v566 = vunpack.c.h.b16 %v508
        %v567 = vunpack.c.l.b16 %v509
        %v568 = vunpack.c.l.b16 %v510
        %v569 = vunpack.c.h.b16 %v510
        %v570 = vunpack.c.l.b16 %v511
        %v571 = vunpack.c.l.b16 %v512
        %v572 = vunpack.c.h.b16 %v512
        %v573 = vunpack.c.l.b16 %v513
        %v574 = vunpack.c.l.b16 %v514
        %v575 = vunpack.c.h.b16 %v514
        %v576 = vunpack.c.l.b16 %v515
        %v577 = vunpack.c.l.b16 %v516
        %v578 = vunpack.c.h.b16 %v516
        %v579 = vunpack.c.l.b16 %v517
        %v580 = vunpack.c.l.b16 %v518
        %v581 = vunpack.c.h.b16 %v518
        %v582 = vunpack.c.l.b16 %v519
        %v583 = vunpack.c.l.b16 %v520
        %v584 = vunpack.c.h.b16 %v520
        %v585 = vunpack.c.l.b16 %v521
        %v586 = vunpack.c.l.b16 %v522
        %v587 = vunpack.c.h.b16 %v522
        %v588 = vunpack.c.l.b16 %v523
        %v589 = vunpack.c.l.b16 %v524
        %v590 = vunpack.c.h.b16 %v524
        %v591 = vunpack.c.l.b16 %v525
        %v592 = vpack.c.b16 %v559, %v556
        %v593 = vpack.c.b16 %v560, %v557
        %v594 = vpack.c.b16 %v561, %v558
        %v595 = vpack.c.b16 %v565, %v562
        %v596 = vpack.c.b16 %v566, %v563
        %v597 = vpack.c.b16 %v567, %v564
        %v598 = vpack.c.b16 %v571, %v568
        %v599 = vpack.c.b16 %v572, %v569
        %v600 = vpack.c.b16 %v573, %v570
        %v601 = vpack.c.b16 %v577, %v574
        %v602 = vpack.c.b16 %v578, %v575
        %v603 = vpack.c.b16 %v579, %v576
        %v604 = vpack.c.b16 %v583, %v580
        %v605 = vpack.c.b16 %v584, %v581
        %v606 = vpack.c.b16 %v585, %v582
        %v607 = vpack.c.b16 %v589, %v586
        %v608 = vpack.c.b16 %v590, %v587
        %v609 = vpack.c.b16 %v591, %v588
        %vm625 = vcmask 760832
        %v627 = vsel %vm625, %v529, 0
        %v630 = vsel %vm625, %v531, 0
        %vm632 = vcmask 1045504
        %vm633 = vcmask 1046528
        %v634 = vsel %vm632, 4294967295, 65535
        %v635 = vsel %vm633, %v634, 0
        %v637 = vand.u32 %v607, %v635
        %v640 = vand.u32 %v608, %v635
        %v643 = vand.u32 %v609, %v635
        %645 = vmatprep.subr.bf16.mxu0 0
        %646 = vmatpush1.bf16.msra.mxu0 0
        %647 = vmatprep.subr.bf16.mxu0 0
        %648 = vmatpush1.bf16.msra.mxu0 0
        %649 = vmatprep.subr.bf16.mxu0 %v640
        %650 = vmatpush1.bf16.msra.mxu0 %v637
        %651 = vmatprep.subr.bf16.mxu0 %v605
        %652 = vmatpush1.bf16.msra.mxu0 %v604
        %653 = vmatprep.subr.bf16.mxu0 %v602
        %654 = vmatpush1.bf16.msra.mxu0 %v601
        %655 = vmatprep.subr.bf16.mxu0 %v599
        %656 = vmatpush1.bf16.msra.mxu0 %v598
        %657 = vmatprep.subr.bf16.mxu0 %v596
        %658 = vmatpush1.bf16.msra.mxu0 %v595
        %659 = vmatprep.subr.bf16.mxu0 %v593
        %660 = vmatpush1.bf16.msra.mxu0 %v592
        %661 = vmatprep.subr.bf16.mxu0 0
        %662 = vmatpush2.bf16.msra.mxu0 0
        %663 = vmatprep.subr.bf16.mxu0 0
        %664 = vmatpush2.bf16.msra.mxu0 0
        %665 = vmatprep.subr.bf16.mxu0 0
        %666 = vmatpush2.bf16.msra.mxu0 0
        %667 = vmatprep.subr.bf16.mxu0 0
        %668 = vmatpush2.bf16.msra.mxu0 0
        %669 = vmatprep.subr.bf16.mxu0 0
        %670 = vmatpush2.bf16.msra.mxu0 0
        %671 = vmatprep.subr.bf16.mxu0 0
        %672 = vmatpush2.bf16.msra.mxu0 0
        %673 = vmatprep.subr.bf16.mxu0 0
        %674 = vmatpush2.bf16.msra.mxu0 0
        %675 = vmatprep.subr.bf16.mxu0 0
        %676 = vmatpush2.bf16.msra.mxu0 0
        %677 = vmatprep.mubr.bf16.mxu0 0
        %678 = vmatmul.mubr.bf16.gmra.mxu0 %v627
        %v679 = vpop.f32.mrf.mxu0
        %v680 = vadd.f32 0.0, %v679
        %v681 = vpop.f32.mrf.mxu0
        %v682 = vadd.f32 0.0, %v681
        %v683 = vpop.f32.mrf.mxu0
        %v684 = vadd.f32 0.0, %v683
        %v685 = vpop.f32.mrf.mxu0
        %v686 = vadd.f32 0.0, %v685
        %687 = vmatprep.mubr.bf16.mxu0 0
        %688 = vmatmul.mubr.bf16.gmra.mxu0 %v630
        %v689 = vpop.f32.mrf.mxu0
        %v690 = vadd.f32 0.0, %v689
        %v691 = vpop.f32.mrf.mxu0
        %v692 = vadd.f32 0.0, %v691
        %v693 = vpop.f32.mrf.mxu0
        %v694 = vadd.f32 0.0, %v693
        %v695 = vpop.f32.mrf.mxu0
        %v696 = vadd.f32 0.0, %v695
        %697 = vdwg.mxu0
        %698 = vmatprep.subr.bf16.mxu0 0
        %699 = vmatpush1.bf16.msra.mxu0 0
        %700 = vmatprep.subr.bf16.mxu0 0
        %701 = vmatpush1.bf16.msra.mxu0 0
        %702 = vmatprep.subr.bf16.mxu0 0
        %703 = vmatpush1.bf16.msra.mxu0 %v643
        %704 = vmatprep.subr.bf16.mxu0 0
        %705 = vmatpush1.bf16.msra.mxu0 %v606
        %706 = vmatprep.subr.bf16.mxu0 0
        %707 = vmatpush1.bf16.msra.mxu0 %v603
        %708 = vmatprep.subr.bf16.mxu0 0
        %709 = vmatpush1.bf16.msra.mxu0 %v600
        %710 = vmatprep.subr.bf16.mxu0 0
        %711 = vmatpush1.bf16.msra.mxu0 %v597
        %712 = vmatprep.subr.bf16.mxu0 0
        %713 = vmatpush1.bf16.msra.mxu0 %v594
        %714 = vmatprep.subr.bf16.mxu0 0
        %715 = vmatpush2.bf16.msra.mxu0 0
        %716 = vmatprep.subr.bf16.mxu0 0
        %717 = vmatpush2.bf16.msra.mxu0 0
        %718 = vmatprep.subr.bf16.mxu0 0
        %719 = vmatpush2.bf16.msra.mxu0 0
        %720 = vmatprep.subr.bf16.mxu0 0
        %721 = vmatpush2.bf16.msra.mxu0 0
        %722 = vmatprep.subr.bf16.mxu0 0
        %723 = vmatpush2.bf16.msra.mxu0 0
        %724 = vmatprep.subr.bf16.mxu0 0
        %725 = vmatpush2.bf16.msra.mxu0 0
        %726 = vmatprep.subr.bf16.mxu0 0
        %727 = vmatpush2.bf16.msra.mxu0 0
        %728 = vmatprep.subr.bf16.mxu0 0
        %729 = vmatpush2.bf16.msra.mxu0 0
        %730 = vmatprep.mubr.bf16.mxu0 0
        %731 = vmatmul.mubr.bf16.gmra.mxu0 %v627
        %v732 = vpop.f32.mrf.mxu0
        %v733 = vadd.f32 0.0, %v732
        %v734 = vpop.f32.mrf.mxu0
        %v735 = vpop.f32.mrf.mxu0
        %v736 = vadd.f32 0.0, %v735
        %v737 = vpop.f32.mrf.mxu0
        %738 = vmatprep.mubr.bf16.mxu0 0
        %739 = vmatmul.mubr.bf16.gmra.mxu0 %v630
        %v740 = vpop.f32.mrf.mxu0
        %v741 = vadd.f32 0.0, %v740
        %v742 = vpop.f32.mrf.mxu0
        %v743 = vpop.f32.mrf.mxu0
        %v744 = vadd.f32 0.0, %v743
        %v745 = vpop.f32.mrf.mxu0
        %746 = vdwg.mxu0
        %v771 = vunpack.c.l.b16 %v477
        %v772 = vunpack.c.h.b16 %v477
        %v773 = vunpack.c.l.b16 %v478
        %v774 = vunpack.c.l.b16 %v479
        %v775 = vunpack.c.h.b16 %v479
        %v776 = vunpack.c.l.b16 %v480
        %v777 = vunpack.c.l.b16 %v481
        %v778 = vunpack.c.h.b16 %v481
        %v779 = vunpack.c.l.b16 %v482
        %v780 = vunpack.c.l.b16 %v483
        %v781 = vunpack.c.h.b16 %v483
        %v782 = vunpack.c.l.b16 %v484
        %v783 = vunpack.c.l.b16 %v485
        %v784 = vunpack.c.h.b16 %v485
        %v785 = vunpack.c.l.b16 %v486
        %v786 = vunpack.c.l.b16 %v487
        %v787 = vunpack.c.h.b16 %v487
        %v788 = vunpack.c.l.b16 %v488
        %v789 = vunpack.c.l.b16 %v489
        %v790 = vunpack.c.h.b16 %v489
        %v791 = vunpack.c.l.b16 %v490
        %v792 = vunpack.c.l.b16 %v491
        %v793 = vunpack.c.h.b16 %v491
        %v794 = vunpack.c.l.b16 %v492
        %v795 = vunpack.c.l.b16 %v493
        %v796 = vunpack.c.h.b16 %v493
        %v797 = vunpack.c.l.b16 %v494
        %v798 = vunpack.c.l.b16 %v495
        %v799 = vunpack.c.h.b16 %v495
        %v800 = vunpack.c.l.b16 %v496
        %v801 = vunpack.c.l.b16 %v497
        %v802 = vunpack.c.h.b16 %v497
        %v803 = vunpack.c.l.b16 %v498
        %v804 = vunpack.c.l.b16 %v499
        %v805 = vunpack.c.h.b16 %v499
        %v806 = vunpack.c.l.b16 %v500
        %v807 = vpack.c.b16 %v774, %v771
        %v808 = vpack.c.b16 %v775, %v772
        %v809 = vpack.c.b16 %v776, %v773
        %v810 = vpack.c.b16 %v780, %v777
        %v811 = vpack.c.b16 %v781, %v778
        %v812 = vpack.c.b16 %v782, %v779
        %v813 = vpack.c.b16 %v786, %v783
        %v814 = vpack.c.b16 %v787, %v784
        %v815 = vpack.c.b16 %v788, %v785
        %v816 = vpack.c.b16 %v792, %v789
        %v817 = vpack.c.b16 %v793, %v790
        %v818 = vpack.c.b16 %v794, %v791
        %v819 = vpack.c.b16 %v798, %v795
        %v820 = vpack.c.b16 %v799, %v796
        %v821 = vpack.c.b16 %v800, %v797
        %v822 = vpack.c.b16 %v804, %v801
        %v823 = vpack.c.b16 %v805, %v802
        %v824 = vpack.c.b16 %v806, %v803
        %v841 = vsel %vm625, %v475, 0
        %v844 = vsel %vm625, %v476, 0
        %v847 = vand.u32 %v822, %v635
        %v850 = vand.u32 %v823, %v635
        %v853 = vand.u32 %v824, %v635
        %855 = vmatprep.subr.bf16.mxu0 0
        %856 = vmatpush1.bf16.msra.mxu0 0
        %857 = vmatprep.subr.bf16.mxu0 0
        %858 = vmatpush1.bf16.msra.mxu0 0
        %859 = vmatprep.subr.bf16.mxu0 %v850
        %860 = vmatpush1.bf16.msra.mxu0 %v847
        %861 = vmatprep.subr.bf16.mxu0 %v820
        %862 = vmatpush1.bf16.msra.mxu0 %v819
        %863 = vmatprep.subr.bf16.mxu0 %v817
        %864 = vmatpush1.bf16.msra.mxu0 %v816
        %865 = vmatprep.subr.bf16.mxu0 %v814
        %866 = vmatpush1.bf16.msra.mxu0 %v813
        %867 = vmatprep.subr.bf16.mxu0 %v811
        %868 = vmatpush1.bf16.msra.mxu0 %v810
        %869 = vmatprep.subr.bf16.mxu0 %v808
        %870 = vmatpush1.bf16.msra.mxu0 %v807
        %871 = vmatprep.subr.bf16.mxu0 0
        %872 = vmatpush2.bf16.msra.mxu0 0
        %873 = vmatprep.subr.bf16.mxu0 0
        %874 = vmatpush2.bf16.msra.mxu0 0
        %875 = vmatprep.subr.bf16.mxu0 0
        %876 = vmatpush2.bf16.msra.mxu0 0
        %877 = vmatprep.subr.bf16.mxu0 0
        %878 = vmatpush2.bf16.msra.mxu0 0
        %879 = vmatprep.subr.bf16.mxu0 0
        %880 = vmatpush2.bf16.msra.mxu0 0
        %881 = vmatprep.subr.bf16.mxu0 0
        %882 = vmatpush2.bf16.msra.mxu0 0
        %883 = vmatprep.subr.bf16.mxu0 0
        %884 = vmatpush2.bf16.msra.mxu0 0
        %885 = vmatprep.subr.bf16.mxu0 0
        %886 = vmatpush2.bf16.msra.mxu0 0
        %887 = vmatprep.mubr.bf16.mxu0 0
        %888 = vmatmul.mubr.bf16.gmra.mxu0 %v841
        %v889 = vpop.f32.mrf.mxu0
        %v890 = vadd.f32 %v680, %v889
        %v891 = vpop.f32.mrf.mxu0
        %v892 = vadd.f32 %v682, %v891
        %v893 = vpop.f32.mrf.mxu0
        %v894 = vadd.f32 %v684, %v893
        %v895 = vpop.f32.mrf.mxu0
        %v896 = vadd.f32 %v686, %v895
        %897 = vmatprep.mubr.bf16.mxu0 0
        %898 = vmatmul.mubr.bf16.gmra.mxu0 %v844
        %v899 = vpop.f32.mrf.mxu0
        %v900 = vadd.f32 %v690, %v899
        %v901 = vpop.f32.mrf.mxu0
        %v902 = vadd.f32 %v692, %v901
        %v903 = vpop.f32.mrf.mxu0
        %v904 = vadd.f32 %v694, %v903
        %v905 = vpop.f32.mrf.mxu0
        %v906 = vadd.f32 %v696, %v905
        %907 = vdwg.mxu0
        %908 = vmatprep.subr.bf16.mxu0 0
        %909 = vmatpush1.bf16.msra.mxu0 0
        %910 = vmatprep.subr.bf16.mxu0 0
        %911 = vmatpush1.bf16.msra.mxu0 0
        %912 = vmatprep.subr.bf16.mxu0 0
        %913 = vmatpush1.bf16.msra.mxu0 %v853
        %914 = vmatprep.subr.bf16.mxu0 0
        %915 = vmatpush1.bf16.msra.mxu0 %v821
        %916 = vmatprep.subr.bf16.mxu0 0
        %917 = vmatpush1.bf16.msra.mxu0 %v818
        %918 = vmatprep.subr.bf16.mxu0 0
        %919 = vmatpush1.bf16.msra.mxu0 %v815
        %920 = vmatprep.subr.bf16.mxu0 0
        %921 = vmatpush1.bf16.msra.mxu0 %v812
        %922 = vmatprep.subr.bf16.mxu0 0
        %923 = vmatpush1.bf16.msra.mxu0 %v809
        %924 = vmatprep.subr.bf16.mxu0 0
        %925 = vmatpush2.bf16.msra.mxu0 0
        %926 = vmatprep.subr.bf16.mxu0 0
        %927 = vmatpush2.bf16.msra.mxu0 0
        %928 = vmatprep.subr.bf16.mxu0 0
        %929 = vmatpush2.bf16.msra.mxu0 0
        %930 = vmatprep.subr.bf16.mxu0 0
        %931 = vmatpush2.bf16.msra.mxu0 0
        %932 = vmatprep.subr.bf16.mxu0 0
        %933 = vmatpush2.bf16.msra.mxu0 0
        %934 = vmatprep.subr.bf16.mxu0 0
        %935 = vmatpush2.bf16.msra.mxu0 0
        %936 = vmatprep.subr.bf16.mxu0 0
        %937 = vmatpush2.bf16.msra.mxu0 0
        %938 = vmatprep.subr.bf16.mxu0 0
        %939 = vmatpush2.bf16.msra.mxu0 0
        %940 = vmatprep.mubr.bf16.mxu0 0
        %941 = vmatmul.mubr.bf16.gmra.mxu0 %v841
        %v942 = vpop.f32.mrf.mxu0
        %v943 = vadd.f32 %v733, %v942
        %v944 = vpop.f32.mrf.mxu0
        %v945 = vpop.f32.mrf.mxu0
        %v946 = vadd.f32 %v736, %v945
        %v947 = vpop.f32.mrf.mxu0
        %948 = vmatprep.mubr.bf16.mxu0 0
        %949 = vmatmul.mubr.bf16.gmra.mxu0 %v844
        %v950 = vpop.f32.mrf.mxu0
        %v951 = vadd.f32 %v741, %v950
        %v952 = vpop.f32.mrf.mxu0
        %v953 = vpop.f32.mrf.mxu0
        %v954 = vadd.f32 %v744, %v953
        %v955 = vpop.f32.mrf.mxu0
        %956 = vdwg.mxu0
        %s957 = scalar_lea.vmem %s1, 288
        %v958 = vld [vmem:[%s957] sm:$0xff]
        %v959 = vld [vmem:[%s957 + $0x8] sm:$0xf]
        %v960 = vld [vmem:[%s957 + $0xc] sm:$0xff]
        %v961 = vld [vmem:[%s957 + $0x14] sm:$0xf]
        %v962 = vld [vmem:[%s957 + $0x18] sm:$0xff]
        %v963 = vld [vmem:[%s957 + $0x20] sm:$0xf]
        %v964 = vld [vmem:[%s957 + $0x24] sm:$0xff]
        %v965 = vld [vmem:[%s957 + $0x2c] sm:$0xf]
        %v966 = vld [vmem:[%s957 + $0x30] sm:$0xff]
        %v967 = vld [vmem:[%s957 + $0x38] sm:$0xf]
        %v968 = vld [vmem:[%s957 + $0x3c] sm:$0xff]
        %v969 = vld [vmem:[%s957 + $0x44] sm:$0xf]
        %v970 = vld [vmem:[%s957 + $0x48] sm:$0xff]
        %v971 = vld [vmem:[%s957 + $0x50] sm:$0xf]
        %v972 = vld [vmem:[%s957 + $0x54] sm:$0xff]
        %v973 = vld [vmem:[%s957 + $0x5c] sm:$0xf]
        %v974 = vld [vmem:[%s957 + $0x60] sm:$0xff]
        %v975 = vld [vmem:[%s957 + $0x68] sm:$0xf]
        %v976 = vld [vmem:[%s957 + $0x6c] sm:$0xff]
        %v977 = vld [vmem:[%s957 + $0x74] sm:$0xf]
        %v978 = vld [vmem:[%s957 + $0x78] sm:$0xff]
        %v979 = vld [vmem:[%s957 + $0x80] sm:$0xf]
        %v980 = vld [vmem:[%s957 + $0x84] sm:$0x77]
        %v981 = vld [vmem:[%s957 + $0x8c] sm:$0x7]
        %982 = vrot.lane.b32.xlu0 %v475, 122
        %v983 = vpop.permute.xlu0 %982
        %984 = vrot.lane.b32.xlu0 %v476, 122
        %v985 = vpop.permute.xlu0 %984
        %v1010 = vunpack.c.l.b16 %v958
        %v1011 = vunpack.c.h.b16 %v958
        %v1012 = vunpack.c.l.b16 %v959
        %v1013 = vunpack.c.l.b16 %v960
        %v1014 = vunpack.c.h.b16 %v960
        %v1015 = vunpack.c.l.b16 %v961
        %v1016 = vunpack.c.l.b16 %v962
        %v1017 = vunpack.c.h.b16 %v962
        %v1018 = vunpack.c.l.b16 %v963
        %v1019 = vunpack.c.l.b16 %v964
        %v1020 = vunpack.c.h.b16 %v964
        %v1021 = vunpack.c.l.b16 %v965
        %v1022 = vunpack.c.l.b16 %v966
        %v1023 = vunpack.c.h.b16 %v966
        %v1024 = vunpack.c.l.b16 %v967
        %v1025 = vunpack.c.l.b16 %v968
        %v1026 = vunpack.c.h.b16 %v968
        %v1027 = vunpack.c.l.b16 %v969
        %v1028 = vunpack.c.l.b16 %v970
        %v1029 = vunpack.c.h.b16 %v970
        %v1030 = vunpack.c.l.b16 %v971
        %v1031 = vunpack.c.l.b16 %v972
        %v1032 = vunpack.c.h.b16 %v972
        %v1033 = vunpack.c.l.b16 %v973
        %v1034 = vunpack.c.l.b16 %v974
        %v1035 = vunpack.c.h.b16 %v974
        %v1036 = vunpack.c.l.b16 %v975
        %v1037 = vunpack.c.l.b16 %v976
        %v1038 = vunpack.c.h.b16 %v976
        %v1039 = vunpack.c.l.b16 %v977
        %v1040 = vunpack.c.l.b16 %v978
        %v1041 = vunpack.c.h.b16 %v978
        %v1042 = vunpack.c.l.b16 %v979
        %v1043 = vunpack.c.l.b16 %v980
        %v1044 = vunpack.c.h.b16 %v980
        %v1045 = vunpack.c.l.b16 %v981
        %v1046 = vpack.c.b16 %v1013, %v1010
        %v1047 = vpack.c.b16 %v1014, %v1011
        %v1048 = vpack.c.b16 %v1015, %v1012
        %v1049 = vpack.c.b16 %v1019, %v1016
        %v1050 = vpack.c.b16 %v1020, %v1017
        %v1051 = vpack.c.b16 %v1021, %v1018
        %v1052 = vpack.c.b16 %v1025, %v1022
        %v1053 = vpack.c.b16 %v1026, %v1023
        %v1054 = vpack.c.b16 %v1027, %v1024
        %v1055 = vpack.c.b16 %v1031, %v1028
        %v1056 = vpack.c.b16 %v1032, %v1029
        %v1057 = vpack.c.b16 %v1033, %v1030
        %v1058 = vpack.c.b16 %v1037, %v1034
        %v1059 = vpack.c.b16 %v1038, %v1035
        %v1060 = vpack.c.b16 %v1039, %v1036
        %v1061 = vpack.c.b16 %v1043, %v1040
        %v1062 = vpack.c.b16 %v1044, %v1041
        %v1063 = vpack.c.b16 %v1045, %v1042
        %v1080 = vsel %vm625, %v983, 0
        %v1083 = vsel %vm625, %v985, 0
        %v1086 = vand.u32 %v1061, %v635
        %v1089 = vand.u32 %v1062, %v635
        %v1092 = vand.u32 %v1063, %v635
        %1094 = vmatprep.subr.bf16.mxu0 0
        %1095 = vmatpush1.bf16.msra.mxu0 0
        %1096 = vmatprep.subr.bf16.mxu0 0
        %1097 = vmatpush1.bf16.msra.mxu0 0
        %1098 = vmatprep.subr.bf16.mxu0 %v1089
        %1099 = vmatpush1.bf16.msra.mxu0 %v1086
        %1100 = vmatprep.subr.bf16.mxu0 %v1059
        %1101 = vmatpush1.bf16.msra.mxu0 %v1058
        %1102 = vmatprep.subr.bf16.mxu0 %v1056
        %1103 = vmatpush1.bf16.msra.mxu0 %v1055
        %1104 = vmatprep.subr.bf16.mxu0 %v1053
        %1105 = vmatpush1.bf16.msra.mxu0 %v1052
        %1106 = vmatprep.subr.bf16.mxu0 %v1050
        %1107 = vmatpush1.bf16.msra.mxu0 %v1049
        %1108 = vmatprep.subr.bf16.mxu0 %v1047
        %1109 = vmatpush1.bf16.msra.mxu0 %v1046
        %1110 = vmatprep.subr.bf16.mxu0 0
        %1111 = vmatpush2.bf16.msra.mxu0 0
        %1112 = vmatprep.subr.bf16.mxu0 0
        %1113 = vmatpush2.bf16.msra.mxu0 0
        %1114 = vmatprep.subr.bf16.mxu0 0
        %1115 = vmatpush2.bf16.msra.mxu0 0
        %1116 = vmatprep.subr.bf16.mxu0 0
        %1117 = vmatpush2.bf16.msra.mxu0 0
        %1118 = vmatprep.subr.bf16.mxu0 0
        %1119 = vmatpush2.bf16.msra.mxu0 0
        %1120 = vmatprep.subr.bf16.mxu0 0
        %1121 = vmatpush2.bf16.msra.mxu0 0
        %1122 = vmatprep.subr.bf16.mxu0 0
        %1123 = vmatpush2.bf16.msra.mxu0 0
        %1124 = vmatprep.subr.bf16.mxu0 0
        %1125 = vmatpush2.bf16.msra.mxu0 0
        %1126 = vmatprep.mubr.bf16.mxu0 0
        %1127 = vmatmul.mubr.bf16.gmra.mxu0 %v1080
        %v1128 = vpop.f32.mrf.mxu0
        %v1129 = vadd.f32 0.0, %v1128
        %v1130 = vpop.f32.mrf.mxu0
        %v1131 = vadd.f32 0.0, %v1130
        %v1132 = vpop.f32.mrf.mxu0
        %v1133 = vadd.f32 0.0, %v1132
        %v1134 = vpop.f32.mrf.mxu0
        %v1135 = vadd.f32 0.0, %v1134
        %1136 = vmatprep.mubr.bf16.mxu0 0
        %1137 = vmatmul.mubr.bf16.gmra.mxu0 %v1083
        %v1138 = vpop.f32.mrf.mxu0
        %v1139 = vadd.f32 0.0, %v1138
        %v1140 = vpop.f32.mrf.mxu0
        %v1141 = vadd.f32 0.0, %v1140
        %v1142 = vpop.f32.mrf.mxu0
        %v1143 = vadd.f32 0.0, %v1142
        %v1144 = vpop.f32.mrf.mxu0
        %v1145 = vadd.f32 0.0, %v1144
        %1146 = vdwg.mxu0
        %1147 = vmatprep.subr.bf16.mxu0 0
        %1148 = vmatpush1.bf16.msra.mxu0 0
        %1149 = vmatprep.subr.bf16.mxu0 0
        %1150 = vmatpush1.bf16.msra.mxu0 0
        %1151 = vmatprep.subr.bf16.mxu0 0
        %1152 = vmatpush1.bf16.msra.mxu0 %v1092
        %1153 = vmatprep.subr.bf16.mxu0 0
        %1154 = vmatpush1.bf16.msra.mxu0 %v1060
        %1155 = vmatprep.subr.bf16.mxu0 0
        %1156 = vmatpush1.bf16.msra.mxu0 %v1057
        %1157 = vmatprep.subr.bf16.mxu0 0
        %1158 = vmatpush1.bf16.msra.mxu0 %v1054
        %1159 = vmatprep.subr.bf16.mxu0 0
        %1160 = vmatpush1.bf16.msra.mxu0 %v1051
        %1161 = vmatprep.subr.bf16.mxu0 0
        %1162 = vmatpush1.bf16.msra.mxu0 %v1048
        %1163 = vmatprep.subr.bf16.mxu0 0
        %1164 = vmatpush2.bf16.msra.mxu0 0
        %1165 = vmatprep.subr.bf16.mxu0 0
        %1166 = vmatpush2.bf16.msra.mxu0 0
        %1167 = vmatprep.subr.bf16.mxu0 0
        %1168 = vmatpush2.bf16.msra.mxu0 0
        %1169 = vmatprep.subr.bf16.mxu0 0
        %1170 = vmatpush2.bf16.msra.mxu0 0
        %1171 = vmatprep.subr.bf16.mxu0 0
        %1172 = vmatpush2.bf16.msra.mxu0 0
        %1173 = vmatprep.subr.bf16.mxu0 0
        %1174 = vmatpush2.bf16.msra.mxu0 0
        %1175 = vmatprep.subr.bf16.mxu0 0
        %1176 = vmatpush2.bf16.msra.mxu0 0
        %1177 = vmatprep.subr.bf16.mxu0 0
        %1178 = vmatpush2.bf16.msra.mxu0 0
        %1179 = vmatprep.mubr.bf16.mxu0 0
        %1180 = vmatmul.mubr.bf16.gmra.mxu0 %v1080
        %v1181 = vpop.f32.mrf.mxu0
        %v1182 = vadd.f32 0.0, %v1181
        %v1183 = vpop.f32.mrf.mxu0
        %v1184 = vpop.f32.mrf.mxu0
        %v1185 = vadd.f32 0.0, %v1184
        %v1186 = vpop.f32.mrf.mxu0
        %1187 = vmatprep.mubr.bf16.mxu0 0
        %1188 = vmatmul.mubr.bf16.gmra.mxu0 %v1083
        %v1189 = vpop.f32.mrf.mxu0
        %v1190 = vadd.f32 0.0, %v1189
        %v1191 = vpop.f32.mrf.mxu0
        %v1192 = vpop.f32.mrf.mxu0
        %v1193 = vadd.f32 0.0, %v1192
        %v1194 = vpop.f32.mrf.mxu0
        %1195 = vdwg.mxu0
        %v1196 = vadd.f32 %v890, %v1129
        %v1197 = vadd.f32 %v892, %v1131
        %v1198 = vadd.f32 %v943, %v1182
        %v1199 = vadd.f32 %v894, %v1133
        %v1200 = vadd.f32 %v896, %v1135
        %v1201 = vadd.f32 %v946, %v1185
        %v1202 = vadd.f32 %v900, %v1139
        %v1203 = vadd.f32 %v902, %v1141
        %v1204 = vadd.f32 %v951, %v1190
        %v1205 = vadd.f32 %v904, %v1143
        %v1206 = vadd.f32 %v906, %v1145
        %v1207 = vadd.f32 %v954, %v1193
        %s1208 = scalar_lea.vmem %s1, 432
        %v1209 = vld [vmem:[%s1208] sm:$0xff]
        %v1210 = vld [vmem:[%s1208 + $0x8] sm:$0xf]
        %v1211 = vld [vmem:[%s1208 + $0xc] sm:$0xff]
        %v1212 = vld [vmem:[%s1208 + $0x14] sm:$0xf]
        %v1213 = vld [vmem:[%s1208 + $0x18] sm:$0xff]
        %v1214 = vld [vmem:[%s1208 + $0x20] sm:$0xf]
        %v1215 = vld [vmem:[%s1208 + $0x24] sm:$0xff]
        %v1216 = vld [vmem:[%s1208 + $0x2c] sm:$0xf]
        %v1217 = vld [vmem:[%s1208 + $0x30] sm:$0xff]
        %v1218 = vld [vmem:[%s1208 + $0x38] sm:$0xf]
        %v1219 = vld [vmem:[%s1208 + $0x3c] sm:$0xff]
        %v1220 = vld [vmem:[%s1208 + $0x44] sm:$0xf]
        %v1221 = vld [vmem:[%s1208 + $0x48] sm:$0xff]
        %v1222 = vld [vmem:[%s1208 + $0x50] sm:$0xf]
        %v1223 = vld [vmem:[%s1208 + $0x54] sm:$0xff]
        %v1224 = vld [vmem:[%s1208 + $0x5c] sm:$0xf]
        %v1225 = vld [vmem:[%s1208 + $0x60] sm:$0xff]
        %v1226 = vld [vmem:[%s1208 + $0x68] sm:$0xf]
        %v1227 = vld [vmem:[%s1208 + $0x6c] sm:$0xff]
        %v1228 = vld [vmem:[%s1208 + $0x74] sm:$0xf]
        %v1229 = vld [vmem:[%s1208 + $0x78] sm:$0xff]
        %v1230 = vld [vmem:[%s1208 + $0x80] sm:$0xf]
        %v1231 = vld [vmem:[%s1208 + $0x84] sm:$0x77]
        %v1232 = vld [vmem:[%s1208 + $0x8c] sm:$0x7]
        %1233 = vrot.lane.b32.xlu0 %v475, 119
        %v1234 = vpop.permute.xlu0 %1233
        %1235 = vrot.lane.b32.xlu0 %v476, 119
        %v1236 = vpop.permute.xlu0 %1235
        %v1261 = vunpack.c.l.b16 %v1209
        %v1262 = vunpack.c.h.b16 %v1209
        %v1263 = vunpack.c.l.b16 %v1210
        %v1264 = vunpack.c.l.b16 %v1211
        %v1265 = vunpack.c.h.b16 %v1211
        %v1266 = vunpack.c.l.b16 %v1212
        %v1267 = vunpack.c.l.b16 %v1213
        %v1268 = vunpack.c.h.b16 %v1213
        %v1269 = vunpack.c.l.b16 %v1214
        %v1270 = vunpack.c.l.b16 %v1215
        %v1271 = vunpack.c.h.b16 %v1215
        %v1272 = vunpack.c.l.b16 %v1216
        %v1273 = vunpack.c.l.b16 %v1217
        %v1274 = vunpack.c.h.b16 %v1217
        %v1275 = vunpack.c.l.b16 %v1218
        %v1276 = vunpack.c.l.b16 %v1219
        %v1277 = vunpack.c.h.b16 %v1219
        %v1278 = vunpack.c.l.b16 %v1220
        %v1279 = vunpack.c.l.b16 %v1221
        %v1280 = vunpack.c.h.b16 %v1221
        %v1281 = vunpack.c.l.b16 %v1222
        %v1282 = vunpack.c.l.b16 %v1223
        %v1283 = vunpack.c.h.b16 %v1223
        %v1284 = vunpack.c.l.b16 %v1224
        %v1285 = vunpack.c.l.b16 %v1225
        %v1286 = vunpack.c.h.b16 %v1225
        %v1287 = vunpack.c.l.b16 %v1226
        %v1288 = vunpack.c.l.b16 %v1227
        %v1289 = vunpack.c.h.b16 %v1227
        %v1290 = vunpack.c.l.b16 %v1228
        %v1291 = vunpack.c.l.b16 %v1229
        %v1292 = vunpack.c.h.b16 %v1229
        %v1293 = vunpack.c.l.b16 %v1230
        %v1294 = vunpack.c.l.b16 %v1231
        %v1295 = vunpack.c.h.b16 %v1231
        %v1296 = vunpack.c.l.b16 %v1232
        %v1297 = vpack.c.b16 %v1264, %v1261
        %v1298 = vpack.c.b16 %v1265, %v1262
        %v1299 = vpack.c.b16 %v1266, %v1263
        %v1300 = vpack.c.b16 %v1270, %v1267
        %v1301 = vpack.c.b16 %v1271, %v1268
        %v1302 = vpack.c.b16 %v1272, %v1269
        %v1303 = vpack.c.b16 %v1276, %v1273
        %v1304 = vpack.c.b16 %v1277, %v1274
        %v1305 = vpack.c.b16 %v1278, %v1275
        %v1306 = vpack.c.b16 %v1282, %v1279
        %v1307 = vpack.c.b16 %v1283, %v1280
        %v1308 = vpack.c.b16 %v1284, %v1281
        %v1309 = vpack.c.b16 %v1288, %v1285
        %v1310 = vpack.c.b16 %v1289, %v1286
        %v1311 = vpack.c.b16 %v1290, %v1287
        %v1312 = vpack.c.b16 %v1294, %v1291
        %v1313 = vpack.c.b16 %v1295, %v1292
        %v1314 = vpack.c.b16 %v1296, %v1293
        %v1331 = vsel %vm625, %v1234, 0
        %v1334 = vsel %vm625, %v1236, 0
        %v1337 = vand.u32 %v1312, %v635
        %v1340 = vand.u32 %v1313, %v635
        %v1343 = vand.u32 %v1314, %v635
        %1345 = vmatprep.subr.bf16.mxu0 0
        %1346 = vmatpush1.bf16.msra.mxu0 0
        %1347 = vmatprep.subr.bf16.mxu0 0
        %1348 = vmatpush1.bf16.msra.mxu0 0
        %1349 = vmatprep.subr.bf16.mxu0 %v1340
        %1350 = vmatpush1.bf16.msra.mxu0 %v1337
        %1351 = vmatprep.subr.bf16.mxu0 %v1310
        %1352 = vmatpush1.bf16.msra.mxu0 %v1309
        %1353 = vmatprep.subr.bf16.mxu0 %v1307
        %1354 = vmatpush1.bf16.msra.mxu0 %v1306
        %1355 = vmatprep.subr.bf16.mxu0 %v1304
        %1356 = vmatpush1.bf16.msra.mxu0 %v1303
        %1357 = vmatprep.subr.bf16.mxu0 %v1301
        %1358 = vmatpush1.bf16.msra.mxu0 %v1300
        %1359 = vmatprep.subr.bf16.mxu0 %v1298
        %1360 = vmatpush1.bf16.msra.mxu0 %v1297
        %1361 = vmatprep.subr.bf16.mxu0 0
        %1362 = vmatpush2.bf16.msra.mxu0 0
        %1363 = vmatprep.subr.bf16.mxu0 0
        %1364 = vmatpush2.bf16.msra.mxu0 0
        %1365 = vmatprep.subr.bf16.mxu0 0
        %1366 = vmatpush2.bf16.msra.mxu0 0
        %1367 = vmatprep.subr.bf16.mxu0 0
        %1368 = vmatpush2.bf16.msra.mxu0 0
        %1369 = vmatprep.subr.bf16.mxu0 0
        %1370 = vmatpush2.bf16.msra.mxu0 0
        %1371 = vmatprep.subr.bf16.mxu0 0
        %1372 = vmatpush2.bf16.msra.mxu0 0
        %1373 = vmatprep.subr.bf16.mxu0 0
        %1374 = vmatpush2.bf16.msra.mxu0 0
        %1375 = vmatprep.subr.bf16.mxu0 0
        %1376 = vmatpush2.bf16.msra.mxu0 0
        %1377 = vmatprep.mubr.bf16.mxu0 0
        %1378 = vmatmul.mubr.bf16.gmra.mxu0 %v1331
        %v1379 = vpop.f32.mrf.mxu0
        %v1380 = vadd.f32 0.0, %v1379
        %v1381 = vpop.f32.mrf.mxu0
        %v1382 = vadd.f32 0.0, %v1381
        %v1383 = vpop.f32.mrf.mxu0
        %v1384 = vadd.f32 0.0, %v1383
        %v1385 = vpop.f32.mrf.mxu0
        %v1386 = vadd.f32 0.0, %v1385
        %1387 = vmatprep.mubr.bf16.mxu0 0
        %1388 = vmatmul.mubr.bf16.gmra.mxu0 %v1334
        %v1389 = vpop.f32.mrf.mxu0
        %v1390 = vadd.f32 0.0, %v1389
        %v1391 = vpop.f32.mrf.mxu0
        %v1392 = vadd.f32 0.0, %v1391
        %v1393 = vpop.f32.mrf.mxu0
        %v1394 = vadd.f32 0.0, %v1393
        %v1395 = vpop.f32.mrf.mxu0
        %v1396 = vadd.f32 0.0, %v1395
        %1397 = vdwg.mxu0
        %1398 = vmatprep.subr.bf16.mxu0 0
        %1399 = vmatpush1.bf16.msra.mxu0 0
        %1400 = vmatprep.subr.bf16.mxu0 0
        %1401 = vmatpush1.bf16.msra.mxu0 0
        %1402 = vmatprep.subr.bf16.mxu0 0
        %1403 = vmatpush1.bf16.msra.mxu0 %v1343
        %1404 = vmatprep.subr.bf16.mxu0 0
        %1405 = vmatpush1.bf16.msra.mxu0 %v1311
        %1406 = vmatprep.subr.bf16.mxu0 0
        %1407 = vmatpush1.bf16.msra.mxu0 %v1308
        %1408 = vmatprep.subr.bf16.mxu0 0
        %1409 = vmatpush1.bf16.msra.mxu0 %v1305
        %1410 = vmatprep.subr.bf16.mxu0 0
        %1411 = vmatpush1.bf16.msra.mxu0 %v1302
        %1412 = vmatprep.subr.bf16.mxu0 0
        %1413 = vmatpush1.bf16.msra.mxu0 %v1299
        %1414 = vmatprep.subr.bf16.mxu0 0
        %1415 = vmatpush2.bf16.msra.mxu0 0
        %1416 = vmatprep.subr.bf16.mxu0 0
        %1417 = vmatpush2.bf16.msra.mxu0 0
        %1418 = vmatprep.subr.bf16.mxu0 0
        %1419 = vmatpush2.bf16.msra.mxu0 0
        %1420 = vmatprep.subr.bf16.mxu0 0
        %1421 = vmatpush2.bf16.msra.mxu0 0
        %1422 = vmatprep.subr.bf16.mxu0 0
        %1423 = vmatpush2.bf16.msra.mxu0 0
        %1424 = vmatprep.subr.bf16.mxu0 0
        %1425 = vmatpush2.bf16.msra.mxu0 0
        %1426 = vmatprep.subr.bf16.mxu0 0
        %1427 = vmatpush2.bf16.msra.mxu0 0
        %1428 = vmatprep.subr.bf16.mxu0 0
        %1429 = vmatpush2.bf16.msra.mxu0 0
        %1430 = vmatprep.mubr.bf16.mxu0 0
        %1431 = vmatmul.mubr.bf16.gmra.mxu0 %v1331
        %v1432 = vpop.f32.mrf.mxu0
        %v1433 = vadd.f32 0.0, %v1432
        %v1434 = vpop.f32.mrf.mxu0
        %v1435 = vpop.f32.mrf.mxu0
        %v1436 = vadd.f32 0.0, %v1435
        %v1437 = vpop.f32.mrf.mxu0
        %1438 = vmatprep.mubr.bf16.mxu0 0
        %1439 = vmatmul.mubr.bf16.gmra.mxu0 %v1334
        %v1440 = vpop.f32.mrf.mxu0
        %v1441 = vadd.f32 0.0, %v1440
        %v1442 = vpop.f32.mrf.mxu0
        %v1443 = vpop.f32.mrf.mxu0
        %v1444 = vadd.f32 0.0, %v1443
        %v1445 = vpop.f32.mrf.mxu0
        %1446 = vdwg.mxu0
        %v1447 = vadd.f32 %v1196, %v1380
        %v1448 = vadd.f32 %v1197, %v1382
        %v1449 = vadd.f32 %v1198, %v1433
        %v1450 = vadd.f32 %v1199, %v1384
        %v1451 = vadd.f32 %v1200, %v1386
        %v1452 = vadd.f32 %v1201, %v1436
        %v1453 = vadd.f32 %v1202, %v1390
        %v1454 = vadd.f32 %v1203, %v1392
        %v1455 = vadd.f32 %v1204, %v1441
        %v1456 = vadd.f32 %v1205, %v1394
        %v1457 = vadd.f32 %v1206, %v1396
        %v1458 = vadd.f32 %v1207, %v1444
        %v1459 = vld [vmem:[#allocation2 + $0x1] sm:$0xff]
        %v1460 = vld [vmem:[#allocation2 + $0x9] sm:$0xff]
        %v1461 = vld [vmem:[#allocation2 + $0x11] sm:$0xff]
        %v1462 = vld [vmem:[#allocation2 + $0x19] sm:$0x7f]
        %v1463 = vpack.c.bf16 %v1460, %v1459
        %v1464 = vpack.c.bf16 %v1462, %v1461
        %s1465 = scalar_lea.vmem %s1, 576
        %v1466 = vld [vmem:[%s1465] sm:$0xff]
        %v1467 = vld [vmem:[%s1465 + $0x8] sm:$0xf]
        %v1468 = vld [vmem:[%s1465 + $0xc] sm:$0xff]
        %v1469 = vld [vmem:[%s1465 + $0x14] sm:$0xf]
        %v1470 = vld [vmem:[%s1465 + $0x18] sm:$0xff]
        %v1471 = vld [vmem:[%s1465 + $0x20] sm:$0xf]
        %v1472 = vld [vmem:[%s1465 + $0x24] sm:$0xff]
        %v1473 = vld [vmem:[%s1465 + $0x2c] sm:$0xf]
        %v1474 = vld [vmem:[%s1465 + $0x30] sm:$0xff]
        %v1475 = vld [vmem:[%s1465 + $0x38] sm:$0xf]
        %v1476 = vld [vmem:[%s1465 + $0x3c] sm:$0xff]
        %v1477 = vld [vmem:[%s1465 + $0x44] sm:$0xf]
        %v1478 = vld [vmem:[%s1465 + $0x48] sm:$0xff]
        %v1479 = vld [vmem:[%s1465 + $0x50] sm:$0xf]
        %v1480 = vld [vmem:[%s1465 + $0x54] sm:$0xff]
        %v1481 = vld [vmem:[%s1465 + $0x5c] sm:$0xf]
        %v1482 = vld [vmem:[%s1465 + $0x60] sm:$0xff]
        %v1483 = vld [vmem:[%s1465 + $0x68] sm:$0xf]
        %v1484 = vld [vmem:[%s1465 + $0x6c] sm:$0xff]
        %v1485 = vld [vmem:[%s1465 + $0x74] sm:$0xf]
        %v1486 = vld [vmem:[%s1465 + $0x78] sm:$0xff]
        %v1487 = vld [vmem:[%s1465 + $0x80] sm:$0xf]
        %v1488 = vld [vmem:[%s1465 + $0x84] sm:$0x77]
        %v1489 = vld [vmem:[%s1465 + $0x8c] sm:$0x7]
        %v1514 = vunpack.c.l.b16 %v1466
        %v1515 = vunpack.c.h.b16 %v1466
        %v1516 = vunpack.c.l.b16 %v1467
        %v1517 = vunpack.c.l.b16 %v1468
        %v1518 = vunpack.c.h.b16 %v1468
        %v1519 = vunpack.c.l.b16 %v1469
        %v1520 = vunpack.c.l.b16 %v1470
        %v1521 = vunpack.c.h.b16 %v1470
        %v1522 = vunpack.c.l.b16 %v1471
        %v1523 = vunpack.c.l.b16 %v1472
        %v1524 = vunpack.c.h.b16 %v1472
        %v1525 = vunpack.c.l.b16 %v1473
        %v1526 = vunpack.c.l.b16 %v1474
        %v1527 = vunpack.c.h.b16 %v1474
        %v1528 = vunpack.c.l.b16 %v1475
        %v1529 = vunpack.c.l.b16 %v1476
        %v1530 = vunpack.c.h.b16 %v1476
        %v1531 = vunpack.c.l.b16 %v1477
        %v1532 = vunpack.c.l.b16 %v1478
        %v1533 = vunpack.c.h.b16 %v1478
        %v1534 = vunpack.c.l.b16 %v1479
        %v1535 = vunpack.c.l.b16 %v1480
        %v1536 = vunpack.c.h.b16 %v1480
        %v1537 = vunpack.c.l.b16 %v1481
        %v1538 = vunpack.c.l.b16 %v1482
        %v1539 = vunpack.c.h.b16 %v1482
        %v1540 = vunpack.c.l.b16 %v1483
        %v1541 = vunpack.c.l.b16 %v1484
        %v1542 = vunpack.c.h.b16 %v1484
        %v1543 = vunpack.c.l.b16 %v1485
        %v1544 = vunpack.c.l.b16 %v1486
        %v1545 = vunpack.c.h.b16 %v1486
        %v1546 = vunpack.c.l.b16 %v1487
        %v1547 = vunpack.c.l.b16 %v1488
        %v1548 = vunpack.c.h.b16 %v1488
        %v1549 = vunpack.c.l.b16 %v1489
        %v1550 = vpack.c.b16 %v1517, %v1514
        %v1551 = vpack.c.b16 %v1518, %v1515
        %v1552 = vpack.c.b16 %v1519, %v1516
        %v1553 = vpack.c.b16 %v1523, %v1520
        %v1554 = vpack.c.b16 %v1524, %v1521
        %v1555 = vpack.c.b16 %v1525, %v1522
        %v1556 = vpack.c.b16 %v1529, %v1526
        %v1557 = vpack.c.b16 %v1530, %v1527
        %v1558 = vpack.c.b16 %v1531, %v1528
        %v1559 = vpack.c.b16 %v1535, %v1532
        %v1560 = vpack.c.b16 %v1536, %v1533
        %v1561 = vpack.c.b16 %v1537, %v1534
        %v1562 = vpack.c.b16 %v1541, %v1538
        %v1563 = vpack.c.b16 %v1542, %v1539
        %v1564 = vpack.c.b16 %v1543, %v1540
        %v1565 = vpack.c.b16 %v1547, %v1544
        %v1566 = vpack.c.b16 %v1548, %v1545
        %v1567 = vpack.c.b16 %v1549, %v1546
        %v1584 = vsel %vm625, %v1463, 0
        %v1587 = vsel %vm625, %v1464, 0
        %v1590 = vand.u32 %v1565, %v635
        %v1593 = vand.u32 %v1566, %v635
        %v1596 = vand.u32 %v1567, %v635
        %1598 = vmatprep.subr.bf16.mxu0 0
        %1599 = vmatpush1.bf16.msra.mxu0 0
        %1600 = vmatprep.subr.bf16.mxu0 0
        %1601 = vmatpush1.bf16.msra.mxu0 0
        %1602 = vmatprep.subr.bf16.mxu0 %v1593
        %1603 = vmatpush1.bf16.msra.mxu0 %v1590
        %1604 = vmatprep.subr.bf16.mxu0 %v1563
        %1605 = vmatpush1.bf16.msra.mxu0 %v1562
        %1606 = vmatprep.subr.bf16.mxu0 %v1560
        %1607 = vmatpush1.bf16.msra.mxu0 %v1559
        %1608 = vmatprep.subr.bf16.mxu0 %v1557
        %1609 = vmatpush1.bf16.msra.mxu0 %v1556
        %1610 = vmatprep.subr.bf16.mxu0 %v1554
        %1611 = vmatpush1.bf16.msra.mxu0 %v1553
        %1612 = vmatprep.subr.bf16.mxu0 %v1551
        %1613 = vmatpush1.bf16.msra.mxu0 %v1550
        %1614 = vmatprep.subr.bf16.mxu0 0
        %1615 = vmatpush2.bf16.msra.mxu0 0
        %1616 = vmatprep.subr.bf16.mxu0 0
        %1617 = vmatpush2.bf16.msra.mxu0 0
        %1618 = vmatprep.subr.bf16.mxu0 0
        %1619 = vmatpush2.bf16.msra.mxu0 0
        %1620 = vmatprep.subr.bf16.mxu0 0
        %1621 = vmatpush2.bf16.msra.mxu0 0
        %1622 = vmatprep.subr.bf16.mxu0 0
        %1623 = vmatpush2.bf16.msra.mxu0 0
        %1624 = vmatprep.subr.bf16.mxu0 0
        %1625 = vmatpush2.bf16.msra.mxu0 0
        %1626 = vmatprep.subr.bf16.mxu0 0
        %1627 = vmatpush2.bf16.msra.mxu0 0
        %1628 = vmatprep.subr.bf16.mxu0 0
        %1629 = vmatpush2.bf16.msra.mxu0 0
        %1630 = vmatprep.mubr.bf16.mxu0 0
        %1631 = vmatmul.mubr.bf16.gmra.mxu0 %v1584
        %v1632 = vpop.f32.mrf.mxu0
        %v1633 = vadd.f32 0.0, %v1632
        %v1634 = vpop.f32.mrf.mxu0
        %v1635 = vadd.f32 0.0, %v1634
        %v1636 = vpop.f32.mrf.mxu0
        %v1637 = vadd.f32 0.0, %v1636
        %v1638 = vpop.f32.mrf.mxu0
        %v1639 = vadd.f32 0.0, %v1638
        %1640 = vmatprep.mubr.bf16.mxu0 0
        %1641 = vmatmul.mubr.bf16.gmra.mxu0 %v1587
        %v1642 = vpop.f32.mrf.mxu0
        %v1643 = vadd.f32 0.0, %v1642
        %v1644 = vpop.f32.mrf.mxu0
        %v1645 = vadd.f32 0.0, %v1644
        %v1646 = vpop.f32.mrf.mxu0
        %v1647 = vadd.f32 0.0, %v1646
        %v1648 = vpop.f32.mrf.mxu0
        %v1649 = vadd.f32 0.0, %v1648
        %1650 = vdwg.mxu0
        %1651 = vmatprep.subr.bf16.mxu0 0
        %1652 = vmatpush1.bf16.msra.mxu0 0
        %1653 = vmatprep.subr.bf16.mxu0 0
        %1654 = vmatpush1.bf16.msra.mxu0 0
        %1655 = vmatprep.subr.bf16.mxu0 0
        %1656 = vmatpush1.bf16.msra.mxu0 %v1596
        %1657 = vmatprep.subr.bf16.mxu0 0
        %1658 = vmatpush1.bf16.msra.mxu0 %v1564
        %1659 = vmatprep.subr.bf16.mxu0 0
        %1660 = vmatpush1.bf16.msra.mxu0 %v1561
        %1661 = vmatprep.subr.bf16.mxu0 0
        %1662 = vmatpush1.bf16.msra.mxu0 %v1558
        %1663 = vmatprep.subr.bf16.mxu0 0
        %1664 = vmatpush1.bf16.msra.mxu0 %v1555
        %1665 = vmatprep.subr.bf16.mxu0 0
        %1666 = vmatpush1.bf16.msra.mxu0 %v1552
        %1667 = vmatprep.subr.bf16.mxu0 0
        %1668 = vmatpush2.bf16.msra.mxu0 0
        %1669 = vmatprep.subr.bf16.mxu0 0
        %1670 = vmatpush2.bf16.msra.mxu0 0
        %1671 = vmatprep.subr.bf16.mxu0 0
        %1672 = vmatpush2.bf16.msra.mxu0 0
        %1673 = vmatprep.subr.bf16.mxu0 0
        %1674 = vmatpush2.bf16.msra.mxu0 0
        %1675 = vmatprep.subr.bf16.mxu0 0
        %1676 = vmatpush2.bf16.msra.mxu0 0
        %1677 = vmatprep.subr.bf16.mxu0 0
        %1678 = vmatpush2.bf16.msra.mxu0 0
        %1679 = vmatprep.subr.bf16.mxu0 0
        %1680 = vmatpush2.bf16.msra.mxu0 0
        %1681 = vmatprep.subr.bf16.mxu0 0
        %1682 = vmatpush2.bf16.msra.mxu0 0
        %1683 = vmatprep.mubr.bf16.mxu0 0
        %1684 = vmatmul.mubr.bf16.gmra.mxu0 %v1584
        %v1685 = vpop.f32.mrf.mxu0
        %v1686 = vadd.f32 0.0, %v1685
        %v1687 = vpop.f32.mrf.mxu0
        %v1688 = vpop.f32.mrf.mxu0
        %v1689 = vadd.f32 0.0, %v1688
        %v1690 = vpop.f32.mrf.mxu0
        %1691 = vmatprep.mubr.bf16.mxu0 0
        %1692 = vmatmul.mubr.bf16.gmra.mxu0 %v1587
        %v1693 = vpop.f32.mrf.mxu0
        %v1694 = vadd.f32 0.0, %v1693
        %v1695 = vpop.f32.mrf.mxu0
        %v1696 = vpop.f32.mrf.mxu0
        %v1697 = vadd.f32 0.0, %v1696
        %v1698 = vpop.f32.mrf.mxu0
        %1699 = vdwg.mxu0
        %v1700 = vadd.f32 %v1447, %v1633
        %v1701 = vadd.f32 %v1448, %v1635
        %v1702 = vadd.f32 %v1449, %v1686
        %v1703 = vadd.f32 %v1450, %v1637
        %v1704 = vadd.f32 %v1451, %v1639
        %v1705 = vadd.f32 %v1452, %v1689
        %v1706 = vadd.f32 %v1453, %v1643
        %v1707 = vadd.f32 %v1454, %v1645
        %v1708 = vadd.f32 %v1455, %v1694
        %v1709 = vadd.f32 %v1456, %v1647
        %v1710 = vadd.f32 %v1457, %v1649
        %v1711 = vadd.f32 %v1458, %v1697
        %s1712 = scalar_lea.vmem %s1, 720
        %v1713 = vld [vmem:[%s1712] sm:$0xff]
        %v1714 = vld [vmem:[%s1712 + $0x8] sm:$0xf]
        %v1715 = vld [vmem:[%s1712 + $0xc] sm:$0xff]
        %v1716 = vld [vmem:[%s1712 + $0x14] sm:$0xf]
        %v1717 = vld [vmem:[%s1712 + $0x18] sm:$0xff]
        %v1718 = vld [vmem:[%s1712 + $0x20] sm:$0xf]
        %v1719 = vld [vmem:[%s1712 + $0x24] sm:$0xff]
        %v1720 = vld [vmem:[%s1712 + $0x2c] sm:$0xf]
        %v1721 = vld [vmem:[%s1712 + $0x30] sm:$0xff]
        %v1722 = vld [vmem:[%s1712 + $0x38] sm:$0xf]
        %v1723 = vld [vmem:[%s1712 + $0x3c] sm:$0xff]
        %v1724 = vld [vmem:[%s1712 + $0x44] sm:$0xf]
        %v1725 = vld [vmem:[%s1712 + $0x48] sm:$0xff]
        %v1726 = vld [vmem:[%s1712 + $0x50] sm:$0xf]
        %v1727 = vld [vmem:[%s1712 + $0x54] sm:$0xff]
        %v1728 = vld [vmem:[%s1712 + $0x5c] sm:$0xf]
        %v1729 = vld [vmem:[%s1712 + $0x60] sm:$0xff]
        %v1730 = vld [vmem:[%s1712 + $0x68] sm:$0xf]
        %v1731 = vld [vmem:[%s1712 + $0x6c] sm:$0xff]
        %v1732 = vld [vmem:[%s1712 + $0x74] sm:$0xf]
        %v1733 = vld [vmem:[%s1712 + $0x78] sm:$0xff]
        %v1734 = vld [vmem:[%s1712 + $0x80] sm:$0xf]
        %v1735 = vld [vmem:[%s1712 + $0x84] sm:$0x77]
        %v1736 = vld [vmem:[%s1712 + $0x8c] sm:$0x7]
        %1739 = vrot.lane.b32.xlu0 %v1463, 125
        %v1740 = vpop.permute.xlu0 %1739
        %1741 = vrot.lane.b32.xlu0 %v1464, 125
        %v1742 = vpop.permute.xlu0 %1741
        %v1767 = vunpack.c.l.b16 %v1713
        %v1768 = vunpack.c.h.b16 %v1713
        %v1769 = vunpack.c.l.b16 %v1714
        %v1770 = vunpack.c.l.b16 %v1715
        %v1771 = vunpack.c.h.b16 %v1715
        %v1772 = vunpack.c.l.b16 %v1716
        %v1773 = vunpack.c.l.b16 %v1717
        %v1774 = vunpack.c.h.b16 %v1717
        %v1775 = vunpack.c.l.b16 %v1718
        %v1776 = vunpack.c.l.b16 %v1719
        %v1777 = vunpack.c.h.b16 %v1719
        %v1778 = vunpack.c.l.b16 %v1720
        %v1779 = vunpack.c.l.b16 %v1721
        %v1780 = vunpack.c.h.b16 %v1721
        %v1781 = vunpack.c.l.b16 %v1722
        %v1782 = vunpack.c.l.b16 %v1723
        %v1783 = vunpack.c.h.b16 %v1723
        %v1784 = vunpack.c.l.b16 %v1724
        %v1785 = vunpack.c.l.b16 %v1725
        %v1786 = vunpack.c.h.b16 %v1725
        %v1787 = vunpack.c.l.b16 %v1726
        %v1788 = vunpack.c.l.b16 %v1727
        %v1789 = vunpack.c.h.b16 %v1727
        %v1790 = vunpack.c.l.b16 %v1728
        %v1791 = vunpack.c.l.b16 %v1729
        %v1792 = vunpack.c.h.b16 %v1729
        %v1793 = vunpack.c.l.b16 %v1730
        %v1794 = vunpack.c.l.b16 %v1731
        %v1795 = vunpack.c.h.b16 %v1731
        %v1796 = vunpack.c.l.b16 %v1732
        %v1797 = vunpack.c.l.b16 %v1733
        %v1798 = vunpack.c.h.b16 %v1733
        %v1799 = vunpack.c.l.b16 %v1734
        %v1800 = vunpack.c.l.b16 %v1735
        %v1801 = vunpack.c.h.b16 %v1735
        %v1802 = vunpack.c.l.b16 %v1736
        %v1803 = vpack.c.b16 %v1770, %v1767
        %v1804 = vpack.c.b16 %v1771, %v1768
        %v1805 = vpack.c.b16 %v1772, %v1769
        %v1806 = vpack.c.b16 %v1776, %v1773
        %v1807 = vpack.c.b16 %v1777, %v1774
        %v1808 = vpack.c.b16 %v1778, %v1775
        %v1809 = vpack.c.b16 %v1782, %v1779
        %v1810 = vpack.c.b16 %v1783, %v1780
        %v1811 = vpack.c.b16 %v1784, %v1781
        %v1812 = vpack.c.b16 %v1788, %v1785
        %v1813 = vpack.c.b16 %v1789, %v1786
        %v1814 = vpack.c.b16 %v1790, %v1787
        %v1815 = vpack.c.b16 %v1794, %v1791
        %v1816 = vpack.c.b16 %v1795, %v1792
        %v1817 = vpack.c.b16 %v1796, %v1793
        %v1818 = vpack.c.b16 %v1800, %v1797
        %v1819 = vpack.c.b16 %v1801, %v1798
        %v1820 = vpack.c.b16 %v1802, %v1799
        %v1837 = vsel %vm625, %v1740, 0
        %v1840 = vsel %vm625, %v1742, 0
        %v1843 = vand.u32 %v1818, %v635
        %v1846 = vand.u32 %v1819, %v635
        %v1849 = vand.u32 %v1820, %v635
        %1851 = vmatprep.subr.bf16.mxu0 0
        %1852 = vmatpush1.bf16.msra.mxu0 0
        %1853 = vmatprep.subr.bf16.mxu0 0
        %1854 = vmatpush1.bf16.msra.mxu0 0
        %1855 = vmatprep.subr.bf16.mxu0 %v1846
        %1856 = vmatpush1.bf16.msra.mxu0 %v1843
        %1857 = vmatprep.subr.bf16.mxu0 %v1816
        %1858 = vmatpush1.bf16.msra.mxu0 %v1815
        %1859 = vmatprep.subr.bf16.mxu0 %v1813
        %1860 = vmatpush1.bf16.msra.mxu0 %v1812
        %1861 = vmatprep.subr.bf16.mxu0 %v1810
        %1862 = vmatpush1.bf16.msra.mxu0 %v1809
        %1863 = vmatprep.subr.bf16.mxu0 %v1807
        %1864 = vmatpush1.bf16.msra.mxu0 %v1806
        %1865 = vmatprep.subr.bf16.mxu0 %v1804
        %1866 = vmatpush1.bf16.msra.mxu0 %v1803
        %1867 = vmatprep.subr.bf16.mxu0 0
        %1868 = vmatpush2.bf16.msra.mxu0 0
        %1869 = vmatprep.subr.bf16.mxu0 0
        %1870 = vmatpush2.bf16.msra.mxu0 0
        %1871 = vmatprep.subr.bf16.mxu0 0
        %1872 = vmatpush2.bf16.msra.mxu0 0
        %1873 = vmatprep.subr.bf16.mxu0 0
        %1874 = vmatpush2.bf16.msra.mxu0 0
        %1875 = vmatprep.subr.bf16.mxu0 0
        %1876 = vmatpush2.bf16.msra.mxu0 0
        %1877 = vmatprep.subr.bf16.mxu0 0
        %1878 = vmatpush2.bf16.msra.mxu0 0
        %1879 = vmatprep.subr.bf16.mxu0 0
        %1880 = vmatpush2.bf16.msra.mxu0 0
        %1881 = vmatprep.subr.bf16.mxu0 0
        %1882 = vmatpush2.bf16.msra.mxu0 0
        %1883 = vmatprep.mubr.bf16.mxu0 0
        %1884 = vmatmul.mubr.bf16.gmra.mxu0 %v1837
        %v1885 = vpop.f32.mrf.mxu0
        %v1886 = vadd.f32 0.0, %v1885
        %v1887 = vpop.f32.mrf.mxu0
        %v1888 = vadd.f32 0.0, %v1887
        %v1889 = vpop.f32.mrf.mxu0
        %v1890 = vadd.f32 0.0, %v1889
        %v1891 = vpop.f32.mrf.mxu0
        %v1892 = vadd.f32 0.0, %v1891
        %1893 = vmatprep.mubr.bf16.mxu0 0
        %1894 = vmatmul.mubr.bf16.gmra.mxu0 %v1840
        %v1895 = vpop.f32.mrf.mxu0
        %v1896 = vadd.f32 0.0, %v1895
        %v1897 = vpop.f32.mrf.mxu0
        %v1898 = vadd.f32 0.0, %v1897
        %v1899 = vpop.f32.mrf.mxu0
        %v1900 = vadd.f32 0.0, %v1899
        %v1901 = vpop.f32.mrf.mxu0
        %v1902 = vadd.f32 0.0, %v1901
        %1903 = vdwg.mxu0
        %1904 = vmatprep.subr.bf16.mxu0 0
        %1905 = vmatpush1.bf16.msra.mxu0 0
        %1906 = vmatprep.subr.bf16.mxu0 0
        %1907 = vmatpush1.bf16.msra.mxu0 0
        %1908 = vmatprep.subr.bf16.mxu0 0
        %1909 = vmatpush1.bf16.msra.mxu0 %v1849
        %1910 = vmatprep.subr.bf16.mxu0 0
        %1911 = vmatpush1.bf16.msra.mxu0 %v1817
        %1912 = vmatprep.subr.bf16.mxu0 0
        %1913 = vmatpush1.bf16.msra.mxu0 %v1814
        %1914 = vmatprep.subr.bf16.mxu0 0
        %1915 = vmatpush1.bf16.msra.mxu0 %v1811
        %1916 = vmatprep.subr.bf16.mxu0 0
        %1917 = vmatpush1.bf16.msra.mxu0 %v1808
        %1918 = vmatprep.subr.bf16.mxu0 0
        %1919 = vmatpush1.bf16.msra.mxu0 %v1805
        %1920 = vmatprep.subr.bf16.mxu0 0
        %1921 = vmatpush2.bf16.msra.mxu0 0
        %1922 = vmatprep.subr.bf16.mxu0 0
        %1923 = vmatpush2.bf16.msra.mxu0 0
        %1924 = vmatprep.subr.bf16.mxu0 0
        %1925 = vmatpush2.bf16.msra.mxu0 0
        %1926 = vmatprep.subr.bf16.mxu0 0
        %1927 = vmatpush2.bf16.msra.mxu0 0
        %1928 = vmatprep.subr.bf16.mxu0 0
        %1929 = vmatpush2.bf16.msra.mxu0 0
        %1930 = vmatprep.subr.bf16.mxu0 0
        %1931 = vmatpush2.bf16.msra.mxu0 0
        %1932 = vmatprep.subr.bf16.mxu0 0
        %1933 = vmatpush2.bf16.msra.mxu0 0
        %1934 = vmatprep.subr.bf16.mxu0 0
        %1935 = vmatpush2.bf16.msra.mxu0 0
        %1936 = vmatprep.mubr.bf16.mxu0 0
        %1937 = vmatmul.mubr.bf16.gmra.mxu0 %v1837
        %v1938 = vpop.f32.mrf.mxu0
        %v1939 = vadd.f32 0.0, %v1938
        %v1940 = vpop.f32.mrf.mxu0
        %v1941 = vpop.f32.mrf.mxu0
        %v1942 = vadd.f32 0.0, %v1941
        %v1943 = vpop.f32.mrf.mxu0
        %1944 = vmatprep.mubr.bf16.mxu0 0
        %1945 = vmatmul.mubr.bf16.gmra.mxu0 %v1840
        %v1946 = vpop.f32.mrf.mxu0
        %v1947 = vadd.f32 0.0, %v1946
        %v1948 = vpop.f32.mrf.mxu0
        %v1949 = vpop.f32.mrf.mxu0
        %v1950 = vadd.f32 0.0, %v1949
        %v1951 = vpop.f32.mrf.mxu0
        %1952 = vdwg.mxu0
        %v1953 = vadd.f32 %v1700, %v1886
        %v1954 = vadd.f32 %v1701, %v1888
        %v1955 = vadd.f32 %v1702, %v1939
        %v1956 = vadd.f32 %v1703, %v1890
        %v1957 = vadd.f32 %v1704, %v1892
        %v1958 = vadd.f32 %v1705, %v1942
        %v1959 = vadd.f32 %v1706, %v1896
        %v1960 = vadd.f32 %v1707, %v1898
        %v1961 = vadd.f32 %v1708, %v1947
        %v1962 = vadd.f32 %v1709, %v1900
        %v1963 = vadd.f32 %v1710, %v1902
        %v1964 = vadd.f32 %v1711, %v1950
        %s1965 = scalar_lea.vmem %s1, 864
        %v1966 = vld [vmem:[%s1965] sm:$0xff]
        %v1967 = vld [vmem:[%s1965 + $0x8] sm:$0xf]
        %v1968 = vld [vmem:[%s1965 + $0xc] sm:$0xff]
        %v1969 = vld [vmem:[%s1965 + $0x14] sm:$0xf]
        %v1970 = vld [vmem:[%s1965 + $0x18] sm:$0xff]
        %v1971 = vld [vmem:[%s1965 + $0x20] sm:$0xf]
        %v1972 = vld [vmem:[%s1965 + $0x24] sm:$0xff]
        %v1973 = vld [vmem:[%s1965 + $0x2c] sm:$0xf]
        %v1974 = vld [vmem:[%s1965 + $0x30] sm:$0xff]
        %v1975 = vld [vmem:[%s1965 + $0x38] sm:$0xf]
        %v1976 = vld [vmem:[%s1965 + $0x3c] sm:$0xff]
        %v1977 = vld [vmem:[%s1965 + $0x44] sm:$0xf]
        %v1978 = vld [vmem:[%s1965 + $0x48] sm:$0xff]
        %v1979 = vld [vmem:[%s1965 + $0x50] sm:$0xf]
        %v1980 = vld [vmem:[%s1965 + $0x54] sm:$0xff]
        %v1981 = vld [vmem:[%s1965 + $0x5c] sm:$0xf]
        %v1982 = vld [vmem:[%s1965 + $0x60] sm:$0xff]
        %v1983 = vld [vmem:[%s1965 + $0x68] sm:$0xf]
        %v1984 = vld [vmem:[%s1965 + $0x6c] sm:$0xff]
        %v1985 = vld [vmem:[%s1965 + $0x74] sm:$0xf]
        %v1986 = vld [vmem:[%s1965 + $0x78] sm:$0xff]
        %v1987 = vld [vmem:[%s1965 + $0x80] sm:$0xf]
        %v1988 = vld [vmem:[%s1965 + $0x84] sm:$0x77]
        %v1989 = vld [vmem:[%s1965 + $0x8c] sm:$0x7]
        %1990 = vrot.lane.b32.xlu0 %v1463, 122
        %v1991 = vpop.permute.xlu0 %1990
        %1992 = vrot.lane.b32.xlu0 %v1464, 122
        %v1993 = vpop.permute.xlu0 %1992
        %v2018 = vunpack.c.l.b16 %v1966
        %v2019 = vunpack.c.h.b16 %v1966
        %v2020 = vunpack.c.l.b16 %v1967
        %v2021 = vunpack.c.l.b16 %v1968
        %v2022 = vunpack.c.h.b16 %v1968
        %v2023 = vunpack.c.l.b16 %v1969
        %v2024 = vunpack.c.l.b16 %v1970
        %v2025 = vunpack.c.h.b16 %v1970
        %v2026 = vunpack.c.l.b16 %v1971
        %v2027 = vunpack.c.l.b16 %v1972
        %v2028 = vunpack.c.h.b16 %v1972
        %v2029 = vunpack.c.l.b16 %v1973
        %v2030 = vunpack.c.l.b16 %v1974
        %v2031 = vunpack.c.h.b16 %v1974
        %v2032 = vunpack.c.l.b16 %v1975
        %v2033 = vunpack.c.l.b16 %v1976
        %v2034 = vunpack.c.h.b16 %v1976
        %v2035 = vunpack.c.l.b16 %v1977
        %v2036 = vunpack.c.l.b16 %v1978
        %v2037 = vunpack.c.h.b16 %v1978
        %v2038 = vunpack.c.l.b16 %v1979
        %v2039 = vunpack.c.l.b16 %v1980
        %v2040 = vunpack.c.h.b16 %v1980
        %v2041 = vunpack.c.l.b16 %v1981
        %v2042 = vunpack.c.l.b16 %v1982
        %v2043 = vunpack.c.h.b16 %v1982
        %v2044 = vunpack.c.l.b16 %v1983
        %v2045 = vunpack.c.l.b16 %v1984
        %v2046 = vunpack.c.h.b16 %v1984
        %v2047 = vunpack.c.l.b16 %v1985
        %v2048 = vunpack.c.l.b16 %v1986
        %v2049 = vunpack.c.h.b16 %v1986
        %v2050 = vunpack.c.l.b16 %v1987
        %v2051 = vunpack.c.l.b16 %v1988
        %v2052 = vunpack.c.h.b16 %v1988
        %v2053 = vunpack.c.l.b16 %v1989
        %v2054 = vpack.c.b16 %v2021, %v2018
        %v2055 = vpack.c.b16 %v2022, %v2019
        %v2056 = vpack.c.b16 %v2023, %v2020
        %v2057 = vpack.c.b16 %v2027, %v2024
        %v2058 = vpack.c.b16 %v2028, %v2025
        %v2059 = vpack.c.b16 %v2029, %v2026
        %v2060 = vpack.c.b16 %v2033, %v2030
        %v2061 = vpack.c.b16 %v2034, %v2031
        %v2062 = vpack.c.b16 %v2035, %v2032
        %v2063 = vpack.c.b16 %v2039, %v2036
        %v2064 = vpack.c.b16 %v2040, %v2037
        %v2065 = vpack.c.b16 %v2041, %v2038
        %v2066 = vpack.c.b16 %v2045, %v2042
        %v2067 = vpack.c.b16 %v2046, %v2043
        %v2068 = vpack.c.b16 %v2047, %v2044
        %v2069 = vpack.c.b16 %v2051, %v2048
        %v2070 = vpack.c.b16 %v2052, %v2049
        %v2071 = vpack.c.b16 %v2053, %v2050
        %v2088 = vsel %vm625, %v1991, 0
        %v2091 = vsel %vm625, %v1993, 0
        %v2094 = vand.u32 %v2069, %v635
        %v2097 = vand.u32 %v2070, %v635
        %v2100 = vand.u32 %v2071, %v635
        %2102 = vmatprep.subr.bf16.mxu0 0
        %2103 = vmatpush1.bf16.msra.mxu0 0
        %2104 = vmatprep.subr.bf16.mxu0 0
        %2105 = vmatpush1.bf16.msra.mxu0 0
        %2106 = vmatprep.subr.bf16.mxu0 %v2097
        %2107 = vmatpush1.bf16.msra.mxu0 %v2094
        %2108 = vmatprep.subr.bf16.mxu0 %v2067
        %2109 = vmatpush1.bf16.msra.mxu0 %v2066
        %2110 = vmatprep.subr.bf16.mxu0 %v2064
        %2111 = vmatpush1.bf16.msra.mxu0 %v2063
        %2112 = vmatprep.subr.bf16.mxu0 %v2061
        %2113 = vmatpush1.bf16.msra.mxu0 %v2060
        %2114 = vmatprep.subr.bf16.mxu0 %v2058
        %2115 = vmatpush1.bf16.msra.mxu0 %v2057
        %2116 = vmatprep.subr.bf16.mxu0 %v2055
        %2117 = vmatpush1.bf16.msra.mxu0 %v2054
        %2118 = vmatprep.subr.bf16.mxu0 0
        %2119 = vmatpush2.bf16.msra.mxu0 0
        %2120 = vmatprep.subr.bf16.mxu0 0
        %2121 = vmatpush2.bf16.msra.mxu0 0
        %2122 = vmatprep.subr.bf16.mxu0 0
        %2123 = vmatpush2.bf16.msra.mxu0 0
        %2124 = vmatprep.subr.bf16.mxu0 0
        %2125 = vmatpush2.bf16.msra.mxu0 0
        %2126 = vmatprep.subr.bf16.mxu0 0
        %2127 = vmatpush2.bf16.msra.mxu0 0
        %2128 = vmatprep.subr.bf16.mxu0 0
        %2129 = vmatpush2.bf16.msra.mxu0 0
        %2130 = vmatprep.subr.bf16.mxu0 0
        %2131 = vmatpush2.bf16.msra.mxu0 0
        %2132 = vmatprep.subr.bf16.mxu0 0
        %2133 = vmatpush2.bf16.msra.mxu0 0
        %2134 = vmatprep.mubr.bf16.mxu0 0
        %2135 = vmatmul.mubr.bf16.gmra.mxu0 %v2088
        %v2136 = vpop.f32.mrf.mxu0
        %v2137 = vadd.f32 0.0, %v2136
        %v2138 = vpop.f32.mrf.mxu0
        %v2139 = vadd.f32 0.0, %v2138
        %v2140 = vpop.f32.mrf.mxu0
        %v2141 = vadd.f32 0.0, %v2140
        %v2142 = vpop.f32.mrf.mxu0
        %v2143 = vadd.f32 0.0, %v2142
        %2144 = vmatprep.mubr.bf16.mxu0 0
        %2145 = vmatmul.mubr.bf16.gmra.mxu0 %v2091
        %v2146 = vpop.f32.mrf.mxu0
        %v2147 = vadd.f32 0.0, %v2146
        %v2148 = vpop.f32.mrf.mxu0
        %v2149 = vadd.f32 0.0, %v2148
        %v2150 = vpop.f32.mrf.mxu0
        %v2151 = vadd.f32 0.0, %v2150
        %v2152 = vpop.f32.mrf.mxu0
        %v2153 = vadd.f32 0.0, %v2152
        %2154 = vdwg.mxu0
        %2155 = vmatprep.subr.bf16.mxu0 0
        %2156 = vmatpush1.bf16.msra.mxu0 0
        %2157 = vmatprep.subr.bf16.mxu0 0
        %2158 = vmatpush1.bf16.msra.mxu0 0
        %2159 = vmatprep.subr.bf16.mxu0 0
        %2160 = vmatpush1.bf16.msra.mxu0 %v2100
        %2161 = vmatprep.subr.bf16.mxu0 0
        %2162 = vmatpush1.bf16.msra.mxu0 %v2068
        %2163 = vmatprep.subr.bf16.mxu0 0
        %2164 = vmatpush1.bf16.msra.mxu0 %v2065
        %2165 = vmatprep.subr.bf16.mxu0 0
        %2166 = vmatpush1.bf16.msra.mxu0 %v2062
        %2167 = vmatprep.subr.bf16.mxu0 0
        %2168 = vmatpush1.bf16.msra.mxu0 %v2059
        %2169 = vmatprep.subr.bf16.mxu0 0
        %2170 = vmatpush1.bf16.msra.mxu0 %v2056
        %2171 = vmatprep.subr.bf16.mxu0 0
        %2172 = vmatpush2.bf16.msra.mxu0 0
        %2173 = vmatprep.subr.bf16.mxu0 0
        %2174 = vmatpush2.bf16.msra.mxu0 0
        %2175 = vmatprep.subr.bf16.mxu0 0
        %2176 = vmatpush2.bf16.msra.mxu0 0
        %2177 = vmatprep.subr.bf16.mxu0 0
        %2178 = vmatpush2.bf16.msra.mxu0 0
        %2179 = vmatprep.subr.bf16.mxu0 0
        %2180 = vmatpush2.bf16.msra.mxu0 0
        %2181 = vmatprep.subr.bf16.mxu0 0
        %2182 = vmatpush2.bf16.msra.mxu0 0
        %2183 = vmatprep.subr.bf16.mxu0 0
        %2184 = vmatpush2.bf16.msra.mxu0 0
        %2185 = vmatprep.subr.bf16.mxu0 0
        %2186 = vmatpush2.bf16.msra.mxu0 0
        %2187 = vmatprep.mubr.bf16.mxu0 0
        %2188 = vmatmul.mubr.bf16.gmra.mxu0 %v2088
        %v2189 = vpop.f32.mrf.mxu0
        %v2190 = vadd.f32 0.0, %v2189
        %v2191 = vpop.f32.mrf.mxu0
        %v2192 = vpop.f32.mrf.mxu0
        %v2193 = vadd.f32 0.0, %v2192
        %v2194 = vpop.f32.mrf.mxu0
        %2195 = vmatprep.mubr.bf16.mxu0 0
        %2196 = vmatmul.mubr.bf16.gmra.mxu0 %v2091
        %v2197 = vpop.f32.mrf.mxu0
        %v2198 = vadd.f32 0.0, %v2197
        %v2199 = vpop.f32.mrf.mxu0
        %v2200 = vpop.f32.mrf.mxu0
        %v2201 = vadd.f32 0.0, %v2200
        %v2202 = vpop.f32.mrf.mxu0
        %2203 = vdwg.mxu0
        %v2204 = vadd.f32 %v1953, %v2137
        %v2205 = vadd.f32 %v1954, %v2139
        %v2206 = vadd.f32 %v1955, %v2190
        %v2207 = vadd.f32 %v1956, %v2141
        %v2208 = vadd.f32 %v1957, %v2143
        %v2209 = vadd.f32 %v1958, %v2193
        %v2210 = vadd.f32 %v1959, %v2147
        %v2211 = vadd.f32 %v1960, %v2149
        %v2212 = vadd.f32 %v1961, %v2198
        %v2213 = vadd.f32 %v1962, %v2151
        %v2214 = vadd.f32 %v1963, %v2153
        %v2215 = vadd.f32 %v1964, %v2201
        %s2216 = scalar_lea.vmem %s1, 1008
        %v2217 = vld [vmem:[%s2216] sm:$0xff]
        %v2218 = vld [vmem:[%s2216 + $0x8] sm:$0xf]
        %v2219 = vld [vmem:[%s2216 + $0xc] sm:$0xff]
        %v2220 = vld [vmem:[%s2216 + $0x14] sm:$0xf]
        %v2221 = vld [vmem:[%s2216 + $0x18] sm:$0xff]
        %v2222 = vld [vmem:[%s2216 + $0x20] sm:$0xf]
        %v2223 = vld [vmem:[%s2216 + $0x24] sm:$0xff]
        %v2224 = vld [vmem:[%s2216 + $0x2c] sm:$0xf]
        %v2225 = vld [vmem:[%s2216 + $0x30] sm:$0xff]
        %v2226 = vld [vmem:[%s2216 + $0x38] sm:$0xf]
        %v2227 = vld [vmem:[%s2216 + $0x3c] sm:$0xff]
        %v2228 = vld [vmem:[%s2216 + $0x44] sm:$0xf]
        %v2229 = vld [vmem:[%s2216 + $0x48] sm:$0xff]
        %v2230 = vld [vmem:[%s2216 + $0x50] sm:$0xf]
        %v2231 = vld [vmem:[%s2216 + $0x54] sm:$0xff]
        %v2232 = vld [vmem:[%s2216 + $0x5c] sm:$0xf]
        %v2233 = vld [vmem:[%s2216 + $0x60] sm:$0xff]
        %v2234 = vld [vmem:[%s2216 + $0x68] sm:$0xf]
        %v2235 = vld [vmem:[%s2216 + $0x6c] sm:$0xff]
        %v2236 = vld [vmem:[%s2216 + $0x74] sm:$0xf]
        %v2237 = vld [vmem:[%s2216 + $0x78] sm:$0xff]
        %v2238 = vld [vmem:[%s2216 + $0x80] sm:$0xf]
        %v2239 = vld [vmem:[%s2216 + $0x84] sm:$0x77]
        %v2240 = vld [vmem:[%s2216 + $0x8c] sm:$0x7]
        %2241 = vrot.lane.b32.xlu0 %v1463, 119
        %v2242 = vpop.permute.xlu0 %2241
        %2243 = vrot.lane.b32.xlu0 %v1464, 119
        %v2244 = vpop.permute.xlu0 %2243
        %v2269 = vunpack.c.l.b16 %v2217
        %v2270 = vunpack.c.h.b16 %v2217
        %v2271 = vunpack.c.l.b16 %v2218
        %v2272 = vunpack.c.l.b16 %v2219
        %v2273 = vunpack.c.h.b16 %v2219
        %v2274 = vunpack.c.l.b16 %v2220
        %v2275 = vunpack.c.l.b16 %v2221
        %v2276 = vunpack.c.h.b16 %v2221
        %v2277 = vunpack.c.l.b16 %v2222
        %v2278 = vunpack.c.l.b16 %v2223
        %v2279 = vunpack.c.h.b16 %v2223
        %v2280 = vunpack.c.l.b16 %v2224
        %v2281 = vunpack.c.l.b16 %v2225
        %v2282 = vunpack.c.h.b16 %v2225
        %v2283 = vunpack.c.l.b16 %v2226
        %v2284 = vunpack.c.l.b16 %v2227
        %v2285 = vunpack.c.h.b16 %v2227
        %v2286 = vunpack.c.l.b16 %v2228
        %v2287 = vunpack.c.l.b16 %v2229
        %v2288 = vunpack.c.h.b16 %v2229
        %v2289 = vunpack.c.l.b16 %v2230
        %v2290 = vunpack.c.l.b16 %v2231
        %v2291 = vunpack.c.h.b16 %v2231
        %v2292 = vunpack.c.l.b16 %v2232
        %v2293 = vunpack.c.l.b16 %v2233
        %v2294 = vunpack.c.h.b16 %v2233
        %v2295 = vunpack.c.l.b16 %v2234
        %v2296 = vunpack.c.l.b16 %v2235
        %v2297 = vunpack.c.h.b16 %v2235
        %v2298 = vunpack.c.l.b16 %v2236
        %v2299 = vunpack.c.l.b16 %v2237
        %v2300 = vunpack.c.h.b16 %v2237
        %v2301 = vunpack.c.l.b16 %v2238
        %v2302 = vunpack.c.l.b16 %v2239
        %v2303 = vunpack.c.h.b16 %v2239
        %v2304 = vunpack.c.l.b16 %v2240
        %v2305 = vpack.c.b16 %v2272, %v2269
        %v2306 = vpack.c.b16 %v2273, %v2270
        %v2307 = vpack.c.b16 %v2274, %v2271
        %v2308 = vpack.c.b16 %v2278, %v2275
        %v2309 = vpack.c.b16 %v2279, %v2276
        %v2310 = vpack.c.b16 %v2280, %v2277
        %v2311 = vpack.c.b16 %v2284, %v2281
        %v2312 = vpack.c.b16 %v2285, %v2282
        %v2313 = vpack.c.b16 %v2286, %v2283
        %v2314 = vpack.c.b16 %v2290, %v2287
        %v2315 = vpack.c.b16 %v2291, %v2288
        %v2316 = vpack.c.b16 %v2292, %v2289
        %v2317 = vpack.c.b16 %v2296, %v2293
        %v2318 = vpack.c.b16 %v2297, %v2294
        %v2319 = vpack.c.b16 %v2298, %v2295
        %v2320 = vpack.c.b16 %v2302, %v2299
        %v2321 = vpack.c.b16 %v2303, %v2300
        %v2322 = vpack.c.b16 %v2304, %v2301
        %v2339 = vsel %vm625, %v2242, 0
        %v2342 = vsel %vm625, %v2244, 0
        %v2345 = vand.u32 %v2320, %v635
        %v2348 = vand.u32 %v2321, %v635
        %v2351 = vand.u32 %v2322, %v635
        %2353 = vmatprep.subr.bf16.mxu0 0
        %2354 = vmatpush1.bf16.msra.mxu0 0
        %2355 = vmatprep.subr.bf16.mxu0 0
        %2356 = vmatpush1.bf16.msra.mxu0 0
        %2357 = vmatprep.subr.bf16.mxu0 %v2348
        %2358 = vmatpush1.bf16.msra.mxu0 %v2345
        %2359 = vmatprep.subr.bf16.mxu0 %v2318
        %2360 = vmatpush1.bf16.msra.mxu0 %v2317
        %2361 = vmatprep.subr.bf16.mxu0 %v2315
        %2362 = vmatpush1.bf16.msra.mxu0 %v2314
        %2363 = vmatprep.subr.bf16.mxu0 %v2312
        %2364 = vmatpush1.bf16.msra.mxu0 %v2311
        %2365 = vmatprep.subr.bf16.mxu0 %v2309
        %2366 = vmatpush1.bf16.msra.mxu0 %v2308
        %2367 = vmatprep.subr.bf16.mxu0 %v2306
        %2368 = vmatpush1.bf16.msra.mxu0 %v2305
        %2369 = vmatprep.subr.bf16.mxu0 0
        %2370 = vmatpush2.bf16.msra.mxu0 0
        %2371 = vmatprep.subr.bf16.mxu0 0
        %2372 = vmatpush2.bf16.msra.mxu0 0
        %2373 = vmatprep.subr.bf16.mxu0 0
        %2374 = vmatpush2.bf16.msra.mxu0 0
        %2375 = vmatprep.subr.bf16.mxu0 0
        %2376 = vmatpush2.bf16.msra.mxu0 0
        %2377 = vmatprep.subr.bf16.mxu0 0
        %2378 = vmatpush2.bf16.msra.mxu0 0
        %2379 = vmatprep.subr.bf16.mxu0 0
        %2380 = vmatpush2.bf16.msra.mxu0 0
        %2381 = vmatprep.subr.bf16.mxu0 0
        %2382 = vmatpush2.bf16.msra.mxu0 0
        %2383 = vmatprep.subr.bf16.mxu0 0
        %2384 = vmatpush2.bf16.msra.mxu0 0
        %2385 = vmatprep.mubr.bf16.mxu0 0
        %2386 = vmatmul.mubr.bf16.gmra.mxu0 %v2339
        %v2387 = vpop.f32.mrf.mxu0
        %v2388 = vadd.f32 0.0, %v2387
        %v2389 = vpop.f32.mrf.mxu0
        %v2390 = vadd.f32 0.0, %v2389
        %v2391 = vpop.f32.mrf.mxu0
        %v2392 = vadd.f32 0.0, %v2391
        %v2393 = vpop.f32.mrf.mxu0
        %v2394 = vadd.f32 0.0, %v2393
        %2395 = vmatprep.mubr.bf16.mxu0 0
        %2396 = vmatmul.mubr.bf16.gmra.mxu0 %v2342
        %v2397 = vpop.f32.mrf.mxu0
        %v2398 = vadd.f32 0.0, %v2397
        %v2399 = vpop.f32.mrf.mxu0
        %v2400 = vadd.f32 0.0, %v2399
        %v2401 = vpop.f32.mrf.mxu0
        %v2402 = vadd.f32 0.0, %v2401
        %v2403 = vpop.f32.mrf.mxu0
        %v2404 = vadd.f32 0.0, %v2403
        %2405 = vdwg.mxu0
        %2406 = vmatprep.subr.bf16.mxu0 0
        %2407 = vmatpush1.bf16.msra.mxu0 0
        %2408 = vmatprep.subr.bf16.mxu0 0
        %2409 = vmatpush1.bf16.msra.mxu0 0
        %2410 = vmatprep.subr.bf16.mxu0 0
        %2411 = vmatpush1.bf16.msra.mxu0 %v2351
        %2412 = vmatprep.subr.bf16.mxu0 0
        %2413 = vmatpush1.bf16.msra.mxu0 %v2319
        %2414 = vmatprep.subr.bf16.mxu0 0
        %2415 = vmatpush1.bf16.msra.mxu0 %v2316
        %2416 = vmatprep.subr.bf16.mxu0 0
        %2417 = vmatpush1.bf16.msra.mxu0 %v2313
        %2418 = vmatprep.subr.bf16.mxu0 0
        %2419 = vmatpush1.bf16.msra.mxu0 %v2310
        %2420 = vmatprep.subr.bf16.mxu0 0
        %2421 = vmatpush1.bf16.msra.mxu0 %v2307
        %2422 = vmatprep.subr.bf16.mxu0 0
        %2423 = vmatpush2.bf16.msra.mxu0 0
        %2424 = vmatprep.subr.bf16.mxu0 0
        %2425 = vmatpush2.bf16.msra.mxu0 0
        %2426 = vmatprep.subr.bf16.mxu0 0
        %2427 = vmatpush2.bf16.msra.mxu0 0
        %2428 = vmatprep.subr.bf16.mxu0 0
        %2429 = vmatpush2.bf16.msra.mxu0 0
        %2430 = vmatprep.subr.bf16.mxu0 0
        %2431 = vmatpush2.bf16.msra.mxu0 0
        %2432 = vmatprep.subr.bf16.mxu0 0
        %2433 = vmatpush2.bf16.msra.mxu0 0
        %2434 = vmatprep.subr.bf16.mxu0 0
        %2435 = vmatpush2.bf16.msra.mxu0 0
        %2436 = vmatprep.subr.bf16.mxu0 0
        %2437 = vmatpush2.bf16.msra.mxu0 0
        %2438 = vmatprep.mubr.bf16.mxu0 0
        %2439 = vmatmul.mubr.bf16.gmra.mxu0 %v2339
        %v2440 = vpop.f32.mrf.mxu0
        %v2441 = vadd.f32 0.0, %v2440
        %v2442 = vpop.f32.mrf.mxu0
        %v2443 = vpop.f32.mrf.mxu0
        %v2444 = vadd.f32 0.0, %v2443
        %v2445 = vpop.f32.mrf.mxu0
        %2446 = vmatprep.mubr.bf16.mxu0 0
        %2447 = vmatmul.mubr.bf16.gmra.mxu0 %v2342
        %v2448 = vpop.f32.mrf.mxu0
        %v2449 = vadd.f32 0.0, %v2448
        %v2450 = vpop.f32.mrf.mxu0
        %v2451 = vpop.f32.mrf.mxu0
        %v2452 = vadd.f32 0.0, %v2451
        %v2453 = vpop.f32.mrf.mxu0
        %2454 = vdwg.mxu0
        %v2455 = vadd.f32 %v2204, %v2388
        %v2456 = vadd.f32 %v2205, %v2390
        %v2457 = vadd.f32 %v2206, %v2441
        %v2458 = vadd.f32 %v2207, %v2392
        %v2459 = vadd.f32 %v2208, %v2394
        %v2460 = vadd.f32 %v2209, %v2444
        %v2461 = vadd.f32 %v2210, %v2398
        %v2462 = vadd.f32 %v2211, %v2400
        %v2463 = vadd.f32 %v2212, %v2449
        %v2464 = vadd.f32 %v2213, %v2402
        %v2465 = vadd.f32 %v2214, %v2404
        %v2466 = vadd.f32 %v2215, %v2452
        %v2467 = vld [vmem:[#allocation2 + $0x2] sm:$0xff]
        %v2468 = vld [vmem:[#allocation2 + $0xa] sm:$0xff]
        %v2469 = vld [vmem:[#allocation2 + $0x12] sm:$0xff]
        %v2470 = vld [vmem:[#allocation2 + $0x1a] sm:$0x7f]
        %v2471 = vpack.c.bf16 %v2468, %v2467
        %v2472 = vpack.c.bf16 %v2470, %v2469
        %s2473 = scalar_lea.vmem %s1, 1152
        %v2474 = vld [vmem:[%s2473] sm:$0xff]
        %v2475 = vld [vmem:[%s2473 + $0x8] sm:$0xf]
        %v2476 = vld [vmem:[%s2473 + $0xc] sm:$0xff]
        %v2477 = vld [vmem:[%s2473 + $0x14] sm:$0xf]
        %v2478 = vld [vmem:[%s2473 + $0x18] sm:$0xff]
        %v2479 = vld [vmem:[%s2473 + $0x20] sm:$0xf]
        %v2480 = vld [vmem:[%s2473 + $0x24] sm:$0xff]
        %v2481 = vld [vmem:[%s2473 + $0x2c] sm:$0xf]
        %v2482 = vld [vmem:[%s2473 + $0x30] sm:$0xff]
        %v2483 = vld [vmem:[%s2473 + $0x38] sm:$0xf]
        %v2484 = vld [vmem:[%s2473 + $0x3c] sm:$0xff]
        %v2485 = vld [vmem:[%s2473 + $0x44] sm:$0xf]
        %v2486 = vld [vmem:[%s2473 + $0x48] sm:$0xff]
        %v2487 = vld [vmem:[%s2473 + $0x50] sm:$0xf]
        %v2488 = vld [vmem:[%s2473 + $0x54] sm:$0xff]
        %v2489 = vld [vmem:[%s2473 + $0x5c] sm:$0xf]
        %v2490 = vld [vmem:[%s2473 + $0x60] sm:$0xff]
        %v2491 = vld [vmem:[%s2473 + $0x68] sm:$0xf]
        %v2492 = vld [vmem:[%s2473 + $0x6c] sm:$0xff]
        %v2493 = vld [vmem:[%s2473 + $0x74] sm:$0xf]
        %v2494 = vld [vmem:[%s2473 + $0x78] sm:$0xff]
        %v2495 = vld [vmem:[%s2473 + $0x80] sm:$0xf]
        %v2496 = vld [vmem:[%s2473 + $0x84] sm:$0x77]
        %v2497 = vld [vmem:[%s2473 + $0x8c] sm:$0x7]
        %v2522 = vunpack.c.l.b16 %v2474
        %v2523 = vunpack.c.h.b16 %v2474
        %v2524 = vunpack.c.l.b16 %v2475
        %v2525 = vunpack.c.l.b16 %v2476
        %v2526 = vunpack.c.h.b16 %v2476
        %v2527 = vunpack.c.l.b16 %v2477
        %v2528 = vunpack.c.l.b16 %v2478
        %v2529 = vunpack.c.h.b16 %v2478
        %v2530 = vunpack.c.l.b16 %v2479
        %v2531 = vunpack.c.l.b16 %v2480
        %v2532 = vunpack.c.h.b16 %v2480
        %v2533 = vunpack.c.l.b16 %v2481
        %v2534 = vunpack.c.l.b16 %v2482
        %v2535 = vunpack.c.h.b16 %v2482
        %v2536 = vunpack.c.l.b16 %v2483
        %v2537 = vunpack.c.l.b16 %v2484
        %v2538 = vunpack.c.h.b16 %v2484
        %v2539 = vunpack.c.l.b16 %v2485
        %v2540 = vunpack.c.l.b16 %v2486
        %v2541 = vunpack.c.h.b16 %v2486
        %v2542 = vunpack.c.l.b16 %v2487
        %v2543 = vunpack.c.l.b16 %v2488
        %v2544 = vunpack.c.h.b16 %v2488
        %v2545 = vunpack.c.l.b16 %v2489
        %v2546 = vunpack.c.l.b16 %v2490
        %v2547 = vunpack.c.h.b16 %v2490
        %v2548 = vunpack.c.l.b16 %v2491
        %v2549 = vunpack.c.l.b16 %v2492
        %v2550 = vunpack.c.h.b16 %v2492
        %v2551 = vunpack.c.l.b16 %v2493
        %v2552 = vunpack.c.l.b16 %v2494
        %v2553 = vunpack.c.h.b16 %v2494
        %v2554 = vunpack.c.l.b16 %v2495
        %v2555 = vunpack.c.l.b16 %v2496
        %v2556 = vunpack.c.h.b16 %v2496
        %v2557 = vunpack.c.l.b16 %v2497
        %v2558 = vpack.c.b16 %v2525, %v2522
        %v2559 = vpack.c.b16 %v2526, %v2523
        %v2560 = vpack.c.b16 %v2527, %v2524
        %v2561 = vpack.c.b16 %v2531, %v2528
        %v2562 = vpack.c.b16 %v2532, %v2529
        %v2563 = vpack.c.b16 %v2533, %v2530
        %v2564 = vpack.c.b16 %v2537, %v2534
        %v2565 = vpack.c.b16 %v2538, %v2535
        %v2566 = vpack.c.b16 %v2539, %v2536
        %v2567 = vpack.c.b16 %v2543, %v2540
        %v2568 = vpack.c.b16 %v2544, %v2541
        %v2569 = vpack.c.b16 %v2545, %v2542
        %v2570 = vpack.c.b16 %v2549, %v2546
        %v2571 = vpack.c.b16 %v2550, %v2547
        %v2572 = vpack.c.b16 %v2551, %v2548
        %v2573 = vpack.c.b16 %v2555, %v2552
        %v2574 = vpack.c.b16 %v2556, %v2553
        %v2575 = vpack.c.b16 %v2557, %v2554
        %v2592 = vsel %vm625, %v2471, 0
        %v2595 = vsel %vm625, %v2472, 0
        %v2598 = vand.u32 %v2573, %v635
        %v2601 = vand.u32 %v2574, %v635
        %v2604 = vand.u32 %v2575, %v635
        %2606 = vmatprep.subr.bf16.mxu0 0
        %2607 = vmatpush1.bf16.msra.mxu0 0
        %2608 = vmatprep.subr.bf16.mxu0 0
        %2609 = vmatpush1.bf16.msra.mxu0 0
        %2610 = vmatprep.subr.bf16.mxu0 %v2601
        %2611 = vmatpush1.bf16.msra.mxu0 %v2598
        %2612 = vmatprep.subr.bf16.mxu0 %v2571
        %2613 = vmatpush1.bf16.msra.mxu0 %v2570
        %2614 = vmatprep.subr.bf16.mxu0 %v2568
        %2615 = vmatpush1.bf16.msra.mxu0 %v2567
        %2616 = vmatprep.subr.bf16.mxu0 %v2565
        %2617 = vmatpush1.bf16.msra.mxu0 %v2564
        %2618 = vmatprep.subr.bf16.mxu0 %v2562
        %2619 = vmatpush1.bf16.msra.mxu0 %v2561
        %2620 = vmatprep.subr.bf16.mxu0 %v2559
        %2621 = vmatpush1.bf16.msra.mxu0 %v2558
        %2622 = vmatprep.subr.bf16.mxu0 0
        %2623 = vmatpush2.bf16.msra.mxu0 0
        %2624 = vmatprep.subr.bf16.mxu0 0
        %2625 = vmatpush2.bf16.msra.mxu0 0
        %2626 = vmatprep.subr.bf16.mxu0 0
        %2627 = vmatpush2.bf16.msra.mxu0 0
        %2628 = vmatprep.subr.bf16.mxu0 0
        %2629 = vmatpush2.bf16.msra.mxu0 0
        %2630 = vmatprep.subr.bf16.mxu0 0
        %2631 = vmatpush2.bf16.msra.mxu0 0
        %2632 = vmatprep.subr.bf16.mxu0 0
        %2633 = vmatpush2.bf16.msra.mxu0 0
        %2634 = vmatprep.subr.bf16.mxu0 0
        %2635 = vmatpush2.bf16.msra.mxu0 0
        %2636 = vmatprep.subr.bf16.mxu0 0
        %2637 = vmatpush2.bf16.msra.mxu0 0
        %2638 = vmatprep.mubr.bf16.mxu0 0
        %2639 = vmatmul.mubr.bf16.gmra.mxu0 %v2592
        %v2640 = vpop.f32.mrf.mxu0
        %v2641 = vadd.f32 0.0, %v2640
        %v2642 = vpop.f32.mrf.mxu0
        %v2643 = vadd.f32 0.0, %v2642
        %v2644 = vpop.f32.mrf.mxu0
        %v2645 = vadd.f32 0.0, %v2644
        %v2646 = vpop.f32.mrf.mxu0
        %v2647 = vadd.f32 0.0, %v2646
        %2648 = vmatprep.mubr.bf16.mxu0 0
        %2649 = vmatmul.mubr.bf16.gmra.mxu0 %v2595
        %v2650 = vpop.f32.mrf.mxu0
        %v2651 = vadd.f32 0.0, %v2650
        %v2652 = vpop.f32.mrf.mxu0
        %v2653 = vadd.f32 0.0, %v2652
        %v2654 = vpop.f32.mrf.mxu0
        %v2655 = vadd.f32 0.0, %v2654
        %v2656 = vpop.f32.mrf.mxu0
        %v2657 = vadd.f32 0.0, %v2656
        %2658 = vdwg.mxu0
        %2659 = vmatprep.subr.bf16.mxu0 0
        %2660 = vmatpush1.bf16.msra.mxu0 0
        %2661 = vmatprep.subr.bf16.mxu0 0
        %2662 = vmatpush1.bf16.msra.mxu0 0
        %2663 = vmatprep.subr.bf16.mxu0 0
        %2664 = vmatpush1.bf16.msra.mxu0 %v2604
        %2665 = vmatprep.subr.bf16.mxu0 0
        %2666 = vmatpush1.bf16.msra.mxu0 %v2572
        %2667 = vmatprep.subr.bf16.mxu0 0
        %2668 = vmatpush1.bf16.msra.mxu0 %v2569
        %2669 = vmatprep.subr.bf16.mxu0 0
        %2670 = vmatpush1.bf16.msra.mxu0 %v2566
        %2671 = vmatprep.subr.bf16.mxu0 0
        %2672 = vmatpush1.bf16.msra.mxu0 %v2563
        %2673 = vmatprep.subr.bf16.mxu0 0
        %2674 = vmatpush1.bf16.msra.mxu0 %v2560
        %2675 = vmatprep.subr.bf16.mxu0 0
        %2676 = vmatpush2.bf16.msra.mxu0 0
        %2677 = vmatprep.subr.bf16.mxu0 0
        %2678 = vmatpush2.bf16.msra.mxu0 0
        %2679 = vmatprep.subr.bf16.mxu0 0
        %2680 = vmatpush2.bf16.msra.mxu0 0
        %2681 = vmatprep.subr.bf16.mxu0 0
        %2682 = vmatpush2.bf16.msra.mxu0 0
        %2683 = vmatprep.subr.bf16.mxu0 0
        %2684 = vmatpush2.bf16.msra.mxu0 0
        %2685 = vmatprep.subr.bf16.mxu0 0
        %2686 = vmatpush2.bf16.msra.mxu0 0
        %2687 = vmatprep.subr.bf16.mxu0 0
        %2688 = vmatpush2.bf16.msra.mxu0 0
        %2689 = vmatprep.subr.bf16.mxu0 0
        %2690 = vmatpush2.bf16.msra.mxu0 0
        %2691 = vmatprep.mubr.bf16.mxu0 0
        %2692 = vmatmul.mubr.bf16.gmra.mxu0 %v2592
        %v2693 = vpop.f32.mrf.mxu0
        %v2694 = vadd.f32 0.0, %v2693
        %v2695 = vpop.f32.mrf.mxu0
        %v2696 = vpop.f32.mrf.mxu0
        %v2697 = vadd.f32 0.0, %v2696
        %v2698 = vpop.f32.mrf.mxu0
        %2699 = vmatprep.mubr.bf16.mxu0 0
        %2700 = vmatmul.mubr.bf16.gmra.mxu0 %v2595
        %v2701 = vpop.f32.mrf.mxu0
        %v2702 = vadd.f32 0.0, %v2701
        %v2703 = vpop.f32.mrf.mxu0
        %v2704 = vpop.f32.mrf.mxu0
        %v2705 = vadd.f32 0.0, %v2704
        %v2706 = vpop.f32.mrf.mxu0
        %2707 = vdwg.mxu0
        %v2708 = vadd.f32 %v2455, %v2641
        %v2709 = vadd.f32 %v2456, %v2643
        %v2710 = vadd.f32 %v2457, %v2694
        %v2711 = vadd.f32 %v2458, %v2645
        %v2712 = vadd.f32 %v2459, %v2647
        %v2713 = vadd.f32 %v2460, %v2697
        %v2714 = vadd.f32 %v2461, %v2651
        %v2715 = vadd.f32 %v2462, %v2653
        %v2716 = vadd.f32 %v2463, %v2702
        %v2717 = vadd.f32 %v2464, %v2655
        %v2718 = vadd.f32 %v2465, %v2657
        %v2719 = vadd.f32 %v2466, %v2705
        %s2720 = scalar_lea.vmem %s1, 1296
        %v2721 = vld [vmem:[%s2720] sm:$0xff]
        %v2722 = vld [vmem:[%s2720 + $0x8] sm:$0xf]
        %v2723 = vld [vmem:[%s2720 + $0xc] sm:$0xff]
        %v2724 = vld [vmem:[%s2720 + $0x14] sm:$0xf]
        %v2725 = vld [vmem:[%s2720 + $0x18] sm:$0xff]
        %v2726 = vld [vmem:[%s2720 + $0x20] sm:$0xf]
        %v2727 = vld [vmem:[%s2720 + $0x24] sm:$0xff]
        %v2728 = vld [vmem:[%s2720 + $0x2c] sm:$0xf]
        %v2729 = vld [vmem:[%s2720 + $0x30] sm:$0xff]
        %v2730 = vld [vmem:[%s2720 + $0x38] sm:$0xf]
        %v2731 = vld [vmem:[%s2720 + $0x3c] sm:$0xff]
        %v2732 = vld [vmem:[%s2720 + $0x44] sm:$0xf]
        %v2733 = vld [vmem:[%s2720 + $0x48] sm:$0xff]
        %v2734 = vld [vmem:[%s2720 + $0x50] sm:$0xf]
        %v2735 = vld [vmem:[%s2720 + $0x54] sm:$0xff]
        %v2736 = vld [vmem:[%s2720 + $0x5c] sm:$0xf]
        %v2737 = vld [vmem:[%s2720 + $0x60] sm:$0xff]
        %v2738 = vld [vmem:[%s2720 + $0x68] sm:$0xf]
        %v2739 = vld [vmem:[%s2720 + $0x6c] sm:$0xff]
        %v2740 = vld [vmem:[%s2720 + $0x74] sm:$0xf]
        %v2741 = vld [vmem:[%s2720 + $0x78] sm:$0xff]
        %v2742 = vld [vmem:[%s2720 + $0x80] sm:$0xf]
        %v2743 = vld [vmem:[%s2720 + $0x84] sm:$0x77]
        %v2744 = vld [vmem:[%s2720 + $0x8c] sm:$0x7]
        %2747 = vrot.lane.b32.xlu0 %v2471, 125
        %v2748 = vpop.permute.xlu0 %2747
        %2749 = vrot.lane.b32.xlu0 %v2472, 125
        %v2750 = vpop.permute.xlu0 %2749
        %v2775 = vunpack.c.l.b16 %v2721
        %v2776 = vunpack.c.h.b16 %v2721
        %v2777 = vunpack.c.l.b16 %v2722
        %v2778 = vunpack.c.l.b16 %v2723
        %v2779 = vunpack.c.h.b16 %v2723
        %v2780 = vunpack.c.l.b16 %v2724
        %v2781 = vunpack.c.l.b16 %v2725
        %v2782 = vunpack.c.h.b16 %v2725
        %v2783 = vunpack.c.l.b16 %v2726
        %v2784 = vunpack.c.l.b16 %v2727
        %v2785 = vunpack.c.h.b16 %v2727
        %v2786 = vunpack.c.l.b16 %v2728
        %v2787 = vunpack.c.l.b16 %v2729
        %v2788 = vunpack.c.h.b16 %v2729
        %v2789 = vunpack.c.l.b16 %v2730
        %v2790 = vunpack.c.l.b16 %v2731
        %v2791 = vunpack.c.h.b16 %v2731
        %v2792 = vunpack.c.l.b16 %v2732
        %v2793 = vunpack.c.l.b16 %v2733
        %v2794 = vunpack.c.h.b16 %v2733
        %v2795 = vunpack.c.l.b16 %v2734
        %v2796 = vunpack.c.l.b16 %v2735
        %v2797 = vunpack.c.h.b16 %v2735
        %v2798 = vunpack.c.l.b16 %v2736
        %v2799 = vunpack.c.l.b16 %v2737
        %v2800 = vunpack.c.h.b16 %v2737
        %v2801 = vunpack.c.l.b16 %v2738
        %v2802 = vunpack.c.l.b16 %v2739
        %v2803 = vunpack.c.h.b16 %v2739
        %v2804 = vunpack.c.l.b16 %v2740
        %v2805 = vunpack.c.l.b16 %v2741
        %v2806 = vunpack.c.h.b16 %v2741
        %v2807 = vunpack.c.l.b16 %v2742
        %v2808 = vunpack.c.l.b16 %v2743
        %v2809 = vunpack.c.h.b16 %v2743
        %v2810 = vunpack.c.l.b16 %v2744
        %v2811 = vpack.c.b16 %v2778, %v2775
        %v2812 = vpack.c.b16 %v2779, %v2776
        %v2813 = vpack.c.b16 %v2780, %v2777
        %v2814 = vpack.c.b16 %v2784, %v2781
        %v2815 = vpack.c.b16 %v2785, %v2782
        %v2816 = vpack.c.b16 %v2786, %v2783
        %v2817 = vpack.c.b16 %v2790, %v2787
        %v2818 = vpack.c.b16 %v2791, %v2788
        %v2819 = vpack.c.b16 %v2792, %v2789
        %v2820 = vpack.c.b16 %v2796, %v2793
        %v2821 = vpack.c.b16 %v2797, %v2794
        %v2822 = vpack.c.b16 %v2798, %v2795
        %v2823 = vpack.c.b16 %v2802, %v2799
        %v2824 = vpack.c.b16 %v2803, %v2800
        %v2825 = vpack.c.b16 %v2804, %v2801
        %v2826 = vpack.c.b16 %v2808, %v2805
        %v2827 = vpack.c.b16 %v2809, %v2806
        %v2828 = vpack.c.b16 %v2810, %v2807
        %v2845 = vsel %vm625, %v2748, 0
        %v2848 = vsel %vm625, %v2750, 0
        %v2851 = vand.u32 %v2826, %v635
        %v2854 = vand.u32 %v2827, %v635
        %v2857 = vand.u32 %v2828, %v635
        %2859 = vmatprep.subr.bf16.mxu0 0
        %2860 = vmatpush1.bf16.msra.mxu0 0
        %2861 = vmatprep.subr.bf16.mxu0 0
        %2862 = vmatpush1.bf16.msra.mxu0 0
        %2863 = vmatprep.subr.bf16.mxu0 %v2854
        %2864 = vmatpush1.bf16.msra.mxu0 %v2851
        %2865 = vmatprep.subr.bf16.mxu0 %v2824
        %2866 = vmatpush1.bf16.msra.mxu0 %v2823
        %2867 = vmatprep.subr.bf16.mxu0 %v2821
        %2868 = vmatpush1.bf16.msra.mxu0 %v2820
        %2869 = vmatprep.subr.bf16.mxu0 %v2818
        %2870 = vmatpush1.bf16.msra.mxu0 %v2817
        %2871 = vmatprep.subr.bf16.mxu0 %v2815
        %2872 = vmatpush1.bf16.msra.mxu0 %v2814
        %2873 = vmatprep.subr.bf16.mxu0 %v2812
        %2874 = vmatpush1.bf16.msra.mxu0 %v2811
        %2875 = vmatprep.subr.bf16.mxu0 0
        %2876 = vmatpush2.bf16.msra.mxu0 0
        %2877 = vmatprep.subr.bf16.mxu0 0
        %2878 = vmatpush2.bf16.msra.mxu0 0
        %2879 = vmatprep.subr.bf16.mxu0 0
        %2880 = vmatpush2.bf16.msra.mxu0 0
        %2881 = vmatprep.subr.bf16.mxu0 0
        %2882 = vmatpush2.bf16.msra.mxu0 0
        %2883 = vmatprep.subr.bf16.mxu0 0
        %2884 = vmatpush2.bf16.msra.mxu0 0
        %2885 = vmatprep.subr.bf16.mxu0 0
        %2886 = vmatpush2.bf16.msra.mxu0 0
        %2887 = vmatprep.subr.bf16.mxu0 0
        %2888 = vmatpush2.bf16.msra.mxu0 0
        %2889 = vmatprep.subr.bf16.mxu0 0
        %2890 = vmatpush2.bf16.msra.mxu0 0
        %2891 = vmatprep.mubr.bf16.mxu0 0
        %2892 = vmatmul.mubr.bf16.gmra.mxu0 %v2845
        %v2893 = vpop.f32.mrf.mxu0
        %v2894 = vadd.f32 0.0, %v2893
        %v2895 = vpop.f32.mrf.mxu0
        %v2896 = vadd.f32 0.0, %v2895
        %v2897 = vpop.f32.mrf.mxu0
        %v2898 = vadd.f32 0.0, %v2897
        %v2899 = vpop.f32.mrf.mxu0
        %v2900 = vadd.f32 0.0, %v2899
        %2901 = vmatprep.mubr.bf16.mxu0 0
        %2902 = vmatmul.mubr.bf16.gmra.mxu0 %v2848
        %v2903 = vpop.f32.mrf.mxu0
        %v2904 = vadd.f32 0.0, %v2903
        %v2905 = vpop.f32.mrf.mxu0
        %v2906 = vadd.f32 0.0, %v2905
        %v2907 = vpop.f32.mrf.mxu0
        %v2908 = vadd.f32 0.0, %v2907
        %v2909 = vpop.f32.mrf.mxu0
        %v2910 = vadd.f32 0.0, %v2909
        %2911 = vdwg.mxu0
        %2912 = vmatprep.subr.bf16.mxu0 0
        %2913 = vmatpush1.bf16.msra.mxu0 0
        %2914 = vmatprep.subr.bf16.mxu0 0
        %2915 = vmatpush1.bf16.msra.mxu0 0
        %2916 = vmatprep.subr.bf16.mxu0 0
        %2917 = vmatpush1.bf16.msra.mxu0 %v2857
        %2918 = vmatprep.subr.bf16.mxu0 0
        %2919 = vmatpush1.bf16.msra.mxu0 %v2825
        %2920 = vmatprep.subr.bf16.mxu0 0
        %2921 = vmatpush1.bf16.msra.mxu0 %v2822
        %2922 = vmatprep.subr.bf16.mxu0 0
        %2923 = vmatpush1.bf16.msra.mxu0 %v2819
        %2924 = vmatprep.subr.bf16.mxu0 0
        %2925 = vmatpush1.bf16.msra.mxu0 %v2816
        %2926 = vmatprep.subr.bf16.mxu0 0
        %2927 = vmatpush1.bf16.msra.mxu0 %v2813
        %2928 = vmatprep.subr.bf16.mxu0 0
        %2929 = vmatpush2.bf16.msra.mxu0 0
        %2930 = vmatprep.subr.bf16.mxu0 0
        %2931 = vmatpush2.bf16.msra.mxu0 0
        %2932 = vmatprep.subr.bf16.mxu0 0
        %2933 = vmatpush2.bf16.msra.mxu0 0
        %2934 = vmatprep.subr.bf16.mxu0 0
        %2935 = vmatpush2.bf16.msra.mxu0 0
        %2936 = vmatprep.subr.bf16.mxu0 0
        %2937 = vmatpush2.bf16.msra.mxu0 0
        %2938 = vmatprep.subr.bf16.mxu0 0
        %2939 = vmatpush2.bf16.msra.mxu0 0
        %2940 = vmatprep.subr.bf16.mxu0 0
        %2941 = vmatpush2.bf16.msra.mxu0 0
        %2942 = vmatprep.subr.bf16.mxu0 0
        %2943 = vmatpush2.bf16.msra.mxu0 0
        %2944 = vmatprep.mubr.bf16.mxu0 0
        %2945 = vmatmul.mubr.bf16.gmra.mxu0 %v2845
        %v2946 = vpop.f32.mrf.mxu0
        %v2947 = vadd.f32 0.0, %v2946
        %v2948 = vpop.f32.mrf.mxu0
        %v2949 = vpop.f32.mrf.mxu0
        %v2950 = vadd.f32 0.0, %v2949
        %v2951 = vpop.f32.mrf.mxu0
        %2952 = vmatprep.mubr.bf16.mxu0 0
        %2953 = vmatmul.mubr.bf16.gmra.mxu0 %v2848
        %v2954 = vpop.f32.mrf.mxu0
        %v2955 = vadd.f32 0.0, %v2954
        %v2956 = vpop.f32.mrf.mxu0
        %v2957 = vpop.f32.mrf.mxu0
        %v2958 = vadd.f32 0.0, %v2957
        %v2959 = vpop.f32.mrf.mxu0
        %2960 = vdwg.mxu0
        %v2961 = vadd.f32 %v2708, %v2894
        %v2962 = vadd.f32 %v2709, %v2896
        %v2963 = vadd.f32 %v2710, %v2947
        %v2964 = vadd.f32 %v2711, %v2898
        %v2965 = vadd.f32 %v2712, %v2900
        %v2966 = vadd.f32 %v2713, %v2950
        %v2967 = vadd.f32 %v2714, %v2904
        %v2968 = vadd.f32 %v2715, %v2906
        %v2969 = vadd.f32 %v2716, %v2955
        %v2970 = vadd.f32 %v2717, %v2908
        %v2971 = vadd.f32 %v2718, %v2910
        %v2972 = vadd.f32 %v2719, %v2958
        %s2973 = scalar_lea.vmem %s1, 1440
        %v2974 = vld [vmem:[%s2973] sm:$0xff]
        %v2975 = vld [vmem:[%s2973 + $0x8] sm:$0xf]
        %v2976 = vld [vmem:[%s2973 + $0xc] sm:$0xff]
        %v2977 = vld [vmem:[%s2973 + $0x14] sm:$0xf]
        %v2978 = vld [vmem:[%s2973 + $0x18] sm:$0xff]
        %v2979 = vld [vmem:[%s2973 + $0x20] sm:$0xf]
        %v2980 = vld [vmem:[%s2973 + $0x24] sm:$0xff]
        %v2981 = vld [vmem:[%s2973 + $0x2c] sm:$0xf]
        %v2982 = vld [vmem:[%s2973 + $0x30] sm:$0xff]
        %v2983 = vld [vmem:[%s2973 + $0x38] sm:$0xf]
        %v2984 = vld [vmem:[%s2973 + $0x3c] sm:$0xff]
        %v2985 = vld [vmem:[%s2973 + $0x44] sm:$0xf]
        %v2986 = vld [vmem:[%s2973 + $0x48] sm:$0xff]
        %v2987 = vld [vmem:[%s2973 + $0x50] sm:$0xf]
        %v2988 = vld [vmem:[%s2973 + $0x54] sm:$0xff]
        %v2989 = vld [vmem:[%s2973 + $0x5c] sm:$0xf]
        %v2990 = vld [vmem:[%s2973 + $0x60] sm:$0xff]
        %v2991 = vld [vmem:[%s2973 + $0x68] sm:$0xf]
        %v2992 = vld [vmem:[%s2973 + $0x6c] sm:$0xff]
        %v2993 = vld [vmem:[%s2973 + $0x74] sm:$0xf]
        %v2994 = vld [vmem:[%s2973 + $0x78] sm:$0xff]
        %v2995 = vld [vmem:[%s2973 + $0x80] sm:$0xf]
        %v2996 = vld [vmem:[%s2973 + $0x84] sm:$0x77]
        %v2997 = vld [vmem:[%s2973 + $0x8c] sm:$0x7]
        %2998 = vrot.lane.b32.xlu0 %v2471, 122
        %v2999 = vpop.permute.xlu0 %2998
        %3000 = vrot.lane.b32.xlu0 %v2472, 122
        %v3001 = vpop.permute.xlu0 %3000
        %v3026 = vunpack.c.l.b16 %v2974
        %v3027 = vunpack.c.h.b16 %v2974
        %v3028 = vunpack.c.l.b16 %v2975
        %v3029 = vunpack.c.l.b16 %v2976
        %v3030 = vunpack.c.h.b16 %v2976
        %v3031 = vunpack.c.l.b16 %v2977
        %v3032 = vunpack.c.l.b16 %v2978
        %v3033 = vunpack.c.h.b16 %v2978
        %v3034 = vunpack.c.l.b16 %v2979
        %v3035 = vunpack.c.l.b16 %v2980
        %v3036 = vunpack.c.h.b16 %v2980
        %v3037 = vunpack.c.l.b16 %v2981
        %v3038 = vunpack.c.l.b16 %v2982
        %v3039 = vunpack.c.h.b16 %v2982
        %v3040 = vunpack.c.l.b16 %v2983
        %v3041 = vunpack.c.l.b16 %v2984
        %v3042 = vunpack.c.h.b16 %v2984
        %v3043 = vunpack.c.l.b16 %v2985
        %v3044 = vunpack.c.l.b16 %v2986
        %v3045 = vunpack.c.h.b16 %v2986
        %v3046 = vunpack.c.l.b16 %v2987
        %v3047 = vunpack.c.l.b16 %v2988
        %v3048 = vunpack.c.h.b16 %v2988
        %v3049 = vunpack.c.l.b16 %v2989
        %v3050 = vunpack.c.l.b16 %v2990
        %v3051 = vunpack.c.h.b16 %v2990
        %v3052 = vunpack.c.l.b16 %v2991
        %v3053 = vunpack.c.l.b16 %v2992
        %v3054 = vunpack.c.h.b16 %v2992
        %v3055 = vunpack.c.l.b16 %v2993
        %v3056 = vunpack.c.l.b16 %v2994
        %v3057 = vunpack.c.h.b16 %v2994
        %v3058 = vunpack.c.l.b16 %v2995
        %v3059 = vunpack.c.l.b16 %v2996
        %v3060 = vunpack.c.h.b16 %v2996
        %v3061 = vunpack.c.l.b16 %v2997
        %v3062 = vpack.c.b16 %v3029, %v3026
        %v3063 = vpack.c.b16 %v3030, %v3027
        %v3064 = vpack.c.b16 %v3031, %v3028
        %v3065 = vpack.c.b16 %v3035, %v3032
        %v3066 = vpack.c.b16 %v3036, %v3033
        %v3067 = vpack.c.b16 %v3037, %v3034
        %v3068 = vpack.c.b16 %v3041, %v3038
        %v3069 = vpack.c.b16 %v3042, %v3039
        %v3070 = vpack.c.b16 %v3043, %v3040
        %v3071 = vpack.c.b16 %v3047, %v3044
        %v3072 = vpack.c.b16 %v3048, %v3045
        %v3073 = vpack.c.b16 %v3049, %v3046
        %v3074 = vpack.c.b16 %v3053, %v3050
        %v3075 = vpack.c.b16 %v3054, %v3051
        %v3076 = vpack.c.b16 %v3055, %v3052
        %v3077 = vpack.c.b16 %v3059, %v3056
        %v3078 = vpack.c.b16 %v3060, %v3057
        %v3079 = vpack.c.b16 %v3061, %v3058
        %v3096 = vsel %vm625, %v2999, 0
        %v3099 = vsel %vm625, %v3001, 0
        %v3102 = vand.u32 %v3077, %v635
        %v3105 = vand.u32 %v3078, %v635
        %v3108 = vand.u32 %v3079, %v635
        %3110 = vmatprep.subr.bf16.mxu0 0
        %3111 = vmatpush1.bf16.msra.mxu0 0
        %3112 = vmatprep.subr.bf16.mxu0 0
        %3113 = vmatpush1.bf16.msra.mxu0 0
        %3114 = vmatprep.subr.bf16.mxu0 %v3105
        %3115 = vmatpush1.bf16.msra.mxu0 %v3102
        %3116 = vmatprep.subr.bf16.mxu0 %v3075
        %3117 = vmatpush1.bf16.msra.mxu0 %v3074
        %3118 = vmatprep.subr.bf16.mxu0 %v3072
        %3119 = vmatpush1.bf16.msra.mxu0 %v3071
        %3120 = vmatprep.subr.bf16.mxu0 %v3069
        %3121 = vmatpush1.bf16.msra.mxu0 %v3068
        %3122 = vmatprep.subr.bf16.mxu0 %v3066
        %3123 = vmatpush1.bf16.msra.mxu0 %v3065
        %3124 = vmatprep.subr.bf16.mxu0 %v3063
        %3125 = vmatpush1.bf16.msra.mxu0 %v3062
        %3126 = vmatprep.subr.bf16.mxu0 0
        %3127 = vmatpush2.bf16.msra.mxu0 0
        %3128 = vmatprep.subr.bf16.mxu0 0
        %3129 = vmatpush2.bf16.msra.mxu0 0
        %3130 = vmatprep.subr.bf16.mxu0 0
        %3131 = vmatpush2.bf16.msra.mxu0 0
        %3132 = vmatprep.subr.bf16.mxu0 0
        %3133 = vmatpush2.bf16.msra.mxu0 0
        %3134 = vmatprep.subr.bf16.mxu0 0
        %3135 = vmatpush2.bf16.msra.mxu0 0
        %3136 = vmatprep.subr.bf16.mxu0 0
        %3137 = vmatpush2.bf16.msra.mxu0 0
        %3138 = vmatprep.subr.bf16.mxu0 0
        %3139 = vmatpush2.bf16.msra.mxu0 0
        %3140 = vmatprep.subr.bf16.mxu0 0
        %3141 = vmatpush2.bf16.msra.mxu0 0
        %3142 = vmatprep.mubr.bf16.mxu0 0
        %3143 = vmatmul.mubr.bf16.gmra.mxu0 %v3096
        %v3144 = vpop.f32.mrf.mxu0
        %v3145 = vadd.f32 0.0, %v3144
        %v3146 = vpop.f32.mrf.mxu0
        %v3147 = vadd.f32 0.0, %v3146
        %v3148 = vpop.f32.mrf.mxu0
        %v3149 = vadd.f32 0.0, %v3148
        %v3150 = vpop.f32.mrf.mxu0
        %v3151 = vadd.f32 0.0, %v3150
        %3152 = vmatprep.mubr.bf16.mxu0 0
        %3153 = vmatmul.mubr.bf16.gmra.mxu0 %v3099
        %v3154 = vpop.f32.mrf.mxu0
        %v3155 = vadd.f32 0.0, %v3154
        %v3156 = vpop.f32.mrf.mxu0
        %v3157 = vadd.f32 0.0, %v3156
        %v3158 = vpop.f32.mrf.mxu0
        %v3159 = vadd.f32 0.0, %v3158
        %v3160 = vpop.f32.mrf.mxu0
        %v3161 = vadd.f32 0.0, %v3160
        %3162 = vdwg.mxu0
        %3163 = vmatprep.subr.bf16.mxu0 0
        %3164 = vmatpush1.bf16.msra.mxu0 0
        %3165 = vmatprep.subr.bf16.mxu0 0
        %3166 = vmatpush1.bf16.msra.mxu0 0
        %3167 = vmatprep.subr.bf16.mxu0 0
        %3168 = vmatpush1.bf16.msra.mxu0 %v3108
        %3169 = vmatprep.subr.bf16.mxu0 0
        %3170 = vmatpush1.bf16.msra.mxu0 %v3076
        %3171 = vmatprep.subr.bf16.mxu0 0
        %3172 = vmatpush1.bf16.msra.mxu0 %v3073
        %3173 = vmatprep.subr.bf16.mxu0 0
        %3174 = vmatpush1.bf16.msra.mxu0 %v3070
        %3175 = vmatprep.subr.bf16.mxu0 0
        %3176 = vmatpush1.bf16.msra.mxu0 %v3067
        %3177 = vmatprep.subr.bf16.mxu0 0
        %3178 = vmatpush1.bf16.msra.mxu0 %v3064
        %3179 = vmatprep.subr.bf16.mxu0 0
        %3180 = vmatpush2.bf16.msra.mxu0 0
        %3181 = vmatprep.subr.bf16.mxu0 0
        %3182 = vmatpush2.bf16.msra.mxu0 0
        %3183 = vmatprep.subr.bf16.mxu0 0
        %3184 = vmatpush2.bf16.msra.mxu0 0
        %3185 = vmatprep.subr.bf16.mxu0 0
        %3186 = vmatpush2.bf16.msra.mxu0 0
        %3187 = vmatprep.subr.bf16.mxu0 0
        %3188 = vmatpush2.bf16.msra.mxu0 0
        %3189 = vmatprep.subr.bf16.mxu0 0
        %3190 = vmatpush2.bf16.msra.mxu0 0
        %3191 = vmatprep.subr.bf16.mxu0 0
        %3192 = vmatpush2.bf16.msra.mxu0 0
        %3193 = vmatprep.subr.bf16.mxu0 0
        %3194 = vmatpush2.bf16.msra.mxu0 0
        %3195 = vmatprep.mubr.bf16.mxu0 0
        %3196 = vmatmul.mubr.bf16.gmra.mxu0 %v3096
        %v3197 = vpop.f32.mrf.mxu0
        %v3198 = vadd.f32 0.0, %v3197
        %v3199 = vpop.f32.mrf.mxu0
        %v3200 = vpop.f32.mrf.mxu0
        %v3201 = vadd.f32 0.0, %v3200
        %v3202 = vpop.f32.mrf.mxu0
        %3203 = vmatprep.mubr.bf16.mxu0 0
        %3204 = vmatmul.mubr.bf16.gmra.mxu0 %v3099
        %v3205 = vpop.f32.mrf.mxu0
        %v3206 = vadd.f32 0.0, %v3205
        %v3207 = vpop.f32.mrf.mxu0
        %v3208 = vpop.f32.mrf.mxu0
        %v3209 = vadd.f32 0.0, %v3208
        %v3210 = vpop.f32.mrf.mxu0
        %3211 = vdwg.mxu0
        %v3212 = vadd.f32 %v2961, %v3145
        %v3213 = vadd.f32 %v2962, %v3147
        %v3214 = vadd.f32 %v2963, %v3198
        %v3215 = vadd.f32 %v2964, %v3149
        %v3216 = vadd.f32 %v2965, %v3151
        %v3217 = vadd.f32 %v2966, %v3201
        %v3218 = vadd.f32 %v2967, %v3155
        %v3219 = vadd.f32 %v2968, %v3157
        %v3220 = vadd.f32 %v2969, %v3206
        %v3221 = vadd.f32 %v2970, %v3159
        %v3222 = vadd.f32 %v2971, %v3161
        %v3223 = vadd.f32 %v2972, %v3209
        %s3224 = scalar_lea.vmem %s1, 1584
        %v3225 = vld [vmem:[%s3224] sm:$0xff]
        %v3226 = vld [vmem:[%s3224 + $0x8] sm:$0xf]
        %v3227 = vld [vmem:[%s3224 + $0xc] sm:$0xff]
        %v3228 = vld [vmem:[%s3224 + $0x14] sm:$0xf]
        %v3229 = vld [vmem:[%s3224 + $0x18] sm:$0xff]
        %v3230 = vld [vmem:[%s3224 + $0x20] sm:$0xf]
        %v3231 = vld [vmem:[%s3224 + $0x24] sm:$0xff]
        %v3232 = vld [vmem:[%s3224 + $0x2c] sm:$0xf]
        %v3233 = vld [vmem:[%s3224 + $0x30] sm:$0xff]
        %v3234 = vld [vmem:[%s3224 + $0x38] sm:$0xf]
        %v3235 = vld [vmem:[%s3224 + $0x3c] sm:$0xff]
        %v3236 = vld [vmem:[%s3224 + $0x44] sm:$0xf]
        %v3237 = vld [vmem:[%s3224 + $0x48] sm:$0xff]
        %v3238 = vld [vmem:[%s3224 + $0x50] sm:$0xf]
        %v3239 = vld [vmem:[%s3224 + $0x54] sm:$0xff]
        %v3240 = vld [vmem:[%s3224 + $0x5c] sm:$0xf]
        %v3241 = vld [vmem:[%s3224 + $0x60] sm:$0xff]
        %v3242 = vld [vmem:[%s3224 + $0x68] sm:$0xf]
        %v3243 = vld [vmem:[%s3224 + $0x6c] sm:$0xff]
        %v3244 = vld [vmem:[%s3224 + $0x74] sm:$0xf]
        %v3245 = vld [vmem:[%s3224 + $0x78] sm:$0xff]
        %v3246 = vld [vmem:[%s3224 + $0x80] sm:$0xf]
        %v3247 = vld [vmem:[%s3224 + $0x84] sm:$0x77]
        %v3248 = vld [vmem:[%s3224 + $0x8c] sm:$0x7]
        %3249 = vrot.lane.b32.xlu0 %v2471, 119
        %v3250 = vpop.permute.xlu0 %3249
        %3251 = vrot.lane.b32.xlu0 %v2472, 119
        %v3252 = vpop.permute.xlu0 %3251
        %v3277 = vunpack.c.l.b16 %v3225
        %v3278 = vunpack.c.h.b16 %v3225
        %v3279 = vunpack.c.l.b16 %v3226
        %v3280 = vunpack.c.l.b16 %v3227
        %v3281 = vunpack.c.h.b16 %v3227
        %v3282 = vunpack.c.l.b16 %v3228
        %v3283 = vunpack.c.l.b16 %v3229
        %v3284 = vunpack.c.h.b16 %v3229
        %v3285 = vunpack.c.l.b16 %v3230
        %v3286 = vunpack.c.l.b16 %v3231
        %v3287 = vunpack.c.h.b16 %v3231
        %v3288 = vunpack.c.l.b16 %v3232
        %v3289 = vunpack.c.l.b16 %v3233
        %v3290 = vunpack.c.h.b16 %v3233
        %v3291 = vunpack.c.l.b16 %v3234
        %v3292 = vunpack.c.l.b16 %v3235
        %v3293 = vunpack.c.h.b16 %v3235
        %v3294 = vunpack.c.l.b16 %v3236
        %v3295 = vunpack.c.l.b16 %v3237
        %v3296 = vunpack.c.h.b16 %v3237
        %v3297 = vunpack.c.l.b16 %v3238
        %v3298 = vunpack.c.l.b16 %v3239
        %v3299 = vunpack.c.h.b16 %v3239
        %v3300 = vunpack.c.l.b16 %v3240
        %v3301 = vunpack.c.l.b16 %v3241
        %v3302 = vunpack.c.h.b16 %v3241
        %v3303 = vunpack.c.l.b16 %v3242
        %v3304 = vunpack.c.l.b16 %v3243
        %v3305 = vunpack.c.h.b16 %v3243
        %v3306 = vunpack.c.l.b16 %v3244
        %v3307 = vunpack.c.l.b16 %v3245
        %v3308 = vunpack.c.h.b16 %v3245
        %v3309 = vunpack.c.l.b16 %v3246
        %v3310 = vunpack.c.l.b16 %v3247
        %v3311 = vunpack.c.h.b16 %v3247
        %v3312 = vunpack.c.l.b16 %v3248
        %v3313 = vpack.c.b16 %v3280, %v3277
        %v3314 = vpack.c.b16 %v3281, %v3278
        %v3315 = vpack.c.b16 %v3282, %v3279
        %v3316 = vpack.c.b16 %v3286, %v3283
        %v3317 = vpack.c.b16 %v3287, %v3284
        %v3318 = vpack.c.b16 %v3288, %v3285
        %v3319 = vpack.c.b16 %v3292, %v3289
        %v3320 = vpack.c.b16 %v3293, %v3290
        %v3321 = vpack.c.b16 %v3294, %v3291
        %v3322 = vpack.c.b16 %v3298, %v3295
        %v3323 = vpack.c.b16 %v3299, %v3296
        %v3324 = vpack.c.b16 %v3300, %v3297
        %v3325 = vpack.c.b16 %v3304, %v3301
        %v3326 = vpack.c.b16 %v3305, %v3302
        %v3327 = vpack.c.b16 %v3306, %v3303
        %v3328 = vpack.c.b16 %v3310, %v3307
        %v3329 = vpack.c.b16 %v3311, %v3308
        %v3330 = vpack.c.b16 %v3312, %v3309
        %v3347 = vsel %vm625, %v3250, 0
        %v3350 = vsel %vm625, %v3252, 0
        %v3353 = vand.u32 %v3328, %v635
        %v3356 = vand.u32 %v3329, %v635
        %v3359 = vand.u32 %v3330, %v635
        %3361 = vmatprep.subr.bf16.mxu0 0
        %3362 = vmatpush1.bf16.msra.mxu0 0
        %3363 = vmatprep.subr.bf16.mxu0 0
        %3364 = vmatpush1.bf16.msra.mxu0 0
        %3365 = vmatprep.subr.bf16.mxu0 %v3356
        %3366 = vmatpush1.bf16.msra.mxu0 %v3353
        %3367 = vmatprep.subr.bf16.mxu0 %v3326
        %3368 = vmatpush1.bf16.msra.mxu0 %v3325
        %3369 = vmatprep.subr.bf16.mxu0 %v3323
        %3370 = vmatpush1.bf16.msra.mxu0 %v3322
        %3371 = vmatprep.subr.bf16.mxu0 %v3320
        %3372 = vmatpush1.bf16.msra.mxu0 %v3319
        %3373 = vmatprep.subr.bf16.mxu0 %v3317
        %3374 = vmatpush1.bf16.msra.mxu0 %v3316
        %3375 = vmatprep.subr.bf16.mxu0 %v3314
        %3376 = vmatpush1.bf16.msra.mxu0 %v3313
        %3377 = vmatprep.subr.bf16.mxu0 0
        %3378 = vmatpush2.bf16.msra.mxu0 0
        %3379 = vmatprep.subr.bf16.mxu0 0
        %3380 = vmatpush2.bf16.msra.mxu0 0
        %3381 = vmatprep.subr.bf16.mxu0 0
        %3382 = vmatpush2.bf16.msra.mxu0 0
        %3383 = vmatprep.subr.bf16.mxu0 0
        %3384 = vmatpush2.bf16.msra.mxu0 0
        %3385 = vmatprep.subr.bf16.mxu0 0
        %3386 = vmatpush2.bf16.msra.mxu0 0
        %3387 = vmatprep.subr.bf16.mxu0 0
        %3388 = vmatpush2.bf16.msra.mxu0 0
        %3389 = vmatprep.subr.bf16.mxu0 0
        %3390 = vmatpush2.bf16.msra.mxu0 0
        %3391 = vmatprep.subr.bf16.mxu0 0
        %3392 = vmatpush2.bf16.msra.mxu0 0
        %3393 = vmatprep.mubr.bf16.mxu0 0
        %3394 = vmatmul.mubr.bf16.gmra.mxu0 %v3347
        %v3395 = vpop.f32.mrf.mxu0
        %v3396 = vadd.f32 0.0, %v3395
        %v3397 = vpop.f32.mrf.mxu0
        %v3398 = vadd.f32 0.0, %v3397
        %v3399 = vpop.f32.mrf.mxu0
        %v3400 = vadd.f32 0.0, %v3399
        %v3401 = vpop.f32.mrf.mxu0
        %v3402 = vadd.f32 0.0, %v3401
        %3403 = vmatprep.mubr.bf16.mxu0 0
        %3404 = vmatmul.mubr.bf16.gmra.mxu0 %v3350
        %v3405 = vpop.f32.mrf.mxu0
        %v3406 = vadd.f32 0.0, %v3405
        %v3407 = vpop.f32.mrf.mxu0
        %v3408 = vadd.f32 0.0, %v3407
        %v3409 = vpop.f32.mrf.mxu0
        %v3410 = vadd.f32 0.0, %v3409
        %v3411 = vpop.f32.mrf.mxu0
        %v3412 = vadd.f32 0.0, %v3411
        %3413 = vdwg.mxu0
        %3414 = vmatprep.subr.bf16.mxu0 0
        %3415 = vmatpush1.bf16.msra.mxu0 0
        %3416 = vmatprep.subr.bf16.mxu0 0
        %3417 = vmatpush1.bf16.msra.mxu0 0
        %3418 = vmatprep.subr.bf16.mxu0 0
        %3419 = vmatpush1.bf16.msra.mxu0 %v3359
        %3420 = vmatprep.subr.bf16.mxu0 0
        %3421 = vmatpush1.bf16.msra.mxu0 %v3327
        %3422 = vmatprep.subr.bf16.mxu0 0
        %3423 = vmatpush1.bf16.msra.mxu0 %v3324
        %3424 = vmatprep.subr.bf16.mxu0 0
        %3425 = vmatpush1.bf16.msra.mxu0 %v3321
        %3426 = vmatprep.subr.bf16.mxu0 0
        %3427 = vmatpush1.bf16.msra.mxu0 %v3318
        %3428 = vmatprep.subr.bf16.mxu0 0
        %3429 = vmatpush1.bf16.msra.mxu0 %v3315
        %3430 = vmatprep.subr.bf16.mxu0 0
        %3431 = vmatpush2.bf16.msra.mxu0 0
        %3432 = vmatprep.subr.bf16.mxu0 0
        %3433 = vmatpush2.bf16.msra.mxu0 0
        %3434 = vmatprep.subr.bf16.mxu0 0
        %3435 = vmatpush2.bf16.msra.mxu0 0
        %3436 = vmatprep.subr.bf16.mxu0 0
        %3437 = vmatpush2.bf16.msra.mxu0 0
        %3438 = vmatprep.subr.bf16.mxu0 0
        %3439 = vmatpush2.bf16.msra.mxu0 0
        %3440 = vmatprep.subr.bf16.mxu0 0
        %3441 = vmatpush2.bf16.msra.mxu0 0
        %3442 = vmatprep.subr.bf16.mxu0 0
        %3443 = vmatpush2.bf16.msra.mxu0 0
        %3444 = vmatprep.subr.bf16.mxu0 0
        %3445 = vmatpush2.bf16.msra.mxu0 0
        %3446 = vmatprep.mubr.bf16.mxu0 0
        %3447 = vmatmul.mubr.bf16.gmra.mxu0 %v3347
        %v3448 = vpop.f32.mrf.mxu0
        %v3449 = vadd.f32 0.0, %v3448
        %v3450 = vpop.f32.mrf.mxu0
        %v3451 = vpop.f32.mrf.mxu0
        %v3452 = vadd.f32 0.0, %v3451
        %v3453 = vpop.f32.mrf.mxu0
        %3454 = vmatprep.mubr.bf16.mxu0 0
        %3455 = vmatmul.mubr.bf16.gmra.mxu0 %v3350
        %v3456 = vpop.f32.mrf.mxu0
        %v3457 = vadd.f32 0.0, %v3456
        %v3458 = vpop.f32.mrf.mxu0
        %v3459 = vpop.f32.mrf.mxu0
        %v3460 = vadd.f32 0.0, %v3459
        %v3461 = vpop.f32.mrf.mxu0
        %3462 = vdwg.mxu0
        %v3463 = vadd.f32 %v3212, %v3396
        %v3464 = vadd.f32 %v3213, %v3398
        %v3465 = vadd.f32 %v3214, %v3449
        %v3466 = vadd.f32 %v3215, %v3400
        %v3467 = vadd.f32 %v3216, %v3402
        %v3468 = vadd.f32 %v3217, %v3452
        %v3469 = vadd.f32 %v3218, %v3406
        %v3470 = vadd.f32 %v3219, %v3408
        %v3471 = vadd.f32 %v3220, %v3457
        %v3472 = vadd.f32 %v3221, %v3410
        %v3473 = vadd.f32 %v3222, %v3412
        %v3474 = vadd.f32 %v3223, %v3460
        %v3475 = vld [vmem:[#allocation2 + $0x3] sm:$0xff]
        %v3476 = vld [vmem:[#allocation2 + $0xb] sm:$0xff]
        %v3477 = vld [vmem:[#allocation2 + $0x13] sm:$0xff]
        %v3478 = vld [vmem:[#allocation2 + $0x1b] sm:$0x7f]
        %v3479 = vpack.c.bf16 %v3476, %v3475
        %v3480 = vpack.c.bf16 %v3478, %v3477
        %s3481 = scalar_lea.vmem %s1, 1728
        %v3482 = vld [vmem:[%s3481] sm:$0xff]
        %v3483 = vld [vmem:[%s3481 + $0x8] sm:$0xf]
        %v3484 = vld [vmem:[%s3481 + $0xc] sm:$0xff]
        %v3485 = vld [vmem:[%s3481 + $0x14] sm:$0xf]
        %v3486 = vld [vmem:[%s3481 + $0x18] sm:$0xff]
        %v3487 = vld [vmem:[%s3481 + $0x20] sm:$0xf]
        %v3488 = vld [vmem:[%s3481 + $0x24] sm:$0xff]
        %v3489 = vld [vmem:[%s3481 + $0x2c] sm:$0xf]
        %v3490 = vld [vmem:[%s3481 + $0x30] sm:$0xff]
        %v3491 = vld [vmem:[%s3481 + $0x38] sm:$0xf]
        %v3492 = vld [vmem:[%s3481 + $0x3c] sm:$0xff]
        %v3493 = vld [vmem:[%s3481 + $0x44] sm:$0xf]
        %v3494 = vld [vmem:[%s3481 + $0x48] sm:$0xff]
        %v3495 = vld [vmem:[%s3481 + $0x50] sm:$0xf]
        %v3496 = vld [vmem:[%s3481 + $0x54] sm:$0xff]
        %v3497 = vld [vmem:[%s3481 + $0x5c] sm:$0xf]
        %v3498 = vld [vmem:[%s3481 + $0x60] sm:$0xff]
        %v3499 = vld [vmem:[%s3481 + $0x68] sm:$0xf]
        %v3500 = vld [vmem:[%s3481 + $0x6c] sm:$0xff]
        %v3501 = vld [vmem:[%s3481 + $0x74] sm:$0xf]
        %v3502 = vld [vmem:[%s3481 + $0x78] sm:$0xff]
        %v3503 = vld [vmem:[%s3481 + $0x80] sm:$0xf]
        %v3504 = vld [vmem:[%s3481 + $0x84] sm:$0x77]
        %v3505 = vld [vmem:[%s3481 + $0x8c] sm:$0x7]
        %v3530 = vunpack.c.l.b16 %v3482
        %v3531 = vunpack.c.h.b16 %v3482
        %v3532 = vunpack.c.l.b16 %v3483
        %v3533 = vunpack.c.l.b16 %v3484
        %v3534 = vunpack.c.h.b16 %v3484
        %v3535 = vunpack.c.l.b16 %v3485
        %v3536 = vunpack.c.l.b16 %v3486
        %v3537 = vunpack.c.h.b16 %v3486
        %v3538 = vunpack.c.l.b16 %v3487
        %v3539 = vunpack.c.l.b16 %v3488
        %v3540 = vunpack.c.h.b16 %v3488
        %v3541 = vunpack.c.l.b16 %v3489
        %v3542 = vunpack.c.l.b16 %v3490
        %v3543 = vunpack.c.h.b16 %v3490
        %v3544 = vunpack.c.l.b16 %v3491
        %v3545 = vunpack.c.l.b16 %v3492
        %v3546 = vunpack.c.h.b16 %v3492
        %v3547 = vunpack.c.l.b16 %v3493
        %v3548 = vunpack.c.l.b16 %v3494
        %v3549 = vunpack.c.h.b16 %v3494
        %v3550 = vunpack.c.l.b16 %v3495
        %v3551 = vunpack.c.l.b16 %v3496
        %v3552 = vunpack.c.h.b16 %v3496
        %v3553 = vunpack.c.l.b16 %v3497
        %v3554 = vunpack.c.l.b16 %v3498
        %v3555 = vunpack.c.h.b16 %v3498
        %v3556 = vunpack.c.l.b16 %v3499
        %v3557 = vunpack.c.l.b16 %v3500
        %v3558 = vunpack.c.h.b16 %v3500
        %v3559 = vunpack.c.l.b16 %v3501
        %v3560 = vunpack.c.l.b16 %v3502
        %v3561 = vunpack.c.h.b16 %v3502
        %v3562 = vunpack.c.l.b16 %v3503
        %v3563 = vunpack.c.l.b16 %v3504
        %v3564 = vunpack.c.h.b16 %v3504
        %v3565 = vunpack.c.l.b16 %v3505
        %v3566 = vpack.c.b16 %v3533, %v3530
        %v3567 = vpack.c.b16 %v3534, %v3531
        %v3568 = vpack.c.b16 %v3535, %v3532
        %v3569 = vpack.c.b16 %v3539, %v3536
        %v3570 = vpack.c.b16 %v3540, %v3537
        %v3571 = vpack.c.b16 %v3541, %v3538
        %v3572 = vpack.c.b16 %v3545, %v3542
        %v3573 = vpack.c.b16 %v3546, %v3543
        %v3574 = vpack.c.b16 %v3547, %v3544
        %v3575 = vpack.c.b16 %v3551, %v3548
        %v3576 = vpack.c.b16 %v3552, %v3549
        %v3577 = vpack.c.b16 %v3553, %v3550
        %v3578 = vpack.c.b16 %v3557, %v3554
        %v3579 = vpack.c.b16 %v3558, %v3555
        %v3580 = vpack.c.b16 %v3559, %v3556
        %v3581 = vpack.c.b16 %v3563, %v3560
        %v3582 = vpack.c.b16 %v3564, %v3561
        %v3583 = vpack.c.b16 %v3565, %v3562
        %v3600 = vsel %vm625, %v3479, 0
        %v3603 = vsel %vm625, %v3480, 0
        %v3606 = vand.u32 %v3581, %v635
        %v3609 = vand.u32 %v3582, %v635
        %v3612 = vand.u32 %v3583, %v635
        %3614 = vmatprep.subr.bf16.mxu0 0
        %3615 = vmatpush1.bf16.msra.mxu0 0
        %3616 = vmatprep.subr.bf16.mxu0 0
        %3617 = vmatpush1.bf16.msra.mxu0 0
        %3618 = vmatprep.subr.bf16.mxu0 %v3609
        %3619 = vmatpush1.bf16.msra.mxu0 %v3606
        %3620 = vmatprep.subr.bf16.mxu0 %v3579
        %3621 = vmatpush1.bf16.msra.mxu0 %v3578
        %3622 = vmatprep.subr.bf16.mxu0 %v3576
        %3623 = vmatpush1.bf16.msra.mxu0 %v3575
        %3624 = vmatprep.subr.bf16.mxu0 %v3573
        %3625 = vmatpush1.bf16.msra.mxu0 %v3572
        %3626 = vmatprep.subr.bf16.mxu0 %v3570
        %3627 = vmatpush1.bf16.msra.mxu0 %v3569
        %3628 = vmatprep.subr.bf16.mxu0 %v3567
        %3629 = vmatpush1.bf16.msra.mxu0 %v3566
        %3630 = vmatprep.subr.bf16.mxu0 0
        %3631 = vmatpush2.bf16.msra.mxu0 0
        %3632 = vmatprep.subr.bf16.mxu0 0
        %3633 = vmatpush2.bf16.msra.mxu0 0
        %3634 = vmatprep.subr.bf16.mxu0 0
        %3635 = vmatpush2.bf16.msra.mxu0 0
        %3636 = vmatprep.subr.bf16.mxu0 0
        %3637 = vmatpush2.bf16.msra.mxu0 0
        %3638 = vmatprep.subr.bf16.mxu0 0
        %3639 = vmatpush2.bf16.msra.mxu0 0
        %3640 = vmatprep.subr.bf16.mxu0 0
        %3641 = vmatpush2.bf16.msra.mxu0 0
        %3642 = vmatprep.subr.bf16.mxu0 0
        %3643 = vmatpush2.bf16.msra.mxu0 0
        %3644 = vmatprep.subr.bf16.mxu0 0
        %3645 = vmatpush2.bf16.msra.mxu0 0
        %3646 = vmatprep.mubr.bf16.mxu0 0
        %3647 = vmatmul.mubr.bf16.gmra.mxu0 %v3600
        %v3648 = vpop.f32.mrf.mxu0
        %v3649 = vadd.f32 0.0, %v3648
        %v3650 = vpop.f32.mrf.mxu0
        %v3651 = vadd.f32 0.0, %v3650
        %v3652 = vpop.f32.mrf.mxu0
        %v3653 = vadd.f32 0.0, %v3652
        %v3654 = vpop.f32.mrf.mxu0
        %v3655 = vadd.f32 0.0, %v3654
        %3656 = vmatprep.mubr.bf16.mxu0 0
        %3657 = vmatmul.mubr.bf16.gmra.mxu0 %v3603
        %v3658 = vpop.f32.mrf.mxu0
        %v3659 = vadd.f32 0.0, %v3658
        %v3660 = vpop.f32.mrf.mxu0
        %v3661 = vadd.f32 0.0, %v3660
        %v3662 = vpop.f32.mrf.mxu0
        %v3663 = vadd.f32 0.0, %v3662
        %v3664 = vpop.f32.mrf.mxu0
        %v3665 = vadd.f32 0.0, %v3664
        %3666 = vdwg.mxu0
        %3667 = vmatprep.subr.bf16.mxu0 0
        %3668 = vmatpush1.bf16.msra.mxu0 0
        %3669 = vmatprep.subr.bf16.mxu0 0
        %3670 = vmatpush1.bf16.msra.mxu0 0
        %3671 = vmatprep.subr.bf16.mxu0 0
        %3672 = vmatpush1.bf16.msra.mxu0 %v3612
        %3673 = vmatprep.subr.bf16.mxu0 0
        %3674 = vmatpush1.bf16.msra.mxu0 %v3580
        %3675 = vmatprep.subr.bf16.mxu0 0
        %3676 = vmatpush1.bf16.msra.mxu0 %v3577
        %3677 = vmatprep.subr.bf16.mxu0 0
        %3678 = vmatpush1.bf16.msra.mxu0 %v3574
        %3679 = vmatprep.subr.bf16.mxu0 0
        %3680 = vmatpush1.bf16.msra.mxu0 %v3571
        %3681 = vmatprep.subr.bf16.mxu0 0
        %3682 = vmatpush1.bf16.msra.mxu0 %v3568
        %3683 = vmatprep.subr.bf16.mxu0 0
        %3684 = vmatpush2.bf16.msra.mxu0 0
        %3685 = vmatprep.subr.bf16.mxu0 0
        %3686 = vmatpush2.bf16.msra.mxu0 0
        %3687 = vmatprep.subr.bf16.mxu0 0
        %3688 = vmatpush2.bf16.msra.mxu0 0
        %3689 = vmatprep.subr.bf16.mxu0 0
        %3690 = vmatpush2.bf16.msra.mxu0 0
        %3691 = vmatprep.subr.bf16.mxu0 0
        %3692 = vmatpush2.bf16.msra.mxu0 0
        %3693 = vmatprep.subr.bf16.mxu0 0
        %3694 = vmatpush2.bf16.msra.mxu0 0
        %3695 = vmatprep.subr.bf16.mxu0 0
        %3696 = vmatpush2.bf16.msra.mxu0 0
        %3697 = vmatprep.subr.bf16.mxu0 0
        %3698 = vmatpush2.bf16.msra.mxu0 0
        %3699 = vmatprep.mubr.bf16.mxu0 0
        %3700 = vmatmul.mubr.bf16.gmra.mxu0 %v3600
        %v3701 = vpop.f32.mrf.mxu0
        %v3702 = vadd.f32 0.0, %v3701
        %v3703 = vpop.f32.mrf.mxu0
        %v3704 = vpop.f32.mrf.mxu0
        %v3705 = vadd.f32 0.0, %v3704
        %v3706 = vpop.f32.mrf.mxu0
        %3707 = vmatprep.mubr.bf16.mxu0 0
        %3708 = vmatmul.mubr.bf16.gmra.mxu0 %v3603
        %v3709 = vpop.f32.mrf.mxu0
        %v3710 = vadd.f32 0.0, %v3709
        %v3711 = vpop.f32.mrf.mxu0
        %v3712 = vpop.f32.mrf.mxu0
        %v3713 = vadd.f32 0.0, %v3712
        %v3714 = vpop.f32.mrf.mxu0
        %3715 = vdwg.mxu0
        %v3716 = vadd.f32 %v3463, %v3649
        %v3717 = vadd.f32 %v3464, %v3651
        %v3718 = vadd.f32 %v3465, %v3702
        %v3719 = vadd.f32 %v3466, %v3653
        %v3720 = vadd.f32 %v3467, %v3655
        %v3721 = vadd.f32 %v3468, %v3705
        %v3722 = vadd.f32 %v3469, %v3659
        %v3723 = vadd.f32 %v3470, %v3661
        %v3724 = vadd.f32 %v3471, %v3710
        %v3725 = vadd.f32 %v3472, %v3663
        %v3726 = vadd.f32 %v3473, %v3665
        %v3727 = vadd.f32 %v3474, %v3713
        %s3728 = scalar_lea.vmem %s1, 1872
        %v3729 = vld [vmem:[%s3728] sm:$0xff]
        %v3730 = vld [vmem:[%s3728 + $0x8] sm:$0xf]
        %v3731 = vld [vmem:[%s3728 + $0xc] sm:$0xff]
        %v3732 = vld [vmem:[%s3728 + $0x14] sm:$0xf]
        %v3733 = vld [vmem:[%s3728 + $0x18] sm:$0xff]
        %v3734 = vld [vmem:[%s3728 + $0x20] sm:$0xf]
        %v3735 = vld [vmem:[%s3728 + $0x24] sm:$0xff]
        %v3736 = vld [vmem:[%s3728 + $0x2c] sm:$0xf]
        %v3737 = vld [vmem:[%s3728 + $0x30] sm:$0xff]
        %v3738 = vld [vmem:[%s3728 + $0x38] sm:$0xf]
        %v3739 = vld [vmem:[%s3728 + $0x3c] sm:$0xff]
        %v3740 = vld [vmem:[%s3728 + $0x44] sm:$0xf]
        %v3741 = vld [vmem:[%s3728 + $0x48] sm:$0xff]
        %v3742 = vld [vmem:[%s3728 + $0x50] sm:$0xf]
        %v3743 = vld [vmem:[%s3728 + $0x54] sm:$0xff]
        %v3744 = vld [vmem:[%s3728 + $0x5c] sm:$0xf]
        %v3745 = vld [vmem:[%s3728 + $0x60] sm:$0xff]
        %v3746 = vld [vmem:[%s3728 + $0x68] sm:$0xf]
        %v3747 = vld [vmem:[%s3728 + $0x6c] sm:$0xff]
        %v3748 = vld [vmem:[%s3728 + $0x74] sm:$0xf]
        %v3749 = vld [vmem:[%s3728 + $0x78] sm:$0xff]
        %v3750 = vld [vmem:[%s3728 + $0x80] sm:$0xf]
        %v3751 = vld [vmem:[%s3728 + $0x84] sm:$0x77]
        %v3752 = vld [vmem:[%s3728 + $0x8c] sm:$0x7]
        %3755 = vrot.lane.b32.xlu0 %v3479, 125
        %v3756 = vpop.permute.xlu0 %3755
        %3757 = vrot.lane.b32.xlu0 %v3480, 125
        %v3758 = vpop.permute.xlu0 %3757
        %v3783 = vunpack.c.l.b16 %v3729
        %v3784 = vunpack.c.h.b16 %v3729
        %v3785 = vunpack.c.l.b16 %v3730
        %v3786 = vunpack.c.l.b16 %v3731
        %v3787 = vunpack.c.h.b16 %v3731
        %v3788 = vunpack.c.l.b16 %v3732
        %v3789 = vunpack.c.l.b16 %v3733
        %v3790 = vunpack.c.h.b16 %v3733
        %v3791 = vunpack.c.l.b16 %v3734
        %v3792 = vunpack.c.l.b16 %v3735
        %v3793 = vunpack.c.h.b16 %v3735
        %v3794 = vunpack.c.l.b16 %v3736
        %v3795 = vunpack.c.l.b16 %v3737
        %v3796 = vunpack.c.h.b16 %v3737
        %v3797 = vunpack.c.l.b16 %v3738
        %v3798 = vunpack.c.l.b16 %v3739
        %v3799 = vunpack.c.h.b16 %v3739
        %v3800 = vunpack.c.l.b16 %v3740
        %v3801 = vunpack.c.l.b16 %v3741
        %v3802 = vunpack.c.h.b16 %v3741
        %v3803 = vunpack.c.l.b16 %v3742
        %v3804 = vunpack.c.l.b16 %v3743
        %v3805 = vunpack.c.h.b16 %v3743
        %v3806 = vunpack.c.l.b16 %v3744
        %v3807 = vunpack.c.l.b16 %v3745
        %v3808 = vunpack.c.h.b16 %v3745
        %v3809 = vunpack.c.l.b16 %v3746
        %v3810 = vunpack.c.l.b16 %v3747
        %v3811 = vunpack.c.h.b16 %v3747
        %v3812 = vunpack.c.l.b16 %v3748
        %v3813 = vunpack.c.l.b16 %v3749
        %v3814 = vunpack.c.h.b16 %v3749
        %v3815 = vunpack.c.l.b16 %v3750
        %v3816 = vunpack.c.l.b16 %v3751
        %v3817 = vunpack.c.h.b16 %v3751
        %v3818 = vunpack.c.l.b16 %v3752
        %v3819 = vpack.c.b16 %v3786, %v3783
        %v3820 = vpack.c.b16 %v3787, %v3784
        %v3821 = vpack.c.b16 %v3788, %v3785
        %v3822 = vpack.c.b16 %v3792, %v3789
        %v3823 = vpack.c.b16 %v3793, %v3790
        %v3824 = vpack.c.b16 %v3794, %v3791
        %v3825 = vpack.c.b16 %v3798, %v3795
        %v3826 = vpack.c.b16 %v3799, %v3796
        %v3827 = vpack.c.b16 %v3800, %v3797
        %v3828 = vpack.c.b16 %v3804, %v3801
        %v3829 = vpack.c.b16 %v3805, %v3802
        %v3830 = vpack.c.b16 %v3806, %v3803
        %v3831 = vpack.c.b16 %v3810, %v3807
        %v3832 = vpack.c.b16 %v3811, %v3808
        %v3833 = vpack.c.b16 %v3812, %v3809
        %v3834 = vpack.c.b16 %v3816, %v3813
        %v3835 = vpack.c.b16 %v3817, %v3814
        %v3836 = vpack.c.b16 %v3818, %v3815
        %v3853 = vsel %vm625, %v3756, 0
        %v3856 = vsel %vm625, %v3758, 0
        %v3859 = vand.u32 %v3834, %v635
        %v3862 = vand.u32 %v3835, %v635
        %v3865 = vand.u32 %v3836, %v635
        %3867 = vmatprep.subr.bf16.mxu0 0
        %3868 = vmatpush1.bf16.msra.mxu0 0
        %3869 = vmatprep.subr.bf16.mxu0 0
        %3870 = vmatpush1.bf16.msra.mxu0 0
        %3871 = vmatprep.subr.bf16.mxu0 %v3862
        %3872 = vmatpush1.bf16.msra.mxu0 %v3859
        %3873 = vmatprep.subr.bf16.mxu0 %v3832
        %3874 = vmatpush1.bf16.msra.mxu0 %v3831
        %3875 = vmatprep.subr.bf16.mxu0 %v3829
        %3876 = vmatpush1.bf16.msra.mxu0 %v3828
        %3877 = vmatprep.subr.bf16.mxu0 %v3826
        %3878 = vmatpush1.bf16.msra.mxu0 %v3825
        %3879 = vmatprep.subr.bf16.mxu0 %v3823
        %3880 = vmatpush1.bf16.msra.mxu0 %v3822
        %3881 = vmatprep.subr.bf16.mxu0 %v3820
        %3882 = vmatpush1.bf16.msra.mxu0 %v3819
        %3883 = vmatprep.subr.bf16.mxu0 0
        %3884 = vmatpush2.bf16.msra.mxu0 0
        %3885 = vmatprep.subr.bf16.mxu0 0
        %3886 = vmatpush2.bf16.msra.mxu0 0
        %3887 = vmatprep.subr.bf16.mxu0 0
        %3888 = vmatpush2.bf16.msra.mxu0 0
        %3889 = vmatprep.subr.bf16.mxu0 0
        %3890 = vmatpush2.bf16.msra.mxu0 0
        %3891 = vmatprep.subr.bf16.mxu0 0
        %3892 = vmatpush2.bf16.msra.mxu0 0
        %3893 = vmatprep.subr.bf16.mxu0 0
        %3894 = vmatpush2.bf16.msra.mxu0 0
        %3895 = vmatprep.subr.bf16.mxu0 0
        %3896 = vmatpush2.bf16.msra.mxu0 0
        %3897 = vmatprep.subr.bf16.mxu0 0
        %3898 = vmatpush2.bf16.msra.mxu0 0
        %3899 = vmatprep.mubr.bf16.mxu0 0
        %3900 = vmatmul.mubr.bf16.gmra.mxu0 %v3853
        %v3901 = vpop.f32.mrf.mxu0
        %v3902 = vadd.f32 0.0, %v3901
        %v3903 = vpop.f32.mrf.mxu0
        %v3904 = vadd.f32 0.0, %v3903
        %v3905 = vpop.f32.mrf.mxu0
        %v3906 = vadd.f32 0.0, %v3905
        %v3907 = vpop.f32.mrf.mxu0
        %v3908 = vadd.f32 0.0, %v3907
        %3909 = vmatprep.mubr.bf16.mxu0 0
        %3910 = vmatmul.mubr.bf16.gmra.mxu0 %v3856
        %v3911 = vpop.f32.mrf.mxu0
        %v3912 = vadd.f32 0.0, %v3911
        %v3913 = vpop.f32.mrf.mxu0
        %v3914 = vadd.f32 0.0, %v3913
        %v3915 = vpop.f32.mrf.mxu0
        %v3916 = vadd.f32 0.0, %v3915
        %v3917 = vpop.f32.mrf.mxu0
        %v3918 = vadd.f32 0.0, %v3917
        %3919 = vdwg.mxu0
        %3920 = vmatprep.subr.bf16.mxu0 0
        %3921 = vmatpush1.bf16.msra.mxu0 0
        %3922 = vmatprep.subr.bf16.mxu0 0
        %3923 = vmatpush1.bf16.msra.mxu0 0
        %3924 = vmatprep.subr.bf16.mxu0 0
        %3925 = vmatpush1.bf16.msra.mxu0 %v3865
        %3926 = vmatprep.subr.bf16.mxu0 0
        %3927 = vmatpush1.bf16.msra.mxu0 %v3833
        %3928 = vmatprep.subr.bf16.mxu0 0
        %3929 = vmatpush1.bf16.msra.mxu0 %v3830
        %3930 = vmatprep.subr.bf16.mxu0 0
        %3931 = vmatpush1.bf16.msra.mxu0 %v3827
        %3932 = vmatprep.subr.bf16.mxu0 0
        %3933 = vmatpush1.bf16.msra.mxu0 %v3824
        %3934 = vmatprep.subr.bf16.mxu0 0
        %3935 = vmatpush1.bf16.msra.mxu0 %v3821
        %3936 = vmatprep.subr.bf16.mxu0 0
        %3937 = vmatpush2.bf16.msra.mxu0 0
        %3938 = vmatprep.subr.bf16.mxu0 0
        %3939 = vmatpush2.bf16.msra.mxu0 0
        %3940 = vmatprep.subr.bf16.mxu0 0
        %3941 = vmatpush2.bf16.msra.mxu0 0
        %3942 = vmatprep.subr.bf16.mxu0 0
        %3943 = vmatpush2.bf16.msra.mxu0 0
        %3944 = vmatprep.subr.bf16.mxu0 0
        %3945 = vmatpush2.bf16.msra.mxu0 0
        %3946 = vmatprep.subr.bf16.mxu0 0
        %3947 = vmatpush2.bf16.msra.mxu0 0
        %3948 = vmatprep.subr.bf16.mxu0 0
        %3949 = vmatpush2.bf16.msra.mxu0 0
        %3950 = vmatprep.subr.bf16.mxu0 0
        %3951 = vmatpush2.bf16.msra.mxu0 0
        %3952 = vmatprep.mubr.bf16.mxu0 0
        %3953 = vmatmul.mubr.bf16.gmra.mxu0 %v3853
        %v3954 = vpop.f32.mrf.mxu0
        %v3955 = vadd.f32 0.0, %v3954
        %v3956 = vpop.f32.mrf.mxu0
        %v3957 = vpop.f32.mrf.mxu0
        %v3958 = vadd.f32 0.0, %v3957
        %v3959 = vpop.f32.mrf.mxu0
        %3960 = vmatprep.mubr.bf16.mxu0 0
        %3961 = vmatmul.mubr.bf16.gmra.mxu0 %v3856
        %v3962 = vpop.f32.mrf.mxu0
        %v3963 = vadd.f32 0.0, %v3962
        %v3964 = vpop.f32.mrf.mxu0
        %v3965 = vpop.f32.mrf.mxu0
        %v3966 = vadd.f32 0.0, %v3965
        %v3967 = vpop.f32.mrf.mxu0
        %3968 = vdwg.mxu0
        %v3969 = vadd.f32 %v3716, %v3902
        %v3970 = vadd.f32 %v3717, %v3904
        %v3971 = vadd.f32 %v3718, %v3955
        %v3972 = vadd.f32 %v3719, %v3906
        %v3973 = vadd.f32 %v3720, %v3908
        %v3974 = vadd.f32 %v3721, %v3958
        %v3975 = vadd.f32 %v3722, %v3912
        %v3976 = vadd.f32 %v3723, %v3914
        %v3977 = vadd.f32 %v3724, %v3963
        %v3978 = vadd.f32 %v3725, %v3916
        %v3979 = vadd.f32 %v3726, %v3918
        %v3980 = vadd.f32 %v3727, %v3966
        %s3981 = scalar_lea.vmem %s1, 2016
        %v3982 = vld [vmem:[%s3981] sm:$0xff]
        %v3983 = vld [vmem:[%s3981 + $0x8] sm:$0xf]
        %v3984 = vld [vmem:[%s3981 + $0xc] sm:$0xff]
        %v3985 = vld [vmem:[%s3981 + $0x14] sm:$0xf]
        %v3986 = vld [vmem:[%s3981 + $0x18] sm:$0xff]
        %v3987 = vld [vmem:[%s3981 + $0x20] sm:$0xf]
        %v3988 = vld [vmem:[%s3981 + $0x24] sm:$0xff]
        %v3989 = vld [vmem:[%s3981 + $0x2c] sm:$0xf]
        %v3990 = vld [vmem:[%s3981 + $0x30] sm:$0xff]
        %v3991 = vld [vmem:[%s3981 + $0x38] sm:$0xf]
        %v3992 = vld [vmem:[%s3981 + $0x3c] sm:$0xff]
        %v3993 = vld [vmem:[%s3981 + $0x44] sm:$0xf]
        %v3994 = vld [vmem:[%s3981 + $0x48] sm:$0xff]
        %v3995 = vld [vmem:[%s3981 + $0x50] sm:$0xf]
        %v3996 = vld [vmem:[%s3981 + $0x54] sm:$0xff]
        %v3997 = vld [vmem:[%s3981 + $0x5c] sm:$0xf]
        %v3998 = vld [vmem:[%s3981 + $0x60] sm:$0xff]
        %v3999 = vld [vmem:[%s3981 + $0x68] sm:$0xf]
        %v4000 = vld [vmem:[%s3981 + $0x6c] sm:$0xff]
        %v4001 = vld [vmem:[%s3981 + $0x74] sm:$0xf]
        %v4002 = vld [vmem:[%s3981 + $0x78] sm:$0xff]
        %v4003 = vld [vmem:[%s3981 + $0x80] sm:$0xf]
        %v4004 = vld [vmem:[%s3981 + $0x84] sm:$0x77]
        %v4005 = vld [vmem:[%s3981 + $0x8c] sm:$0x7]
        %4006 = vrot.lane.b32.xlu0 %v3479, 122
        %v4007 = vpop.permute.xlu0 %4006
        %4008 = vrot.lane.b32.xlu0 %v3480, 122
        %v4009 = vpop.permute.xlu0 %4008
        %v4034 = vunpack.c.l.b16 %v3982
        %v4035 = vunpack.c.h.b16 %v3982
        %v4036 = vunpack.c.l.b16 %v3983
        %v4037 = vunpack.c.l.b16 %v3984
        %v4038 = vunpack.c.h.b16 %v3984
        %v4039 = vunpack.c.l.b16 %v3985
        %v4040 = vunpack.c.l.b16 %v3986
        %v4041 = vunpack.c.h.b16 %v3986
        %v4042 = vunpack.c.l.b16 %v3987
        %v4043 = vunpack.c.l.b16 %v3988
        %v4044 = vunpack.c.h.b16 %v3988
        %v4045 = vunpack.c.l.b16 %v3989
        %v4046 = vunpack.c.l.b16 %v3990
        %v4047 = vunpack.c.h.b16 %v3990
        %v4048 = vunpack.c.l.b16 %v3991
        %v4049 = vunpack.c.l.b16 %v3992
        %v4050 = vunpack.c.h.b16 %v3992
        %v4051 = vunpack.c.l.b16 %v3993
        %v4052 = vunpack.c.l.b16 %v3994
        %v4053 = vunpack.c.h.b16 %v3994
        %v4054 = vunpack.c.l.b16 %v3995
        %v4055 = vunpack.c.l.b16 %v3996
        %v4056 = vunpack.c.h.b16 %v3996
        %v4057 = vunpack.c.l.b16 %v3997
        %v4058 = vunpack.c.l.b16 %v3998
        %v4059 = vunpack.c.h.b16 %v3998
        %v4060 = vunpack.c.l.b16 %v3999
        %v4061 = vunpack.c.l.b16 %v4000
        %v4062 = vunpack.c.h.b16 %v4000
        %v4063 = vunpack.c.l.b16 %v4001
        %v4064 = vunpack.c.l.b16 %v4002
        %v4065 = vunpack.c.h.b16 %v4002
        %v4066 = vunpack.c.l.b16 %v4003
        %v4067 = vunpack.c.l.b16 %v4004
        %v4068 = vunpack.c.h.b16 %v4004
        %v4069 = vunpack.c.l.b16 %v4005
        %v4070 = vpack.c.b16 %v4037, %v4034
        %v4071 = vpack.c.b16 %v4038, %v4035
        %v4072 = vpack.c.b16 %v4039, %v4036
        %v4073 = vpack.c.b16 %v4043, %v4040
        %v4074 = vpack.c.b16 %v4044, %v4041
        %v4075 = vpack.c.b16 %v4045, %v4042
        %v4076 = vpack.c.b16 %v4049, %v4046
        %v4077 = vpack.c.b16 %v4050, %v4047
        %v4078 = vpack.c.b16 %v4051, %v4048
        %v4079 = vpack.c.b16 %v4055, %v4052
        %v4080 = vpack.c.b16 %v4056, %v4053
        %v4081 = vpack.c.b16 %v4057, %v4054
        %v4082 = vpack.c.b16 %v4061, %v4058
        %v4083 = vpack.c.b16 %v4062, %v4059
        %v4084 = vpack.c.b16 %v4063, %v4060
        %v4085 = vpack.c.b16 %v4067, %v4064
        %v4086 = vpack.c.b16 %v4068, %v4065
        %v4087 = vpack.c.b16 %v4069, %v4066
        %v4104 = vsel %vm625, %v4007, 0
        %v4107 = vsel %vm625, %v4009, 0
        %v4110 = vand.u32 %v4085, %v635
        %v4113 = vand.u32 %v4086, %v635
        %v4116 = vand.u32 %v4087, %v635
        %4118 = vmatprep.subr.bf16.mxu0 0
        %4119 = vmatpush1.bf16.msra.mxu0 0
        %4120 = vmatprep.subr.bf16.mxu0 0
        %4121 = vmatpush1.bf16.msra.mxu0 0
        %4122 = vmatprep.subr.bf16.mxu0 %v4113
        %4123 = vmatpush1.bf16.msra.mxu0 %v4110
        %4124 = vmatprep.subr.bf16.mxu0 %v4083
        %4125 = vmatpush1.bf16.msra.mxu0 %v4082
        %4126 = vmatprep.subr.bf16.mxu0 %v4080
        %4127 = vmatpush1.bf16.msra.mxu0 %v4079
        %4128 = vmatprep.subr.bf16.mxu0 %v4077
        %4129 = vmatpush1.bf16.msra.mxu0 %v4076
        %4130 = vmatprep.subr.bf16.mxu0 %v4074
        %4131 = vmatpush1.bf16.msra.mxu0 %v4073
        %4132 = vmatprep.subr.bf16.mxu0 %v4071
        %4133 = vmatpush1.bf16.msra.mxu0 %v4070
        %4134 = vmatprep.subr.bf16.mxu0 0
        %4135 = vmatpush2.bf16.msra.mxu0 0
        %4136 = vmatprep.subr.bf16.mxu0 0
        %4137 = vmatpush2.bf16.msra.mxu0 0
        %4138 = vmatprep.subr.bf16.mxu0 0
        %4139 = vmatpush2.bf16.msra.mxu0 0
        %4140 = vmatprep.subr.bf16.mxu0 0
        %4141 = vmatpush2.bf16.msra.mxu0 0
        %4142 = vmatprep.subr.bf16.mxu0 0
        %4143 = vmatpush2.bf16.msra.mxu0 0
        %4144 = vmatprep.subr.bf16.mxu0 0
        %4145 = vmatpush2.bf16.msra.mxu0 0
        %4146 = vmatprep.subr.bf16.mxu0 0
        %4147 = vmatpush2.bf16.msra.mxu0 0
        %4148 = vmatprep.subr.bf16.mxu0 0
        %4149 = vmatpush2.bf16.msra.mxu0 0
        %4150 = vmatprep.mubr.bf16.mxu0 0
        %4151 = vmatmul.mubr.bf16.gmra.mxu0 %v4104
        %v4152 = vpop.f32.mrf.mxu0
        %v4153 = vadd.f32 0.0, %v4152
        %v4154 = vpop.f32.mrf.mxu0
        %v4155 = vadd.f32 0.0, %v4154
        %v4156 = vpop.f32.mrf.mxu0
        %v4157 = vadd.f32 0.0, %v4156
        %v4158 = vpop.f32.mrf.mxu0
        %v4159 = vadd.f32 0.0, %v4158
        %4160 = vmatprep.mubr.bf16.mxu0 0
        %4161 = vmatmul.mubr.bf16.gmra.mxu0 %v4107
        %v4162 = vpop.f32.mrf.mxu0
        %v4163 = vadd.f32 0.0, %v4162
        %v4164 = vpop.f32.mrf.mxu0
        %v4165 = vadd.f32 0.0, %v4164
        %v4166 = vpop.f32.mrf.mxu0
        %v4167 = vadd.f32 0.0, %v4166
        %v4168 = vpop.f32.mrf.mxu0
        %v4169 = vadd.f32 0.0, %v4168
        %4170 = vdwg.mxu0
        %4171 = vmatprep.subr.bf16.mxu0 0
        %4172 = vmatpush1.bf16.msra.mxu0 0
        %4173 = vmatprep.subr.bf16.mxu0 0
        %4174 = vmatpush1.bf16.msra.mxu0 0
        %4175 = vmatprep.subr.bf16.mxu0 0
        %4176 = vmatpush1.bf16.msra.mxu0 %v4116
        %4177 = vmatprep.subr.bf16.mxu0 0
        %4178 = vmatpush1.bf16.msra.mxu0 %v4084
        %4179 = vmatprep.subr.bf16.mxu0 0
        %4180 = vmatpush1.bf16.msra.mxu0 %v4081
        %4181 = vmatprep.subr.bf16.mxu0 0
        %4182 = vmatpush1.bf16.msra.mxu0 %v4078
        %4183 = vmatprep.subr.bf16.mxu0 0
        %4184 = vmatpush1.bf16.msra.mxu0 %v4075
        %4185 = vmatprep.subr.bf16.mxu0 0
        %4186 = vmatpush1.bf16.msra.mxu0 %v4072
        %4187 = vmatprep.subr.bf16.mxu0 0
        %4188 = vmatpush2.bf16.msra.mxu0 0
        %4189 = vmatprep.subr.bf16.mxu0 0
        %4190 = vmatpush2.bf16.msra.mxu0 0
        %4191 = vmatprep.subr.bf16.mxu0 0
        %4192 = vmatpush2.bf16.msra.mxu0 0
        %4193 = vmatprep.subr.bf16.mxu0 0
        %4194 = vmatpush2.bf16.msra.mxu0 0
        %4195 = vmatprep.subr.bf16.mxu0 0
        %4196 = vmatpush2.bf16.msra.mxu0 0
        %4197 = vmatprep.subr.bf16.mxu0 0
        %4198 = vmatpush2.bf16.msra.mxu0 0
        %4199 = vmatprep.subr.bf16.mxu0 0
        %4200 = vmatpush2.bf16.msra.mxu0 0
        %4201 = vmatprep.subr.bf16.mxu0 0
        %4202 = vmatpush2.bf16.msra.mxu0 0
        %4203 = vmatprep.mubr.bf16.mxu0 0
        %4204 = vmatmul.mubr.bf16.gmra.mxu0 %v4104
        %v4205 = vpop.f32.mrf.mxu0
        %v4206 = vadd.f32 0.0, %v4205
        %v4207 = vpop.f32.mrf.mxu0
        %v4208 = vpop.f32.mrf.mxu0
        %v4209 = vadd.f32 0.0, %v4208
        %v4210 = vpop.f32.mrf.mxu0
        %4211 = vmatprep.mubr.bf16.mxu0 0
        %4212 = vmatmul.mubr.bf16.gmra.mxu0 %v4107
        %v4213 = vpop.f32.mrf.mxu0
        %v4214 = vadd.f32 0.0, %v4213
        %v4215 = vpop.f32.mrf.mxu0
        %v4216 = vpop.f32.mrf.mxu0
        %v4217 = vadd.f32 0.0, %v4216
        %v4218 = vpop.f32.mrf.mxu0
        %4219 = vdwg.mxu0
        %v4220 = vadd.f32 %v3969, %v4153
        %v4221 = vadd.f32 %v3970, %v4155
        %v4222 = vadd.f32 %v3971, %v4206
        %v4223 = vadd.f32 %v3972, %v4157
        %v4224 = vadd.f32 %v3973, %v4159
        %v4225 = vadd.f32 %v3974, %v4209
        %v4226 = vadd.f32 %v3975, %v4163
        %v4227 = vadd.f32 %v3976, %v4165
        %v4228 = vadd.f32 %v3977, %v4214
        %v4229 = vadd.f32 %v3978, %v4167
        %v4230 = vadd.f32 %v3979, %v4169
        %v4231 = vadd.f32 %v3980, %v4217
        %s4232 = scalar_lea.vmem %s1, 2160
        %v4233 = vld [vmem:[%s4232] sm:$0xff]
        %v4234 = vld [vmem:[%s4232 + $0x8] sm:$0xf]
        %v4235 = vld [vmem:[%s4232 + $0xc] sm:$0xff]
        %v4236 = vld [vmem:[%s4232 + $0x14] sm:$0xf]
        %v4237 = vld [vmem:[%s4232 + $0x18] sm:$0xff]
        %v4238 = vld [vmem:[%s4232 + $0x20] sm:$0xf]
        %v4239 = vld [vmem:[%s4232 + $0x24] sm:$0xff]
        %v4240 = vld [vmem:[%s4232 + $0x2c] sm:$0xf]
        %v4241 = vld [vmem:[%s4232 + $0x30] sm:$0xff]
        %v4242 = vld [vmem:[%s4232 + $0x38] sm:$0xf]
        %v4243 = vld [vmem:[%s4232 + $0x3c] sm:$0xff]
        %v4244 = vld [vmem:[%s4232 + $0x44] sm:$0xf]
        %v4245 = vld [vmem:[%s4232 + $0x48] sm:$0xff]
        %v4246 = vld [vmem:[%s4232 + $0x50] sm:$0xf]
        %v4247 = vld [vmem:[%s4232 + $0x54] sm:$0xff]
        %v4248 = vld [vmem:[%s4232 + $0x5c] sm:$0xf]
        %v4249 = vld [vmem:[%s4232 + $0x60] sm:$0xff]
        %v4250 = vld [vmem:[%s4232 + $0x68] sm:$0xf]
        %v4251 = vld [vmem:[%s4232 + $0x6c] sm:$0xff]
        %v4252 = vld [vmem:[%s4232 + $0x74] sm:$0xf]
        %v4253 = vld [vmem:[%s4232 + $0x78] sm:$0xff]
        %v4254 = vld [vmem:[%s4232 + $0x80] sm:$0xf]
        %v4255 = vld [vmem:[%s4232 + $0x84] sm:$0x77]
        %v4256 = vld [vmem:[%s4232 + $0x8c] sm:$0x7]
        %4257 = vrot.lane.b32.xlu0 %v3479, 119
        %v4258 = vpop.permute.xlu0 %4257
        %4259 = vrot.lane.b32.xlu0 %v3480, 119
        %v4260 = vpop.permute.xlu0 %4259
        %v4285 = vunpack.c.l.b16 %v4233
        %v4286 = vunpack.c.h.b16 %v4233
        %v4287 = vunpack.c.l.b16 %v4234
        %v4288 = vunpack.c.l.b16 %v4235
        %v4289 = vunpack.c.h.b16 %v4235
        %v4290 = vunpack.c.l.b16 %v4236
        %v4291 = vunpack.c.l.b16 %v4237
        %v4292 = vunpack.c.h.b16 %v4237
        %v4293 = vunpack.c.l.b16 %v4238
        %v4294 = vunpack.c.l.b16 %v4239
        %v4295 = vunpack.c.h.b16 %v4239
        %v4296 = vunpack.c.l.b16 %v4240
        %v4297 = vunpack.c.l.b16 %v4241
        %v4298 = vunpack.c.h.b16 %v4241
        %v4299 = vunpack.c.l.b16 %v4242
        %v4300 = vunpack.c.l.b16 %v4243
        %v4301 = vunpack.c.h.b16 %v4243
        %v4302 = vunpack.c.l.b16 %v4244
        %v4303 = vunpack.c.l.b16 %v4245
        %v4304 = vunpack.c.h.b16 %v4245
        %v4305 = vunpack.c.l.b16 %v4246
        %v4306 = vunpack.c.l.b16 %v4247
        %v4307 = vunpack.c.h.b16 %v4247
        %v4308 = vunpack.c.l.b16 %v4248
        %v4309 = vunpack.c.l.b16 %v4249
        %v4310 = vunpack.c.h.b16 %v4249
        %v4311 = vunpack.c.l.b16 %v4250
        %v4312 = vunpack.c.l.b16 %v4251
        %v4313 = vunpack.c.h.b16 %v4251
        %v4314 = vunpack.c.l.b16 %v4252
        %v4315 = vunpack.c.l.b16 %v4253
        %v4316 = vunpack.c.h.b16 %v4253
        %v4317 = vunpack.c.l.b16 %v4254
        %v4318 = vunpack.c.l.b16 %v4255
        %v4319 = vunpack.c.h.b16 %v4255
        %v4320 = vunpack.c.l.b16 %v4256
        %v4321 = vpack.c.b16 %v4288, %v4285
        %v4322 = vpack.c.b16 %v4289, %v4286
        %v4323 = vpack.c.b16 %v4290, %v4287
        %v4324 = vpack.c.b16 %v4294, %v4291
        %v4325 = vpack.c.b16 %v4295, %v4292
        %v4326 = vpack.c.b16 %v4296, %v4293
        %v4327 = vpack.c.b16 %v4300, %v4297
        %v4328 = vpack.c.b16 %v4301, %v4298
        %v4329 = vpack.c.b16 %v4302, %v4299
        %v4330 = vpack.c.b16 %v4306, %v4303
        %v4331 = vpack.c.b16 %v4307, %v4304
        %v4332 = vpack.c.b16 %v4308, %v4305
        %v4333 = vpack.c.b16 %v4312, %v4309
        %v4334 = vpack.c.b16 %v4313, %v4310
        %v4335 = vpack.c.b16 %v4314, %v4311
        %v4336 = vpack.c.b16 %v4318, %v4315
        %v4337 = vpack.c.b16 %v4319, %v4316
        %v4338 = vpack.c.b16 %v4320, %v4317
        %v4355 = vsel %vm625, %v4258, 0
        %v4358 = vsel %vm625, %v4260, 0
        %v4361 = vand.u32 %v4336, %v635
        %v4364 = vand.u32 %v4337, %v635
        %v4367 = vand.u32 %v4338, %v635
        %4369 = vmatprep.subr.bf16.mxu0 0
        %4370 = vmatpush1.bf16.msra.mxu0 0
        %4371 = vmatprep.subr.bf16.mxu0 0
        %4372 = vmatpush1.bf16.msra.mxu0 0
        %4373 = vmatprep.subr.bf16.mxu0 %v4364
        %4374 = vmatpush1.bf16.msra.mxu0 %v4361
        %4375 = vmatprep.subr.bf16.mxu0 %v4334
        %4376 = vmatpush1.bf16.msra.mxu0 %v4333
        %4377 = vmatprep.subr.bf16.mxu0 %v4331
        %4378 = vmatpush1.bf16.msra.mxu0 %v4330
        %4379 = vmatprep.subr.bf16.mxu0 %v4328
        %4380 = vmatpush1.bf16.msra.mxu0 %v4327
        %4381 = vmatprep.subr.bf16.mxu0 %v4325
        %4382 = vmatpush1.bf16.msra.mxu0 %v4324
        %4383 = vmatprep.subr.bf16.mxu0 %v4322
        %4384 = vmatpush1.bf16.msra.mxu0 %v4321
        %4385 = vmatprep.subr.bf16.mxu0 0
        %4386 = vmatpush2.bf16.msra.mxu0 0
        %4387 = vmatprep.subr.bf16.mxu0 0
        %4388 = vmatpush2.bf16.msra.mxu0 0
        %4389 = vmatprep.subr.bf16.mxu0 0
        %4390 = vmatpush2.bf16.msra.mxu0 0
        %4391 = vmatprep.subr.bf16.mxu0 0
        %4392 = vmatpush2.bf16.msra.mxu0 0
        %4393 = vmatprep.subr.bf16.mxu0 0
        %4394 = vmatpush2.bf16.msra.mxu0 0
        %4395 = vmatprep.subr.bf16.mxu0 0
        %4396 = vmatpush2.bf16.msra.mxu0 0
        %4397 = vmatprep.subr.bf16.mxu0 0
        %4398 = vmatpush2.bf16.msra.mxu0 0
        %4399 = vmatprep.subr.bf16.mxu0 0
        %4400 = vmatpush2.bf16.msra.mxu0 0
        %4401 = vmatprep.mubr.bf16.mxu0 0
        %4402 = vmatmul.mubr.bf16.gmra.mxu0 %v4355
        %v4403 = vpop.f32.mrf.mxu0
        %v4404 = vadd.f32 0.0, %v4403
        %v4405 = vpop.f32.mrf.mxu0
        %v4406 = vadd.f32 0.0, %v4405
        %v4407 = vpop.f32.mrf.mxu0
        %v4408 = vadd.f32 0.0, %v4407
        %v4409 = vpop.f32.mrf.mxu0
        %v4410 = vadd.f32 0.0, %v4409
        %4411 = vmatprep.mubr.bf16.mxu0 0
        %4412 = vmatmul.mubr.bf16.gmra.mxu0 %v4358
        %v4413 = vpop.f32.mrf.mxu0
        %v4414 = vadd.f32 0.0, %v4413
        %v4415 = vpop.f32.mrf.mxu0
        %v4416 = vadd.f32 0.0, %v4415
        %v4417 = vpop.f32.mrf.mxu0
        %v4418 = vadd.f32 0.0, %v4417
        %v4419 = vpop.f32.mrf.mxu0
        %v4420 = vadd.f32 0.0, %v4419
        %4421 = vdwg.mxu0
        %4422 = vmatprep.subr.bf16.mxu0 0
        %4423 = vmatpush1.bf16.msra.mxu0 0
        %4424 = vmatprep.subr.bf16.mxu0 0
        %4425 = vmatpush1.bf16.msra.mxu0 0
        %4426 = vmatprep.subr.bf16.mxu0 0
        %4427 = vmatpush1.bf16.msra.mxu0 %v4367
        %4428 = vmatprep.subr.bf16.mxu0 0
        %4429 = vmatpush1.bf16.msra.mxu0 %v4335
        %4430 = vmatprep.subr.bf16.mxu0 0
        %4431 = vmatpush1.bf16.msra.mxu0 %v4332
        %4432 = vmatprep.subr.bf16.mxu0 0
        %4433 = vmatpush1.bf16.msra.mxu0 %v4329
        %4434 = vmatprep.subr.bf16.mxu0 0
        %4435 = vmatpush1.bf16.msra.mxu0 %v4326
        %4436 = vmatprep.subr.bf16.mxu0 0
        %4437 = vmatpush1.bf16.msra.mxu0 %v4323
        %4438 = vmatprep.subr.bf16.mxu0 0
        %4439 = vmatpush2.bf16.msra.mxu0 0
        %4440 = vmatprep.subr.bf16.mxu0 0
        %4441 = vmatpush2.bf16.msra.mxu0 0
        %4442 = vmatprep.subr.bf16.mxu0 0
        %4443 = vmatpush2.bf16.msra.mxu0 0
        %4444 = vmatprep.subr.bf16.mxu0 0
        %4445 = vmatpush2.bf16.msra.mxu0 0
        %4446 = vmatprep.subr.bf16.mxu0 0
        %4447 = vmatpush2.bf16.msra.mxu0 0
        %4448 = vmatprep.subr.bf16.mxu0 0
        %4449 = vmatpush2.bf16.msra.mxu0 0
        %4450 = vmatprep.subr.bf16.mxu0 0
        %4451 = vmatpush2.bf16.msra.mxu0 0
        %4452 = vmatprep.subr.bf16.mxu0 0
        %4453 = vmatpush2.bf16.msra.mxu0 0
        %4454 = vmatprep.mubr.bf16.mxu0 0
        %4455 = vmatmul.mubr.bf16.gmra.mxu0 %v4355
        %v4456 = vpop.f32.mrf.mxu0
        %v4457 = vadd.f32 0.0, %v4456
        %v4458 = vpop.f32.mrf.mxu0
        %v4459 = vpop.f32.mrf.mxu0
        %v4460 = vadd.f32 0.0, %v4459
        %v4461 = vpop.f32.mrf.mxu0
        %4462 = vmatprep.mubr.bf16.mxu0 0
        %4463 = vmatmul.mubr.bf16.gmra.mxu0 %v4358
        %v4464 = vpop.f32.mrf.mxu0
        %v4465 = vadd.f32 0.0, %v4464
        %v4466 = vpop.f32.mrf.mxu0
        %v4467 = vpop.f32.mrf.mxu0
        %v4468 = vadd.f32 0.0, %v4467
        %v4469 = vpop.f32.mrf.mxu0
        %4470 = vdwg.mxu0
        %v4471 = vadd.f32 %v4220, %v4404
        %v4472 = vadd.f32 %v4221, %v4406
        %v4473 = vadd.f32 %v4222, %v4457
        %v4474 = vadd.f32 %v4223, %v4408
        %v4475 = vadd.f32 %v4224, %v4410
        %v4476 = vadd.f32 %v4225, %v4460
        %v4477 = vadd.f32 %v4226, %v4414
        %v4478 = vadd.f32 %v4227, %v4416
        %v4479 = vadd.f32 %v4228, %v4465
        %v4480 = vadd.f32 %v4229, %v4418
        %v4481 = vadd.f32 %v4230, %v4420
        %v4482 = vadd.f32 %v4231, %v4468
        %v4483 = vld [vmem:[%s2] sm:$0x7]
        %v4485 = vlaneseq
        %v4486 = vshrl.u32 %v4485, 7
        %v4487 = vsub.s32 0, %v4486
        %v4488 = vrot.slane %v4483, %v4487
        %v4489 = vlaneseq
        %v4490 = vshrl.u32 %v4489, 7
        %v4491 = vsub.s32 1, %v4490
        %v4492 = vrot.slane %v4483, %v4491
        %v4493 = vlaneseq
        %v4494 = vshrl.u32 %v4493, 7
        %v4495 = vsub.s32 2, %v4494
        %v4496 = vrot.slane %v4483, %v4495
        %v4500 = vadd.f32 %v4471, %v4488
        %v4501 = vadd.f32 %v4472, %v4492
        %v4502 = vadd.f32 %v4473, %v4496
        %v4503 = vadd.f32 %v4474, %v4488
        %v4504 = vadd.f32 %v4475, %v4492
        %v4505 = vadd.f32 %v4476, %v4496
        %v4506 = vadd.f32 %v4477, %v4488
        %v4507 = vadd.f32 %v4478, %v4492
        %v4508 = vadd.f32 %v4479, %v4496
        %v4509 = vadd.f32 %v4480, %v4488
        %v4510 = vadd.f32 %v4481, %v4492
        %v4511 = vadd.f32 %v4482, %v4496
        %4524 = vrot.lane.b32.xlu0 %v4500, 116
        %v4525 = vpop.permute.xlu0 %4524
        %4526 = vrot.lane.b32.xlu0 %v4501, 116
        %v4527 = vpop.permute.xlu0 %4526
        %4528 = vrot.lane.b32.xlu0 %v4502, 116
        %v4529 = vpop.permute.xlu0 %4528
        %4530 = vrot.lane.b32.xlu0 %v4503, 116
        %v4531 = vpop.permute.xlu0 %4530
        %4532 = vrot.lane.b32.xlu0 %v4504, 116
        %v4533 = vpop.permute.xlu0 %4532
        %4534 = vrot.lane.b32.xlu0 %v4505, 116
        %v4535 = vpop.permute.xlu0 %4534
        %4536 = vrot.lane.b32.xlu0 %v4506, 116
        %v4537 = vpop.permute.xlu0 %4536
        %4538 = vrot.lane.b32.xlu0 %v4507, 116
        %v4539 = vpop.permute.xlu0 %4538
        %4540 = vrot.lane.b32.xlu0 %v4508, 116
        %v4541 = vpop.permute.xlu0 %4540
        %4542 = vrot.lane.b32.xlu0 %v4509, 116
        %v4543 = vpop.permute.xlu0 %4542
        %4544 = vrot.lane.b32.xlu0 %v4510, 116
        %v4545 = vpop.permute.xlu0 %4544
        %4546 = vrot.lane.b32.xlu0 %v4511, 116
        %v4547 = vpop.permute.xlu0 %4546
        %vm4548 = vcmask 949248
        %v4549 = vsel %vm4548, %v4525, %v4527
        %v4550 = vsel %vm4548, %v4527, %v4529
        %v4551 = vsel %vm4548, %v4531, %v4533
        %v4552 = vsel %vm4548, %v4533, %v4535
        %v4553 = vsel %vm4548, %v4537, %v4539
        %v4554 = vsel %vm4548, %v4539, %v4541
        %v4555 = vsel %vm4548, %v4543, %v4545
        %v4556 = vsel %vm4548, %v4545, %v4547
        %v4569 = vmax.f32 %v4500, %v4549
        %v4570 = vmax.f32 %v4501, %v4550
        %v4571 = vmax.f32 %v4502, %v4529
        %v4572 = vmax.f32 %v4503, %v4551
        %v4573 = vmax.f32 %v4504, %v4552
        %v4574 = vmax.f32 %v4505, %v4535
        %v4575 = vmax.f32 %v4506, %v4553
        %v4576 = vmax.f32 %v4507, %v4554
        %v4577 = vmax.f32 %v4508, %v4541
        %v4578 = vmax.f32 %v4509, %v4555
        %v4579 = vmax.f32 %v4510, %v4556
        %v4580 = vmax.f32 %v4511, %v4547
        %4581 = vrot.lane.b32.xlu0 %v4500, 104
        %v4582 = vpop.permute.xlu0 %4581
        %4583 = vrot.lane.b32.xlu0 %v4501, 104
        %v4584 = vpop.permute.xlu0 %4583
        %4585 = vrot.lane.b32.xlu0 %v4502, 104
        %v4586 = vpop.permute.xlu0 %4585
        %4587 = vrot.lane.b32.xlu0 %v4503, 104
        %v4588 = vpop.permute.xlu0 %4587
        %4589 = vrot.lane.b32.xlu0 %v4504, 104
        %v4590 = vpop.permute.xlu0 %4589
        %4591 = vrot.lane.b32.xlu0 %v4505, 104
        %v4592 = vpop.permute.xlu0 %4591
        %4593 = vrot.lane.b32.xlu0 %v4506, 104
        %v4594 = vpop.permute.xlu0 %4593
        %4595 = vrot.lane.b32.xlu0 %v4507, 104
        %v4596 = vpop.permute.xlu0 %4595
        %4597 = vrot.lane.b32.xlu0 %v4508, 104
        %v4598 = vpop.permute.xlu0 %4597
        %4599 = vrot.lane.b32.xlu0 %v4509, 104
        %v4600 = vpop.permute.xlu0 %4599
        %4601 = vrot.lane.b32.xlu0 %v4510, 104
        %v4602 = vpop.permute.xlu0 %4601
        %4603 = vrot.lane.b32.xlu0 %v4511, 104
        %v4604 = vpop.permute.xlu0 %4603
        %vm4605 = vcmask 850944
        %v4606 = vsel %vm4605, %v4582, %v4584
        %v4607 = vsel %vm4605, %v4584, %v4586
        %v4608 = vsel %vm4605, %v4588, %v4590
        %v4609 = vsel %vm4605, %v4590, %v4592
        %v4610 = vsel %vm4605, %v4594, %v4596
        %v4611 = vsel %vm4605, %v4596, %v4598
        %v4612 = vsel %vm4605, %v4600, %v4602
        %v4613 = vsel %vm4605, %v4602, %v4604
        %v4626 = vmax.f32 %v4569, %v4606
        %v4627 = vmax.f32 %v4570, %v4607
        %v4628 = vmax.f32 %v4571, %v4586
        %v4629 = vmax.f32 %v4572, %v4608
        %v4630 = vmax.f32 %v4573, %v4609
        %v4631 = vmax.f32 %v4574, %v4592
        %v4632 = vmax.f32 %v4575, %v4610
        %v4633 = vmax.f32 %v4576, %v4611
        %v4634 = vmax.f32 %v4577, %v4598
        %v4635 = vmax.f32 %v4578, %v4612
        %v4636 = vmax.f32 %v4579, %v4613
        %v4637 = vmax.f32 %v4580, %v4604
        %v4638 = vrot.slane %v4500, 1
        %v4639 = vrot.slane %v4503, 1
        %v4640 = vsel %vm633, %v4638, %v4639
        %v4641 = vrot.slane %v4501, 1
        %v4642 = vrot.slane %v4504, 1
        %v4643 = vsel %vm633, %v4641, %v4642
        %v4644 = vrot.slane %v4502, 1
        %v4645 = vrot.slane %v4505, 1
        %v4646 = vsel %vm633, %v4644, %v4645
        %v4647 = vrot.slane %v4506, 1
        %v4648 = vsel %vm633, %v4639, %v4647
        %v4649 = vrot.slane %v4507, 1
        %v4650 = vsel %vm633, %v4642, %v4649
        %v4651 = vrot.slane %v4508, 1
        %v4652 = vsel %vm633, %v4645, %v4651
        %v4653 = vrot.slane %v4509, 1
        %v4654 = vsel %vm633, %v4647, %v4653
        %v4655 = vrot.slane %v4510, 1
        %v4656 = vsel %vm633, %v4649, %v4655
        %v4657 = vrot.slane %v4511, 1
        %v4658 = vsel %vm633, %v4651, %v4657
        %v4671 = vmax.f32 %v4626, %v4640
        %v4672 = vmax.f32 %v4627, %v4643
        %v4673 = vmax.f32 %v4628, %v4646
        %v4674 = vmax.f32 %v4629, %v4648
        %v4675 = vmax.f32 %v4630, %v4650
        %v4676 = vmax.f32 %v4631, %v4652
        %v4677 = vmax.f32 %v4632, %v4654
        %v4678 = vmax.f32 %v4633, %v4656
        %v4679 = vmax.f32 %v4634, %v4658
        %v4680 = vmax.f32 %v4635, %v4653
        %v4681 = vmax.f32 %v4636, %v4655
        %v4682 = vmax.f32 %v4637, %v4657
        %4683 = vrot.lane.b32.xlu0 %v4640, 116
        %v4684 = vpop.permute.xlu0 %4683
        %4685 = vrot.lane.b32.xlu0 %v4643, 116
        %v4686 = vpop.permute.xlu0 %4685
        %4687 = vrot.lane.b32.xlu0 %v4646, 116
        %v4688 = vpop.permute.xlu0 %4687
        %4689 = vrot.lane.b32.xlu0 %v4648, 116
        %v4690 = vpop.permute.xlu0 %4689
        %4691 = vrot.lane.b32.xlu0 %v4650, 116
        %v4692 = vpop.permute.xlu0 %4691
        %4693 = vrot.lane.b32.xlu0 %v4652, 116
        %v4694 = vpop.permute.xlu0 %4693
        %4695 = vrot.lane.b32.xlu0 %v4654, 116
        %v4696 = vpop.permute.xlu0 %4695
        %4697 = vrot.lane.b32.xlu0 %v4656, 116
        %v4698 = vpop.permute.xlu0 %4697
        %4699 = vrot.lane.b32.xlu0 %v4658, 116
        %v4700 = vpop.permute.xlu0 %4699
        %4701 = vrot.lane.b32.xlu0 %v4653, 116
        %v4702 = vpop.permute.xlu0 %4701
        %4703 = vrot.lane.b32.xlu0 %v4655, 116
        %v4704 = vpop.permute.xlu0 %4703
        %4705 = vrot.lane.b32.xlu0 %v4657, 116
        %v4706 = vpop.permute.xlu0 %4705
        %v4707 = vsel %vm4548, %v4684, %v4686
        %v4708 = vsel %vm4548, %v4686, %v4688
        %v4709 = vsel %vm4548, %v4690, %v4692
        %v4710 = vsel %vm4548, %v4692, %v4694
        %v4711 = vsel %vm4548, %v4696, %v4698
        %v4712 = vsel %vm4548, %v4698, %v4700
        %v4713 = vsel %vm4548, %v4702, %v4704
        %v4714 = vsel %vm4548, %v4704, %v4706
        %v4727 = vmax.f32 %v4671, %v4707
        %v4728 = vmax.f32 %v4672, %v4708
        %v4729 = vmax.f32 %v4673, %v4688
        %v4730 = vmax.f32 %v4674, %v4709
        %v4731 = vmax.f32 %v4675, %v4710
        %v4732 = vmax.f32 %v4676, %v4694
        %v4733 = vmax.f32 %v4677, %v4711
        %v4734 = vmax.f32 %v4678, %v4712
        %v4735 = vmax.f32 %v4679, %v4700
        %v4736 = vmax.f32 %v4680, %v4713
        %v4737 = vmax.f32 %v4681, %v4714
        %v4738 = vmax.f32 %v4682, %v4706
        %4739 = vrot.lane.b32.xlu0 %v4640, 104
        %v4740 = vpop.permute.xlu0 %4739
        %4741 = vrot.lane.b32.xlu0 %v4643, 104
        %v4742 = vpop.permute.xlu0 %4741
        %4743 = vrot.lane.b32.xlu0 %v4646, 104
        %v4744 = vpop.permute.xlu0 %4743
        %4745 = vrot.lane.b32.xlu0 %v4648, 104
        %v4746 = vpop.permute.xlu0 %4745
        %4747 = vrot.lane.b32.xlu0 %v4650, 104
        %v4748 = vpop.permute.xlu0 %4747
        %4749 = vrot.lane.b32.xlu0 %v4652, 104
        %v4750 = vpop.permute.xlu0 %4749
        %4751 = vrot.lane.b32.xlu0 %v4654, 104
        %v4752 = vpop.permute.xlu0 %4751
        %4753 = vrot.lane.b32.xlu0 %v4656, 104
        %v4754 = vpop.permute.xlu0 %4753
        %4755 = vrot.lane.b32.xlu0 %v4658, 104
        %v4756 = vpop.permute.xlu0 %4755
        %4757 = vrot.lane.b32.xlu0 %v4653, 104
        %v4758 = vpop.permute.xlu0 %4757
        %4759 = vrot.lane.b32.xlu0 %v4655, 104
        %v4760 = vpop.permute.xlu0 %4759
        %4761 = vrot.lane.b32.xlu0 %v4657, 104
        %v4762 = vpop.permute.xlu0 %4761
        %v4763 = vsel %vm4605, %v4740, %v4742
        %v4764 = vsel %vm4605, %v4742, %v4744
        %v4765 = vsel %vm4605, %v4746, %v4748
        %v4766 = vsel %vm4605, %v4748, %v4750
        %v4767 = vsel %vm4605, %v4752, %v4754
        %v4768 = vsel %vm4605, %v4754, %v4756
        %v4769 = vsel %vm4605, %v4758, %v4760
        %v4770 = vsel %vm4605, %v4760, %v4762
        %v4783 = vmax.f32 %v4727, %v4763
        %v4784 = vmax.f32 %v4728, %v4764
        %v4785 = vmax.f32 %v4729, %v4744
        %v4786 = vmax.f32 %v4730, %v4765
        %v4787 = vmax.f32 %v4731, %v4766
        %v4788 = vmax.f32 %v4732, %v4750
        %v4789 = vmax.f32 %v4733, %v4767
        %v4790 = vmax.f32 %v4734, %v4768
        %v4791 = vmax.f32 %v4735, %v4756
        %v4792 = vmax.f32 %v4736, %v4769
        %v4793 = vmax.f32 %v4737, %v4770
        %v4794 = vmax.f32 %v4738, %v4762
        %v4795 = vrot.slane %v4500, 2
        %v4796 = vrot.slane %v4503, 2
        %v4797 = vsel %vm632, %v4795, %v4796
        %v4798 = vrot.slane %v4501, 2
        %v4799 = vrot.slane %v4504, 2
        %v4800 = vsel %vm632, %v4798, %v4799
        %v4801 = vrot.slane %v4502, 2
        %v4802 = vrot.slane %v4505, 2
        %v4803 = vsel %vm632, %v4801, %v4802
        %v4804 = vrot.slane %v4506, 2
        %v4805 = vsel %vm632, %v4796, %v4804
        %v4806 = vrot.slane %v4507, 2
        %v4807 = vsel %vm632, %v4799, %v4806
        %v4808 = vrot.slane %v4508, 2
        %v4809 = vsel %vm632, %v4802, %v4808
        %v4810 = vrot.slane %v4509, 2
        %v4811 = vsel %vm632, %v4804, %v4810
        %v4812 = vrot.slane %v4510, 2
        %v4813 = vsel %vm632, %v4806, %v4812
        %v4814 = vrot.slane %v4511, 2
        %v4815 = vsel %vm632, %v4808, %v4814
        %v4828 = vmax.f32 %v4783, %v4797
        %v4829 = vmax.f32 %v4784, %v4800
        %v4830 = vmax.f32 %v4785, %v4803
        %v4831 = vmax.f32 %v4786, %v4805
        %v4832 = vmax.f32 %v4787, %v4807
        %v4833 = vmax.f32 %v4788, %v4809
        %v4834 = vmax.f32 %v4789, %v4811
        %v4835 = vmax.f32 %v4790, %v4813
        %v4836 = vmax.f32 %v4791, %v4815
        %v4837 = vmax.f32 %v4792, %v4810
        %v4838 = vmax.f32 %v4793, %v4812
        %v4839 = vmax.f32 %v4794, %v4814
        %4840 = vrot.lane.b32.xlu0 %v4797, 116
        %v4841 = vpop.permute.xlu0 %4840
        %4842 = vrot.lane.b32.xlu0 %v4800, 116
        %v4843 = vpop.permute.xlu0 %4842
        %4844 = vrot.lane.b32.xlu0 %v4803, 116
        %v4845 = vpop.permute.xlu0 %4844
        %4846 = vrot.lane.b32.xlu0 %v4805, 116
        %v4847 = vpop.permute.xlu0 %4846
        %4848 = vrot.lane.b32.xlu0 %v4807, 116
        %v4849 = vpop.permute.xlu0 %4848
        %4850 = vrot.lane.b32.xlu0 %v4809, 116
        %v4851 = vpop.permute.xlu0 %4850
        %4852 = vrot.lane.b32.xlu0 %v4811, 116
        %v4853 = vpop.permute.xlu0 %4852
        %4854 = vrot.lane.b32.xlu0 %v4813, 116
        %v4855 = vpop.permute.xlu0 %4854
        %4856 = vrot.lane.b32.xlu0 %v4815, 116
        %v4857 = vpop.permute.xlu0 %4856
        %4858 = vrot.lane.b32.xlu0 %v4810, 116
        %v4859 = vpop.permute.xlu0 %4858
        %4860 = vrot.lane.b32.xlu0 %v4812, 116
        %v4861 = vpop.permute.xlu0 %4860
        %4862 = vrot.lane.b32.xlu0 %v4814, 116
        %v4863 = vpop.permute.xlu0 %4862
        %v4864 = vsel %vm4548, %v4841, %v4843
        %v4865 = vsel %vm4548, %v4843, %v4845
        %v4866 = vsel %vm4548, %v4847, %v4849
        %v4867 = vsel %vm4548, %v4849, %v4851
        %v4868 = vsel %vm4548, %v4853, %v4855
        %v4869 = vsel %vm4548, %v4855, %v4857
        %v4870 = vsel %vm4548, %v4859, %v4861
        %v4871 = vsel %vm4548, %v4861, %v4863
        %v4884 = vmax.f32 %v4828, %v4864
        %v4885 = vmax.f32 %v4829, %v4865
        %v4886 = vmax.f32 %v4830, %v4845
        %v4887 = vmax.f32 %v4831, %v4866
        %v4888 = vmax.f32 %v4832, %v4867
        %v4889 = vmax.f32 %v4833, %v4851
        %v4890 = vmax.f32 %v4834, %v4868
        %v4891 = vmax.f32 %v4835, %v4869
        %v4892 = vmax.f32 %v4836, %v4857
        %v4893 = vmax.f32 %v4837, %v4870
        %v4894 = vmax.f32 %v4838, %v4871
        %v4895 = vmax.f32 %v4839, %v4863
        %4896 = vrot.lane.b32.xlu0 %v4797, 104
        %v4897 = vpop.permute.xlu0 %4896
        %4898 = vrot.lane.b32.xlu0 %v4800, 104
        %v4899 = vpop.permute.xlu0 %4898
        %4900 = vrot.lane.b32.xlu0 %v4803, 104
        %v4901 = vpop.permute.xlu0 %4900
        %4902 = vrot.lane.b32.xlu0 %v4805, 104
        %v4903 = vpop.permute.xlu0 %4902
        %4904 = vrot.lane.b32.xlu0 %v4807, 104
        %v4905 = vpop.permute.xlu0 %4904
        %4906 = vrot.lane.b32.xlu0 %v4809, 104
        %v4907 = vpop.permute.xlu0 %4906
        %4908 = vrot.lane.b32.xlu0 %v4811, 104
        %v4909 = vpop.permute.xlu0 %4908
        %4910 = vrot.lane.b32.xlu0 %v4813, 104
        %v4911 = vpop.permute.xlu0 %4910
        %4912 = vrot.lane.b32.xlu0 %v4815, 104
        %v4913 = vpop.permute.xlu0 %4912
        %4914 = vrot.lane.b32.xlu0 %v4810, 104
        %v4915 = vpop.permute.xlu0 %4914
        %4916 = vrot.lane.b32.xlu0 %v4812, 104
        %v4917 = vpop.permute.xlu0 %4916
        %4918 = vrot.lane.b32.xlu0 %v4814, 104
        %v4919 = vpop.permute.xlu0 %4918
        %v4920 = vsel %vm4605, %v4897, %v4899
        %v4921 = vsel %vm4605, %v4899, %v4901
        %v4922 = vsel %vm4605, %v4903, %v4905
        %v4923 = vsel %vm4605, %v4905, %v4907
        %v4924 = vsel %vm4605, %v4909, %v4911
        %v4925 = vsel %vm4605, %v4911, %v4913
        %v4926 = vsel %vm4605, %v4915, %v4917
        %v4927 = vsel %vm4605, %v4917, %v4919
        %v4940 = vmax.f32 %v4884, %v4920
        %v4941 = vmax.f32 %v4885, %v4921
        %v4942 = vmax.f32 %v4886, %v4901
        %v4943 = vmax.f32 %v4887, %v4922
        %v4944 = vmax.f32 %v4888, %v4923
        %v4945 = vmax.f32 %v4889, %v4907
        %v4946 = vmax.f32 %v4890, %v4924
        %v4947 = vmax.f32 %v4891, %v4925
        %v4948 = vmax.f32 %v4892, %v4913
        %v4949 = vmax.f32 %v4893, %v4926
        %v4950 = vmax.f32 %v4894, %v4927
        %v4951 = vmax.f32 %v4895, %v4919
        %v4952 = vld [vmem:[%s3] sm:$0xff]
        %v4953 = vld [vmem:[%s3 + $0x8] sm:$0x3]
        %vm4954 = vcmask 228352
        %v4956 = vsel %vm4954, %v4952, 0
        %v4959 = vsel %vm4954, %v4953, 0
        %vm4961 = vcmask 1043456
        %v4963 = vsel %vm4961, %v4949, 0
        %v4966 = vsel %vm4961, %v4950, 0
        %v4969 = vsel %vm4961, %v4951, 0
        %4971 = vmatprep.subr.mxu0 0.0
        %4972 = vmatpush1.msra.mxu0 0.0
        %4973 = vmatprep.subr.mxu0 0.0
        %4974 = vmatpush1.msra.mxu0 0.0
        %4975 = vmatprep.subr.mxu0 0.0
        %4976 = vmatpush1.msra.mxu0 0.0
        %4977 = vmatprep.subr.mxu0 0.0
        %4978 = vmatpush1.msra.mxu0 0.0
        %4979 = vmatprep.subr.mxu0 0.0
        %4980 = vmatpush1.msra.mxu0 0.0
        %4981 = vmatprep.subr.mxu0 0.0
        %4982 = vmatpush1.msra.mxu0 0.0
        %4983 = vmatprep.subr.mxu0 0.0
        %4984 = vmatpush1.msra.mxu0 0.0
        %4985 = vmatprep.subr.mxu0 0.0
        %4986 = vmatpush1.msra.mxu0 0.0
        %4987 = vmatprep.subr.mxu0 0.0
        %4988 = vmatpush1.msra.mxu0 0.0
        %4989 = vmatprep.subr.mxu0 0.0
        %4990 = vmatpush1.msra.mxu0 0.0
        %4991 = vmatprep.subr.mxu0 0.0
        %4992 = vmatpush1.msra.mxu0 0.0
        %4993 = vmatprep.subr.mxu0 0.0
        %4994 = vmatpush1.msra.mxu0 0.0
        %4995 = vmatprep.subr.mxu0 %v4966
        %4996 = vmatpush1.msra.mxu0 %v4963
        %4997 = vmatprep.subr.mxu0 %v4947
        %4998 = vmatpush1.msra.mxu0 %v4946
        %4999 = vmatprep.subr.mxu0 %v4944
        %5000 = vmatpush1.msra.mxu0 %v4943
        %5001 = vmatprep.subr.mxu0 %v4941
        %5002 = vmatpush1.msra.mxu0 %v4940
        %5003 = vmatprep.subr.mxu0 0.0
        %5004 = vmatpush2.msra.mxu0 0.0
        %5005 = vmatprep.subr.mxu0 0.0
        %5006 = vmatpush2.msra.mxu0 0.0
        %5007 = vmatprep.subr.mxu0 0.0
        %5008 = vmatpush2.msra.mxu0 0.0
        %5009 = vmatprep.subr.mxu0 0.0
        %5010 = vmatpush2.msra.mxu0 0.0
        %5011 = vmatprep.subr.mxu0 0.0
        %5012 = vmatpush2.msra.mxu0 0.0
        %5013 = vmatprep.subr.mxu0 0.0
        %5014 = vmatpush2.msra.mxu0 0.0
        %5015 = vmatprep.subr.mxu0 0.0
        %5016 = vmatpush2.msra.mxu0 0.0
        %5017 = vmatprep.subr.mxu0 0.0
        %5018 = vmatpush2.msra.mxu0 0.0
        %5019 = vmatprep.subr.mxu0 0.0
        %5020 = vmatpush2.msra.mxu0 0.0
        %5021 = vmatprep.subr.mxu0 0.0
        %5022 = vmatpush2.msra.mxu0 0.0
        %5023 = vmatprep.subr.mxu0 0.0
        %5024 = vmatpush2.msra.mxu0 0.0
        %5025 = vmatprep.subr.mxu0 0.0
        %5026 = vmatpush2.msra.mxu0 0.0
        %5027 = vmatprep.subr.mxu0 0.0
        %5028 = vmatpush2.msra.mxu0 0.0
        %5029 = vmatprep.subr.mxu0 0.0
        %5030 = vmatpush2.msra.mxu0 0.0
        %5031 = vmatprep.subr.mxu0 0.0
        %5032 = vmatpush2.msra.mxu0 0.0
        %5033 = vmatprep.subr.mxu0 0.0
        %5034 = vmatpush2.msra.mxu0 0.0
        %5035 = vmatprep.mubr.f32.mxu0 0.0
        %5036 = vmatmul.mubr.f32.gmra.mxu0 %v4956
        %v5037 = vpop.f32.mrf.mxu0
        %v5038 = vadd.f32 0.0, %v5037
        %v5039 = vpop.f32.mrf.mxu0
        %v5040 = vadd.f32 0.0, %v5039
        %5041 = vmatprep.mubr.f32.mxu0 0.0
        %5042 = vmatmul.mubr.f32.gmra.mxu0 %v4959
        %v5043 = vpop.f32.mrf.mxu0
        %v5044 = vadd.f32 0.0, %v5043
        %v5045 = vpop.f32.mrf.mxu0
        %v5046 = vadd.f32 0.0, %v5045
        %5047 = vdwg.mxu0
        %5048 = vmatprep.subr.mxu0 0.0
        %5049 = vmatpush1.msra.mxu0 0.0
        %5050 = vmatprep.subr.mxu0 0.0
        %5051 = vmatpush1.msra.mxu0 0.0
        %5052 = vmatprep.subr.mxu0 0.0
        %5053 = vmatpush1.msra.mxu0 0.0
        %5054 = vmatprep.subr.mxu0 0.0
        %5055 = vmatpush1.msra.mxu0 0.0
        %5056 = vmatprep.subr.mxu0 0.0
        %5057 = vmatpush1.msra.mxu0 0.0
        %5058 = vmatprep.subr.mxu0 0.0
        %5059 = vmatpush1.msra.mxu0 0.0
        %5060 = vmatprep.subr.mxu0 0.0
        %5061 = vmatpush1.msra.mxu0 0.0
        %5062 = vmatprep.subr.mxu0 0.0
        %5063 = vmatpush1.msra.mxu0 0.0
        %5064 = vmatprep.subr.mxu0 0.0
        %5065 = vmatpush1.msra.mxu0 0.0
        %5066 = vmatprep.subr.mxu0 0.0
        %5067 = vmatpush1.msra.mxu0 0.0
        %5068 = vmatprep.subr.mxu0 0.0
        %5069 = vmatpush1.msra.mxu0 0.0
        %5070 = vmatprep.subr.mxu0 0.0
        %5071 = vmatpush1.msra.mxu0 0.0
        %5072 = vmatprep.subr.mxu0 0.0
        %5073 = vmatpush1.msra.mxu0 %v4969
        %5074 = vmatprep.subr.mxu0 0.0
        %5075 = vmatpush1.msra.mxu0 %v4948
        %5076 = vmatprep.subr.mxu0 0.0
        %5077 = vmatpush1.msra.mxu0 %v4945
        %5078 = vmatprep.subr.mxu0 0.0
        %5079 = vmatpush1.msra.mxu0 %v4942
        %5080 = vmatprep.subr.mxu0 0.0
        %5081 = vmatpush2.msra.mxu0 0.0
        %5082 = vmatprep.subr.mxu0 0.0
        %5083 = vmatpush2.msra.mxu0 0.0
        %5084 = vmatprep.subr.mxu0 0.0
        %5085 = vmatpush2.msra.mxu0 0.0
        %5086 = vmatprep.subr.mxu0 0.0
        %5087 = vmatpush2.msra.mxu0 0.0
        %5088 = vmatprep.subr.mxu0 0.0
        %5089 = vmatpush2.msra.mxu0 0.0
        %5090 = vmatprep.subr.mxu0 0.0
        %5091 = vmatpush2.msra.mxu0 0.0
        %5092 = vmatprep.subr.mxu0 0.0
        %5093 = vmatpush2.msra.mxu0 0.0
        %5094 = vmatprep.subr.mxu0 0.0
        %5095 = vmatpush2.msra.mxu0 0.0
        %5096 = vmatprep.subr.mxu0 0.0
        %5097 = vmatpush2.msra.mxu0 0.0
        %5098 = vmatprep.subr.mxu0 0.0
        %5099 = vmatpush2.msra.mxu0 0.0
        %5100 = vmatprep.subr.mxu0 0.0
        %5101 = vmatpush2.msra.mxu0 0.0
        %5102 = vmatprep.subr.mxu0 0.0
        %5103 = vmatpush2.msra.mxu0 0.0
        %5104 = vmatprep.subr.mxu0 0.0
        %5105 = vmatpush2.msra.mxu0 0.0
        %5106 = vmatprep.subr.mxu0 0.0
        %5107 = vmatpush2.msra.mxu0 0.0
        %5108 = vmatprep.subr.mxu0 0.0
        %5109 = vmatpush2.msra.mxu0 0.0
        %5110 = vmatprep.subr.mxu0 0.0
        %5111 = vmatpush2.msra.mxu0 0.0
        %5112 = vmatprep.mubr.f32.mxu0 0.0
        %5113 = vmatmul.mubr.f32.gmra.mxu0 %v4956
        %v5114 = vpop.f32.mrf.mxu0
        %v5115 = vadd.f32 0.0, %v5114
        %v5116 = vpop.f32.mrf.mxu0
        %5117 = vmatprep.mubr.f32.mxu0 0.0
        %5118 = vmatmul.mubr.f32.gmra.mxu0 %v4959
        %v5119 = vpop.f32.mrf.mxu0
        %v5120 = vadd.f32 0.0, %v5119
        %v5121 = vpop.f32.mrf.mxu0
        %5122 = vdwg.mxu0
        %v5123 = vld [vmem:[%s4] sm:$0xff]
        %v5124 = vld [vmem:[%s4 + $0x8] sm:$0xff]
        %v5125 = vld [vmem:[%s4 + $0x10] sm:$0xff]
        %v5126 = vld [vmem:[%s4 + $0x18] sm:$0xff]
        %v5127 = vld [vmem:[%s4 + $0x20] sm:$0xff]
        %v5128 = vld [vmem:[%s4 + $0x28] sm:$0xff]
        %v5129 = vld [vmem:[%s4 + $0x30] sm:$0xff]
        %v5130 = vld [vmem:[%s4 + $0x38] sm:$0xff]
        %v5131 = vld [vmem:[%s4 + $0x40] sm:$0xff]
        %v5132 = vld [vmem:[%s4 + $0x48] sm:$0xff]
        %v5133 = vld [vmem:[%s4 + $0x50] sm:$0xff]
        %v5134 = vld [vmem:[%s4 + $0x58] sm:$0xff]
        %v5135 = vld [vmem:[%s4 + $0x60] sm:$0xff]
        %v5136 = vld [vmem:[%s4 + $0x68] sm:$0xff]
        %v5137 = vld [vmem:[%s4 + $0x70] sm:$0xff]
        %v5138 = vld [vmem:[%s4 + $0x78] sm:$0xff]
        %v5139 = vld [vmem:[%s4 + $0x80] sm:$0xff]
        %v5140 = vld [vmem:[%s4 + $0x88] sm:$0xff]
        %v5141 = vld [vmem:[%s4 + $0x90] sm:$0xff]
        %v5142 = vld [vmem:[%s4 + $0x98] sm:$0xff]
        %v5143 = vld [vmem:[%s4 + $0xa0] sm:$0xff]
        %v5144 = vld [vmem:[%s4 + $0xa8] sm:$0xff]
        %v5145 = vld [vmem:[%s4 + $0xb0] sm:$0xff]
        %v5146 = vld [vmem:[%s4 + $0xb8] sm:$0xff]
        %v5147 = vld [vmem:[%s4 + $0xc0] sm:$0xff]
        %v5148 = vld [vmem:[%s4 + $0xc8] sm:$0xff]
        %v5149 = vld [vmem:[%s4 + $0xd0] sm:$0xff]
        %v5150 = vld [vmem:[%s4 + $0xd8] sm:$0xff]
        %v5151 = vld [vmem:[%s4 + $0xe0] sm:$0xff]
        %v5152 = vld [vmem:[%s4 + $0xe8] sm:$0xff]
        %v5153 = vld [vmem:[%s4 + $0xf0] sm:$0xff]
        %v5154 = vld [vmem:[%s4 + $0xf8] sm:$0xff]
        %v5155 = vld [vmem:[%s4 + $0x100] sm:$0xff]
        %v5156 = vld [vmem:[%s4 + $0x108] sm:$0xff]
        %v5157 = vld [vmem:[%s4 + $0x110] sm:$0xff]
        %v5158 = vld [vmem:[%s4 + $0x118] sm:$0xff]
        %v5159 = vld [vmem:[%s4 + $0x120] sm:$0xff]
        %v5160 = vld [vmem:[%s4 + $0x128] sm:$0xff]
        %v5161 = vld [vmem:[%s4 + $0x130] sm:$0xff]
        %v5162 = vld [vmem:[%s4 + $0x138] sm:$0xff]
        %v5163 = vld [vmem:[%s4 + $0x140] sm:$0xff]
        %v5164 = vld [vmem:[%s4 + $0x148] sm:$0xff]
        %v5165 = vld [vmem:[%s4 + $0x150] sm:$0xff]
        %v5166 = vld [vmem:[%s4 + $0x158] sm:$0xff]
        %v5167 = vld [vmem:[%s4 + $0x160] sm:$0xff]
        %v5169 = vsel %vm4605, %v5115, 0
        %v5172 = vsel %vm4605, %v5120, 0
        %5174 = vmatprep.subr.mxu0 0.0
        %5175 = vmatpush1.msra.mxu0 %v5138
        %5176 = vmatprep.subr.mxu0 0.0
        %5177 = vmatpush1.msra.mxu0 %v5137
        %5178 = vmatprep.subr.mxu0 0.0
        %5179 = vmatpush1.msra.mxu0 %v5136
        %5180 = vmatprep.subr.mxu0 0.0
        %5181 = vmatpush1.msra.mxu0 %v5135
        %5182 = vmatprep.subr.mxu0 0.0
        %5183 = vmatpush1.msra.mxu0 %v5134
        %5184 = vmatprep.subr.mxu0 0.0
        %5185 = vmatpush1.msra.mxu0 %v5133
        %5186 = vmatprep.subr.mxu0 0.0
        %5187 = vmatpush1.msra.mxu0 %v5132
        %5188 = vmatprep.subr.mxu0 0.0
        %5189 = vmatpush1.msra.mxu0 %v5131
        %5190 = vmatprep.subr.mxu0 0.0
        %5191 = vmatpush1.msra.mxu0 %v5130
        %5192 = vmatprep.subr.mxu0 0.0
        %5193 = vmatpush1.msra.mxu0 %v5129
        %5194 = vmatprep.subr.mxu0 0.0
        %5195 = vmatpush1.msra.mxu0 %v5128
        %5196 = vmatprep.subr.mxu0 0.0
        %5197 = vmatpush1.msra.mxu0 %v5127
        %5198 = vmatprep.subr.mxu0 0.0
        %5199 = vmatpush1.msra.mxu0 %v5126
        %5200 = vmatprep.subr.mxu0 0.0
        %5201 = vmatpush1.msra.mxu0 %v5125
        %5202 = vmatprep.subr.mxu0 0.0
        %5203 = vmatpush1.msra.mxu0 %v5124
        %5204 = vmatprep.subr.mxu0 0.0
        %5205 = vmatpush1.msra.mxu0 %v5123
        %5206 = vmatprep.subr.mxu0 0.0
        %5207 = vmatpush2.msra.mxu0 %v5154
        %5208 = vmatprep.subr.mxu0 0.0
        %5209 = vmatpush2.msra.mxu0 %v5153
        %5210 = vmatprep.subr.mxu0 0.0
        %5211 = vmatpush2.msra.mxu0 %v5152
        %5212 = vmatprep.subr.mxu0 0.0
        %5213 = vmatpush2.msra.mxu0 %v5151
        %5214 = vmatprep.subr.mxu0 0.0
        %5215 = vmatpush2.msra.mxu0 %v5150
        %5216 = vmatprep.subr.mxu0 0.0
        %5217 = vmatpush2.msra.mxu0 %v5149
        %5218 = vmatprep.subr.mxu0 0.0
        %5219 = vmatpush2.msra.mxu0 %v5148
        %5220 = vmatprep.subr.mxu0 0.0
        %5221 = vmatpush2.msra.mxu0 %v5147
        %5222 = vmatprep.subr.mxu0 0.0
        %5223 = vmatpush2.msra.mxu0 %v5146
        %5224 = vmatprep.subr.mxu0 0.0
        %5225 = vmatpush2.msra.mxu0 %v5145
        %5226 = vmatprep.subr.mxu0 0.0
        %5227 = vmatpush2.msra.mxu0 %v5144
        %5228 = vmatprep.subr.mxu0 0.0
        %5229 = vmatpush2.msra.mxu0 %v5143
        %5230 = vmatprep.subr.mxu0 0.0
        %5231 = vmatpush2.msra.mxu0 %v5142
        %5232 = vmatprep.subr.mxu0 0.0
        %5233 = vmatpush2.msra.mxu0 %v5141
        %5234 = vmatprep.subr.mxu0 0.0
        %5235 = vmatpush2.msra.mxu0 %v5140
        %5236 = vmatprep.subr.mxu0 0.0
        %5237 = vmatpush2.msra.mxu0 %v5139
        %5238 = vmatprep.mubr.f32.mxu0 %v5040
        %5239 = vmatmul.mubr.f32.gmra.mxu0 %v5038
        %v5240 = vpop.f32.mrf.mxu0
        %v5241 = vadd.f32 0.0, %v5240
        %v5242 = vpop.f32.mrf.mxu0
        %5243 = vmatprep.mubr.f32.mxu0 %v5046
        %5244 = vmatmul.mubr.f32.gmra.mxu0 %v5044
        %v5245 = vpop.f32.mrf.mxu0
        %v5246 = vadd.f32 0.0, %v5245
        %v5247 = vpop.f32.mrf.mxu0
        %5248 = vdwg.mxu0
        %5249 = vmatprep.subr.mxu0 0.0
        %5250 = vmatpush1.msra.mxu0 0.0
        %5251 = vmatprep.subr.mxu0 0.0
        %5252 = vmatpush1.msra.mxu0 0.0
        %5253 = vmatprep.subr.mxu0 0.0
        %5254 = vmatpush1.msra.mxu0 0.0
        %5255 = vmatprep.subr.mxu0 0.0
        %5256 = vmatpush1.msra.mxu0 %v5167
        %5257 = vmatprep.subr.mxu0 0.0
        %5258 = vmatpush1.msra.mxu0 %v5166
        %5259 = vmatprep.subr.mxu0 0.0
        %5260 = vmatpush1.msra.mxu0 %v5165
        %5261 = vmatprep.subr.mxu0 0.0
        %5262 = vmatpush1.msra.mxu0 %v5164
        %5263 = vmatprep.subr.mxu0 0.0
        %5264 = vmatpush1.msra.mxu0 %v5163
        %5265 = vmatprep.subr.mxu0 0.0
        %5266 = vmatpush1.msra.mxu0 %v5162
        %5267 = vmatprep.subr.mxu0 0.0
        %5268 = vmatpush1.msra.mxu0 %v5161
        %5269 = vmatprep.subr.mxu0 0.0
        %5270 = vmatpush1.msra.mxu0 %v5160
        %5271 = vmatprep.subr.mxu0 0.0
        %5272 = vmatpush1.msra.mxu0 %v5159
        %5273 = vmatprep.subr.mxu0 0.0
        %5274 = vmatpush1.msra.mxu0 %v5158
        %5275 = vmatprep.subr.mxu0 0.0
        %5276 = vmatpush1.msra.mxu0 %v5157
        %5277 = vmatprep.subr.mxu0 0.0
        %5278 = vmatpush1.msra.mxu0 %v5156
        %5279 = vmatprep.subr.mxu0 0.0
        %5280 = vmatpush1.msra.mxu0 %v5155
        %5281 = vmatprep.subr.mxu0 0.0
        %5282 = vmatpush2.msra.mxu0 0.0
        %5283 = vmatprep.subr.mxu0 0.0
        %5284 = vmatpush2.msra.mxu0 0.0
        %5285 = vmatprep.subr.mxu0 0.0
        %5286 = vmatpush2.msra.mxu0 0.0
        %5287 = vmatprep.subr.mxu0 0.0
        %5288 = vmatpush2.msra.mxu0 0.0
        %5289 = vmatprep.subr.mxu0 0.0
        %5290 = vmatpush2.msra.mxu0 0.0
        %5291 = vmatprep.subr.mxu0 0.0
        %5292 = vmatpush2.msra.mxu0 0.0
        %5293 = vmatprep.subr.mxu0 0.0
        %5294 = vmatpush2.msra.mxu0 0.0
        %5295 = vmatprep.subr.mxu0 0.0
        %5296 = vmatpush2.msra.mxu0 0.0
        %5297 = vmatprep.subr.mxu0 0.0
        %5298 = vmatpush2.msra.mxu0 0.0
        %5299 = vmatprep.subr.mxu0 0.0
        %5300 = vmatpush2.msra.mxu0 0.0
        %5301 = vmatprep.subr.mxu0 0.0
        %5302 = vmatpush2.msra.mxu0 0.0
        %5303 = vmatprep.subr.mxu0 0.0
        %5304 = vmatpush2.msra.mxu0 0.0
        %5305 = vmatprep.subr.mxu0 0.0
        %5306 = vmatpush2.msra.mxu0 0.0
        %5307 = vmatprep.subr.mxu0 0.0
        %5308 = vmatpush2.msra.mxu0 0.0
        %5309 = vmatprep.subr.mxu0 0.0
        %5310 = vmatpush2.msra.mxu0 0.0
        %5311 = vmatprep.subr.mxu0 0.0
        %5312 = vmatpush2.msra.mxu0 0.0
        %5313 = vmatprep.mubr.f32.mxu0 0.0
        %5314 = vmatmul.mubr.f32.gmra.mxu0 %v5169
        %v5315 = vpop.f32.mrf.mxu0
        %v5316 = vadd.f32 %v5241, %v5315
        %v5317 = vpop.f32.mrf.mxu0
        %5318 = vmatprep.mubr.f32.mxu0 0.0
        %5319 = vmatmul.mubr.f32.gmra.mxu0 %v5172
        %v5320 = vpop.f32.mrf.mxu0
        %v5321 = vadd.f32 %v5246, %v5320
        %v5322 = vpop.f32.mrf.mxu0
        %5323 = vdwg.mxu0
        %vm5324 = vcmp.ge.f32.partialorder %v5316, 0.0
        %vm5325 = vcmp.ge.f32.partialorder %v5321, 0.0
        %v5326 = vmul.f32 %v5316, 0.01
        %v5327 = vmul.f32 %v5321, 0.01
        %v5328 = vsel %vm5324, %v5316, %v5326
        %v5329 = vsel %vm5325, %v5321, %v5327
        %5330 = vst [vmem:[#allocation3] sm:$0xff] 0.0
        %vm5331 = vcmask 130048
        %5332 = vst.msk [vmem:[#allocation3 + $0x8] sm:$0xff] %vm5331, 0.0
        %5333 = vst [vmem:[#allocation3 + $0x10] sm:$0xf] 0.0
        %vm5334 = vcmask 125952
        %5335 = vst.msk [vmem:[#allocation3 + $0x18] sm:$0xf] %vm5334, 0.0
        %vm5338 = vcmask 1040384
        %v5339 = vrot.slane %v5328, 7
        %v5340 = vrot.slane %v5329, 7
        %v5341 = vsel %vm5338, %v5339, %v5340
        %5342 = vrot.lane.b32.xlu0 %v5339, 12
        %v5343 = vpop.permute.xlu0 %5342
        %5344 = vrot.lane.b32.xlu0 %v5341, 12
        %v5345 = vpop.permute.xlu0 %5344
        %vm5348 = vcmask 1047649
        %5349 = vst.msk [vmem:[#allocation3] sm:$0xfe] %vm5348, %v5343
        %vm5350 = vcmask 31745
        %5351 = vst.msk [vmem:[#allocation3 + $0x8] sm:$0xfe] %vm5350, %v5343
        %vm5352 = vcmask 1042528
        %5353 = vst.msk [vmem:[#allocation3 + $0x10] sm:$0x7] %vm5352, %v5345
        %vm5354 = vcmask 26624
        %5355 = vst.msk [vmem:[#allocation3 + $0x18] sm:$0x7] %vm5354, %v5345
        %v5356 = vld [vmem:[#allocation3] sm:$0xff]
        %v5357 = vld [vmem:[#allocation3 + $0x10] sm:$0x3]
        %v5358 = vpack.c.bf16 %v5357, %v5356
        %v5359 = vld [vmem:[%s5] sm:$0xff]
        %v5360 = vld [vmem:[%s5 + $0x8] sm:$0xff]
        %v5361 = vld [vmem:[%s5 + $0x10] sm:$0xff]
        %v5362 = vld [vmem:[%s5 + $0x18] sm:$0xff]
        %v5363 = vld [vmem:[%s5 + $0x20] sm:$0xff]
        %v5364 = vld [vmem:[%s5 + $0x28] sm:$0xff]
        %v5365 = vld [vmem:[%s5 + $0x30] sm:$0xff]
        %v5366 = vld [vmem:[%s5 + $0x38] sm:$0xff]
        %v5367 = vld [vmem:[%s5 + $0x40] sm:$0xff]
        %v5368 = vld [vmem:[%s5 + $0x48] sm:$0xff]
        %v5369 = vld [vmem:[%s5 + $0x50] sm:$0xff]
        %v5370 = vld [vmem:[%s5 + $0x58] sm:$0xff]
        %v5371 = vld [vmem:[%s5 + $0x60] sm:$0xff]
        %v5372 = vld [vmem:[%s5 + $0x68] sm:$0xff]
        %v5373 = vld [vmem:[%s5 + $0x70] sm:$0xff]
        %v5374 = vld [vmem:[%s5 + $0x78] sm:$0xff]
        %v5375 = vld [vmem:[%s5 + $0x80] sm:$0xff]
        %v5376 = vld [vmem:[%s5 + $0x88] sm:$0xff]
        %v5377 = vld [vmem:[%s5 + $0x90] sm:$0xff]
        %v5378 = vld [vmem:[%s5 + $0x98] sm:$0xff]
        %v5379 = vld [vmem:[%s5 + $0xa0] sm:$0xff]
        %v5380 = vld [vmem:[%s5 + $0xa8] sm:$0xff]
        %v5381 = vld [vmem:[%s5 + $0xb0] sm:$0xff]
        %v5382 = vld [vmem:[%s5 + $0xb8] sm:$0xff]
        %v5383 = vld [vmem:[%s5 + $0xc0] sm:$0xff]
        %v5384 = vld [vmem:[%s5 + $0xc8] sm:$0xff]
        %v5385 = vld [vmem:[%s5 + $0xd0] sm:$0xff]
        %v5386 = vld [vmem:[%s5 + $0xd8] sm:$0xff]
        %v5387 = vld [vmem:[%s5 + $0xe0] sm:$0xff]
        %v5388 = vld [vmem:[%s5 + $0xe8] sm:$0xff]
        %v5389 = vld [vmem:[#allocation3 + $0x8] sm:$0xff]
        %v5390 = vld [vmem:[#allocation3 + $0x18] sm:$0x3]
        %v5391 = vpack.c.bf16 %v5390, %v5389
        %s5392 = scalar_lea.vmem %s5, 240
        %v5393 = vld [vmem:[%s5392] sm:$0xff]
        %v5394 = vld [vmem:[%s5392 + $0x8] sm:$0xff]
        %v5395 = vld [vmem:[%s5392 + $0x10] sm:$0xff]
        %v5396 = vld [vmem:[%s5392 + $0x18] sm:$0xff]
        %v5397 = vld [vmem:[%s5392 + $0x20] sm:$0xff]
        %v5398 = vld [vmem:[%s5392 + $0x28] sm:$0xff]
        %v5399 = vld [vmem:[%s5392 + $0x30] sm:$0xff]
        %v5400 = vld [vmem:[%s5392 + $0x38] sm:$0xff]
        %v5401 = vld [vmem:[%s5392 + $0x40] sm:$0xff]
        %v5402 = vld [vmem:[%s5392 + $0x48] sm:$0xff]
        %v5403 = vld [vmem:[%s5392 + $0x50] sm:$0xff]
        %v5404 = vld [vmem:[%s5392 + $0x58] sm:$0xff]
        %v5405 = vld [vmem:[%s5392 + $0x60] sm:$0xff]
        %v5406 = vld [vmem:[%s5392 + $0x68] sm:$0xff]
        %v5407 = vld [vmem:[%s5392 + $0x70] sm:$0xff]
        %v5408 = vld [vmem:[%s5392 + $0x78] sm:$0xff]
        %v5409 = vld [vmem:[%s5392 + $0x80] sm:$0xff]
        %v5410 = vld [vmem:[%s5392 + $0x88] sm:$0xff]
        %v5411 = vld [vmem:[%s5392 + $0x90] sm:$0xff]
        %v5412 = vld [vmem:[%s5392 + $0x98] sm:$0xff]
        %v5413 = vld [vmem:[%s5392 + $0xa0] sm:$0xff]
        %v5414 = vld [vmem:[%s5392 + $0xa8] sm:$0xff]
        %v5415 = vld [vmem:[%s5392 + $0xb0] sm:$0xff]
        %v5416 = vld [vmem:[%s5392 + $0xb8] sm:$0xff]
        %v5417 = vld [vmem:[%s5392 + $0xc0] sm:$0xff]
        %v5418 = vld [vmem:[%s5392 + $0xc8] sm:$0xff]
        %v5419 = vld [vmem:[%s5392 + $0xd0] sm:$0xff]
        %v5420 = vld [vmem:[%s5392 + $0xd8] sm:$0xff]
        %v5421 = vld [vmem:[%s5392 + $0xe0] sm:$0xff]
        %v5422 = vld [vmem:[%s5392 + $0xe8] sm:$0xff]
        %5425 = vrot.lane.b32.xlu0 %v5358, 116
        %v5426 = vpop.permute.xlu0 %5425
        %5427 = vrot.lane.b32.xlu0 %v5391, 116
        %v5428 = vpop.permute.xlu0 %5427
        %vm5429 = vcmask 949248
        %v5430 = vsel %vm5429, %v5426, %v5428
        %v5461 = vunpack.c.l.b16 %v5393
        %v5462 = vunpack.c.h.b16 %v5393
        %v5463 = vunpack.c.l.b16 %v5394
        %v5464 = vunpack.c.h.b16 %v5394
        %v5465 = vunpack.c.l.b16 %v5395
        %v5466 = vunpack.c.h.b16 %v5395
        %v5467 = vunpack.c.l.b16 %v5396
        %v5468 = vunpack.c.h.b16 %v5396
        %v5469 = vunpack.c.l.b16 %v5397
        %v5470 = vunpack.c.h.b16 %v5397
        %v5471 = vunpack.c.l.b16 %v5398
        %v5472 = vunpack.c.h.b16 %v5398
        %v5473 = vunpack.c.l.b16 %v5399
        %v5474 = vunpack.c.h.b16 %v5399
        %v5475 = vunpack.c.l.b16 %v5400
        %v5476 = vunpack.c.h.b16 %v5400
        %v5477 = vunpack.c.l.b16 %v5401
        %v5478 = vunpack.c.h.b16 %v5401
        %v5479 = vunpack.c.l.b16 %v5402
        %v5480 = vunpack.c.h.b16 %v5402
        %v5481 = vunpack.c.l.b16 %v5403
        %v5482 = vunpack.c.h.b16 %v5403
        %v5483 = vunpack.c.l.b16 %v5404
        %v5484 = vunpack.c.h.b16 %v5404
        %v5485 = vunpack.c.l.b16 %v5405
        %v5486 = vunpack.c.h.b16 %v5405
        %v5487 = vunpack.c.l.b16 %v5406
        %v5488 = vunpack.c.h.b16 %v5406
        %v5489 = vunpack.c.l.b16 %v5407
        %v5490 = vunpack.c.h.b16 %v5407
        %v5491 = vunpack.c.l.b16 %v5408
        %v5492 = vunpack.c.h.b16 %v5408
        %v5493 = vunpack.c.l.b16 %v5409
        %v5494 = vunpack.c.h.b16 %v5409
        %v5495 = vunpack.c.l.b16 %v5410
        %v5496 = vunpack.c.h.b16 %v5410
        %v5497 = vunpack.c.l.b16 %v5411
        %v5498 = vunpack.c.h.b16 %v5411
        %v5499 = vunpack.c.l.b16 %v5412
        %v5500 = vunpack.c.h.b16 %v5412
        %v5501 = vunpack.c.l.b16 %v5413
        %v5502 = vunpack.c.h.b16 %v5413
        %v5503 = vunpack.c.l.b16 %v5414
        %v5504 = vunpack.c.h.b16 %v5414
        %v5505 = vunpack.c.l.b16 %v5415
        %v5506 = vunpack.c.h.b16 %v5415
        %v5507 = vunpack.c.l.b16 %v5416
        %v5508 = vunpack.c.h.b16 %v5416
        %v5509 = vunpack.c.l.b16 %v5417
        %v5510 = vunpack.c.h.b16 %v5417
        %v5511 = vunpack.c.l.b16 %v5418
        %v5512 = vunpack.c.h.b16 %v5418
        %v5513 = vunpack.c.l.b16 %v5419
        %v5514 = vunpack.c.h.b16 %v5419
        %v5515 = vunpack.c.l.b16 %v5420
        %v5516 = vunpack.c.h.b16 %v5420
        %v5517 = vunpack.c.l.b16 %v5421
        %v5518 = vunpack.c.h.b16 %v5421
        %v5519 = vunpack.c.l.b16 %v5422
        %v5520 = vunpack.c.h.b16 %v5422
        %v5521 = vpack.c.b16 %v5465, %v5461
        %v5522 = vpack.c.b16 %v5466, %v5462
        %v5523 = vpack.c.b16 %v5467, %v5463
        %v5524 = vpack.c.b16 %v5468, %v5464
        %v5525 = vpack.c.b16 %v5473, %v5469
        %v5526 = vpack.c.b16 %v5474, %v5470
        %v5527 = vpack.c.b16 %v5475, %v5471
        %v5528 = vpack.c.b16 %v5476, %v5472
        %v5529 = vpack.c.b16 %v5481, %v5477
        %v5530 = vpack.c.b16 %v5482, %v5478
        %v5531 = vpack.c.b16 %v5483, %v5479
        %v5532 = vpack.c.b16 %v5484, %v5480
        %v5533 = vpack.c.b16 %v5489, %v5485
        %v5534 = vpack.c.b16 %v5490, %v5486
        %v5535 = vpack.c.b16 %v5491, %v5487
        %v5536 = vpack.c.b16 %v5492, %v5488
        %v5537 = vpack.c.b16 %v5497, %v5493
        %v5538 = vpack.c.b16 %v5498, %v5494
        %v5539 = vpack.c.b16 %v5499, %v5495
        %v5540 = vpack.c.b16 %v5500, %v5496
        %v5541 = vpack.c.b16 %v5505, %v5501
        %v5542 = vpack.c.b16 %v5506, %v5502
        %v5543 = vpack.c.b16 %v5507, %v5503
        %v5544 = vpack.c.b16 %v5508, %v5504
        %v5545 = vpack.c.b16 %v5513, %v5509
        %v5546 = vpack.c.b16 %v5514, %v5510
        %v5547 = vpack.c.b16 %v5515, %v5511
        %v5548 = vpack.c.b16 %v5516, %v5512
        %v5549 = vpack.c.b16 %v5517, %v5517
        %v5550 = vpack.c.b16 %v5518, %v5518
        %v5551 = vpack.c.b16 %v5519, %v5519
        %v5552 = vpack.c.b16 %v5520, %v5520
        %vm5581 = vcmask 982016
        %v5583 = vsel %vm5581, %v5430, 0
        %v5586 = vsel %vm4961, %v5549, 0
        %v5589 = vsel %vm4961, %v5550, 0
        %v5592 = vsel %vm4961, %v5551, 0
        %v5595 = vsel %vm4961, %v5552, 0
        %5597 = vmatprep.subr.bf16.mxu0 %v5589
        %5598 = vmatpush1.bf16.msra.mxu0 %v5586
        %5599 = vmatprep.subr.bf16.mxu0 %v5546
        %5600 = vmatpush1.bf16.msra.mxu0 %v5545
        %5601 = vmatprep.subr.bf16.mxu0 %v5542
        %5602 = vmatpush1.bf16.msra.mxu0 %v5541
        %5603 = vmatprep.subr.bf16.mxu0 %v5538
        %5604 = vmatpush1.bf16.msra.mxu0 %v5537
        %5605 = vmatprep.subr.bf16.mxu0 %v5534
        %5606 = vmatpush1.bf16.msra.mxu0 %v5533
        %5607 = vmatprep.subr.bf16.mxu0 %v5530
        %5608 = vmatpush1.bf16.msra.mxu0 %v5529
        %5609 = vmatprep.subr.bf16.mxu0 %v5526
        %5610 = vmatpush1.bf16.msra.mxu0 %v5525
        %5611 = vmatprep.subr.bf16.mxu0 %v5522
        %5612 = vmatpush1.bf16.msra.mxu0 %v5521
        %5613 = vmatprep.subr.bf16.mxu0 0
        %5614 = vmatpush2.bf16.msra.mxu0 0
        %5615 = vmatprep.subr.bf16.mxu0 0
        %5616 = vmatpush2.bf16.msra.mxu0 0
        %5617 = vmatprep.subr.bf16.mxu0 0
        %5618 = vmatpush2.bf16.msra.mxu0 0
        %5619 = vmatprep.subr.bf16.mxu0 0
        %5620 = vmatpush2.bf16.msra.mxu0 0
        %5621 = vmatprep.subr.bf16.mxu0 0
        %5622 = vmatpush2.bf16.msra.mxu0 0
        %5623 = vmatprep.subr.bf16.mxu0 0
        %5624 = vmatpush2.bf16.msra.mxu0 0
        %5625 = vmatprep.subr.bf16.mxu0 0
        %5626 = vmatpush2.bf16.msra.mxu0 0
        %5627 = vmatprep.subr.bf16.mxu0 0
        %5628 = vmatpush2.bf16.msra.mxu0 0
        %5629 = vmatprep.mubr.bf16.mxu0 0
        %5630 = vmatmul.mubr.bf16.gmra.mxu0 %v5583
        %v5631 = vpop.f32.mrf.mxu0
        %v5632 = vadd.f32 0.0, %v5631
        %v5633 = vpop.f32.mrf.mxu0
        %v5634 = vadd.f32 0.0, %v5633
        %v5635 = vpop.f32.mrf.mxu0
        %v5636 = vadd.f32 0.0, %v5635
        %v5637 = vpop.f32.mrf.mxu0
        %v5638 = vadd.f32 0.0, %v5637
        %5639 = vdwg.mxu0
        %5640 = vmatprep.subr.bf16.mxu0 %v5595
        %5641 = vmatpush1.bf16.msra.mxu0 %v5592
        %5642 = vmatprep.subr.bf16.mxu0 %v5548
        %5643 = vmatpush1.bf16.msra.mxu0 %v5547
        %5644 = vmatprep.subr.bf16.mxu0 %v5544
        %5645 = vmatpush1.bf16.msra.mxu0 %v5543
        %5646 = vmatprep.subr.bf16.mxu0 %v5540
        %5647 = vmatpush1.bf16.msra.mxu0 %v5539
        %5648 = vmatprep.subr.bf16.mxu0 %v5536
        %5649 = vmatpush1.bf16.msra.mxu0 %v5535
        %5650 = vmatprep.subr.bf16.mxu0 %v5532
        %5651 = vmatpush1.bf16.msra.mxu0 %v5531
        %5652 = vmatprep.subr.bf16.mxu0 %v5528
        %5653 = vmatpush1.bf16.msra.mxu0 %v5527
        %5654 = vmatprep.subr.bf16.mxu0 %v5524
        %5655 = vmatpush1.bf16.msra.mxu0 %v5523
        %5656 = vmatprep.subr.bf16.mxu0 0
        %5657 = vmatpush2.bf16.msra.mxu0 0
        %5658 = vmatprep.subr.bf16.mxu0 0
        %5659 = vmatpush2.bf16.msra.mxu0 0
        %5660 = vmatprep.subr.bf16.mxu0 0
        %5661 = vmatpush2.bf16.msra.mxu0 0
        %5662 = vmatprep.subr.bf16.mxu0 0
        %5663 = vmatpush2.bf16.msra.mxu0 0
        %5664 = vmatprep.subr.bf16.mxu0 0
        %5665 = vmatpush2.bf16.msra.mxu0 0
        %5666 = vmatprep.subr.bf16.mxu0 0
        %5667 = vmatpush2.bf16.msra.mxu0 0
        %5668 = vmatprep.subr.bf16.mxu0 0
        %5669 = vmatpush2.bf16.msra.mxu0 0
        %5670 = vmatprep.subr.bf16.mxu0 0
        %5671 = vmatpush2.bf16.msra.mxu0 0
        %5672 = vmatprep.mubr.bf16.mxu0 0
        %5673 = vmatmul.mubr.bf16.gmra.mxu0 %v5583
        %v5674 = vpop.f32.mrf.mxu0
        %v5675 = vadd.f32 0.0, %v5674
        %v5676 = vpop.f32.mrf.mxu0
        %v5677 = vpop.f32.mrf.mxu0
        %v5678 = vadd.f32 0.0, %v5677
        %v5679 = vpop.f32.mrf.mxu0
        %5680 = vdwg.mxu0
        %v5711 = vunpack.c.l.b16 %v5359
        %v5712 = vunpack.c.h.b16 %v5359
        %v5713 = vunpack.c.l.b16 %v5360
        %v5714 = vunpack.c.h.b16 %v5360
        %v5715 = vunpack.c.l.b16 %v5361
        %v5716 = vunpack.c.h.b16 %v5361
        %v5717 = vunpack.c.l.b16 %v5362
        %v5718 = vunpack.c.h.b16 %v5362
        %v5719 = vunpack.c.l.b16 %v5363
        %v5720 = vunpack.c.h.b16 %v5363
        %v5721 = vunpack.c.l.b16 %v5364
        %v5722 = vunpack.c.h.b16 %v5364
        %v5723 = vunpack.c.l.b16 %v5365
        %v5724 = vunpack.c.h.b16 %v5365
        %v5725 = vunpack.c.l.b16 %v5366
        %v5726 = vunpack.c.h.b16 %v5366
        %v5727 = vunpack.c.l.b16 %v5367
        %v5728 = vunpack.c.h.b16 %v5367
        %v5729 = vunpack.c.l.b16 %v5368
        %v5730 = vunpack.c.h.b16 %v5368
        %v5731 = vunpack.c.l.b16 %v5369
        %v5732 = vunpack.c.h.b16 %v5369
        %v5733 = vunpack.c.l.b16 %v5370
        %v5734 = vunpack.c.h.b16 %v5370
        %v5735 = vunpack.c.l.b16 %v5371
        %v5736 = vunpack.c.h.b16 %v5371
        %v5737 = vunpack.c.l.b16 %v5372
        %v5738 = vunpack.c.h.b16 %v5372
        %v5739 = vunpack.c.l.b16 %v5373
        %v5740 = vunpack.c.h.b16 %v5373
        %v5741 = vunpack.c.l.b16 %v5374
        %v5742 = vunpack.c.h.b16 %v5374
        %v5743 = vunpack.c.l.b16 %v5375
        %v5744 = vunpack.c.h.b16 %v5375
        %v5745 = vunpack.c.l.b16 %v5376
        %v5746 = vunpack.c.h.b16 %v5376
        %v5747 = vunpack.c.l.b16 %v5377
        %v5748 = vunpack.c.h.b16 %v5377
        %v5749 = vunpack.c.l.b16 %v5378
        %v5750 = vunpack.c.h.b16 %v5378
        %v5751 = vunpack.c.l.b16 %v5379
        %v5752 = vunpack.c.h.b16 %v5379
        %v5753 = vunpack.c.l.b16 %v5380
        %v5754 = vunpack.c.h.b16 %v5380
        %v5755 = vunpack.c.l.b16 %v5381
        %v5756 = vunpack.c.h.b16 %v5381
        %v5757 = vunpack.c.l.b16 %v5382
        %v5758 = vunpack.c.h.b16 %v5382
        %v5759 = vunpack.c.l.b16 %v5383
        %v5760 = vunpack.c.h.b16 %v5383
        %v5761 = vunpack.c.l.b16 %v5384
        %v5762 = vunpack.c.h.b16 %v5384
        %v5763 = vunpack.c.l.b16 %v5385
        %v5764 = vunpack.c.h.b16 %v5385
        %v5765 = vunpack.c.l.b16 %v5386
        %v5766 = vunpack.c.h.b16 %v5386
        %v5767 = vunpack.c.l.b16 %v5387
        %v5768 = vunpack.c.h.b16 %v5387
        %v5769 = vunpack.c.l.b16 %v5388
        %v5770 = vunpack.c.h.b16 %v5388
        %v5771 = vpack.c.b16 %v5715, %v5711
        %v5772 = vpack.c.b16 %v5716, %v5712
        %v5773 = vpack.c.b16 %v5717, %v5713
        %v5774 = vpack.c.b16 %v5718, %v5714
        %v5775 = vpack.c.b16 %v5723, %v5719
        %v5776 = vpack.c.b16 %v5724, %v5720
        %v5777 = vpack.c.b16 %v5725, %v5721
        %v5778 = vpack.c.b16 %v5726, %v5722
        %v5779 = vpack.c.b16 %v5731, %v5727
        %v5780 = vpack.c.b16 %v5732, %v5728
        %v5781 = vpack.c.b16 %v5733, %v5729
        %v5782 = vpack.c.b16 %v5734, %v5730
        %v5783 = vpack.c.b16 %v5739, %v5735
        %v5784 = vpack.c.b16 %v5740, %v5736
        %v5785 = vpack.c.b16 %v5741, %v5737
        %v5786 = vpack.c.b16 %v5742, %v5738
        %v5787 = vpack.c.b16 %v5747, %v5743
        %v5788 = vpack.c.b16 %v5748, %v5744
        %v5789 = vpack.c.b16 %v5749, %v5745
        %v5790 = vpack.c.b16 %v5750, %v5746
        %v5791 = vpack.c.b16 %v5755, %v5751
        %v5792 = vpack.c.b16 %v5756, %v5752
        %v5793 = vpack.c.b16 %v5757, %v5753
        %v5794 = vpack.c.b16 %v5758, %v5754
        %v5795 = vpack.c.b16 %v5763, %v5759
        %v5796 = vpack.c.b16 %v5764, %v5760
        %v5797 = vpack.c.b16 %v5765, %v5761
        %v5798 = vpack.c.b16 %v5766, %v5762
        %v5799 = vpack.c.b16 %v5767, %v5767
        %v5800 = vpack.c.b16 %v5768, %v5768
        %v5801 = vpack.c.b16 %v5769, %v5769
        %v5802 = vpack.c.b16 %v5770, %v5770
        %v5832 = vsel %vm5581, %v5358, 0
        %v5835 = vsel %vm4961, %v5799, 0
        %v5838 = vsel %vm4961, %v5800, 0
        %v5841 = vsel %vm4961, %v5801, 0
        %v5844 = vsel %vm4961, %v5802, 0
        %5846 = vmatprep.subr.bf16.mxu0 %v5838
        %5847 = vmatpush1.bf16.msra.mxu0 %v5835
        %5848 = vmatprep.subr.bf16.mxu0 %v5796
        %5849 = vmatpush1.bf16.msra.mxu0 %v5795
        %5850 = vmatprep.subr.bf16.mxu0 %v5792
        %5851 = vmatpush1.bf16.msra.mxu0 %v5791
        %5852 = vmatprep.subr.bf16.mxu0 %v5788
        %5853 = vmatpush1.bf16.msra.mxu0 %v5787
        %5854 = vmatprep.subr.bf16.mxu0 %v5784
        %5855 = vmatpush1.bf16.msra.mxu0 %v5783
        %5856 = vmatprep.subr.bf16.mxu0 %v5780
        %5857 = vmatpush1.bf16.msra.mxu0 %v5779
        %5858 = vmatprep.subr.bf16.mxu0 %v5776
        %5859 = vmatpush1.bf16.msra.mxu0 %v5775
        %5860 = vmatprep.subr.bf16.mxu0 %v5772
        %5861 = vmatpush1.bf16.msra.mxu0 %v5771
        %5862 = vmatprep.subr.bf16.mxu0 0
        %5863 = vmatpush2.bf16.msra.mxu0 0
        %5864 = vmatprep.subr.bf16.mxu0 0
        %5865 = vmatpush2.bf16.msra.mxu0 0
        %5866 = vmatprep.subr.bf16.mxu0 0
        %5867 = vmatpush2.bf16.msra.mxu0 0
        %5868 = vmatprep.subr.bf16.mxu0 0
        %5869 = vmatpush2.bf16.msra.mxu0 0
        %5870 = vmatprep.subr.bf16.mxu0 0
        %5871 = vmatpush2.bf16.msra.mxu0 0
        %5872 = vmatprep.subr.bf16.mxu0 0
        %5873 = vmatpush2.bf16.msra.mxu0 0
        %5874 = vmatprep.subr.bf16.mxu0 0
        %5875 = vmatpush2.bf16.msra.mxu0 0
        %5876 = vmatprep.subr.bf16.mxu0 0
        %5877 = vmatpush2.bf16.msra.mxu0 0
        %5878 = vmatprep.mubr.bf16.mxu0 0
        %5879 = vmatmul.mubr.bf16.gmra.mxu0 %v5832
        %v5880 = vpop.f32.mrf.mxu0
        %v5881 = vadd.f32 %v5632, %v5880
        %v5882 = vpop.f32.mrf.mxu0
        %v5883 = vadd.f32 %v5634, %v5882
        %v5884 = vpop.f32.mrf.mxu0
        %v5885 = vadd.f32 %v5636, %v5884
        %v5886 = vpop.f32.mrf.mxu0
        %v5887 = vadd.f32 %v5638, %v5886
        %5888 = vdwg.mxu0
        %5889 = vmatprep.subr.bf16.mxu0 %v5844
        %5890 = vmatpush1.bf16.msra.mxu0 %v5841
        %5891 = vmatprep.subr.bf16.mxu0 %v5798
        %5892 = vmatpush1.bf16.msra.mxu0 %v5797
        %5893 = vmatprep.subr.bf16.mxu0 %v5794
        %5894 = vmatpush1.bf16.msra.mxu0 %v5793
        %5895 = vmatprep.subr.bf16.mxu0 %v5790
        %5896 = vmatpush1.bf16.msra.mxu0 %v5789
        %5897 = vmatprep.subr.bf16.mxu0 %v5786
        %5898 = vmatpush1.bf16.msra.mxu0 %v5785
        %5899 = vmatprep.subr.bf16.mxu0 %v5782
        %5900 = vmatpush1.bf16.msra.mxu0 %v5781
        %5901 = vmatprep.subr.bf16.mxu0 %v5778
        %5902 = vmatpush1.bf16.msra.mxu0 %v5777
        %5903 = vmatprep.subr.bf16.mxu0 %v5774
        %5904 = vmatpush1.bf16.msra.mxu0 %v5773
        %5905 = vmatprep.subr.bf16.mxu0 0
        %5906 = vmatpush2.bf16.msra.mxu0 0
        %5907 = vmatprep.subr.bf16.mxu0 0
        %5908 = vmatpush2.bf16.msra.mxu0 0
        %5909 = vmatprep.subr.bf16.mxu0 0
        %5910 = vmatpush2.bf16.msra.mxu0 0
        %5911 = vmatprep.subr.bf16.mxu0 0
        %5912 = vmatpush2.bf16.msra.mxu0 0
        %5913 = vmatprep.subr.bf16.mxu0 0
        %5914 = vmatpush2.bf16.msra.mxu0 0
        %5915 = vmatprep.subr.bf16.mxu0 0
        %5916 = vmatpush2.bf16.msra.mxu0 0
        %5917 = vmatprep.subr.bf16.mxu0 0
        %5918 = vmatpush2.bf16.msra.mxu0 0
        %5919 = vmatprep.subr.bf16.mxu0 0
        %5920 = vmatpush2.bf16.msra.mxu0 0
        %5921 = vmatprep.mubr.bf16.mxu0 0
        %5922 = vmatmul.mubr.bf16.gmra.mxu0 %v5832
        %v5923 = vpop.f32.mrf.mxu0
        %v5924 = vadd.f32 %v5675, %v5923
        %v5925 = vpop.f32.mrf.mxu0
        %v5926 = vpop.f32.mrf.mxu0
        %v5927 = vadd.f32 %v5678, %v5926
        %v5928 = vpop.f32.mrf.mxu0
        %5929 = vdwg.mxu0
        %s5930 = scalar_lea.vmem %s5, 480
        %v5931 = vld [vmem:[%s5930] sm:$0xff]
        %v5932 = vld [vmem:[%s5930 + $0x8] sm:$0xff]
        %v5933 = vld [vmem:[%s5930 + $0x10] sm:$0xff]
        %v5934 = vld [vmem:[%s5930 + $0x18] sm:$0xff]
        %v5935 = vld [vmem:[%s5930 + $0x20] sm:$0xff]
        %v5936 = vld [vmem:[%s5930 + $0x28] sm:$0xff]
        %v5937 = vld [vmem:[%s5930 + $0x30] sm:$0xff]
        %v5938 = vld [vmem:[%s5930 + $0x38] sm:$0xff]
        %v5939 = vld [vmem:[%s5930 + $0x40] sm:$0xff]
        %v5940 = vld [vmem:[%s5930 + $0x48] sm:$0xff]
        %v5941 = vld [vmem:[%s5930 + $0x50] sm:$0xff]
        %v5942 = vld [vmem:[%s5930 + $0x58] sm:$0xff]
        %v5943 = vld [vmem:[%s5930 + $0x60] sm:$0xff]
        %v5944 = vld [vmem:[%s5930 + $0x68] sm:$0xff]
        %v5945 = vld [vmem:[%s5930 + $0x70] sm:$0xff]
        %v5946 = vld [vmem:[%s5930 + $0x78] sm:$0xff]
        %v5947 = vld [vmem:[%s5930 + $0x80] sm:$0xff]
        %v5948 = vld [vmem:[%s5930 + $0x88] sm:$0xff]
        %v5949 = vld [vmem:[%s5930 + $0x90] sm:$0xff]
        %v5950 = vld [vmem:[%s5930 + $0x98] sm:$0xff]
        %v5951 = vld [vmem:[%s5930 + $0xa0] sm:$0xff]
        %v5952 = vld [vmem:[%s5930 + $0xa8] sm:$0xff]
        %v5953 = vld [vmem:[%s5930 + $0xb0] sm:$0xff]
        %v5954 = vld [vmem:[%s5930 + $0xb8] sm:$0xff]
        %v5955 = vld [vmem:[%s5930 + $0xc0] sm:$0xff]
        %v5956 = vld [vmem:[%s5930 + $0xc8] sm:$0xff]
        %v5957 = vld [vmem:[%s5930 + $0xd0] sm:$0xff]
        %v5958 = vld [vmem:[%s5930 + $0xd8] sm:$0xff]
        %v5959 = vld [vmem:[%s5930 + $0xe0] sm:$0xff]
        %v5960 = vld [vmem:[%s5930 + $0xe8] sm:$0xff]
        %5961 = vrot.lane.b32.xlu0 %v5358, 104
        %v5962 = vpop.permute.xlu0 %5961
        %5963 = vrot.lane.b32.xlu0 %v5391, 104
        %v5964 = vpop.permute.xlu0 %5963
        %vm5965 = vcmask 850944
        %v5966 = vsel %vm5965, %v5962, %v5964
        %v5997 = vunpack.c.l.b16 %v5931
        %v5998 = vunpack.c.h.b16 %v5931
        %v5999 = vunpack.c.l.b16 %v5932
        %v6000 = vunpack.c.h.b16 %v5932
        %v6001 = vunpack.c.l.b16 %v5933
        %v6002 = vunpack.c.h.b16 %v5933
        %v6003 = vunpack.c.l.b16 %v5934
        %v6004 = vunpack.c.h.b16 %v5934
        %v6005 = vunpack.c.l.b16 %v5935
        %v6006 = vunpack.c.h.b16 %v5935
        %v6007 = vunpack.c.l.b16 %v5936
        %v6008 = vunpack.c.h.b16 %v5936
        %v6009 = vunpack.c.l.b16 %v5937
        %v6010 = vunpack.c.h.b16 %v5937
        %v6011 = vunpack.c.l.b16 %v5938
        %v6012 = vunpack.c.h.b16 %v5938
        %v6013 = vunpack.c.l.b16 %v5939
        %v6014 = vunpack.c.h.b16 %v5939
        %v6015 = vunpack.c.l.b16 %v5940
        %v6016 = vunpack.c.h.b16 %v5940
        %v6017 = vunpack.c.l.b16 %v5941
        %v6018 = vunpack.c.h.b16 %v5941
        %v6019 = vunpack.c.l.b16 %v5942
        %v6020 = vunpack.c.h.b16 %v5942
        %v6021 = vunpack.c.l.b16 %v5943
        %v6022 = vunpack.c.h.b16 %v5943
        %v6023 = vunpack.c.l.b16 %v5944
        %v6024 = vunpack.c.h.b16 %v5944
        %v6025 = vunpack.c.l.b16 %v5945
        %v6026 = vunpack.c.h.b16 %v5945
        %v6027 = vunpack.c.l.b16 %v5946
        %v6028 = vunpack.c.h.b16 %v5946
        %v6029 = vunpack.c.l.b16 %v5947
        %v6030 = vunpack.c.h.b16 %v5947
        %v6031 = vunpack.c.l.b16 %v5948
        %v6032 = vunpack.c.h.b16 %v5948
        %v6033 = vunpack.c.l.b16 %v5949
        %v6034 = vunpack.c.h.b16 %v5949
        %v6035 = vunpack.c.l.b16 %v5950
        %v6036 = vunpack.c.h.b16 %v5950
        %v6037 = vunpack.c.l.b16 %v5951
        %v6038 = vunpack.c.h.b16 %v5951
        %v6039 = vunpack.c.l.b16 %v5952
        %v6040 = vunpack.c.h.b16 %v5952
        %v6041 = vunpack.c.l.b16 %v5953
        %v6042 = vunpack.c.h.b16 %v5953
        %v6043 = vunpack.c.l.b16 %v5954
        %v6044 = vunpack.c.h.b16 %v5954
        %v6045 = vunpack.c.l.b16 %v5955
        %v6046 = vunpack.c.h.b16 %v5955
        %v6047 = vunpack.c.l.b16 %v5956
        %v6048 = vunpack.c.h.b16 %v5956
        %v6049 = vunpack.c.l.b16 %v5957
        %v6050 = vunpack.c.h.b16 %v5957
        %v6051 = vunpack.c.l.b16 %v5958
        %v6052 = vunpack.c.h.b16 %v5958
        %v6053 = vunpack.c.l.b16 %v5959
        %v6054 = vunpack.c.h.b16 %v5959
        %v6055 = vunpack.c.l.b16 %v5960
        %v6056 = vunpack.c.h.b16 %v5960
        %v6057 = vpack.c.b16 %v6001, %v5997
        %v6058 = vpack.c.b16 %v6002, %v5998
        %v6059 = vpack.c.b16 %v6003, %v5999
        %v6060 = vpack.c.b16 %v6004, %v6000
        %v6061 = vpack.c.b16 %v6009, %v6005
        %v6062 = vpack.c.b16 %v6010, %v6006
        %v6063 = vpack.c.b16 %v6011, %v6007
        %v6064 = vpack.c.b16 %v6012, %v6008
        %v6065 = vpack.c.b16 %v6017, %v6013
        %v6066 = vpack.c.b16 %v6018, %v6014
        %v6067 = vpack.c.b16 %v6019, %v6015
        %v6068 = vpack.c.b16 %v6020, %v6016
        %v6069 = vpack.c.b16 %v6025, %v6021
        %v6070 = vpack.c.b16 %v6026, %v6022
        %v6071 = vpack.c.b16 %v6027, %v6023
        %v6072 = vpack.c.b16 %v6028, %v6024
        %v6073 = vpack.c.b16 %v6033, %v6029
        %v6074 = vpack.c.b16 %v6034, %v6030
        %v6075 = vpack.c.b16 %v6035, %v6031
        %v6076 = vpack.c.b16 %v6036, %v6032
        %v6077 = vpack.c.b16 %v6041, %v6037
        %v6078 = vpack.c.b16 %v6042, %v6038
        %v6079 = vpack.c.b16 %v6043, %v6039
        %v6080 = vpack.c.b16 %v6044, %v6040
        %v6081 = vpack.c.b16 %v6049, %v6045
        %v6082 = vpack.c.b16 %v6050, %v6046
        %v6083 = vpack.c.b16 %v6051, %v6047
        %v6084 = vpack.c.b16 %v6052, %v6048
        %v6085 = vpack.c.b16 %v6053, %v6053
        %v6086 = vpack.c.b16 %v6054, %v6054
        %v6087 = vpack.c.b16 %v6055, %v6055
        %v6088 = vpack.c.b16 %v6056, %v6056
        %v6118 = vsel %vm5581, %v5966, 0
        %v6121 = vsel %vm4961, %v6085, 0
        %v6124 = vsel %vm4961, %v6086, 0
        %v6127 = vsel %vm4961, %v6087, 0
        %v6130 = vsel %vm4961, %v6088, 0
        %6132 = vmatprep.subr.bf16.mxu0 %v6124
        %6133 = vmatpush1.bf16.msra.mxu0 %v6121
        %6134 = vmatprep.subr.bf16.mxu0 %v6082
        %6135 = vmatpush1.bf16.msra.mxu0 %v6081
        %6136 = vmatprep.subr.bf16.mxu0 %v6078
        %6137 = vmatpush1.bf16.msra.mxu0 %v6077
        %6138 = vmatprep.subr.bf16.mxu0 %v6074
        %6139 = vmatpush1.bf16.msra.mxu0 %v6073
        %6140 = vmatprep.subr.bf16.mxu0 %v6070
        %6141 = vmatpush1.bf16.msra.mxu0 %v6069
        %6142 = vmatprep.subr.bf16.mxu0 %v6066
        %6143 = vmatpush1.bf16.msra.mxu0 %v6065
        %6144 = vmatprep.subr.bf16.mxu0 %v6062
        %6145 = vmatpush1.bf16.msra.mxu0 %v6061
        %6146 = vmatprep.subr.bf16.mxu0 %v6058
        %6147 = vmatpush1.bf16.msra.mxu0 %v6057
        %6148 = vmatprep.subr.bf16.mxu0 0
        %6149 = vmatpush2.bf16.msra.mxu0 0
        %6150 = vmatprep.subr.bf16.mxu0 0
        %6151 = vmatpush2.bf16.msra.mxu0 0
        %6152 = vmatprep.subr.bf16.mxu0 0
        %6153 = vmatpush2.bf16.msra.mxu0 0
        %6154 = vmatprep.subr.bf16.mxu0 0
        %6155 = vmatpush2.bf16.msra.mxu0 0
        %6156 = vmatprep.subr.bf16.mxu0 0
        %6157 = vmatpush2.bf16.msra.mxu0 0
        %6158 = vmatprep.subr.bf16.mxu0 0
        %6159 = vmatpush2.bf16.msra.mxu0 0
        %6160 = vmatprep.subr.bf16.mxu0 0
        %6161 = vmatpush2.bf16.msra.mxu0 0
        %6162 = vmatprep.subr.bf16.mxu0 0
        %6163 = vmatpush2.bf16.msra.mxu0 0
        %6164 = vmatprep.mubr.bf16.mxu0 0
        %6165 = vmatmul.mubr.bf16.gmra.mxu0 %v6118
        %v6166 = vpop.f32.mrf.mxu0
        %v6167 = vadd.f32 0.0, %v6166
        %v6168 = vpop.f32.mrf.mxu0
        %v6169 = vadd.f32 0.0, %v6168
        %v6170 = vpop.f32.mrf.mxu0
        %v6171 = vadd.f32 0.0, %v6170
        %v6172 = vpop.f32.mrf.mxu0
        %v6173 = vadd.f32 0.0, %v6172
        %6174 = vdwg.mxu0
        %6175 = vmatprep.subr.bf16.mxu0 %v6130
        %6176 = vmatpush1.bf16.msra.mxu0 %v6127
        %6177 = vmatprep.subr.bf16.mxu0 %v6084
        %6178 = vmatpush1.bf16.msra.mxu0 %v6083
        %6179 = vmatprep.subr.bf16.mxu0 %v6080
        %6180 = vmatpush1.bf16.msra.mxu0 %v6079
        %6181 = vmatprep.subr.bf16.mxu0 %v6076
        %6182 = vmatpush1.bf16.msra.mxu0 %v6075
        %6183 = vmatprep.subr.bf16.mxu0 %v6072
        %6184 = vmatpush1.bf16.msra.mxu0 %v6071
        %6185 = vmatprep.subr.bf16.mxu0 %v6068
        %6186 = vmatpush1.bf16.msra.mxu0 %v6067
        %6187 = vmatprep.subr.bf16.mxu0 %v6064
        %6188 = vmatpush1.bf16.msra.mxu0 %v6063
        %6189 = vmatprep.subr.bf16.mxu0 %v6060
        %6190 = vmatpush1.bf16.msra.mxu0 %v6059
        %6191 = vmatprep.subr.bf16.mxu0 0
        %6192 = vmatpush2.bf16.msra.mxu0 0
        %6193 = vmatprep.subr.bf16.mxu0 0
        %6194 = vmatpush2.bf16.msra.mxu0 0
        %6195 = vmatprep.subr.bf16.mxu0 0
        %6196 = vmatpush2.bf16.msra.mxu0 0
        %6197 = vmatprep.subr.bf16.mxu0 0
        %6198 = vmatpush2.bf16.msra.mxu0 0
        %6199 = vmatprep.subr.bf16.mxu0 0
        %6200 = vmatpush2.bf16.msra.mxu0 0
        %6201 = vmatprep.subr.bf16.mxu0 0
        %6202 = vmatpush2.bf16.msra.mxu0 0
        %6203 = vmatprep.subr.bf16.mxu0 0
        %6204 = vmatpush2.bf16.msra.mxu0 0
        %6205 = vmatprep.subr.bf16.mxu0 0
        %6206 = vmatpush2.bf16.msra.mxu0 0
        %6207 = vmatprep.mubr.bf16.mxu0 0
        %6208 = vmatmul.mubr.bf16.gmra.mxu0 %v6118
        %v6209 = vpop.f32.mrf.mxu0
        %v6210 = vadd.f32 0.0, %v6209
        %v6211 = vpop.f32.mrf.mxu0
        %v6212 = vpop.f32.mrf.mxu0
        %v6213 = vadd.f32 0.0, %v6212
        %v6214 = vpop.f32.mrf.mxu0
        %6215 = vdwg.mxu0
        %v6216 = vadd.f32 %v5881, %v6167
        %v6217 = vadd.f32 %v5883, %v6169
        %v6218 = vadd.f32 %v5924, %v6210
        %v6219 = vadd.f32 %v5885, %v6171
        %v6220 = vadd.f32 %v5887, %v6173
        %v6221 = vadd.f32 %v5927, %v6213
        %v6222 = vld [vmem:[#allocation3] sm:$0xfe]
        %v6223 = vld [vmem:[#allocation3 + $0x10] sm:$0x7]
        %v6224 = vpack.c.bf16 %v6223, %v6222
        %s6225 = scalar_lea.vmem %s5, 720
        %v6226 = vld [vmem:[%s6225] sm:$0xff]
        %v6227 = vld [vmem:[%s6225 + $0x8] sm:$0xff]
        %v6228 = vld [vmem:[%s6225 + $0x10] sm:$0xff]
        %v6229 = vld [vmem:[%s6225 + $0x18] sm:$0xff]
        %v6230 = vld [vmem:[%s6225 + $0x20] sm:$0xff]
        %v6231 = vld [vmem:[%s6225 + $0x28] sm:$0xff]
        %v6232 = vld [vmem:[%s6225 + $0x30] sm:$0xff]
        %v6233 = vld [vmem:[%s6225 + $0x38] sm:$0xff]
        %v6234 = vld [vmem:[%s6225 + $0x40] sm:$0xff]
        %v6235 = vld [vmem:[%s6225 + $0x48] sm:$0xff]
        %v6236 = vld [vmem:[%s6225 + $0x50] sm:$0xff]
        %v6237 = vld [vmem:[%s6225 + $0x58] sm:$0xff]
        %v6238 = vld [vmem:[%s6225 + $0x60] sm:$0xff]
        %v6239 = vld [vmem:[%s6225 + $0x68] sm:$0xff]
        %v6240 = vld [vmem:[%s6225 + $0x70] sm:$0xff]
        %v6241 = vld [vmem:[%s6225 + $0x78] sm:$0xff]
        %v6242 = vld [vmem:[%s6225 + $0x80] sm:$0xff]
        %v6243 = vld [vmem:[%s6225 + $0x88] sm:$0xff]
        %v6244 = vld [vmem:[%s6225 + $0x90] sm:$0xff]
        %v6245 = vld [vmem:[%s6225 + $0x98] sm:$0xff]
        %v6246 = vld [vmem:[%s6225 + $0xa0] sm:$0xff]
        %v6247 = vld [vmem:[%s6225 + $0xa8] sm:$0xff]
        %v6248 = vld [vmem:[%s6225 + $0xb0] sm:$0xff]
        %v6249 = vld [vmem:[%s6225 + $0xb8] sm:$0xff]
        %v6250 = vld [vmem:[%s6225 + $0xc0] sm:$0xff]
        %v6251 = vld [vmem:[%s6225 + $0xc8] sm:$0xff]
        %v6252 = vld [vmem:[%s6225 + $0xd0] sm:$0xff]
        %v6253 = vld [vmem:[%s6225 + $0xd8] sm:$0xff]
        %v6254 = vld [vmem:[%s6225 + $0xe0] sm:$0xff]
        %v6255 = vld [vmem:[%s6225 + $0xe8] sm:$0xff]
        %v6257 = vshrl.u32 %v6224, 16
        %v6259 = vshll.u32 %v6224, 16
        %v6261 = vrot.slane %v6259, 1
        %v6262 = vor.u32 %v6257, %v6261
        %v6293 = vunpack.c.l.b16 %v6226
        %v6294 = vunpack.c.h.b16 %v6226
        %v6295 = vunpack.c.l.b16 %v6227
        %v6296 = vunpack.c.h.b16 %v6227
        %v6297 = vunpack.c.l.b16 %v6228
        %v6298 = vunpack.c.h.b16 %v6228
        %v6299 = vunpack.c.l.b16 %v6229
        %v6300 = vunpack.c.h.b16 %v6229
        %v6301 = vunpack.c.l.b16 %v6230
        %v6302 = vunpack.c.h.b16 %v6230
        %v6303 = vunpack.c.l.b16 %v6231
        %v6304 = vunpack.c.h.b16 %v6231
        %v6305 = vunpack.c.l.b16 %v6232
        %v6306 = vunpack.c.h.b16 %v6232
        %v6307 = vunpack.c.l.b16 %v6233
        %v6308 = vunpack.c.h.b16 %v6233
        %v6309 = vunpack.c.l.b16 %v6234
        %v6310 = vunpack.c.h.b16 %v6234
        %v6311 = vunpack.c.l.b16 %v6235
        %v6312 = vunpack.c.h.b16 %v6235
        %v6313 = vunpack.c.l.b16 %v6236
        %v6314 = vunpack.c.h.b16 %v6236
        %v6315 = vunpack.c.l.b16 %v6237
        %v6316 = vunpack.c.h.b16 %v6237
        %v6317 = vunpack.c.l.b16 %v6238
        %v6318 = vunpack.c.h.b16 %v6238
        %v6319 = vunpack.c.l.b16 %v6239
        %v6320 = vunpack.c.h.b16 %v6239
        %v6321 = vunpack.c.l.b16 %v6240
        %v6322 = vunpack.c.h.b16 %v6240
        %v6323 = vunpack.c.l.b16 %v6241
        %v6324 = vunpack.c.h.b16 %v6241
        %v6325 = vunpack.c.l.b16 %v6242
        %v6326 = vunpack.c.h.b16 %v6242
        %v6327 = vunpack.c.l.b16 %v6243
        %v6328 = vunpack.c.h.b16 %v6243
        %v6329 = vunpack.c.l.b16 %v6244
        %v6330 = vunpack.c.h.b16 %v6244
        %v6331 = vunpack.c.l.b16 %v6245
        %v6332 = vunpack.c.h.b16 %v6245
        %v6333 = vunpack.c.l.b16 %v6246
        %v6334 = vunpack.c.h.b16 %v6246
        %v6335 = vunpack.c.l.b16 %v6247
        %v6336 = vunpack.c.h.b16 %v6247
        %v6337 = vunpack.c.l.b16 %v6248
        %v6338 = vunpack.c.h.b16 %v6248
        %v6339 = vunpack.c.l.b16 %v6249
        %v6340 = vunpack.c.h.b16 %v6249
        %v6341 = vunpack.c.l.b16 %v6250
        %v6342 = vunpack.c.h.b16 %v6250
        %v6343 = vunpack.c.l.b16 %v6251
        %v6344 = vunpack.c.h.b16 %v6251
        %v6345 = vunpack.c.l.b16 %v6252
        %v6346 = vunpack.c.h.b16 %v6252
        %v6347 = vunpack.c.l.b16 %v6253
        %v6348 = vunpack.c.h.b16 %v6253
        %v6349 = vunpack.c.l.b16 %v6254
        %v6350 = vunpack.c.h.b16 %v6254
        %v6351 = vunpack.c.l.b16 %v6255
        %v6352 = vunpack.c.h.b16 %v6255
        %v6353 = vpack.c.b16 %v6297, %v6293
        %v6354 = vpack.c.b16 %v6298, %v6294
        %v6355 = vpack.c.b16 %v6299, %v6295
        %v6356 = vpack.c.b16 %v6300, %v6296
        %v6357 = vpack.c.b16 %v6305, %v6301
        %v6358 = vpack.c.b16 %v6306, %v6302
        %v6359 = vpack.c.b16 %v6307, %v6303
        %v6360 = vpack.c.b16 %v6308, %v6304
        %v6361 = vpack.c.b16 %v6313, %v6309
        %v6362 = vpack.c.b16 %v6314, %v6310
        %v6363 = vpack.c.b16 %v6315, %v6311
        %v6364 = vpack.c.b16 %v6316, %v6312
        %v6365 = vpack.c.b16 %v6321, %v6317
        %v6366 = vpack.c.b16 %v6322, %v6318
        %v6367 = vpack.c.b16 %v6323, %v6319
        %v6368 = vpack.c.b16 %v6324, %v6320
        %v6369 = vpack.c.b16 %v6329, %v6325
        %v6370 = vpack.c.b16 %v6330, %v6326
        %v6371 = vpack.c.b16 %v6331, %v6327
        %v6372 = vpack.c.b16 %v6332, %v6328
        %v6373 = vpack.c.b16 %v6337, %v6333
        %v6374 = vpack.c.b16 %v6338, %v6334
        %v6375 = vpack.c.b16 %v6339, %v6335
        %v6376 = vpack.c.b16 %v6340, %v6336
        %v6377 = vpack.c.b16 %v6345, %v6341
        %v6378 = vpack.c.b16 %v6346, %v6342
        %v6379 = vpack.c.b16 %v6347, %v6343
        %v6380 = vpack.c.b16 %v6348, %v6344
        %v6381 = vpack.c.b16 %v6349, %v6349
        %v6382 = vpack.c.b16 %v6350, %v6350
        %v6383 = vpack.c.b16 %v6351, %v6351
        %v6384 = vpack.c.b16 %v6352, %v6352
        %v6414 = vsel %vm5581, %v6262, 0
        %v6417 = vsel %vm4961, %v6381, 0
        %v6420 = vsel %vm4961, %v6382, 0
        %v6423 = vsel %vm4961, %v6383, 0
        %v6426 = vsel %vm4961, %v6384, 0
        %6428 = vmatprep.subr.bf16.mxu0 %v6420
        %6429 = vmatpush1.bf16.msra.mxu0 %v6417
        %6430 = vmatprep.subr.bf16.mxu0 %v6378
        %6431 = vmatpush1.bf16.msra.mxu0 %v6377
        %6432 = vmatprep.subr.bf16.mxu0 %v6374
        %6433 = vmatpush1.bf16.msra.mxu0 %v6373
        %6434 = vmatprep.subr.bf16.mxu0 %v6370
        %6435 = vmatpush1.bf16.msra.mxu0 %v6369
        %6436 = vmatprep.subr.bf16.mxu0 %v6366
        %6437 = vmatpush1.bf16.msra.mxu0 %v6365
        %6438 = vmatprep.subr.bf16.mxu0 %v6362
        %6439 = vmatpush1.bf16.msra.mxu0 %v6361
        %6440 = vmatprep.subr.bf16.mxu0 %v6358
        %6441 = vmatpush1.bf16.msra.mxu0 %v6357
        %6442 = vmatprep.subr.bf16.mxu0 %v6354
        %6443 = vmatpush1.bf16.msra.mxu0 %v6353
        %6444 = vmatprep.subr.bf16.mxu0 0
        %6445 = vmatpush2.bf16.msra.mxu0 0
        %6446 = vmatprep.subr.bf16.mxu0 0
        %6447 = vmatpush2.bf16.msra.mxu0 0
        %6448 = vmatprep.subr.bf16.mxu0 0
        %6449 = vmatpush2.bf16.msra.mxu0 0
        %6450 = vmatprep.subr.bf16.mxu0 0
        %6451 = vmatpush2.bf16.msra.mxu0 0
        %6452 = vmatprep.subr.bf16.mxu0 0
        %6453 = vmatpush2.bf16.msra.mxu0 0
        %6454 = vmatprep.subr.bf16.mxu0 0
        %6455 = vmatpush2.bf16.msra.mxu0 0
        %6456 = vmatprep.subr.bf16.mxu0 0
        %6457 = vmatpush2.bf16.msra.mxu0 0
        %6458 = vmatprep.subr.bf16.mxu0 0
        %6459 = vmatpush2.bf16.msra.mxu0 0
        %6460 = vmatprep.mubr.bf16.mxu0 0
        %6461 = vmatmul.mubr.bf16.gmra.mxu0 %v6414
        %v6462 = vpop.f32.mrf.mxu0
        %v6463 = vadd.f32 0.0, %v6462
        %v6464 = vpop.f32.mrf.mxu0
        %v6465 = vadd.f32 0.0, %v6464
        %v6466 = vpop.f32.mrf.mxu0
        %v6467 = vadd.f32 0.0, %v6466
        %v6468 = vpop.f32.mrf.mxu0
        %v6469 = vadd.f32 0.0, %v6468
        %6470 = vdwg.mxu0
        %6471 = vmatprep.subr.bf16.mxu0 %v6426
        %6472 = vmatpush1.bf16.msra.mxu0 %v6423
        %6473 = vmatprep.subr.bf16.mxu0 %v6380
        %6474 = vmatpush1.bf16.msra.mxu0 %v6379
        %6475 = vmatprep.subr.bf16.mxu0 %v6376
        %6476 = vmatpush1.bf16.msra.mxu0 %v6375
        %6477 = vmatprep.subr.bf16.mxu0 %v6372
        %6478 = vmatpush1.bf16.msra.mxu0 %v6371
        %6479 = vmatprep.subr.bf16.mxu0 %v6368
        %6480 = vmatpush1.bf16.msra.mxu0 %v6367
        %6481 = vmatprep.subr.bf16.mxu0 %v6364
        %6482 = vmatpush1.bf16.msra.mxu0 %v6363
        %6483 = vmatprep.subr.bf16.mxu0 %v6360
        %6484 = vmatpush1.bf16.msra.mxu0 %v6359
        %6485 = vmatprep.subr.bf16.mxu0 %v6356
        %6486 = vmatpush1.bf16.msra.mxu0 %v6355
        %6487 = vmatprep.subr.bf16.mxu0 0
        %6488 = vmatpush2.bf16.msra.mxu0 0
        %6489 = vmatprep.subr.bf16.mxu0 0
        %6490 = vmatpush2.bf16.msra.mxu0 0
        %6491 = vmatprep.subr.bf16.mxu0 0
        %6492 = vmatpush2.bf16.msra.mxu0 0
        %6493 = vmatprep.subr.bf16.mxu0 0
        %6494 = vmatpush2.bf16.msra.mxu0 0
        %6495 = vmatprep.subr.bf16.mxu0 0
        %6496 = vmatpush2.bf16.msra.mxu0 0
        %6497 = vmatprep.subr.bf16.mxu0 0
        %6498 = vmatpush2.bf16.msra.mxu0 0
        %6499 = vmatprep.subr.bf16.mxu0 0
        %6500 = vmatpush2.bf16.msra.mxu0 0
        %6501 = vmatprep.subr.bf16.mxu0 0
        %6502 = vmatpush2.bf16.msra.mxu0 0
        %6503 = vmatprep.mubr.bf16.mxu0 0
        %6504 = vmatmul.mubr.bf16.gmra.mxu0 %v6414
        %v6505 = vpop.f32.mrf.mxu0
        %v6506 = vadd.f32 0.0, %v6505
        %v6507 = vpop.f32.mrf.mxu0
        %v6508 = vpop.f32.mrf.mxu0
        %v6509 = vadd.f32 0.0, %v6508
        %v6510 = vpop.f32.mrf.mxu0
        %6511 = vdwg.mxu0
        %v6512 = vadd.f32 %v6216, %v6463
        %v6513 = vadd.f32 %v6217, %v6465
        %v6514 = vadd.f32 %v6218, %v6506
        %v6515 = vadd.f32 %v6219, %v6467
        %v6516 = vadd.f32 %v6220, %v6469
        %v6517 = vadd.f32 %v6221, %v6509
        %v6518 = vld [vmem:[#allocation3] sm:$0xfe]
        %v6519 = vld [vmem:[#allocation3 + $0x8] sm:$0xfe]
        %v6520 = vld [vmem:[#allocation3 + $0x10] sm:$0x7]
        %v6521 = vld [vmem:[#allocation3 + $0x18] sm:$0x7]
        %v6522 = vpack.c.bf16 %v6520, %v6518
        %v6523 = vpack.c.bf16 %v6521, %v6519
        %s6524 = scalar_lea.vmem %s5, 960
        %v6525 = vld [vmem:[%s6524] sm:$0xff]
        %v6526 = vld [vmem:[%s6524 + $0x8] sm:$0xff]
        %v6527 = vld [vmem:[%s6524 + $0x10] sm:$0xff]
        %v6528 = vld [vmem:[%s6524 + $0x18] sm:$0xff]
        %v6529 = vld [vmem:[%s6524 + $0x20] sm:$0xff]
        %v6530 = vld [vmem:[%s6524 + $0x28] sm:$0xff]
        %v6531 = vld [vmem:[%s6524 + $0x30] sm:$0xff]
        %v6532 = vld [vmem:[%s6524 + $0x38] sm:$0xff]
        %v6533 = vld [vmem:[%s6524 + $0x40] sm:$0xff]
        %v6534 = vld [vmem:[%s6524 + $0x48] sm:$0xff]
        %v6535 = vld [vmem:[%s6524 + $0x50] sm:$0xff]
        %v6536 = vld [vmem:[%s6524 + $0x58] sm:$0xff]
        %v6537 = vld [vmem:[%s6524 + $0x60] sm:$0xff]
        %v6538 = vld [vmem:[%s6524 + $0x68] sm:$0xff]
        %v6539 = vld [vmem:[%s6524 + $0x70] sm:$0xff]
        %v6540 = vld [vmem:[%s6524 + $0x78] sm:$0xff]
        %v6541 = vld [vmem:[%s6524 + $0x80] sm:$0xff]
        %v6542 = vld [vmem:[%s6524 + $0x88] sm:$0xff]
        %v6543 = vld [vmem:[%s6524 + $0x90] sm:$0xff]
        %v6544 = vld [vmem:[%s6524 + $0x98] sm:$0xff]
        %v6545 = vld [vmem:[%s6524 + $0xa0] sm:$0xff]
        %v6546 = vld [vmem:[%s6524 + $0xa8] sm:$0xff]
        %v6547 = vld [vmem:[%s6524 + $0xb0] sm:$0xff]
        %v6548 = vld [vmem:[%s6524 + $0xb8] sm:$0xff]
        %v6549 = vld [vmem:[%s6524 + $0xc0] sm:$0xff]
        %v6550 = vld [vmem:[%s6524 + $0xc8] sm:$0xff]
        %v6551 = vld [vmem:[%s6524 + $0xd0] sm:$0xff]
        %v6552 = vld [vmem:[%s6524 + $0xd8] sm:$0xff]
        %v6553 = vld [vmem:[%s6524 + $0xe0] sm:$0xff]
        %v6554 = vld [vmem:[%s6524 + $0xe8] sm:$0xff]
        %v6556 = vshrl.u32 %v6522, 16
        %v6558 = vshll.u32 %v6522, 16
        %v6560 = vrot.slane %v6558, 1
        %v6561 = vor.u32 %v6556, %v6560
        %v6563 = vshrl.u32 %v6523, 16
        %v6565 = vshll.u32 %v6523, 16
        %v6567 = vrot.slane %v6565, 1
        %v6568 = vor.u32 %v6563, %v6567
        %6569 = vrot.lane.b32.xlu0 %v6561, 116
        %v6570 = vpop.permute.xlu0 %6569
        %6571 = vrot.lane.b32.xlu0 %v6568, 116
        %v6572 = vpop.permute.xlu0 %6571
        %v6573 = vsel %vm5429, %v6570, %v6572
        %v6604 = vunpack.c.l.b16 %v6525
        %v6605 = vunpack.c.h.b16 %v6525
        %v6606 = vunpack.c.l.b16 %v6526
        %v6607 = vunpack.c.h.b16 %v6526
        %v6608 = vunpack.c.l.b16 %v6527
        %v6609 = vunpack.c.h.b16 %v6527
        %v6610 = vunpack.c.l.b16 %v6528
        %v6611 = vunpack.c.h.b16 %v6528
        %v6612 = vunpack.c.l.b16 %v6529
        %v6613 = vunpack.c.h.b16 %v6529
        %v6614 = vunpack.c.l.b16 %v6530
        %v6615 = vunpack.c.h.b16 %v6530
        %v6616 = vunpack.c.l.b16 %v6531
        %v6617 = vunpack.c.h.b16 %v6531
        %v6618 = vunpack.c.l.b16 %v6532
        %v6619 = vunpack.c.h.b16 %v6532
        %v6620 = vunpack.c.l.b16 %v6533
        %v6621 = vunpack.c.h.b16 %v6533
        %v6622 = vunpack.c.l.b16 %v6534
        %v6623 = vunpack.c.h.b16 %v6534
        %v6624 = vunpack.c.l.b16 %v6535
        %v6625 = vunpack.c.h.b16 %v6535
        %v6626 = vunpack.c.l.b16 %v6536
        %v6627 = vunpack.c.h.b16 %v6536
        %v6628 = vunpack.c.l.b16 %v6537
        %v6629 = vunpack.c.h.b16 %v6537
        %v6630 = vunpack.c.l.b16 %v6538
        %v6631 = vunpack.c.h.b16 %v6538
        %v6632 = vunpack.c.l.b16 %v6539
        %v6633 = vunpack.c.h.b16 %v6539
        %v6634 = vunpack.c.l.b16 %v6540
        %v6635 = vunpack.c.h.b16 %v6540
        %v6636 = vunpack.c.l.b16 %v6541
        %v6637 = vunpack.c.h.b16 %v6541
        %v6638 = vunpack.c.l.b16 %v6542
        %v6639 = vunpack.c.h.b16 %v6542
        %v6640 = vunpack.c.l.b16 %v6543
        %v6641 = vunpack.c.h.b16 %v6543
        %v6642 = vunpack.c.l.b16 %v6544
        %v6643 = vunpack.c.h.b16 %v6544
        %v6644 = vunpack.c.l.b16 %v6545
        %v6645 = vunpack.c.h.b16 %v6545
        %v6646 = vunpack.c.l.b16 %v6546
        %v6647 = vunpack.c.h.b16 %v6546
        %v6648 = vunpack.c.l.b16 %v6547
        %v6649 = vunpack.c.h.b16 %v6547
        %v6650 = vunpack.c.l.b16 %v6548
        %v6651 = vunpack.c.h.b16 %v6548
        %v6652 = vunpack.c.l.b16 %v6549
        %v6653 = vunpack.c.h.b16 %v6549
        %v6654 = vunpack.c.l.b16 %v6550
        %v6655 = vunpack.c.h.b16 %v6550
        %v6656 = vunpack.c.l.b16 %v6551
        %v6657 = vunpack.c.h.b16 %v6551
        %v6658 = vunpack.c.l.b16 %v6552
        %v6659 = vunpack.c.h.b16 %v6552
        %v6660 = vunpack.c.l.b16 %v6553
        %v6661 = vunpack.c.h.b16 %v6553
        %v6662 = vunpack.c.l.b16 %v6554
        %v6663 = vunpack.c.h.b16 %v6554
        %v6664 = vpack.c.b16 %v6608, %v6604
        %v6665 = vpack.c.b16 %v6609, %v6605
        %v6666 = vpack.c.b16 %v6610, %v6606
        %v6667 = vpack.c.b16 %v6611, %v6607
        %v6668 = vpack.c.b16 %v6616, %v6612
        %v6669 = vpack.c.b16 %v6617, %v6613
        %v6670 = vpack.c.b16 %v6618, %v6614
        %v6671 = vpack.c.b16 %v6619, %v6615
        %v6672 = vpack.c.b16 %v6624, %v6620
        %v6673 = vpack.c.b16 %v6625, %v6621
        %v6674 = vpack.c.b16 %v6626, %v6622
        %v6675 = vpack.c.b16 %v6627, %v6623
        %v6676 = vpack.c.b16 %v6632, %v6628
        %v6677 = vpack.c.b16 %v6633, %v6629
        %v6678 = vpack.c.b16 %v6634, %v6630
        %v6679 = vpack.c.b16 %v6635, %v6631
        %v6680 = vpack.c.b16 %v6640, %v6636
        %v6681 = vpack.c.b16 %v6641, %v6637
        %v6682 = vpack.c.b16 %v6642, %v6638
        %v6683 = vpack.c.b16 %v6643, %v6639
        %v6684 = vpack.c.b16 %v6648, %v6644
        %v6685 = vpack.c.b16 %v6649, %v6645
        %v6686 = vpack.c.b16 %v6650, %v6646
        %v6687 = vpack.c.b16 %v6651, %v6647
        %v6688 = vpack.c.b16 %v6656, %v6652
        %v6689 = vpack.c.b16 %v6657, %v6653
        %v6690 = vpack.c.b16 %v6658, %v6654
        %v6691 = vpack.c.b16 %v6659, %v6655
        %v6692 = vpack.c.b16 %v6660, %v6660
        %v6693 = vpack.c.b16 %v6661, %v6661
        %v6694 = vpack.c.b16 %v6662, %v6662
        %v6695 = vpack.c.b16 %v6663, %v6663
        %v6725 = vsel %vm5581, %v6573, 0
        %v6728 = vsel %vm4961, %v6692, 0
        %v6731 = vsel %vm4961, %v6693, 0
        %v6734 = vsel %vm4961, %v6694, 0
        %v6737 = vsel %vm4961, %v6695, 0
        %6739 = vmatprep.subr.bf16.mxu0 %v6731
        %6740 = vmatpush1.bf16.msra.mxu0 %v6728
        %6741 = vmatprep.subr.bf16.mxu0 %v6689
        %6742 = vmatpush1.bf16.msra.mxu0 %v6688
        %6743 = vmatprep.subr.bf16.mxu0 %v6685
        %6744 = vmatpush1.bf16.msra.mxu0 %v6684
        %6745 = vmatprep.subr.bf16.mxu0 %v6681
        %6746 = vmatpush1.bf16.msra.mxu0 %v6680
        %6747 = vmatprep.subr.bf16.mxu0 %v6677
        %6748 = vmatpush1.bf16.msra.mxu0 %v6676
        %6749 = vmatprep.subr.bf16.mxu0 %v6673
        %6750 = vmatpush1.bf16.msra.mxu0 %v6672
        %6751 = vmatprep.subr.bf16.mxu0 %v6669
        %6752 = vmatpush1.bf16.msra.mxu0 %v6668
        %6753 = vmatprep.subr.bf16.mxu0 %v6665
        %6754 = vmatpush1.bf16.msra.mxu0 %v6664
        %6755 = vmatprep.subr.bf16.mxu0 0
        %6756 = vmatpush2.bf16.msra.mxu0 0
        %6757 = vmatprep.subr.bf16.mxu0 0
        %6758 = vmatpush2.bf16.msra.mxu0 0
        %6759 = vmatprep.subr.bf16.mxu0 0
        %6760 = vmatpush2.bf16.msra.mxu0 0
        %6761 = vmatprep.subr.bf16.mxu0 0
        %6762 = vmatpush2.bf16.msra.mxu0 0
        %6763 = vmatprep.subr.bf16.mxu0 0
        %6764 = vmatpush2.bf16.msra.mxu0 0
        %6765 = vmatprep.subr.bf16.mxu0 0
        %6766 = vmatpush2.bf16.msra.mxu0 0
        %6767 = vmatprep.subr.bf16.mxu0 0
        %6768 = vmatpush2.bf16.msra.mxu0 0
        %6769 = vmatprep.subr.bf16.mxu0 0
        %6770 = vmatpush2.bf16.msra.mxu0 0
        %6771 = vmatprep.mubr.bf16.mxu0 0
        %6772 = vmatmul.mubr.bf16.gmra.mxu0 %v6725
        %v6773 = vpop.f32.mrf.mxu0
        %v6774 = vadd.f32 0.0, %v6773
        %v6775 = vpop.f32.mrf.mxu0
        %v6776 = vadd.f32 0.0, %v6775
        %v6777 = vpop.f32.mrf.mxu0
        %v6778 = vadd.f32 0.0, %v6777
        %v6779 = vpop.f32.mrf.mxu0
        %v6780 = vadd.f32 0.0, %v6779
        %6781 = vdwg.mxu0
        %6782 = vmatprep.subr.bf16.mxu0 %v6737
        %6783 = vmatpush1.bf16.msra.mxu0 %v6734
        %6784 = vmatprep.subr.bf16.mxu0 %v6691
        %6785 = vmatpush1.bf16.msra.mxu0 %v6690
        %6786 = vmatprep.subr.bf16.mxu0 %v6687
        %6787 = vmatpush1.bf16.msra.mxu0 %v6686
        %6788 = vmatprep.subr.bf16.mxu0 %v6683
        %6789 = vmatpush1.bf16.msra.mxu0 %v6682
        %6790 = vmatprep.subr.bf16.mxu0 %v6679
        %6791 = vmatpush1.bf16.msra.mxu0 %v6678
        %6792 = vmatprep.subr.bf16.mxu0 %v6675
        %6793 = vmatpush1.bf16.msra.mxu0 %v6674
        %6794 = vmatprep.subr.bf16.mxu0 %v6671
        %6795 = vmatpush1.bf16.msra.mxu0 %v6670
        %6796 = vmatprep.subr.bf16.mxu0 %v6667
        %6797 = vmatpush1.bf16.msra.mxu0 %v6666
        %6798 = vmatprep.subr.bf16.mxu0 0
        %6799 = vmatpush2.bf16.msra.mxu0 0
        %6800 = vmatprep.subr.bf16.mxu0 0
        %6801 = vmatpush2.bf16.msra.mxu0 0
        %6802 = vmatprep.subr.bf16.mxu0 0
        %6803 = vmatpush2.bf16.msra.mxu0 0
        %6804 = vmatprep.subr.bf16.mxu0 0
        %6805 = vmatpush2.bf16.msra.mxu0 0
        %6806 = vmatprep.subr.bf16.mxu0 0
        %6807 = vmatpush2.bf16.msra.mxu0 0
        %6808 = vmatprep.subr.bf16.mxu0 0
        %6809 = vmatpush2.bf16.msra.mxu0 0
        %6810 = vmatprep.subr.bf16.mxu0 0
        %6811 = vmatpush2.bf16.msra.mxu0 0
        %6812 = vmatprep.subr.bf16.mxu0 0
        %6813 = vmatpush2.bf16.msra.mxu0 0
        %6814 = vmatprep.mubr.bf16.mxu0 0
        %6815 = vmatmul.mubr.bf16.gmra.mxu0 %v6725
        %v6816 = vpop.f32.mrf.mxu0
        %v6817 = vadd.f32 0.0, %v6816
        %v6818 = vpop.f32.mrf.mxu0
        %v6819 = vpop.f32.mrf.mxu0
        %v6820 = vadd.f32 0.0, %v6819
        %v6821 = vpop.f32.mrf.mxu0
        %6822 = vdwg.mxu0
        %v6823 = vadd.f32 %v6512, %v6774
        %v6824 = vadd.f32 %v6513, %v6776
        %v6825 = vadd.f32 %v6514, %v6817
        %v6826 = vadd.f32 %v6515, %v6778
        %v6827 = vadd.f32 %v6516, %v6780
        %v6828 = vadd.f32 %v6517, %v6820
        %s6829 = scalar_lea.vmem %s5, 1200
        %v6830 = vld [vmem:[%s6829] sm:$0xff]
        %v6831 = vld [vmem:[%s6829 + $0x8] sm:$0xff]
        %v6832 = vld [vmem:[%s6829 + $0x10] sm:$0xff]
        %v6833 = vld [vmem:[%s6829 + $0x18] sm:$0xff]
        %v6834 = vld [vmem:[%s6829 + $0x20] sm:$0xff]
        %v6835 = vld [vmem:[%s6829 + $0x28] sm:$0xff]
        %v6836 = vld [vmem:[%s6829 + $0x30] sm:$0xff]
        %v6837 = vld [vmem:[%s6829 + $0x38] sm:$0xff]
        %v6838 = vld [vmem:[%s6829 + $0x40] sm:$0xff]
        %v6839 = vld [vmem:[%s6829 + $0x48] sm:$0xff]
        %v6840 = vld [vmem:[%s6829 + $0x50] sm:$0xff]
        %v6841 = vld [vmem:[%s6829 + $0x58] sm:$0xff]
        %v6842 = vld [vmem:[%s6829 + $0x60] sm:$0xff]
        %v6843 = vld [vmem:[%s6829 + $0x68] sm:$0xff]
        %v6844 = vld [vmem:[%s6829 + $0x70] sm:$0xff]
        %v6845 = vld [vmem:[%s6829 + $0x78] sm:$0xff]
        %v6846 = vld [vmem:[%s6829 + $0x80] sm:$0xff]
        %v6847 = vld [vmem:[%s6829 + $0x88] sm:$0xff]
        %v6848 = vld [vmem:[%s6829 + $0x90] sm:$0xff]
        %v6849 = vld [vmem:[%s6829 + $0x98] sm:$0xff]
        %v6850 = vld [vmem:[%s6829 + $0xa0] sm:$0xff]
        %v6851 = vld [vmem:[%s6829 + $0xa8] sm:$0xff]
        %v6852 = vld [vmem:[%s6829 + $0xb0] sm:$0xff]
        %v6853 = vld [vmem:[%s6829 + $0xb8] sm:$0xff]
        %v6854 = vld [vmem:[%s6829 + $0xc0] sm:$0xff]
        %v6855 = vld [vmem:[%s6829 + $0xc8] sm:$0xff]
        %v6856 = vld [vmem:[%s6829 + $0xd0] sm:$0xff]
        %v6857 = vld [vmem:[%s6829 + $0xd8] sm:$0xff]
        %v6858 = vld [vmem:[%s6829 + $0xe0] sm:$0xff]
        %v6859 = vld [vmem:[%s6829 + $0xe8] sm:$0xff]
        %6860 = vrot.lane.b32.xlu0 %v6561, 104
        %v6861 = vpop.permute.xlu0 %6860
        %6862 = vrot.lane.b32.xlu0 %v6568, 104
        %v6863 = vpop.permute.xlu0 %6862
        %v6864 = vsel %vm5965, %v6861, %v6863
        %v6895 = vunpack.c.l.b16 %v6830
        %v6896 = vunpack.c.h.b16 %v6830
        %v6897 = vunpack.c.l.b16 %v6831
        %v6898 = vunpack.c.h.b16 %v6831
        %v6899 = vunpack.c.l.b16 %v6832
        %v6900 = vunpack.c.h.b16 %v6832
        %v6901 = vunpack.c.l.b16 %v6833
        %v6902 = vunpack.c.h.b16 %v6833
        %v6903 = vunpack.c.l.b16 %v6834
        %v6904 = vunpack.c.h.b16 %v6834
        %v6905 = vunpack.c.l.b16 %v6835
        %v6906 = vunpack.c.h.b16 %v6835
        %v6907 = vunpack.c.l.b16 %v6836
        %v6908 = vunpack.c.h.b16 %v6836
        %v6909 = vunpack.c.l.b16 %v6837
        %v6910 = vunpack.c.h.b16 %v6837
        %v6911 = vunpack.c.l.b16 %v6838
        %v6912 = vunpack.c.h.b16 %v6838
        %v6913 = vunpack.c.l.b16 %v6839
        %v6914 = vunpack.c.h.b16 %v6839
        %v6915 = vunpack.c.l.b16 %v6840
        %v6916 = vunpack.c.h.b16 %v6840
        %v6917 = vunpack.c.l.b16 %v6841
        %v6918 = vunpack.c.h.b16 %v6841
        %v6919 = vunpack.c.l.b16 %v6842
        %v6920 = vunpack.c.h.b16 %v6842
        %v6921 = vunpack.c.l.b16 %v6843
        %v6922 = vunpack.c.h.b16 %v6843
        %v6923 = vunpack.c.l.b16 %v6844
        %v6924 = vunpack.c.h.b16 %v6844
        %v6925 = vunpack.c.l.b16 %v6845
        %v6926 = vunpack.c.h.b16 %v6845
        %v6927 = vunpack.c.l.b16 %v6846
        %v6928 = vunpack.c.h.b16 %v6846
        %v6929 = vunpack.c.l.b16 %v6847
        %v6930 = vunpack.c.h.b16 %v6847
        %v6931 = vunpack.c.l.b16 %v6848
        %v6932 = vunpack.c.h.b16 %v6848
        %v6933 = vunpack.c.l.b16 %v6849
        %v6934 = vunpack.c.h.b16 %v6849
        %v6935 = vunpack.c.l.b16 %v6850
        %v6936 = vunpack.c.h.b16 %v6850
        %v6937 = vunpack.c.l.b16 %v6851
        %v6938 = vunpack.c.h.b16 %v6851
        %v6939 = vunpack.c.l.b16 %v6852
        %v6940 = vunpack.c.h.b16 %v6852
        %v6941 = vunpack.c.l.b16 %v6853
        %v6942 = vunpack.c.h.b16 %v6853
        %v6943 = vunpack.c.l.b16 %v6854
        %v6944 = vunpack.c.h.b16 %v6854
        %v6945 = vunpack.c.l.b16 %v6855
        %v6946 = vunpack.c.h.b16 %v6855
        %v6947 = vunpack.c.l.b16 %v6856
        %v6948 = vunpack.c.h.b16 %v6856
        %v6949 = vunpack.c.l.b16 %v6857
        %v6950 = vunpack.c.h.b16 %v6857
        %v6951 = vunpack.c.l.b16 %v6858
        %v6952 = vunpack.c.h.b16 %v6858
        %v6953 = vunpack.c.l.b16 %v6859
        %v6954 = vunpack.c.h.b16 %v6859
        %v6955 = vpack.c.b16 %v6899, %v6895
        %v6956 = vpack.c.b16 %v6900, %v6896
        %v6957 = vpack.c.b16 %v6901, %v6897
        %v6958 = vpack.c.b16 %v6902, %v6898
        %v6959 = vpack.c.b16 %v6907, %v6903
        %v6960 = vpack.c.b16 %v6908, %v6904
        %v6961 = vpack.c.b16 %v6909, %v6905
        %v6962 = vpack.c.b16 %v6910, %v6906
        %v6963 = vpack.c.b16 %v6915, %v6911
        %v6964 = vpack.c.b16 %v6916, %v6912
        %v6965 = vpack.c.b16 %v6917, %v6913
        %v6966 = vpack.c.b16 %v6918, %v6914
        %v6967 = vpack.c.b16 %v6923, %v6919
        %v6968 = vpack.c.b16 %v6924, %v6920
        %v6969 = vpack.c.b16 %v6925, %v6921
        %v6970 = vpack.c.b16 %v6926, %v6922
        %v6971 = vpack.c.b16 %v6931, %v6927
        %v6972 = vpack.c.b16 %v6932, %v6928
        %v6973 = vpack.c.b16 %v6933, %v6929
        %v6974 = vpack.c.b16 %v6934, %v6930
        %v6975 = vpack.c.b16 %v6939, %v6935
        %v6976 = vpack.c.b16 %v6940, %v6936
        %v6977 = vpack.c.b16 %v6941, %v6937
        %v6978 = vpack.c.b16 %v6942, %v6938
        %v6979 = vpack.c.b16 %v6947, %v6943
        %v6980 = vpack.c.b16 %v6948, %v6944
        %v6981 = vpack.c.b16 %v6949, %v6945
        %v6982 = vpack.c.b16 %v6950, %v6946
        %v6983 = vpack.c.b16 %v6951, %v6951
        %v6984 = vpack.c.b16 %v6952, %v6952
        %v6985 = vpack.c.b16 %v6953, %v6953
        %v6986 = vpack.c.b16 %v6954, %v6954
        %v7016 = vsel %vm5581, %v6864, 0
        %v7019 = vsel %vm4961, %v6983, 0
        %v7022 = vsel %vm4961, %v6984, 0
        %v7025 = vsel %vm4961, %v6985, 0
        %v7028 = vsel %vm4961, %v6986, 0
        %7030 = vmatprep.subr.bf16.mxu0 %v7022
        %7031 = vmatpush1.bf16.msra.mxu0 %v7019
        %7032 = vmatprep.subr.bf16.mxu0 %v6980
        %7033 = vmatpush1.bf16.msra.mxu0 %v6979
        %7034 = vmatprep.subr.bf16.mxu0 %v6976
        %7035 = vmatpush1.bf16.msra.mxu0 %v6975
        %7036 = vmatprep.subr.bf16.mxu0 %v6972
        %7037 = vmatpush1.bf16.msra.mxu0 %v6971
        %7038 = vmatprep.subr.bf16.mxu0 %v6968
        %7039 = vmatpush1.bf16.msra.mxu0 %v6967
        %7040 = vmatprep.subr.bf16.mxu0 %v6964
        %7041 = vmatpush1.bf16.msra.mxu0 %v6963
        %7042 = vmatprep.subr.bf16.mxu0 %v6960
        %7043 = vmatpush1.bf16.msra.mxu0 %v6959
        %7044 = vmatprep.subr.bf16.mxu0 %v6956
        %7045 = vmatpush1.bf16.msra.mxu0 %v6955
        %7046 = vmatprep.subr.bf16.mxu0 0
        %7047 = vmatpush2.bf16.msra.mxu0 0
        %7048 = vmatprep.subr.bf16.mxu0 0
        %7049 = vmatpush2.bf16.msra.mxu0 0
        %7050 = vmatprep.subr.bf16.mxu0 0
        %7051 = vmatpush2.bf16.msra.mxu0 0
        %7052 = vmatprep.subr.bf16.mxu0 0
        %7053 = vmatpush2.bf16.msra.mxu0 0
        %7054 = vmatprep.subr.bf16.mxu0 0
        %7055 = vmatpush2.bf16.msra.mxu0 0
        %7056 = vmatprep.subr.bf16.mxu0 0
        %7057 = vmatpush2.bf16.msra.mxu0 0
        %7058 = vmatprep.subr.bf16.mxu0 0
        %7059 = vmatpush2.bf16.msra.mxu0 0
        %7060 = vmatprep.subr.bf16.mxu0 0
        %7061 = vmatpush2.bf16.msra.mxu0 0
        %7062 = vmatprep.mubr.bf16.mxu0 0
        %7063 = vmatmul.mubr.bf16.gmra.mxu0 %v7016
        %v7064 = vpop.f32.mrf.mxu0
        %v7065 = vadd.f32 0.0, %v7064
        %v7066 = vpop.f32.mrf.mxu0
        %v7067 = vadd.f32 0.0, %v7066
        %v7068 = vpop.f32.mrf.mxu0
        %v7069 = vadd.f32 0.0, %v7068
        %v7070 = vpop.f32.mrf.mxu0
        %v7071 = vadd.f32 0.0, %v7070
        %7072 = vdwg.mxu0
        %7073 = vmatprep.subr.bf16.mxu0 %v7028
        %7074 = vmatpush1.bf16.msra.mxu0 %v7025
        %7075 = vmatprep.subr.bf16.mxu0 %v6982
        %7076 = vmatpush1.bf16.msra.mxu0 %v6981
        %7077 = vmatprep.subr.bf16.mxu0 %v6978
        %7078 = vmatpush1.bf16.msra.mxu0 %v6977
        %7079 = vmatprep.subr.bf16.mxu0 %v6974
        %7080 = vmatpush1.bf16.msra.mxu0 %v6973
        %7081 = vmatprep.subr.bf16.mxu0 %v6970
        %7082 = vmatpush1.bf16.msra.mxu0 %v6969
        %7083 = vmatprep.subr.bf16.mxu0 %v6966
        %7084 = vmatpush1.bf16.msra.mxu0 %v6965
        %7085 = vmatprep.subr.bf16.mxu0 %v6962
        %7086 = vmatpush1.bf16.msra.mxu0 %v6961
        %7087 = vmatprep.subr.bf16.mxu0 %v6958
        %7088 = vmatpush1.bf16.msra.mxu0 %v6957
        %7089 = vmatprep.subr.bf16.mxu0 0
        %7090 = vmatpush2.bf16.msra.mxu0 0
        %7091 = vmatprep.subr.bf16.mxu0 0
        %7092 = vmatpush2.bf16.msra.mxu0 0
        %7093 = vmatprep.subr.bf16.mxu0 0
        %7094 = vmatpush2.bf16.msra.mxu0 0
        %7095 = vmatprep.subr.bf16.mxu0 0
        %7096 = vmatpush2.bf16.msra.mxu0 0
        %7097 = vmatprep.subr.bf16.mxu0 0
        %7098 = vmatpush2.bf16.msra.mxu0 0
        %7099 = vmatprep.subr.bf16.mxu0 0
        %7100 = vmatpush2.bf16.msra.mxu0 0
        %7101 = vmatprep.subr.bf16.mxu0 0
        %7102 = vmatpush2.bf16.msra.mxu0 0
        %7103 = vmatprep.subr.bf16.mxu0 0
        %7104 = vmatpush2.bf16.msra.mxu0 0
        %7105 = vmatprep.mubr.bf16.mxu0 0
        %7106 = vmatmul.mubr.bf16.gmra.mxu0 %v7016
        %v7107 = vpop.f32.mrf.mxu0
        %v7108 = vadd.f32 0.0, %v7107
        %v7109 = vpop.f32.mrf.mxu0
        %v7110 = vpop.f32.mrf.mxu0
        %v7111 = vadd.f32 0.0, %v7110
        %v7112 = vpop.f32.mrf.mxu0
        %7113 = vdwg.mxu0
        %v7114 = vadd.f32 %v6823, %v7065
        %v7115 = vadd.f32 %v6824, %v7067
        %v7116 = vadd.f32 %v6825, %v7108
        %v7117 = vadd.f32 %v6826, %v7069
        %v7118 = vadd.f32 %v6827, %v7071
        %v7119 = vadd.f32 %v6828, %v7111
        %v7120 = vld [vmem:[#allocation3] sm:$0xfc]
        %v7121 = vld [vmem:[#allocation3 + $0x10] sm:$0xf]
        %v7122 = vpack.c.bf16 %v7121, %v7120
        %s7123 = scalar_lea.vmem %s5, 1440
        %v7124 = vld [vmem:[%s7123] sm:$0xff]
        %v7125 = vld [vmem:[%s7123 + $0x8] sm:$0xff]
        %v7126 = vld [vmem:[%s7123 + $0x10] sm:$0xff]
        %v7127 = vld [vmem:[%s7123 + $0x18] sm:$0xff]
        %v7128 = vld [vmem:[%s7123 + $0x20] sm:$0xff]
        %v7129 = vld [vmem:[%s7123 + $0x28] sm:$0xff]
        %v7130 = vld [vmem:[%s7123 + $0x30] sm:$0xff]
        %v7131 = vld [vmem:[%s7123 + $0x38] sm:$0xff]
        %v7132 = vld [vmem:[%s7123 + $0x40] sm:$0xff]
        %v7133 = vld [vmem:[%s7123 + $0x48] sm:$0xff]
        %v7134 = vld [vmem:[%s7123 + $0x50] sm:$0xff]
        %v7135 = vld [vmem:[%s7123 + $0x58] sm:$0xff]
        %v7136 = vld [vmem:[%s7123 + $0x60] sm:$0xff]
        %v7137 = vld [vmem:[%s7123 + $0x68] sm:$0xff]
        %v7138 = vld [vmem:[%s7123 + $0x70] sm:$0xff]
        %v7139 = vld [vmem:[%s7123 + $0x78] sm:$0xff]
        %v7140 = vld [vmem:[%s7123 + $0x80] sm:$0xff]
        %v7141 = vld [vmem:[%s7123 + $0x88] sm:$0xff]
        %v7142 = vld [vmem:[%s7123 + $0x90] sm:$0xff]
        %v7143 = vld [vmem:[%s7123 + $0x98] sm:$0xff]
        %v7144 = vld [vmem:[%s7123 + $0xa0] sm:$0xff]
        %v7145 = vld [vmem:[%s7123 + $0xa8] sm:$0xff]
        %v7146 = vld [vmem:[%s7123 + $0xb0] sm:$0xff]
        %v7147 = vld [vmem:[%s7123 + $0xb8] sm:$0xff]
        %v7148 = vld [vmem:[%s7123 + $0xc0] sm:$0xff]
        %v7149 = vld [vmem:[%s7123 + $0xc8] sm:$0xff]
        %v7150 = vld [vmem:[%s7123 + $0xd0] sm:$0xff]
        %v7151 = vld [vmem:[%s7123 + $0xd8] sm:$0xff]
        %v7152 = vld [vmem:[%s7123 + $0xe0] sm:$0xff]
        %v7153 = vld [vmem:[%s7123 + $0xe8] sm:$0xff]
        %v7155 = vrot.slane %v7122, 1
        %v7186 = vunpack.c.l.b16 %v7124
        %v7187 = vunpack.c.h.b16 %v7124
        %v7188 = vunpack.c.l.b16 %v7125
        %v7189 = vunpack.c.h.b16 %v7125
        %v7190 = vunpack.c.l.b16 %v7126
        %v7191 = vunpack.c.h.b16 %v7126
        %v7192 = vunpack.c.l.b16 %v7127
        %v7193 = vunpack.c.h.b16 %v7127
        %v7194 = vunpack.c.l.b16 %v7128
        %v7195 = vunpack.c.h.b16 %v7128
        %v7196 = vunpack.c.l.b16 %v7129
        %v7197 = vunpack.c.h.b16 %v7129
        %v7198 = vunpack.c.l.b16 %v7130
        %v7199 = vunpack.c.h.b16 %v7130
        %v7200 = vunpack.c.l.b16 %v7131
        %v7201 = vunpack.c.h.b16 %v7131
        %v7202 = vunpack.c.l.b16 %v7132
        %v7203 = vunpack.c.h.b16 %v7132
        %v7204 = vunpack.c.l.b16 %v7133
        %v7205 = vunpack.c.h.b16 %v7133
        %v7206 = vunpack.c.l.b16 %v7134
        %v7207 = vunpack.c.h.b16 %v7134
        %v7208 = vunpack.c.l.b16 %v7135
        %v7209 = vunpack.c.h.b16 %v7135
        %v7210 = vunpack.c.l.b16 %v7136
        %v7211 = vunpack.c.h.b16 %v7136
        %v7212 = vunpack.c.l.b16 %v7137
        %v7213 = vunpack.c.h.b16 %v7137
        %v7214 = vunpack.c.l.b16 %v7138
        %v7215 = vunpack.c.h.b16 %v7138
        %v7216 = vunpack.c.l.b16 %v7139
        %v7217 = vunpack.c.h.b16 %v7139
        %v7218 = vunpack.c.l.b16 %v7140
        %v7219 = vunpack.c.h.b16 %v7140
        %v7220 = vunpack.c.l.b16 %v7141
        %v7221 = vunpack.c.h.b16 %v7141
        %v7222 = vunpack.c.l.b16 %v7142
        %v7223 = vunpack.c.h.b16 %v7142
        %v7224 = vunpack.c.l.b16 %v7143
        %v7225 = vunpack.c.h.b16 %v7143
        %v7226 = vunpack.c.l.b16 %v7144
        %v7227 = vunpack.c.h.b16 %v7144
        %v7228 = vunpack.c.l.b16 %v7145
        %v7229 = vunpack.c.h.b16 %v7145
        %v7230 = vunpack.c.l.b16 %v7146
        %v7231 = vunpack.c.h.b16 %v7146
        %v7232 = vunpack.c.l.b16 %v7147
        %v7233 = vunpack.c.h.b16 %v7147
        %v7234 = vunpack.c.l.b16 %v7148
        %v7235 = vunpack.c.h.b16 %v7148
        %v7236 = vunpack.c.l.b16 %v7149
        %v7237 = vunpack.c.h.b16 %v7149
        %v7238 = vunpack.c.l.b16 %v7150
        %v7239 = vunpack.c.h.b16 %v7150
        %v7240 = vunpack.c.l.b16 %v7151
        %v7241 = vunpack.c.h.b16 %v7151
        %v7242 = vunpack.c.l.b16 %v7152
        %v7243 = vunpack.c.h.b16 %v7152
        %v7244 = vunpack.c.l.b16 %v7153
        %v7245 = vunpack.c.h.b16 %v7153
        %v7246 = vpack.c.b16 %v7190, %v7186
        %v7247 = vpack.c.b16 %v7191, %v7187
        %v7248 = vpack.c.b16 %v7192, %v7188
        %v7249 = vpack.c.b16 %v7193, %v7189
        %v7250 = vpack.c.b16 %v7198, %v7194
        %v7251 = vpack.c.b16 %v7199, %v7195
        %v7252 = vpack.c.b16 %v7200, %v7196
        %v7253 = vpack.c.b16 %v7201, %v7197
        %v7254 = vpack.c.b16 %v7206, %v7202
        %v7255 = vpack.c.b16 %v7207, %v7203
        %v7256 = vpack.c.b16 %v7208, %v7204
        %v7257 = vpack.c.b16 %v7209, %v7205
        %v7258 = vpack.c.b16 %v7214, %v7210
        %v7259 = vpack.c.b16 %v7215, %v7211
        %v7260 = vpack.c.b16 %v7216, %v7212
        %v7261 = vpack.c.b16 %v7217, %v7213
        %v7262 = vpack.c.b16 %v7222, %v7218
        %v7263 = vpack.c.b16 %v7223, %v7219
        %v7264 = vpack.c.b16 %v7224, %v7220
        %v7265 = vpack.c.b16 %v7225, %v7221
        %v7266 = vpack.c.b16 %v7230, %v7226
        %v7267 = vpack.c.b16 %v7231, %v7227
        %v7268 = vpack.c.b16 %v7232, %v7228
        %v7269 = vpack.c.b16 %v7233, %v7229
        %v7270 = vpack.c.b16 %v7238, %v7234
        %v7271 = vpack.c.b16 %v7239, %v7235
        %v7272 = vpack.c.b16 %v7240, %v7236
        %v7273 = vpack.c.b16 %v7241, %v7237
        %v7274 = vpack.c.b16 %v7242, %v7242
        %v7275 = vpack.c.b16 %v7243, %v7243
        %v7276 = vpack.c.b16 %v7244, %v7244
        %v7277 = vpack.c.b16 %v7245, %v7245
        %v7307 = vsel %vm5581, %v7155, 0
        %v7310 = vsel %vm4961, %v7274, 0
        %v7313 = vsel %vm4961, %v7275, 0
        %v7316 = vsel %vm4961, %v7276, 0
        %v7319 = vsel %vm4961, %v7277, 0
        %7321 = vmatprep.subr.bf16.mxu0 %v7313
        %7322 = vmatpush1.bf16.msra.mxu0 %v7310
        %7323 = vmatprep.subr.bf16.mxu0 %v7271
        %7324 = vmatpush1.bf16.msra.mxu0 %v7270
        %7325 = vmatprep.subr.bf16.mxu0 %v7267
        %7326 = vmatpush1.bf16.msra.mxu0 %v7266
        %7327 = vmatprep.subr.bf16.mxu0 %v7263
        %7328 = vmatpush1.bf16.msra.mxu0 %v7262
        %7329 = vmatprep.subr.bf16.mxu0 %v7259
        %7330 = vmatpush1.bf16.msra.mxu0 %v7258
        %7331 = vmatprep.subr.bf16.mxu0 %v7255
        %7332 = vmatpush1.bf16.msra.mxu0 %v7254
        %7333 = vmatprep.subr.bf16.mxu0 %v7251
        %7334 = vmatpush1.bf16.msra.mxu0 %v7250
        %7335 = vmatprep.subr.bf16.mxu0 %v7247
        %7336 = vmatpush1.bf16.msra.mxu0 %v7246
        %7337 = vmatprep.subr.bf16.mxu0 0
        %7338 = vmatpush2.bf16.msra.mxu0 0
        %7339 = vmatprep.subr.bf16.mxu0 0
        %7340 = vmatpush2.bf16.msra.mxu0 0
        %7341 = vmatprep.subr.bf16.mxu0 0
        %7342 = vmatpush2.bf16.msra.mxu0 0
        %7343 = vmatprep.subr.bf16.mxu0 0
        %7344 = vmatpush2.bf16.msra.mxu0 0
        %7345 = vmatprep.subr.bf16.mxu0 0
        %7346 = vmatpush2.bf16.msra.mxu0 0
        %7347 = vmatprep.subr.bf16.mxu0 0
        %7348 = vmatpush2.bf16.msra.mxu0 0
        %7349 = vmatprep.subr.bf16.mxu0 0
        %7350 = vmatpush2.bf16.msra.mxu0 0
        %7351 = vmatprep.subr.bf16.mxu0 0
        %7352 = vmatpush2.bf16.msra.mxu0 0
        %7353 = vmatprep.mubr.bf16.mxu0 0
        %7354 = vmatmul.mubr.bf16.gmra.mxu0 %v7307
        %v7355 = vpop.f32.mrf.mxu0
        %v7356 = vadd.f32 0.0, %v7355
        %v7357 = vpop.f32.mrf.mxu0
        %v7358 = vadd.f32 0.0, %v7357
        %v7359 = vpop.f32.mrf.mxu0
        %v7360 = vadd.f32 0.0, %v7359
        %v7361 = vpop.f32.mrf.mxu0
        %v7362 = vadd.f32 0.0, %v7361
        %7363 = vdwg.mxu0
        %7364 = vmatprep.subr.bf16.mxu0 %v7319
        %7365 = vmatpush1.bf16.msra.mxu0 %v7316
        %7366 = vmatprep.subr.bf16.mxu0 %v7273
        %7367 = vmatpush1.bf16.msra.mxu0 %v7272
        %7368 = vmatprep.subr.bf16.mxu0 %v7269
        %7369 = vmatpush1.bf16.msra.mxu0 %v7268
        %7370 = vmatprep.subr.bf16.mxu0 %v7265
        %7371 = vmatpush1.bf16.msra.mxu0 %v7264
        %7372 = vmatprep.subr.bf16.mxu0 %v7261
        %7373 = vmatpush1.bf16.msra.mxu0 %v7260
        %7374 = vmatprep.subr.bf16.mxu0 %v7257
        %7375 = vmatpush1.bf16.msra.mxu0 %v7256
        %7376 = vmatprep.subr.bf16.mxu0 %v7253
        %7377 = vmatpush1.bf16.msra.mxu0 %v7252
        %7378 = vmatprep.subr.bf16.mxu0 %v7249
        %7379 = vmatpush1.bf16.msra.mxu0 %v7248
        %7380 = vmatprep.subr.bf16.mxu0 0
        %7381 = vmatpush2.bf16.msra.mxu0 0
        %7382 = vmatprep.subr.bf16.mxu0 0
        %7383 = vmatpush2.bf16.msra.mxu0 0
        %7384 = vmatprep.subr.bf16.mxu0 0
        %7385 = vmatpush2.bf16.msra.mxu0 0
        %7386 = vmatprep.subr.bf16.mxu0 0
        %7387 = vmatpush2.bf16.msra.mxu0 0
        %7388 = vmatprep.subr.bf16.mxu0 0
        %7389 = vmatpush2.bf16.msra.mxu0 0
        %7390 = vmatprep.subr.bf16.mxu0 0
        %7391 = vmatpush2.bf16.msra.mxu0 0
        %7392 = vmatprep.subr.bf16.mxu0 0
        %7393 = vmatpush2.bf16.msra.mxu0 0
        %7394 = vmatprep.subr.bf16.mxu0 0
        %7395 = vmatpush2.bf16.msra.mxu0 0
        %7396 = vmatprep.mubr.bf16.mxu0 0
        %7397 = vmatmul.mubr.bf16.gmra.mxu0 %v7307
        %v7398 = vpop.f32.mrf.mxu0
        %v7399 = vadd.f32 0.0, %v7398
        %v7400 = vpop.f32.mrf.mxu0
        %v7401 = vpop.f32.mrf.mxu0
        %v7402 = vadd.f32 0.0, %v7401
        %v7403 = vpop.f32.mrf.mxu0
        %7404 = vdwg.mxu0
        %v7405 = vadd.f32 %v7114, %v7356
        %v7406 = vadd.f32 %v7115, %v7358
        %v7407 = vadd.f32 %v7116, %v7399
        %v7408 = vadd.f32 %v7117, %v7360
        %v7409 = vadd.f32 %v7118, %v7362
        %v7410 = vadd.f32 %v7119, %v7402
        %v7411 = vld [vmem:[#allocation3] sm:$0xfc]
        %v7412 = vld [vmem:[#allocation3 + $0x8] sm:$0xfc]
        %v7413 = vld [vmem:[#allocation3 + $0x10] sm:$0xf]
        %v7414 = vld [vmem:[#allocation3 + $0x18] sm:$0xf]
        %v7415 = vpack.c.bf16 %v7413, %v7411
        %v7416 = vpack.c.bf16 %v7414, %v7412
        %s7417 = scalar_lea.vmem %s5, 1680
        %v7418 = vld [vmem:[%s7417] sm:$0xff]
        %v7419 = vld [vmem:[%s7417 + $0x8] sm:$0xff]
        %v7420 = vld [vmem:[%s7417 + $0x10] sm:$0xff]
        %v7421 = vld [vmem:[%s7417 + $0x18] sm:$0xff]
        %v7422 = vld [vmem:[%s7417 + $0x20] sm:$0xff]
        %v7423 = vld [vmem:[%s7417 + $0x28] sm:$0xff]
        %v7424 = vld [vmem:[%s7417 + $0x30] sm:$0xff]
        %v7425 = vld [vmem:[%s7417 + $0x38] sm:$0xff]
        %v7426 = vld [vmem:[%s7417 + $0x40] sm:$0xff]
        %v7427 = vld [vmem:[%s7417 + $0x48] sm:$0xff]
        %v7428 = vld [vmem:[%s7417 + $0x50] sm:$0xff]
        %v7429 = vld [vmem:[%s7417 + $0x58] sm:$0xff]
        %v7430 = vld [vmem:[%s7417 + $0x60] sm:$0xff]
        %v7431 = vld [vmem:[%s7417 + $0x68] sm:$0xff]
        %v7432 = vld [vmem:[%s7417 + $0x70] sm:$0xff]
        %v7433 = vld [vmem:[%s7417 + $0x78] sm:$0xff]
        %v7434 = vld [vmem:[%s7417 + $0x80] sm:$0xff]
        %v7435 = vld [vmem:[%s7417 + $0x88] sm:$0xff]
        %v7436 = vld [vmem:[%s7417 + $0x90] sm:$0xff]
        %v7437 = vld [vmem:[%s7417 + $0x98] sm:$0xff]
        %v7438 = vld [vmem:[%s7417 + $0xa0] sm:$0xff]
        %v7439 = vld [vmem:[%s7417 + $0xa8] sm:$0xff]
        %v7440 = vld [vmem:[%s7417 + $0xb0] sm:$0xff]
        %v7441 = vld [vmem:[%s7417 + $0xb8] sm:$0xff]
        %v7442 = vld [vmem:[%s7417 + $0xc0] sm:$0xff]
        %v7443 = vld [vmem:[%s7417 + $0xc8] sm:$0xff]
        %v7444 = vld [vmem:[%s7417 + $0xd0] sm:$0xff]
        %v7445 = vld [vmem:[%s7417 + $0xd8] sm:$0xff]
        %v7446 = vld [vmem:[%s7417 + $0xe0] sm:$0xff]
        %v7447 = vld [vmem:[%s7417 + $0xe8] sm:$0xff]
        %v7450 = vrot.slane %v7415, 1
        %v7451 = vrot.slane %v7416, 1
        %7452 = vrot.lane.b32.xlu0 %v7450, 116
        %v7453 = vpop.permute.xlu0 %7452
        %7454 = vrot.lane.b32.xlu0 %v7451, 116
        %v7455 = vpop.permute.xlu0 %7454
        %v7456 = vsel %vm5429, %v7453, %v7455
        %v7487 = vunpack.c.l.b16 %v7418
        %v7488 = vunpack.c.h.b16 %v7418
        %v7489 = vunpack.c.l.b16 %v7419
        %v7490 = vunpack.c.h.b16 %v7419
        %v7491 = vunpack.c.l.b16 %v7420
        %v7492 = vunpack.c.h.b16 %v7420
        %v7493 = vunpack.c.l.b16 %v7421
        %v7494 = vunpack.c.h.b16 %v7421
        %v7495 = vunpack.c.l.b16 %v7422
        %v7496 = vunpack.c.h.b16 %v7422
        %v7497 = vunpack.c.l.b16 %v7423
        %v7498 = vunpack.c.h.b16 %v7423
        %v7499 = vunpack.c.l.b16 %v7424
        %v7500 = vunpack.c.h.b16 %v7424
        %v7501 = vunpack.c.l.b16 %v7425
        %v7502 = vunpack.c.h.b16 %v7425
        %v7503 = vunpack.c.l.b16 %v7426
        %v7504 = vunpack.c.h.b16 %v7426
        %v7505 = vunpack.c.l.b16 %v7427
        %v7506 = vunpack.c.h.b16 %v7427
        %v7507 = vunpack.c.l.b16 %v7428
        %v7508 = vunpack.c.h.b16 %v7428
        %v7509 = vunpack.c.l.b16 %v7429
        %v7510 = vunpack.c.h.b16 %v7429
        %v7511 = vunpack.c.l.b16 %v7430
        %v7512 = vunpack.c.h.b16 %v7430
        %v7513 = vunpack.c.l.b16 %v7431
        %v7514 = vunpack.c.h.b16 %v7431
        %v7515 = vunpack.c.l.b16 %v7432
        %v7516 = vunpack.c.h.b16 %v7432
        %v7517 = vunpack.c.l.b16 %v7433
        %v7518 = vunpack.c.h.b16 %v7433
        %v7519 = vunpack.c.l.b16 %v7434
        %v7520 = vunpack.c.h.b16 %v7434
        %v7521 = vunpack.c.l.b16 %v7435
        %v7522 = vunpack.c.h.b16 %v7435
        %v7523 = vunpack.c.l.b16 %v7436
        %v7524 = vunpack.c.h.b16 %v7436
        %v7525 = vunpack.c.l.b16 %v7437
        %v7526 = vunpack.c.h.b16 %v7437
        %v7527 = vunpack.c.l.b16 %v7438
        %v7528 = vunpack.c.h.b16 %v7438
        %v7529 = vunpack.c.l.b16 %v7439
        %v7530 = vunpack.c.h.b16 %v7439
        %v7531 = vunpack.c.l.b16 %v7440
        %v7532 = vunpack.c.h.b16 %v7440
        %v7533 = vunpack.c.l.b16 %v7441
        %v7534 = vunpack.c.h.b16 %v7441
        %v7535 = vunpack.c.l.b16 %v7442
        %v7536 = vunpack.c.h.b16 %v7442
        %v7537 = vunpack.c.l.b16 %v7443
        %v7538 = vunpack.c.h.b16 %v7443
        %v7539 = vunpack.c.l.b16 %v7444
        %v7540 = vunpack.c.h.b16 %v7444
        %v7541 = vunpack.c.l.b16 %v7445
        %v7542 = vunpack.c.h.b16 %v7445
        %v7543 = vunpack.c.l.b16 %v7446
        %v7544 = vunpack.c.h.b16 %v7446
        %v7545 = vunpack.c.l.b16 %v7447
        %v7546 = vunpack.c.h.b16 %v7447
        %v7547 = vpack.c.b16 %v7491, %v7487
        %v7548 = vpack.c.b16 %v7492, %v7488
        %v7549 = vpack.c.b16 %v7493, %v7489
        %v7550 = vpack.c.b16 %v7494, %v7490
        %v7551 = vpack.c.b16 %v7499, %v7495
        %v7552 = vpack.c.b16 %v7500, %v7496
        %v7553 = vpack.c.b16 %v7501, %v7497
        %v7554 = vpack.c.b16 %v7502, %v7498
        %v7555 = vpack.c.b16 %v7507, %v7503
        %v7556 = vpack.c.b16 %v7508, %v7504
        %v7557 = vpack.c.b16 %v7509, %v7505
        %v7558 = vpack.c.b16 %v7510, %v7506
        %v7559 = vpack.c.b16 %v7515, %v7511
        %v7560 = vpack.c.b16 %v7516, %v7512
        %v7561 = vpack.c.b16 %v7517, %v7513
        %v7562 = vpack.c.b16 %v7518, %v7514
        %v7563 = vpack.c.b16 %v7523, %v7519
        %v7564 = vpack.c.b16 %v7524, %v7520
        %v7565 = vpack.c.b16 %v7525, %v7521
        %v7566 = vpack.c.b16 %v7526, %v7522
        %v7567 = vpack.c.b16 %v7531, %v7527
        %v7568 = vpack.c.b16 %v7532, %v7528
        %v7569 = vpack.c.b16 %v7533, %v7529
        %v7570 = vpack.c.b16 %v7534, %v7530
        %v7571 = vpack.c.b16 %v7539, %v7535
        %v7572 = vpack.c.b16 %v7540, %v7536
        %v7573 = vpack.c.b16 %v7541, %v7537
        %v7574 = vpack.c.b16 %v7542, %v7538
        %v7575 = vpack.c.b16 %v7543, %v7543
        %v7576 = vpack.c.b16 %v7544, %v7544
        %v7577 = vpack.c.b16 %v7545, %v7545
        %v7578 = vpack.c.b16 %v7546, %v7546
        %v7608 = vsel %vm5581, %v7456, 0
        %v7611 = vsel %vm4961, %v7575, 0
        %v7614 = vsel %vm4961, %v7576, 0
        %v7617 = vsel %vm4961, %v7577, 0
        %v7620 = vsel %vm4961, %v7578, 0
        %7622 = vmatprep.subr.bf16.mxu0 %v7614
        %7623 = vmatpush1.bf16.msra.mxu0 %v7611
        %7624 = vmatprep.subr.bf16.mxu0 %v7572
        %7625 = vmatpush1.bf16.msra.mxu0 %v7571
        %7626 = vmatprep.subr.bf16.mxu0 %v7568
        %7627 = vmatpush1.bf16.msra.mxu0 %v7567
        %7628 = vmatprep.subr.bf16.mxu0 %v7564
        %7629 = vmatpush1.bf16.msra.mxu0 %v7563
        %7630 = vmatprep.subr.bf16.mxu0 %v7560
        %7631 = vmatpush1.bf16.msra.mxu0 %v7559
        %7632 = vmatprep.subr.bf16.mxu0 %v7556
        %7633 = vmatpush1.bf16.msra.mxu0 %v7555
        %7634 = vmatprep.subr.bf16.mxu0 %v7552
        %7635 = vmatpush1.bf16.msra.mxu0 %v7551
        %7636 = vmatprep.subr.bf16.mxu0 %v7548
        %7637 = vmatpush1.bf16.msra.mxu0 %v7547
        %7638 = vmatprep.subr.bf16.mxu0 0
        %7639 = vmatpush2.bf16.msra.mxu0 0
        %7640 = vmatprep.subr.bf16.mxu0 0
        %7641 = vmatpush2.bf16.msra.mxu0 0
        %7642 = vmatprep.subr.bf16.mxu0 0
        %7643 = vmatpush2.bf16.msra.mxu0 0
        %7644 = vmatprep.subr.bf16.mxu0 0
        %7645 = vmatpush2.bf16.msra.mxu0 0
        %7646 = vmatprep.subr.bf16.mxu0 0
        %7647 = vmatpush2.bf16.msra.mxu0 0
        %7648 = vmatprep.subr.bf16.mxu0 0
        %7649 = vmatpush2.bf16.msra.mxu0 0
        %7650 = vmatprep.subr.bf16.mxu0 0
        %7651 = vmatpush2.bf16.msra.mxu0 0
        %7652 = vmatprep.subr.bf16.mxu0 0
        %7653 = vmatpush2.bf16.msra.mxu0 0
        %7654 = vmatprep.mubr.bf16.mxu0 0
        %7655 = vmatmul.mubr.bf16.gmra.mxu0 %v7608
        %v7656 = vpop.f32.mrf.mxu0
        %v7657 = vadd.f32 0.0, %v7656
        %v7658 = vpop.f32.mrf.mxu0
        %v7659 = vadd.f32 0.0, %v7658
        %v7660 = vpop.f32.mrf.mxu0
        %v7661 = vadd.f32 0.0, %v7660
        %v7662 = vpop.f32.mrf.mxu0
        %v7663 = vadd.f32 0.0, %v7662
        %7664 = vdwg.mxu0
        %7665 = vmatprep.subr.bf16.mxu0 %v7620
        %7666 = vmatpush1.bf16.msra.mxu0 %v7617
        %7667 = vmatprep.subr.bf16.mxu0 %v7574
        %7668 = vmatpush1.bf16.msra.mxu0 %v7573
        %7669 = vmatprep.subr.bf16.mxu0 %v7570
        %7670 = vmatpush1.bf16.msra.mxu0 %v7569
        %7671 = vmatprep.subr.bf16.mxu0 %v7566
        %7672 = vmatpush1.bf16.msra.mxu0 %v7565
        %7673 = vmatprep.subr.bf16.mxu0 %v7562
        %7674 = vmatpush1.bf16.msra.mxu0 %v7561
        %7675 = vmatprep.subr.bf16.mxu0 %v7558
        %7676 = vmatpush1.bf16.msra.mxu0 %v7557
        %7677 = vmatprep.subr.bf16.mxu0 %v7554
        %7678 = vmatpush1.bf16.msra.mxu0 %v7553
        %7679 = vmatprep.subr.bf16.mxu0 %v7550
        %7680 = vmatpush1.bf16.msra.mxu0 %v7549
        %7681 = vmatprep.subr.bf16.mxu0 0
        %7682 = vmatpush2.bf16.msra.mxu0 0
        %7683 = vmatprep.subr.bf16.mxu0 0
        %7684 = vmatpush2.bf16.msra.mxu0 0
        %7685 = vmatprep.subr.bf16.mxu0 0
        %7686 = vmatpush2.bf16.msra.mxu0 0
        %7687 = vmatprep.subr.bf16.mxu0 0
        %7688 = vmatpush2.bf16.msra.mxu0 0
        %7689 = vmatprep.subr.bf16.mxu0 0
        %7690 = vmatpush2.bf16.msra.mxu0 0
        %7691 = vmatprep.subr.bf16.mxu0 0
        %7692 = vmatpush2.bf16.msra.mxu0 0
        %7693 = vmatprep.subr.bf16.mxu0 0
        %7694 = vmatpush2.bf16.msra.mxu0 0
        %7695 = vmatprep.subr.bf16.mxu0 0
        %7696 = vmatpush2.bf16.msra.mxu0 0
        %7697 = vmatprep.mubr.bf16.mxu0 0
        %7698 = vmatmul.mubr.bf16.gmra.mxu0 %v7608
        %v7699 = vpop.f32.mrf.mxu0
        %v7700 = vadd.f32 0.0, %v7699
        %v7701 = vpop.f32.mrf.mxu0
        %v7702 = vpop.f32.mrf.mxu0
        %v7703 = vadd.f32 0.0, %v7702
        %v7704 = vpop.f32.mrf.mxu0
        %7705 = vdwg.mxu0
        %v7706 = vadd.f32 %v7405, %v7657
        %v7707 = vadd.f32 %v7406, %v7659
        %v7708 = vadd.f32 %v7407, %v7700
        %v7709 = vadd.f32 %v7408, %v7661
        %v7710 = vadd.f32 %v7409, %v7663
        %v7711 = vadd.f32 %v7410, %v7703
        %s7712 = scalar_lea.vmem %s5, 1920
        %v7713 = vld [vmem:[%s7712] sm:$0xff]
        %v7714 = vld [vmem:[%s7712 + $0x8] sm:$0xff]
        %v7715 = vld [vmem:[%s7712 + $0x10] sm:$0xff]
        %v7716 = vld [vmem:[%s7712 + $0x18] sm:$0xff]
        %v7717 = vld [vmem:[%s7712 + $0x20] sm:$0xff]
        %v7718 = vld [vmem:[%s7712 + $0x28] sm:$0xff]
        %v7719 = vld [vmem:[%s7712 + $0x30] sm:$0xff]
        %v7720 = vld [vmem:[%s7712 + $0x38] sm:$0xff]
        %v7721 = vld [vmem:[%s7712 + $0x40] sm:$0xff]
        %v7722 = vld [vmem:[%s7712 + $0x48] sm:$0xff]
        %v7723 = vld [vmem:[%s7712 + $0x50] sm:$0xff]
        %v7724 = vld [vmem:[%s7712 + $0x58] sm:$0xff]
        %v7725 = vld [vmem:[%s7712 + $0x60] sm:$0xff]
        %v7726 = vld [vmem:[%s7712 + $0x68] sm:$0xff]
        %v7727 = vld [vmem:[%s7712 + $0x70] sm:$0xff]
        %v7728 = vld [vmem:[%s7712 + $0x78] sm:$0xff]
        %v7729 = vld [vmem:[%s7712 + $0x80] sm:$0xff]
        %v7730 = vld [vmem:[%s7712 + $0x88] sm:$0xff]
        %v7731 = vld [vmem:[%s7712 + $0x90] sm:$0xff]
        %v7732 = vld [vmem:[%s7712 + $0x98] sm:$0xff]
        %v7733 = vld [vmem:[%s7712 + $0xa0] sm:$0xff]
        %v7734 = vld [vmem:[%s7712 + $0xa8] sm:$0xff]
        %v7735 = vld [vmem:[%s7712 + $0xb0] sm:$0xff]
        %v7736 = vld [vmem:[%s7712 + $0xb8] sm:$0xff]
        %v7737 = vld [vmem:[%s7712 + $0xc0] sm:$0xff]
        %v7738 = vld [vmem:[%s7712 + $0xc8] sm:$0xff]
        %v7739 = vld [vmem:[%s7712 + $0xd0] sm:$0xff]
        %v7740 = vld [vmem:[%s7712 + $0xd8] sm:$0xff]
        %v7741 = vld [vmem:[%s7712 + $0xe0] sm:$0xff]
        %v7742 = vld [vmem:[%s7712 + $0xe8] sm:$0xff]
        %7743 = vrot.lane.b32.xlu0 %v7450, 104
        %v7744 = vpop.permute.xlu0 %7743
        %7745 = vrot.lane.b32.xlu0 %v7451, 104
        %v7746 = vpop.permute.xlu0 %7745
        %v7747 = vsel %vm5965, %v7744, %v7746
        %v7778 = vunpack.c.l.b16 %v7713
        %v7779 = vunpack.c.h.b16 %v7713
        %v7780 = vunpack.c.l.b16 %v7714
        %v7781 = vunpack.c.h.b16 %v7714
        %v7782 = vunpack.c.l.b16 %v7715
        %v7783 = vunpack.c.h.b16 %v7715
        %v7784 = vunpack.c.l.b16 %v7716
        %v7785 = vunpack.c.h.b16 %v7716
        %v7786 = vunpack.c.l.b16 %v7717
        %v7787 = vunpack.c.h.b16 %v7717
        %v7788 = vunpack.c.l.b16 %v7718
        %v7789 = vunpack.c.h.b16 %v7718
        %v7790 = vunpack.c.l.b16 %v7719
        %v7791 = vunpack.c.h.b16 %v7719
        %v7792 = vunpack.c.l.b16 %v7720
        %v7793 = vunpack.c.h.b16 %v7720
        %v7794 = vunpack.c.l.b16 %v7721
        %v7795 = vunpack.c.h.b16 %v7721
        %v7796 = vunpack.c.l.b16 %v7722
        %v7797 = vunpack.c.h.b16 %v7722
        %v7798 = vunpack.c.l.b16 %v7723
        %v7799 = vunpack.c.h.b16 %v7723
        %v7800 = vunpack.c.l.b16 %v7724
        %v7801 = vunpack.c.h.b16 %v7724
        %v7802 = vunpack.c.l.b16 %v7725
        %v7803 = vunpack.c.h.b16 %v7725
        %v7804 = vunpack.c.l.b16 %v7726
        %v7805 = vunpack.c.h.b16 %v7726
        %v7806 = vunpack.c.l.b16 %v7727
        %v7807 = vunpack.c.h.b16 %v7727
        %v7808 = vunpack.c.l.b16 %v7728
        %v7809 = vunpack.c.h.b16 %v7728
        %v7810 = vunpack.c.l.b16 %v7729
        %v7811 = vunpack.c.h.b16 %v7729
        %v7812 = vunpack.c.l.b16 %v7730
        %v7813 = vunpack.c.h.b16 %v7730
        %v7814 = vunpack.c.l.b16 %v7731
        %v7815 = vunpack.c.h.b16 %v7731
        %v7816 = vunpack.c.l.b16 %v7732
        %v7817 = vunpack.c.h.b16 %v7732
        %v7818 = vunpack.c.l.b16 %v7733
        %v7819 = vunpack.c.h.b16 %v7733
        %v7820 = vunpack.c.l.b16 %v7734
        %v7821 = vunpack.c.h.b16 %v7734
        %v7822 = vunpack.c.l.b16 %v7735
        %v7823 = vunpack.c.h.b16 %v7735
        %v7824 = vunpack.c.l.b16 %v7736
        %v7825 = vunpack.c.h.b16 %v7736
        %v7826 = vunpack.c.l.b16 %v7737
        %v7827 = vunpack.c.h.b16 %v7737
        %v7828 = vunpack.c.l.b16 %v7738
        %v7829 = vunpack.c.h.b16 %v7738
        %v7830 = vunpack.c.l.b16 %v7739
        %v7831 = vunpack.c.h.b16 %v7739
        %v7832 = vunpack.c.l.b16 %v7740
        %v7833 = vunpack.c.h.b16 %v7740
        %v7834 = vunpack.c.l.b16 %v7741
        %v7835 = vunpack.c.h.b16 %v7741
        %v7836 = vunpack.c.l.b16 %v7742
        %v7837 = vunpack.c.h.b16 %v7742
        %v7838 = vpack.c.b16 %v7782, %v7778
        %v7839 = vpack.c.b16 %v7783, %v7779
        %v7840 = vpack.c.b16 %v7784, %v7780
        %v7841 = vpack.c.b16 %v7785, %v7781
        %v7842 = vpack.c.b16 %v7790, %v7786
        %v7843 = vpack.c.b16 %v7791, %v7787
        %v7844 = vpack.c.b16 %v7792, %v7788
        %v7845 = vpack.c.b16 %v7793, %v7789
        %v7846 = vpack.c.b16 %v7798, %v7794
        %v7847 = vpack.c.b16 %v7799, %v7795
        %v7848 = vpack.c.b16 %v7800, %v7796
        %v7849 = vpack.c.b16 %v7801, %v7797
        %v7850 = vpack.c.b16 %v7806, %v7802
        %v7851 = vpack.c.b16 %v7807, %v7803
        %v7852 = vpack.c.b16 %v7808, %v7804
        %v7853 = vpack.c.b16 %v7809, %v7805
        %v7854 = vpack.c.b16 %v7814, %v7810
        %v7855 = vpack.c.b16 %v7815, %v7811
        %v7856 = vpack.c.b16 %v7816, %v7812
        %v7857 = vpack.c.b16 %v7817, %v7813
        %v7858 = vpack.c.b16 %v7822, %v7818
        %v7859 = vpack.c.b16 %v7823, %v7819
        %v7860 = vpack.c.b16 %v7824, %v7820
        %v7861 = vpack.c.b16 %v7825, %v7821
        %v7862 = vpack.c.b16 %v7830, %v7826
        %v7863 = vpack.c.b16 %v7831, %v7827
        %v7864 = vpack.c.b16 %v7832, %v7828
        %v7865 = vpack.c.b16 %v7833, %v7829
        %v7866 = vpack.c.b16 %v7834, %v7834
        %v7867 = vpack.c.b16 %v7835, %v7835
        %v7868 = vpack.c.b16 %v7836, %v7836
        %v7869 = vpack.c.b16 %v7837, %v7837
        %v7899 = vsel %vm5581, %v7747, 0
        %v7902 = vsel %vm4961, %v7866, 0
        %v7905 = vsel %vm4961, %v7867, 0
        %v7908 = vsel %vm4961, %v7868, 0
        %v7911 = vsel %vm4961, %v7869, 0
        %7913 = vmatprep.subr.bf16.mxu0 %v7905
        %7914 = vmatpush1.bf16.msra.mxu0 %v7902
        %7915 = vmatprep.subr.bf16.mxu0 %v7863
        %7916 = vmatpush1.bf16.msra.mxu0 %v7862
        %7917 = vmatprep.subr.bf16.mxu0 %v7859
        %7918 = vmatpush1.bf16.msra.mxu0 %v7858
        %7919 = vmatprep.subr.bf16.mxu0 %v7855
        %7920 = vmatpush1.bf16.msra.mxu0 %v7854
        %7921 = vmatprep.subr.bf16.mxu0 %v7851
        %7922 = vmatpush1.bf16.msra.mxu0 %v7850
        %7923 = vmatprep.subr.bf16.mxu0 %v7847
        %7924 = vmatpush1.bf16.msra.mxu0 %v7846
        %7925 = vmatprep.subr.bf16.mxu0 %v7843
        %7926 = vmatpush1.bf16.msra.mxu0 %v7842
        %7927 = vmatprep.subr.bf16.mxu0 %v7839
        %7928 = vmatpush1.bf16.msra.mxu0 %v7838
        %7929 = vmatprep.subr.bf16.mxu0 0
        %7930 = vmatpush2.bf16.msra.mxu0 0
        %7931 = vmatprep.subr.bf16.mxu0 0
        %7932 = vmatpush2.bf16.msra.mxu0 0
        %7933 = vmatprep.subr.bf16.mxu0 0
        %7934 = vmatpush2.bf16.msra.mxu0 0
        %7935 = vmatprep.subr.bf16.mxu0 0
        %7936 = vmatpush2.bf16.msra.mxu0 0
        %7937 = vmatprep.subr.bf16.mxu0 0
        %7938 = vmatpush2.bf16.msra.mxu0 0
        %7939 = vmatprep.subr.bf16.mxu0 0
        %7940 = vmatpush2.bf16.msra.mxu0 0
        %7941 = vmatprep.subr.bf16.mxu0 0
        %7942 = vmatpush2.bf16.msra.mxu0 0
        %7943 = vmatprep.subr.bf16.mxu0 0
        %7944 = vmatpush2.bf16.msra.mxu0 0
        %7945 = vmatprep.mubr.bf16.mxu0 0
        %7946 = vmatmul.mubr.bf16.gmra.mxu0 %v7899
        %v7947 = vpop.f32.mrf.mxu0
        %v7948 = vadd.f32 0.0, %v7947
        %v7949 = vpop.f32.mrf.mxu0
        %v7950 = vadd.f32 0.0, %v7949
        %v7951 = vpop.f32.mrf.mxu0
        %v7952 = vadd.f32 0.0, %v7951
        %v7953 = vpop.f32.mrf.mxu0
        %v7954 = vadd.f32 0.0, %v7953
        %7955 = vdwg.mxu0
        %7956 = vmatprep.subr.bf16.mxu0 %v7911
        %7957 = vmatpush1.bf16.msra.mxu0 %v7908
        %7958 = vmatprep.subr.bf16.mxu0 %v7865
        %7959 = vmatpush1.bf16.msra.mxu0 %v7864
        %7960 = vmatprep.subr.bf16.mxu0 %v7861
        %7961 = vmatpush1.bf16.msra.mxu0 %v7860
        %7962 = vmatprep.subr.bf16.mxu0 %v7857
        %7963 = vmatpush1.bf16.msra.mxu0 %v7856
        %7964 = vmatprep.subr.bf16.mxu0 %v7853
        %7965 = vmatpush1.bf16.msra.mxu0 %v7852
        %7966 = vmatprep.subr.bf16.mxu0 %v7849
        %7967 = vmatpush1.bf16.msra.mxu0 %v7848
        %7968 = vmatprep.subr.bf16.mxu0 %v7845
        %7969 = vmatpush1.bf16.msra.mxu0 %v7844
        %7970 = vmatprep.subr.bf16.mxu0 %v7841
        %7971 = vmatpush1.bf16.msra.mxu0 %v7840
        %7972 = vmatprep.subr.bf16.mxu0 0
        %7973 = vmatpush2.bf16.msra.mxu0 0
        %7974 = vmatprep.subr.bf16.mxu0 0
        %7975 = vmatpush2.bf16.msra.mxu0 0
        %7976 = vmatprep.subr.bf16.mxu0 0
        %7977 = vmatpush2.bf16.msra.mxu0 0
        %7978 = vmatprep.subr.bf16.mxu0 0
        %7979 = vmatpush2.bf16.msra.mxu0 0
        %7980 = vmatprep.subr.bf16.mxu0 0
        %7981 = vmatpush2.bf16.msra.mxu0 0
        %7982 = vmatprep.subr.bf16.mxu0 0
        %7983 = vmatpush2.bf16.msra.mxu0 0
        %7984 = vmatprep.subr.bf16.mxu0 0
        %7985 = vmatpush2.bf16.msra.mxu0 0
        %7986 = vmatprep.subr.bf16.mxu0 0
        %7987 = vmatpush2.bf16.msra.mxu0 0
        %7988 = vmatprep.mubr.bf16.mxu0 0
        %7989 = vmatmul.mubr.bf16.gmra.mxu0 %v7899
        %v7990 = vpop.f32.mrf.mxu0
        %v7991 = vadd.f32 0.0, %v7990
        %v7992 = vpop.f32.mrf.mxu0
        %v7993 = vpop.f32.mrf.mxu0
        %v7994 = vadd.f32 0.0, %v7993
        %v7995 = vpop.f32.mrf.mxu0
        %7996 = vdwg.mxu0
        %v7997 = vadd.f32 %v7706, %v7948
        %v7998 = vadd.f32 %v7707, %v7950
        %v7999 = vadd.f32 %v7708, %v7991
        %v8000 = vadd.f32 %v7709, %v7952
        %v8001 = vadd.f32 %v7710, %v7954
        %v8002 = vadd.f32 %v7711, %v7994
        %v8003 = vld [vmem:[%s6] sm:$0xf]
        %v8005 = vlaneseq
        %v8006 = vshrl.u32 %v8005, 7
        %v8007 = vsub.s32 0, %v8006
        %v8008 = vrot.slane %v8003, %v8007
        %v8009 = vlaneseq
        %v8010 = vshrl.u32 %v8009, 7
        %v8011 = vsub.s32 1, %v8010
        %v8012 = vrot.slane %v8003, %v8011
        %v8013 = vlaneseq
        %v8014 = vshrl.u32 %v8013, 7
        %v8015 = vsub.s32 2, %v8014
        %v8016 = vrot.slane %v8003, %v8015
        %v8020 = vadd.f32 %v7997, %v8008
        %v8021 = vadd.f32 %v7998, %v8012
        %v8022 = vadd.f32 %v7999, %v8016
        %v8023 = vadd.f32 %v8000, %v8008
        %v8024 = vadd.f32 %v8001, %v8012
        %v8025 = vadd.f32 %v8002, %v8016
        %vm8026 = vcmp.ge.f32.partialorder %v8020, 0.0
        %vm8027 = vcmp.ge.f32.partialorder %v8021, 0.0
        %vm8028 = vcmp.ge.f32.partialorder %v8022, 0.0
        %vm8029 = vcmp.ge.f32.partialorder %v8023, 0.0
        %vm8030 = vcmp.ge.f32.partialorder %v8024, 0.0
        %vm8031 = vcmp.ge.f32.partialorder %v8025, 0.0
        %v8032 = vmul.f32 %v8020, 0.01
        %v8033 = vmul.f32 %v8021, 0.01
        %v8034 = vmul.f32 %v8022, 0.01
        %v8035 = vmul.f32 %v8023, 0.01
        %v8036 = vmul.f32 %v8024, 0.01
        %v8037 = vmul.f32 %v8025, 0.01
        %v8038 = vsel %vm8026, %v8020, %v8032
        %v8039 = vsel %vm8027, %v8021, %v8033
        %v8040 = vsel %vm8028, %v8022, %v8034
        %v8041 = vsel %vm8029, %v8023, %v8035
        %v8042 = vsel %vm8030, %v8024, %v8036
        %v8043 = vsel %vm8031, %v8025, %v8037
        %8047 = vrot.lane.b32.xlu0 %v8038, 92
        %v8048 = vpop.permute.xlu0 %8047
        %8049 = vrot.lane.b32.xlu0 %v8039, 92
        %v8050 = vpop.permute.xlu0 %8049
        %8051 = vrot.lane.b32.xlu0 %v8040, 92
        %v8052 = vpop.permute.xlu0 %8051
        %vm8053 = vcmask 752640
        %v8054 = vsel %vm8053, %v8048, %v8050
        %v8055 = vsel %vm8053, %v8050, %v8052
        %v8058 = vmax.f32 %v8038, %v8054
        %v8059 = vmax.f32 %v8039, %v8055
        %8060 = vrot.lane.b32.xlu0 %v8038, 56
        %v8061 = vpop.permute.xlu0 %8060
        %8062 = vrot.lane.b32.xlu0 %v8039, 56
        %v8063 = vpop.permute.xlu0 %8062
        %8064 = vrot.lane.b32.xlu0 %v8040, 56
        %v8065 = vpop.permute.xlu0 %8064
        %vm8066 = vcmask 457728
        %v8067 = vsel %vm8066, %v8061, %v8063
        %v8068 = vsel %vm8066, %v8063, %v8065
        %v8071 = vmax.f32 %v8058, %v8067
        %v8072 = vmax.f32 %v8059, %v8068
        %v8073 = vrot.slane %v8038, 1
        %v8074 = vrot.slane %v8039, 1
        %v8077 = vmax.f32 %v8071, %v8073
        %v8078 = vmax.f32 %v8072, %v8074
        %v8079 = vrot.slane %v8040, 1
        %8080 = vrot.lane.b32.xlu0 %v8073, 92
        %v8081 = vpop.permute.xlu0 %8080
        %8082 = vrot.lane.b32.xlu0 %v8074, 92
        %v8083 = vpop.permute.xlu0 %8082
        %8084 = vrot.lane.b32.xlu0 %v8079, 92
        %v8085 = vpop.permute.xlu0 %8084
        %v8086 = vsel %vm8053, %v8081, %v8083
        %v8087 = vsel %vm8053, %v8083, %v8085
        %v8090 = vmax.f32 %v8077, %v8086
        %v8091 = vmax.f32 %v8078, %v8087
        %8092 = vrot.lane.b32.xlu0 %v8073, 56
        %v8093 = vpop.permute.xlu0 %8092
        %8094 = vrot.lane.b32.xlu0 %v8074, 56
        %v8095 = vpop.permute.xlu0 %8094
        %8096 = vrot.lane.b32.xlu0 %v8079, 56
        %v8097 = vpop.permute.xlu0 %8096
        %v8098 = vsel %vm8066, %v8093, %v8095
        %v8099 = vsel %vm8066, %v8095, %v8097
        %v8102 = vmax.f32 %v8090, %v8098
        %v8103 = vmax.f32 %v8091, %v8099
        %v8106 = vrot.slane %v8038, 2
        %v8107 = vrot.slane %v8041, 2
        %v8108 = vsel %vm632, %v8106, %v8107
        %v8109 = vrot.slane %v8039, 2
        %v8110 = vrot.slane %v8042, 2
        %v8111 = vsel %vm632, %v8109, %v8110
        %v8114 = vmax.f32 %v8102, %v8108
        %v8115 = vmax.f32 %v8103, %v8111
        %v8117 = vrot.slane %v8040, 2
        %v8118 = vrot.slane %v8043, 2
        %v8119 = vsel %vm632, %v8117, %v8118
        %8120 = vrot.lane.b32.xlu0 %v8108, 92
        %v8121 = vpop.permute.xlu0 %8120
        %8122 = vrot.lane.b32.xlu0 %v8111, 92
        %v8123 = vpop.permute.xlu0 %8122
        %8124 = vrot.lane.b32.xlu0 %v8119, 92
        %v8125 = vpop.permute.xlu0 %8124
        %v8126 = vsel %vm8053, %v8121, %v8123
        %v8127 = vsel %vm8053, %v8123, %v8125
        %v8130 = vmax.f32 %v8114, %v8126
        %v8131 = vmax.f32 %v8115, %v8127
        %8132 = vrot.lane.b32.xlu0 %v8108, 56
        %v8133 = vpop.permute.xlu0 %8132
        %8134 = vrot.lane.b32.xlu0 %v8111, 56
        %v8135 = vpop.permute.xlu0 %8134
        %8136 = vrot.lane.b32.xlu0 %v8119, 56
        %v8137 = vpop.permute.xlu0 %8136
        %v8138 = vsel %vm8066, %v8133, %v8135
        %v8139 = vsel %vm8066, %v8135, %v8137
        %v8142 = vmax.f32 %v8130, %v8138
        %v8143 = vmax.f32 %v8131, %v8139
        %v8144 = vld [vmem:[%s7] sm:$0x7]
        %vm8145 = vcmask 56320
        %v8147 = vsel %vm8145, %v8144, 0
        %v8150 = vsel %vm633, %v8142, 0
        %v8153 = vsel %vm633, %v8143, 0
        %8155 = vmatprep.subr.mxu0 0.0
        %8156 = vmatpush1.msra.mxu0 0.0
        %8157 = vmatprep.subr.mxu0 0.0
        %8158 = vmatpush1.msra.mxu0 0.0
        %8159 = vmatprep.subr.mxu0 0.0
        %8160 = vmatpush1.msra.mxu0 0.0
        %8161 = vmatprep.subr.mxu0 0.0
        %8162 = vmatpush1.msra.mxu0 0.0
        %8163 = vmatprep.subr.mxu0 0.0
        %8164 = vmatpush1.msra.mxu0 0.0
        %8165 = vmatprep.subr.mxu0 0.0
        %8166 = vmatpush1.msra.mxu0 0.0
        %8167 = vmatprep.subr.mxu0 0.0
        %8168 = vmatpush1.msra.mxu0 0.0
        %8169 = vmatprep.subr.mxu0 0.0
        %8170 = vmatpush1.msra.mxu0 0.0
        %8171 = vmatprep.subr.mxu0 0.0
        %8172 = vmatpush1.msra.mxu0 0.0
        %8173 = vmatprep.subr.mxu0 0.0
        %8174 = vmatpush1.msra.mxu0 0.0
        %8175 = vmatprep.subr.mxu0 0.0
        %8176 = vmatpush1.msra.mxu0 0.0
        %8177 = vmatprep.subr.mxu0 0.0
        %8178 = vmatpush1.msra.mxu0 0.0
        %8179 = vmatprep.subr.mxu0 0.0
        %8180 = vmatpush1.msra.mxu0 0.0
        %8181 = vmatprep.subr.mxu0 0.0
        %8182 = vmatpush1.msra.mxu0 0.0
        %8183 = vmatprep.subr.mxu0 0.0
        %8184 = vmatpush1.msra.mxu0 0.0
        %8185 = vmatprep.subr.mxu0 %v8153
        %8186 = vmatpush1.msra.mxu0 %v8150
        %8187 = vmatprep.subr.mxu0 0.0
        %8188 = vmatpush2.msra.mxu0 0.0
        %8189 = vmatprep.subr.mxu0 0.0
        %8190 = vmatpush2.msra.mxu0 0.0
        %8191 = vmatprep.subr.mxu0 0.0
        %8192 = vmatpush2.msra.mxu0 0.0
        %8193 = vmatprep.subr.mxu0 0.0
        %8194 = vmatpush2.msra.mxu0 0.0
        %8195 = vmatprep.subr.mxu0 0.0
        %8196 = vmatpush2.msra.mxu0 0.0
        %8197 = vmatprep.subr.mxu0 0.0
        %8198 = vmatpush2.msra.mxu0 0.0
        %8199 = vmatprep.subr.mxu0 0.0
        %8200 = vmatpush2.msra.mxu0 0.0
        %8201 = vmatprep.subr.mxu0 0.0
        %8202 = vmatpush2.msra.mxu0 0.0
        %8203 = vmatprep.subr.mxu0 0.0
        %8204 = vmatpush2.msra.mxu0 0.0
        %8205 = vmatprep.subr.mxu0 0.0
        %8206 = vmatpush2.msra.mxu0 0.0
        %8207 = vmatprep.subr.mxu0 0.0
        %8208 = vmatpush2.msra.mxu0 0.0
        %8209 = vmatprep.subr.mxu0 0.0
        %8210 = vmatpush2.msra.mxu0 0.0
        %8211 = vmatprep.subr.mxu0 0.0
        %8212 = vmatpush2.msra.mxu0 0.0
        %8213 = vmatprep.subr.mxu0 0.0
        %8214 = vmatpush2.msra.mxu0 0.0
        %8215 = vmatprep.subr.mxu0 0.0
        %8216 = vmatpush2.msra.mxu0 0.0
        %8217 = vmatprep.subr.mxu0 0.0
        %8218 = vmatpush2.msra.mxu0 0.0
        %8219 = vmatprep.mubr.f32.mxu0 0.0
        %8220 = vmatmul.mubr.f32.gmra.mxu0 %v8147
        %v8221 = vpop.f32.mrf.mxu0
        %v8222 = vadd.f32 0.0, %v8221
        %v8223 = vpop.f32.mrf.mxu0
        %v8224 = vadd.f32 0.0, %v8223
        %8225 = vdwg.mxu0
        %v8226 = vld [vmem:[%s8] sm:$0xff]
        %v8227 = vld [vmem:[%s8 + $0x8] sm:$0xff]
        %v8228 = vld [vmem:[%s8 + $0x10] sm:$0xff]
        %v8229 = vld [vmem:[%s8 + $0x18] sm:$0xff]
        %v8230 = vld [vmem:[%s8 + $0x20] sm:$0xff]
        %v8231 = vld [vmem:[%s8 + $0x28] sm:$0xff]
        %v8232 = vld [vmem:[%s8 + $0x30] sm:$0xff]
        %v8233 = vld [vmem:[%s8 + $0x38] sm:$0xff]
        %v8234 = vld [vmem:[%s8 + $0x40] sm:$0xff]
        %v8235 = vld [vmem:[%s8 + $0x48] sm:$0xff]
        %v8236 = vld [vmem:[%s8 + $0x50] sm:$0xff]
        %v8237 = vld [vmem:[%s8 + $0x58] sm:$0xff]
        %v8238 = vld [vmem:[%s8 + $0x60] sm:$0xff]
        %v8239 = vld [vmem:[%s8 + $0x68] sm:$0xff]
        %v8240 = vld [vmem:[%s8 + $0x70] sm:$0xff]
        %v8241 = vld [vmem:[%s8 + $0x78] sm:$0xff]
        %v8242 = vld [vmem:[%s8 + $0x80] sm:$0xff]
        %v8243 = vld [vmem:[%s8 + $0x88] sm:$0xff]
        %v8244 = vld [vmem:[%s8 + $0x90] sm:$0xff]
        %v8245 = vld [vmem:[%s8 + $0x98] sm:$0xff]
        %v8246 = vld [vmem:[%s8 + $0xa0] sm:$0xff]
        %v8247 = vld [vmem:[%s8 + $0xa8] sm:$0xff]
        %v8248 = vld [vmem:[%s8 + $0xb0] sm:$0xff]
        %v8249 = vld [vmem:[%s8 + $0xb8] sm:$0xff]
        %v8250 = vld [vmem:[%s8 + $0xc0] sm:$0xff]
        %v8251 = vld [vmem:[%s8 + $0xc8] sm:$0xff]
        %v8252 = vld [vmem:[%s8 + $0xd0] sm:$0xff]
        %v8253 = vld [vmem:[%s8 + $0xd8] sm:$0xff]
        %v8254 = vld [vmem:[%s8 + $0xe0] sm:$0xff]
        %v8255 = vld [vmem:[%s8 + $0xe8] sm:$0xff]
        %v8256 = vld [vmem:[%s8 + $0xf0] sm:$0xff]
        %v8257 = vld [vmem:[%s8 + $0xf8] sm:$0xf]
        %vm8258 = vcmask 1014784
        %v8260 = vsel %vm8258, %v8224, 0
        %v8263 = vsel %vm4961, %v8257, 0
        %8265 = vmatprep.subr.mxu0 0.0
        %8266 = vmatpush1.msra.mxu0 %v8241
        %8267 = vmatprep.subr.mxu0 0.0
        %8268 = vmatpush1.msra.mxu0 %v8240
        %8269 = vmatprep.subr.mxu0 0.0
        %8270 = vmatpush1.msra.mxu0 %v8239
        %8271 = vmatprep.subr.mxu0 0.0
        %8272 = vmatpush1.msra.mxu0 %v8238
        %8273 = vmatprep.subr.mxu0 0.0
        %8274 = vmatpush1.msra.mxu0 %v8237
        %8275 = vmatprep.subr.mxu0 0.0
        %8276 = vmatpush1.msra.mxu0 %v8236
        %8277 = vmatprep.subr.mxu0 0.0
        %8278 = vmatpush1.msra.mxu0 %v8235
        %8279 = vmatprep.subr.mxu0 0.0
        %8280 = vmatpush1.msra.mxu0 %v8234
        %8281 = vmatprep.subr.mxu0 0.0
        %8282 = vmatpush1.msra.mxu0 %v8233
        %8283 = vmatprep.subr.mxu0 0.0
        %8284 = vmatpush1.msra.mxu0 %v8232
        %8285 = vmatprep.subr.mxu0 0.0
        %8286 = vmatpush1.msra.mxu0 %v8231
        %8287 = vmatprep.subr.mxu0 0.0
        %8288 = vmatpush1.msra.mxu0 %v8230
        %8289 = vmatprep.subr.mxu0 0.0
        %8290 = vmatpush1.msra.mxu0 %v8229
        %8291 = vmatprep.subr.mxu0 0.0
        %8292 = vmatpush1.msra.mxu0 %v8228
        %8293 = vmatprep.subr.mxu0 0.0
        %8294 = vmatpush1.msra.mxu0 %v8227
        %8295 = vmatprep.subr.mxu0 0.0
        %8296 = vmatpush1.msra.mxu0 %v8226
        %8297 = vmatprep.subr.mxu0 0.0
        %8298 = vmatpush2.msra.mxu0 %v8263
        %8299 = vmatprep.subr.mxu0 0.0
        %8300 = vmatpush2.msra.mxu0 %v8256
        %8301 = vmatprep.subr.mxu0 0.0
        %8302 = vmatpush2.msra.mxu0 %v8255
        %8303 = vmatprep.subr.mxu0 0.0
        %8304 = vmatpush2.msra.mxu0 %v8254
        %8305 = vmatprep.subr.mxu0 0.0
        %8306 = vmatpush2.msra.mxu0 %v8253
        %8307 = vmatprep.subr.mxu0 0.0
        %8308 = vmatpush2.msra.mxu0 %v8252
        %8309 = vmatprep.subr.mxu0 0.0
        %8310 = vmatpush2.msra.mxu0 %v8251
        %8311 = vmatprep.subr.mxu0 0.0
        %8312 = vmatpush2.msra.mxu0 %v8250
        %8313 = vmatprep.subr.mxu0 0.0
        %8314 = vmatpush2.msra.mxu0 %v8249
        %8315 = vmatprep.subr.mxu0 0.0
        %8316 = vmatpush2.msra.mxu0 %v8248
        %8317 = vmatprep.subr.mxu0 0.0
        %8318 = vmatpush2.msra.mxu0 %v8247
        %8319 = vmatprep.subr.mxu0 0.0
        %8320 = vmatpush2.msra.mxu0 %v8246
        %8321 = vmatprep.subr.mxu0 0.0
        %8322 = vmatpush2.msra.mxu0 %v8245
        %8323 = vmatprep.subr.mxu0 0.0
        %8324 = vmatpush2.msra.mxu0 %v8244
        %8325 = vmatprep.subr.mxu0 0.0
        %8326 = vmatpush2.msra.mxu0 %v8243
        %8327 = vmatprep.subr.mxu0 0.0
        %8328 = vmatpush2.msra.mxu0 %v8242
        %8329 = vmatprep.mubr.f32.mxu0 %v8260
        %8330 = vmatmul.mubr.f32.gmra.mxu0 %v8222
        %v8331 = vpop.f32.mrf.mxu0
        %v8332 = vadd.f32 0.0, %v8331
        %v8333 = vpop.f32.mrf.mxu0
        %8334 = vdwg.mxu0
        %v8335 = vld [vmem:[%s10] sm:$0x1]
        %v8336 = vld [vmem:[%s9] sm:$0xff]
        %v8337 = vld [vmem:[%s9 + $0x8] sm:$0xff]
        %v8338 = vld [vmem:[%s9 + $0x10] sm:$0xff]
        %v8339 = vld [vmem:[%s9 + $0x18] sm:$0xff]
        %v8340 = vld [vmem:[%s9 + $0x20] sm:$0xff]
        %v8341 = vld [vmem:[%s9 + $0x28] sm:$0xff]
        %v8342 = vld [vmem:[%s9 + $0x30] sm:$0xff]
        %v8343 = vld [vmem:[%s9 + $0x38] sm:$0xff]
        %v8344 = vld [vmem:[%s9 + $0x40] sm:$0xff]
        %v8345 = vld [vmem:[%s9 + $0x48] sm:$0xff]
        %v8346 = vld [vmem:[%s9 + $0x50] sm:$0xff]
        %v8347 = vld [vmem:[%s9 + $0x58] sm:$0xff]
        %v8348 = vld [vmem:[%s9 + $0x60] sm:$0xff]
        %v8349 = vld [vmem:[%s9 + $0x68] sm:$0xf]
        %vm8350 = vcmask 883712
        %v8352 = vsel %vm8350, %v8332, 0
        %v8355 = vsel %vm4961, %v8349, 0
        %8357 = vmatprep.subr.mxu0 0.0
        %8358 = vmatpush1.msra.mxu0 0.0
        %8359 = vmatprep.subr.mxu0 0.0
        %8360 = vmatpush1.msra.mxu0 0.0
        %8361 = vmatprep.subr.mxu0 0.0
        %8362 = vmatpush1.msra.mxu0 %v8355
        %8363 = vmatprep.subr.mxu0 0.0
        %8364 = vmatpush1.msra.mxu0 %v8348
        %8365 = vmatprep.subr.mxu0 0.0
        %8366 = vmatpush1.msra.mxu0 %v8347
        %8367 = vmatprep.subr.mxu0 0.0
        %8368 = vmatpush1.msra.mxu0 %v8346
        %8369 = vmatprep.subr.mxu0 0.0
        %8370 = vmatpush1.msra.mxu0 %v8345
        %8371 = vmatprep.subr.mxu0 0.0
        %8372 = vmatpush1.msra.mxu0 %v8344
        %8373 = vmatprep.subr.mxu0 0.0
        %8374 = vmatpush1.msra.mxu0 %v8343
        %8375 = vmatprep.subr.mxu0 0.0
        %8376 = vmatpush1.msra.mxu0 %v8342
        %8377 = vmatprep.subr.mxu0 0.0
        %8378 = vmatpush1.msra.mxu0 %v8341
        %8379 = vmatprep.subr.mxu0 0.0
        %8380 = vmatpush1.msra.mxu0 %v8340
        %8381 = vmatprep.subr.mxu0 0.0
        %8382 = vmatpush1.msra.mxu0 %v8339
        %8383 = vmatprep.subr.mxu0 0.0
        %8384 = vmatpush1.msra.mxu0 %v8338
        %8385 = vmatprep.subr.mxu0 0.0
        %8386 = vmatpush1.msra.mxu0 %v8337
        %8387 = vmatprep.subr.mxu0 0.0
        %8388 = vmatpush1.msra.mxu0 %v8336
        %8389 = vmatprep.subr.mxu0 0.0
        %8390 = vmatpush2.msra.mxu0 0.0
        %8391 = vmatprep.subr.mxu0 0.0
        %8392 = vmatpush2.msra.mxu0 0.0
        %8393 = vmatprep.subr.mxu0 0.0
        %8394 = vmatpush2.msra.mxu0 0.0
        %8395 = vmatprep.subr.mxu0 0.0
        %8396 = vmatpush2.msra.mxu0 0.0
        %8397 = vmatprep.subr.mxu0 0.0
        %8398 = vmatpush2.msra.mxu0 0.0
        %8399 = vmatprep.subr.mxu0 0.0
        %8400 = vmatpush2.msra.mxu0 0.0
        %8401 = vmatprep.subr.mxu0 0.0
        %8402 = vmatpush2.msra.mxu0 0.0
        %8403 = vmatprep.subr.mxu0 0.0
        %8404 = vmatpush2.msra.mxu0 0.0
        %8405 = vmatprep.subr.mxu0 0.0
        %8406 = vmatpush2.msra.mxu0 0.0
        %8407 = vmatprep.subr.mxu0 0.0
        %8408 = vmatpush2.msra.mxu0 0.0
        %8409 = vmatprep.subr.mxu0 0.0
        %8410 = vmatpush2.msra.mxu0 0.0
        %8411 = vmatprep.subr.mxu0 0.0
        %8412 = vmatpush2.msra.mxu0 0.0
        %8413 = vmatprep.subr.mxu0 0.0
        %8414 = vmatpush2.msra.mxu0 0.0
        %8415 = vmatprep.subr.mxu0 0.0
        %8416 = vmatpush2.msra.mxu0 0.0
        %8417 = vmatprep.subr.mxu0 0.0
        %8418 = vmatpush2.msra.mxu0 0.0
        %8419 = vmatprep.subr.mxu0 0.0
        %8420 = vmatpush2.msra.mxu0 0.0
        %8421 = vmatprep.mubr.f32.mxu0 0.0
        %8422 = vmatmul.mubr.f32.gmra.mxu0 %v8352
        %v8423 = vpop.f32.mrf.mxu0
        %v8424 = vadd.f32 0.0, %v8423
        %v8425 = vpop.f32.mrf.mxu0
        %8426 = vdwg.mxu0
        %v8427 = vadd.f32 %v8335, %v8424
        %s8428 = scalar_lea.vmem %s9, 112
        %v8429 = vld [vmem:[%s8428] sm:$0xff]
        %v8430 = vld [vmem:[%s8428 + $0x8] sm:$0xff]
        %v8431 = vld [vmem:[%s8428 + $0x10] sm:$0xff]
        %v8432 = vld [vmem:[%s8428 + $0x18] sm:$0xff]
        %v8433 = vld [vmem:[%s8428 + $0x20] sm:$0xff]
        %v8434 = vld [vmem:[%s8428 + $0x28] sm:$0xff]
        %v8435 = vld [vmem:[%s8428 + $0x30] sm:$0xff]
        %v8436 = vld [vmem:[%s8428 + $0x38] sm:$0xff]
        %v8437 = vld [vmem:[%s8428 + $0x40] sm:$0xff]
        %v8438 = vld [vmem:[%s8428 + $0x48] sm:$0xff]
        %v8439 = vld [vmem:[%s8428 + $0x50] sm:$0xff]
        %v8440 = vld [vmem:[%s8428 + $0x58] sm:$0xff]
        %v8441 = vld [vmem:[%s8428 + $0x60] sm:$0xff]
        %v8442 = vld [vmem:[%s8428 + $0x68] sm:$0xf]
        %v8443 = vrot.slane %v8332, 1
        %v8444 = vsel %vm8350, %v8443, 0
        %v8447 = vsel %vm4961, %v8442, 0
        %8449 = vmatprep.subr.mxu0 0.0
        %8450 = vmatpush1.msra.mxu0 0.0
        %8451 = vmatprep.subr.mxu0 0.0
        %8452 = vmatpush1.msra.mxu0 0.0
        %8453 = vmatprep.subr.mxu0 0.0
        %8454 = vmatpush1.msra.mxu0 %v8447
        %8455 = vmatprep.subr.mxu0 0.0
        %8456 = vmatpush1.msra.mxu0 %v8441
        %8457 = vmatprep.subr.mxu0 0.0
        %8458 = vmatpush1.msra.mxu0 %v8440
        %8459 = vmatprep.subr.mxu0 0.0
        %8460 = vmatpush1.msra.mxu0 %v8439
        %8461 = vmatprep.subr.mxu0 0.0
        %8462 = vmatpush1.msra.mxu0 %v8438
        %8463 = vmatprep.subr.mxu0 0.0
        %8464 = vmatpush1.msra.mxu0 %v8437
        %8465 = vmatprep.subr.mxu0 0.0
        %8466 = vmatpush1.msra.mxu0 %v8436
        %8467 = vmatprep.subr.mxu0 0.0
        %8468 = vmatpush1.msra.mxu0 %v8435
        %8469 = vmatprep.subr.mxu0 0.0
        %8470 = vmatpush1.msra.mxu0 %v8434
        %8471 = vmatprep.subr.mxu0 0.0
        %8472 = vmatpush1.msra.mxu0 %v8433
        %8473 = vmatprep.subr.mxu0 0.0
        %8474 = vmatpush1.msra.mxu0 %v8432
        %8475 = vmatprep.subr.mxu0 0.0
        %8476 = vmatpush1.msra.mxu0 %v8431
        %8477 = vmatprep.subr.mxu0 0.0
        %8478 = vmatpush1.msra.mxu0 %v8430
        %8479 = vmatprep.subr.mxu0 0.0
        %8480 = vmatpush1.msra.mxu0 %v8429
        %8481 = vmatprep.subr.mxu0 0.0
        %8482 = vmatpush2.msra.mxu0 0.0
        %8483 = vmatprep.subr.mxu0 0.0
        %8484 = vmatpush2.msra.mxu0 0.0
        %8485 = vmatprep.subr.mxu0 0.0
        %8486 = vmatpush2.msra.mxu0 0.0
        %8487 = vmatprep.subr.mxu0 0.0
        %8488 = vmatpush2.msra.mxu0 0.0
        %8489 = vmatprep.subr.mxu0 0.0
        %8490 = vmatpush2.msra.mxu0 0.0
        %8491 = vmatprep.subr.mxu0 0.0
        %8492 = vmatpush2.msra.mxu0 0.0
        %8493 = vmatprep.subr.mxu0 0.0
        %8494 = vmatpush2.msra.mxu0 0.0
        %8495 = vmatprep.subr.mxu0 0.0
        %8496 = vmatpush2.msra.mxu0 0.0
        %8497 = vmatprep.subr.mxu0 0.0
        %8498 = vmatpush2.msra.mxu0 0.0
        %8499 = vmatprep.subr.mxu0 0.0
        %8500 = vmatpush2.msra.mxu0 0.0
        %8501 = vmatprep.subr.mxu0 0.0
        %8502 = vmatpush2.msra.mxu0 0.0
        %8503 = vmatprep.subr.mxu0 0.0
        %8504 = vmatpush2.msra.mxu0 0.0
        %8505 = vmatprep.subr.mxu0 0.0
        %8506 = vmatpush2.msra.mxu0 0.0
        %8507 = vmatprep.subr.mxu0 0.0
        %8508 = vmatpush2.msra.mxu0 0.0
        %8509 = vmatprep.subr.mxu0 0.0
        %8510 = vmatpush2.msra.mxu0 0.0
        %8511 = vmatprep.subr.mxu0 0.0
        %8512 = vmatpush2.msra.mxu0 0.0
        %8513 = vmatprep.mubr.f32.mxu0 0.0
        %8514 = vmatmul.mubr.f32.gmra.mxu0 %v8444
        %v8515 = vpop.f32.mrf.mxu0
        %v8516 = vadd.f32 0.0, %v8515
        %v8517 = vpop.f32.mrf.mxu0
        %8518 = vdwg.mxu0
        %v8519 = vadd.f32 %v8427, %v8516
        %s8520 = scalar_lea.vmem %s9, 224
        %v8521 = vld [vmem:[%s8520] sm:$0xff]
        %v8522 = vld [vmem:[%s8520 + $0x8] sm:$0xff]
        %v8523 = vld [vmem:[%s8520 + $0x10] sm:$0xff]
        %v8524 = vld [vmem:[%s8520 + $0x18] sm:$0xff]
        %v8525 = vld [vmem:[%s8520 + $0x20] sm:$0xff]
        %v8526 = vld [vmem:[%s8520 + $0x28] sm:$0xff]
        %v8527 = vld [vmem:[%s8520 + $0x30] sm:$0xff]
        %v8528 = vld [vmem:[%s8520 + $0x38] sm:$0xff]
        %v8529 = vld [vmem:[%s8520 + $0x40] sm:$0xff]
        %v8530 = vld [vmem:[%s8520 + $0x48] sm:$0xff]
        %v8531 = vld [vmem:[%s8520 + $0x50] sm:$0xff]
        %v8532 = vld [vmem:[%s8520 + $0x58] sm:$0xff]
        %v8533 = vld [vmem:[%s8520 + $0x60] sm:$0xff]
        %v8534 = vld [vmem:[%s8520 + $0x68] sm:$0xf]
        %v8535 = vrot.slane %v8332, 2
        %v8536 = vsel %vm8350, %v8535, 0
        %v8539 = vsel %vm4961, %v8534, 0
        %8541 = vmatprep.subr.mxu0 0.0
        %8542 = vmatpush1.msra.mxu0 0.0
        %8543 = vmatprep.subr.mxu0 0.0
        %8544 = vmatpush1.msra.mxu0 0.0
        %8545 = vmatprep.subr.mxu0 0.0
        %8546 = vmatpush1.msra.mxu0 %v8539
        %8547 = vmatprep.subr.mxu0 0.0
        %8548 = vmatpush1.msra.mxu0 %v8533
        %8549 = vmatprep.subr.mxu0 0.0
        %8550 = vmatpush1.msra.mxu0 %v8532
        %8551 = vmatprep.subr.mxu0 0.0
        %8552 = vmatpush1.msra.mxu0 %v8531
        %8553 = vmatprep.subr.mxu0 0.0
        %8554 = vmatpush1.msra.mxu0 %v8530
        %8555 = vmatprep.subr.mxu0 0.0
        %8556 = vmatpush1.msra.mxu0 %v8529
        %8557 = vmatprep.subr.mxu0 0.0
        %8558 = vmatpush1.msra.mxu0 %v8528
        %8559 = vmatprep.subr.mxu0 0.0
        %8560 = vmatpush1.msra.mxu0 %v8527
        %8561 = vmatprep.subr.mxu0 0.0
        %8562 = vmatpush1.msra.mxu0 %v8526
        %8563 = vmatprep.subr.mxu0 0.0
        %8564 = vmatpush1.msra.mxu0 %v8525
        %8565 = vmatprep.subr.mxu0 0.0
        %8566 = vmatpush1.msra.mxu0 %v8524
        %8567 = vmatprep.subr.mxu0 0.0
        %8568 = vmatpush1.msra.mxu0 %v8523
        %8569 = vmatprep.subr.mxu0 0.0
        %8570 = vmatpush1.msra.mxu0 %v8522
        %8571 = vmatprep.subr.mxu0 0.0
        %8572 = vmatpush1.msra.mxu0 %v8521
        %8573 = vmatprep.subr.mxu0 0.0
        %8574 = vmatpush2.msra.mxu0 0.0
        %8575 = vmatprep.subr.mxu0 0.0
        %8576 = vmatpush2.msra.mxu0 0.0
        %8577 = vmatprep.subr.mxu0 0.0
        %8578 = vmatpush2.msra.mxu0 0.0
        %8579 = vmatprep.subr.mxu0 0.0
        %8580 = vmatpush2.msra.mxu0 0.0
        %8581 = vmatprep.subr.mxu0 0.0
        %8582 = vmatpush2.msra.mxu0 0.0
        %8583 = vmatprep.subr.mxu0 0.0
        %8584 = vmatpush2.msra.mxu0 0.0
        %8585 = vmatprep.subr.mxu0 0.0
        %8586 = vmatpush2.msra.mxu0 0.0
        %8587 = vmatprep.subr.mxu0 0.0
        %8588 = vmatpush2.msra.mxu0 0.0
        %8589 = vmatprep.subr.mxu0 0.0
        %8590 = vmatpush2.msra.mxu0 0.0
        %8591 = vmatprep.subr.mxu0 0.0
        %8592 = vmatpush2.msra.mxu0 0.0
        %8593 = vmatprep.subr.mxu0 0.0
        %8594 = vmatpush2.msra.mxu0 0.0
        %8595 = vmatprep.subr.mxu0 0.0
        %8596 = vmatpush2.msra.mxu0 0.0
        %8597 = vmatprep.subr.mxu0 0.0
        %8598 = vmatpush2.msra.mxu0 0.0
        %8599 = vmatprep.subr.mxu0 0.0
        %8600 = vmatpush2.msra.mxu0 0.0
        %8601 = vmatprep.subr.mxu0 0.0
        %8602 = vmatpush2.msra.mxu0 0.0
        %8603 = vmatprep.subr.mxu0 0.0
        %8604 = vmatpush2.msra.mxu0 0.0
        %8605 = vmatprep.mubr.f32.mxu0 0.0
        %8606 = vmatmul.mubr.f32.gmra.mxu0 %v8536
        %v8607 = vpop.f32.mrf.mxu0
        %v8608 = vadd.f32 0.0, %v8607
        %v8609 = vpop.f32.mrf.mxu0
        %8610 = vdwg.mxu0
        %v8611 = vadd.f32 %v8519, %v8608
        %8612 = vst [vmem:[%s378] sm:$0x1] %v8611
        %s8613 = sand.u32 %s269, 1
        %s8614 = scalar_lea.sflag [#allocation5], %s8613
        %s8615 = sand.u32 %s269, 1
        %s8616 = scalar_lea.vmem [#allocation4], %s8615
        // Predicated region
        $region65: #{neuralnet_forward.1} parent=63 // pred_check
          %p8617 = pneg %p279
        $region66: #{neuralnet_forward.1} parent=63 // pred_check_branch
          %8619 = sbr.rel (%p8617) target = $region68
        $region67: #{neuralnet_forward.1} parent=63 // pred_region
          %s8621 = ssub.s32 16, 16
          %8622 = vsyncadd %s8614, %s8621
          %s8623 = smul.addr %s25, 16
          %s8624 = scalar_lea.hbm %s11, %s8623
          %s8626 = sshll.u32 %s8616, 4
          %s8627 = int_to_ptr.vmem [resolvable:$true] %s8626
          %8629 = dma.vmem_to_hbm [thread:$0]  %s8627, 16, %s8624, %s8614
        $region68: #{neuralnet_forward.1} parent=63 // pred_fallthru
          _
      $region64: #{neuralnet_forward.1} parent=5 // pred_fallthru
        _
      %p8630 = scmp.le.s32.totalorder 2, %s20
      // Predicated region
      $region69: #{neuralnet_forward.1} parent=5 // pred_check
        %p8631 = pneg %p8630
      $region70: #{neuralnet_forward.1} parent=5 // pred_check_branch
        %8633 = sbr.rel (%p8631) target = $region72
      $region71: #{neuralnet_forward.1} parent=5 // pred_region
        %s8634 = ssub.s32 %s20, 2
        // Predicated region
        $region73: #{neuralnet_forward.1} parent=71 // pred_check
          %p8635 = pneg %p285
        $region74: #{neuralnet_forward.1} parent=71 // pred_check_branch
          %8637 = sbr.rel (%p8635) target = $region76
        $region75: #{neuralnet_forward.1} parent=71 // pred_region
          %s8638 = sand.u32 %s270, 1
          %s8639 = scalar_lea.sflag [#allocation5], %s8638
          %s8640 = sand.u32 %s270, 1
          %s8641 = scalar_lea.vmem [#allocation4], %s8640
          %8642 = dma.done %s8639, 16
        $region76: #{neuralnet_forward.1} parent=71 // pred_fallthru
          _
      $region72: #{neuralnet_forward.1} parent=5 // pred_fallthru
        _
    $region6: #{neuralnet_forward.1} parent=1 // loop_footer
      %s24 = sadd.s32 1, %s20
    $region7: #{neuralnet_forward.1} parent=1 // loop_footer_branch
      %19 = sbr.rel target = $region3
    $region8: #{neuralnet_forward.1} parent=1 // loop_exit
      _
    %8643 = vsyncpa [#allocation5], 1
    %s8644 = scalar_lea.sflag [#allocation5], 1
    %8645 = vsyncpa %s8644, 1

</llo_original>
